<compile_context>
chip_gen: v7x
topology: tpu7x:2x2x1
jax: 0.10.0
libtpu: 0.0.40
codegen_flags: <defaults>
</compile_context>

<pallas_src>
import jax
import jax.numpy as jnp
from jax import lax
from jax.experimental import pallas as pl
from jax.experimental.pallas import tpu as pltpu

F32 = jnp.float32
HIDDEN = 128
NEG_SLOPE = 0.01          # torch.nn.LeakyReLU default
BN_EPS = 1e-5
STD_EPS = 1e-5
AVG_DEG_LOG = 1.0
AVG_DEG_LIN = 1.0
BIG = 1e30
EDGE_CHUNK = 32           # edges streamed per step for the min/max aggregators


def _leaky(v):
    return jnp.where(v > 0, v, NEG_SLOPE * v)


# ---------------------------------------------------------------------------
# Fused kernel: 6 x (PNAConv + BatchNorm + LeakyReLU) + global pool + MLP head
# grid = (num_layers,), "arbitrary" (sequential) axis; h carried in VMEM scratch.
# ---------------------------------------------------------------------------
def fused_pna_kernel(x0_ref, src_ref, dst_ref, ea_ref, nstat_ref, bohm_ref,
                     we_ref, wpre_ref, wpx_ref, wpa_ref, wlin_ref, vecs_ref,
                     w1_ref, b1_ref, w2_ref, b2_ref, w3_ref, b3_ref,
                     out_ref, h_ref):
    l = pl.program_id(0)
    n_layers = pl.num_programs(0)

    @pl.when(l == 0)
    def _init():
        h_ref[...] = x0_ref[...]                    # padded input features
        out_ref[...] = jnp.zeros_like(out_ref)

    x = h_ref[...]                                  # [N, F]
    src = src_ref[...]                              # [E, N] one-hot (source)
    dst = dst_ref[...]                              # [E, N] one-hot (target)
    nstat = nstat_ref[...]                          # [N, 8] hoisted degree stats

    n_nodes, fdim = x.shape
    n_edges = src.shape[0]

    # ---- per-edge message: Linear_pre([x_i, x_j, Linear_edge(e)]) with no [E,3F] concat
    x_j = jnp.dot(src, x, preferred_element_type=F32)          # [E, F] source feats
    x_i = jnp.dot(dst, x, preferred_element_type=F32)          # [E, F] target feats
    be = vecs_ref[0, 0:1, :]
    e_enc = jnp.dot(ea_ref[...], we_ref[0], preferred_element_type=F32) + be
    bpre = vecs_ref[0, 1:2, :]
    h = (jnp.dot(x_i, wpre_ref[0, 0:fdim, :], preferred_element_type=F32)
         + jnp.dot(x_j, wpre_ref[0, fdim:2 * fdim, :], preferred_element_type=F32)
         + jnp.dot(e_enc, wpre_ref[0, 2 * fdim:3 * fdim, :], preferred_element_type=F32)
         + bpre)                                               # [E, F]

    # ---- mean / std aggregators via MXU scatter-sums (degree stats precomputed)
    inv_deg = nstat[:, 0:1]                          # [N, 1] 1/max(deg,1)
    has_edge = nstat[:, 5:6]                         # [N, 1] deg > 0
    sum_h = lax.dot_general(dst, h, (((0,), (0,)), ((), ())),
                            preferred_element_type=F32)         # [N, F]
    sum_h2 = lax.dot_general(dst, h * h, (((0,), (0,)), ((), ())),
                             preferred_element_type=F32)        # [N, F]
    mean = sum_h * inv_deg
    var = sum_h2 * inv_deg - mean * mean
    std = jnp.sqrt(jnp.maximum(var, 0.0) + STD_EPS)

    # ---- min / max aggregators: stream edges in chunks with running accumulators
    hmax = jnp.full((n_nodes, fdim), -BIG, F32)
    hmin = jnp.full((n_nodes, fdim), BIG, F32)
    C = EDGE_CHUNK
    n_full = n_edges // C
    for c in range(n_full):
        hc = h[c * C:(c + 1) * C, :]                 # [C, F]
        dc = dst[c * C:(c + 1) * C, :]               # [C, N]
        pen = (1.0 - dc) * BIG                       # 0 where edge->node, BIG otherwise
        hb = hc[:, None, :]                          # [C, 1, F]
        pb = pen[:, :, None]                         # [C, N, 1]
        hmax = jnp.maximum(hmax, jnp.max(hb - pb, axis=0))
        hmin = jnp.minimum(hmin, jnp.min(hb + pb, axis=0))
    if n_edges % C:                                  # remainder chunk (static)
        hc = h[n_full * C:, :]
        dc = dst[n_full * C:, :]
        pen = (1.0 - dc) * BIG
        hmax = jnp.maximum(hmax, jnp.max(hc[:, None, :] - pen[:, :, None], axis=0))
        hmin = jnp.minimum(hmin, jnp.min(hc[:, None, :] + pen[:, :, None], axis=0))
    hmax = jnp.where(has_edge > 0.5, hmax, 0.0)      # isolated-node guard
    hmin = jnp.where(has_edge > 0.5, hmin, 0.0)

    agg = jnp.concatenate([mean, hmin, hmax, std], axis=-1)     # [N, 4F]

    # ---- post NN: scalers applied AFTER the matmul (row-scaling commutes):
    #      p = x @ Wx + b + sum_s  scaler_s * (agg @ Wstack)[:, sF:(s+1)F]
    bpost = vecs_ref[0, 2:3, :]
    aw = jnp.dot(agg, wpa_ref[0], preferred_element_type=F32)    # [N, 4F] one big matmul
    p = jnp.dot(x, wpx_ref[0], preferred_element_type=F32) + bpost
    for s in range(4):                               # identity, amplification, attenuation, linear
        p = p + nstat[:, 1 + s:2 + s] * aw[:, s * fdim:(s + 1) * fdim]

    blin = vecs_ref[0, 3:4, :]
    o = jnp.dot(p, wlin_ref[0], preferred_element_type=F32) + blin        # [N, F]

    # ---- BatchNorm (batch statistics, two-pass variance) + LeakyReLU
    gamma = vecs_ref[0, 4:5, :]
    beta = vecs_ref[0, 5:6, :]
    mu = jnp.mean(o, axis=0, keepdims=True)
    d = o - mu
    var_bn = jnp.mean(d * d, axis=0, keepdims=True)
    y = d * lax.rsqrt(var_bn + BN_EPS) * gamma + beta
    y = _leaky(y)
    h_ref[...] = y                                   # carry to next layer

    # ---- readout: global mean/max pool + lin1/lin2/lin3, only on the last grid step
    @pl.when(l == n_layers - 1)
    def _readout():
        bohm = bohm_ref[...]                         # [N, B] one-hot / graph size
        mean_p = lax.dot_general(bohm, y, (((0,), (0,)), ((), ())),
                                 preferred_element_type=F32)              # [B, F]
        mask = bohm[:, :, None] > 0.0                # [N, B, 1]
        max_p = jnp.max(jnp.where(mask, y[:, None, :], -BIG), axis=0)     # [B, F]
        # lin1 over concat([mean, max]) computed as two row-slice matmuls (no concat)
        z = _leaky(jnp.dot(mean_p, w1_ref[0:fdim, :], preferred_element_type=F32)
                   + jnp.dot(max_p, w1_ref[fdim:2 * fdim, :], preferred_element_type=F32)
                   + b1_ref[...])
        z = _leaky(jnp.dot(z, w2_ref[...], preferred_element_type=F32) + b2_ref[...])
        out_ref[...] = jnp.dot(z, w3_ref[...], preferred_element_type=F32) + b3_ref[...]


# ---------------------------------------------------------------------------
# Wrapper: graph preprocessing (hoisted, constant across layers) + one pallas_call
# ---------------------------------------------------------------------------
def modified_pna_net(x, edge_src, edge_dst, edge_attr, batch, params, num_graphs):
    n = x.shape[0]
    f = HIDDEN
    b = num_graphs

    src_oh = jax.nn.one_hot(edge_src, n, dtype=F32)            # [E, N]
    dst_oh = jax.nn.one_hot(edge_dst, n, dtype=F32)            # [E, N]
    batch_oh = jax.nn.one_hot(batch, b, dtype=F32)             # [N, B]

    # pad node features / edge attrs to the uniform 128-lane layout
    x0 = jnp.pad(x, ((0, 0), (0, f - x.shape[1])))             # [N, 128]
    ea = jnp.pad(edge_attr, ((0, 0), (0, f - edge_attr.shape[1])))  # [E, 128]

    # degree-dependent quantities: constant across all 6 layers -> computed once here
    deg = jnp.sum(dst_oh, axis=0)                               # [N]
    deg_c = jnp.maximum(deg, 1.0)
    log_deg = jnp.log(deg_c + 1.0)
    nstat = jnp.stack([
        1.0 / deg_c,                      # 0: inverse degree (for mean/var)
        jnp.ones_like(deg),               # 1: identity scaler
        log_deg / AVG_DEG_LOG,            # 2: amplification scaler
        AVG_DEG_LOG / log_deg,            # 3: attenuation scaler
        deg_c / AVG_DEG_LIN,              # 4: linear scaler
        (deg > 0).astype(F32),            # 5: has incoming edge
        jnp.zeros_like(deg),
        jnp.zeros_like(deg),
    ], axis=1)                                                  # [N, 8]

    counts = jnp.maximum(jnp.sum(batch_oh, axis=0, keepdims=True), 1.0)   # [1, B]
    bohm = batch_oh / counts                                    # [N, B] mean-pool weights

    cs = params["conv_stack"]
    head = params["head"]
    n_layers = cs["wpostx"].shape[0]

    def const_spec(arr):
        nd = arr.ndim
        return pl.BlockSpec(arr.shape, lambda l, _nd=nd: (0,) * _nd)

    def layer_spec(arr):
        return pl.BlockSpec((1,) + arr.shape[1:], lambda l: (l, 0, 0))

    args = (x0, src_oh, dst_oh, ea, nstat, bohm,
            cs["we"], cs["wpre"], cs["wpostx"], cs["wposta"], cs["wlin"], cs["vecs"],
            head["w1"], head["b1"], head["w2"], head["b2"], head["w3"], head["b3"])

    in_specs = [const_spec(x0), const_spec(src_oh), const_spec(dst_oh), const_spec(ea),
                const_spec(nstat), const_spec(bohm),
                layer_spec(cs["we"]), layer_spec(cs["wpre"]), layer_spec(cs["wpostx"]),
                layer_spec(cs["wposta"]), layer_spec(cs["wlin"]), layer_spec(cs["vecs"]),
                const_spec(head["w1"]), const_spec(head["b1"]),
                const_spec(head["w2"]), const_spec(head["b2"]),
                const_spec(head["w3"]), const_spec(head["b3"])]

    return pl.pallas_call(
        fused_pna_kernel,
        out_shape=jax.ShapeDtypeStruct((b, 1), F32),
        grid_spec=pltpu.PrefetchScalarGridSpec(
            num_scalar_prefetch=0,
            grid=(n_layers,),
            in_specs=in_specs,
            out_specs=pl.BlockSpec((b, 1), lambda l: (0, 0)),
            scratch_shapes=[pltpu.VMEM((n, f), F32)],           # h carried across layers
        ),
        compiler_params=pltpu.CompilerParams(
            dimension_semantics=("arbitrary",),
            vmem_limit_bytes=32 * 1024 * 1024,                  # headroom above default
        ),
    )(*args)


# ---------------------------------------------------------------------------
# deterministic parameter init (natural shapes) + packing into padded layer stacks
# ---------------------------------------------------------------------------
def _lin_init(key, fan_in, fan_out):
    return jax.random.normal(key, (fan_in, fan_out), F32) / jnp.sqrt(float(fan_in))


def init_conv_params(key, f_in, f_out=HIDDEN):
    ks = jax.random.split(key, 10)
    return dict(
        we=_lin_init(ks[0], 3, f_in),
        be=0.01 * jax.random.normal(ks[1], (1, f_in), F32),
        wpi=_lin_init(ks[2], f_in, f_in),
        wpj=_lin_init(ks[3], f_in, f_in),
        wpe=_lin_init(ks[4], f_in, f_in),
        bpre=0.01 * jax.random.normal(ks[5], (1, f_in), F32),
        wpost=_lin_init(ks[6], 17 * f_in, f_out),
        bpost=0.01 * jax.random.normal(ks[7], (1, f_out), F32),
        wlin=_lin_init(ks[8], f_out, f_out),
        blin=jnp.zeros((1, f_out), F32),
        gamma=1.0 + 0.05 * jax.random.normal(ks[9], (1, f_out), F32),
        beta=jnp.zeros((1, f_out), F32),
    )


def pack_conv_stack(convs, f_pad=HIDDEN):
    """Zero-pad every layer to the uniform (128-lane) layout and stack on a leading axis.

    wpost is repacked into:
      wpostx  [L, F, F]   : rows acting on the root features x
      wposta  [L, 4F, 4F] : (aggregator-row, scaler-column) stacked blocks so the kernel
                            can do ONE matmul and scale per-scaler F-wide output slices.
    """
    n_l = len(convs)
    we = jnp.zeros((n_l, f_pad, f_pad), F32)
    wpre = jnp.zeros((n_l, 3 * f_pad, f_pad), F32)
    wpostx = jnp.zeros((n_l, f_pad, f_pad), F32)
    wposta = jnp.zeros((n_l, 4 * f_pad, 4 * f_pad), F32)
    wlin = jnp.zeros((n_l, f_pad, f_pad), F32)
    vecs = jnp.zeros((n_l, 8, f_pad), F32)   # rows: be, bpre, bpost, blin, gamma, beta, 0, 0
    for l, p in enumerate(convs):
        fin = p["wpi"].shape[0]
        we = we.at[l, 0:3, 0:fin].set(p["we"])
        wpre = wpre.at[l, 0:fin, 0:fin].set(p["wpi"])
        wpre = wpre.at[l, f_pad:f_pad + fin, 0:fin].set(p["wpj"])
        wpre = wpre.at[l, 2 * f_pad:2 * f_pad + fin, 0:fin].set(p["wpe"])
        wpostx = wpostx.at[l, 0:fin, :].set(p["wpost"][0:fin])
        # natural wpost rows: [x (fin rows)], then for scaler s (outer), aggregator a
        # (inner, order mean/min/max/std): rows fin + (4*s + a)*fin : fin + (4*s+a+1)*fin
        for s in range(4):
            for a in range(4):
                rows = p["wpost"][fin + (4 * s + a) * fin: fin + (4 * s + a + 1) * fin]
                wposta = wposta.at[l,
                                   a * f_pad: a * f_pad + fin,
                                   s * f_pad:(s + 1) * f_pad].set(rows)
        wlin = wlin.at[l].set(p["wlin"])
        vecs = vecs.at[l, 0, 0:fin].set(p["be"][0])
        vecs = vecs.at[l, 1, 0:fin].set(p["bpre"][0])
        vecs = vecs.at[l, 2, :].set(p["bpost"][0])
        vecs = vecs.at[l, 3, :].set(p["blin"][0])
        vecs = vecs.at[l, 4, :].set(p["gamma"][0])
        vecs = vecs.at[l, 5, :].set(p["beta"][0])
    return dict(we=we, wpre=wpre, wpostx=wpostx, wposta=wposta, wlin=wlin, vecs=vecs)


def init_params(key):
    ks = jax.random.split(key, 10)
    convs = ([init_conv_params(ks[0], 4)]
             + [init_conv_params(ks[i], HIDDEN) for i in range(1, 6)])
    head = dict(
        w1=_lin_init(ks[6], 2 * HIDDEN, HIDDEN), b1=jnp.zeros((1, HIDDEN), F32),
        w2=_lin_init(ks[7], HIDDEN, 64), b2=jnp.zeros((1, 64), F32),
        w3=_lin_init(ks[8], 64, 1), b3=jnp.zeros((1, 1), F32),
    )
    return dict(conv_stack=pack_conv_stack(convs), head=head)


# ---------------------------------------------------------------------------
if __name__ == "__main__":
    key = jax.random.PRNGKey(0)
    k_x, k_e, k_p = jax.random.split(key, 3)

    NUM_GRAPHS = 2
    NODES_PER_GRAPH = 16
    N = NUM_GRAPHS * NODES_PER_GRAPH          # 32 nodes
    EDGES_PER_GRAPH = 64
    E = NUM_GRAPHS * EDGES_PER_GRAPH          # 128 edges

    # deterministic synthetic graph; ring edges guarantee every node has an incoming edge
    src_list, dst_list = [], []
    for g in range(NUM_GRAPHS):
        base = g * NODES_PER_GRAPH
        for i in range(NODES_PER_GRAPH):
            src_list.append(base + (i + 1) % NODES_PER_GRAPH)
            dst_list.append(base + i)
        for i in range(EDGES_PER_GRAPH - NODES_PER_GRAPH):
            src_list.append(base + (i * 5) % NODES_PER_GRAPH)
            dst_list.append(base + (i * 7 + 3) % NODES_PER_GRAPH)

    edge_src = jnp.array(src_list, dtype=jnp.int32)
    edge_dst = jnp.array(dst_list, dtype=jnp.int32)
    batch = jnp.repeat(jnp.arange(NUM_GRAPHS, dtype=jnp.int32), NODES_PER_GRAPH)

    x = jax.random.normal(k_x, (N, 4), F32)           # 4 node features (add_rna_id=False)
    edge_attr = jax.random.normal(k_e, (E, 3), F32)   # edge_dim = 3

    params = init_params(k_p)

    fwd = jax.jit(modified_pna_net, static_argnums=(6,))
    out = fwd(x, edge_src, edge_dst, edge_attr, batch, params, NUM_GRAPHS)
    out = jax.block_until_ready(out)
    assert out.shape == (NUM_GRAPHS, 1) and bool(jnp.all(jnp.isfinite(out)))
    print("KERNEL_OK")
</pallas_src>

<mosaic_0001>
module attributes {stable_mosaic.version = 11 : i64} {
  func.func @fused_pna_kernel(%arg0: i32, %arg1: memref<32x128xf32, #tpu.memory_space<vmem>>, %arg2: memref<128x32xf32, #tpu.memory_space<vmem>>, %arg3: memref<128x32xf32, #tpu.memory_space<vmem>>, %arg4: memref<128x128xf32, #tpu.memory_space<vmem>>, %arg5: memref<32x8xf32, #tpu.memory_space<vmem>>, %arg6: memref<32x2xf32, #tpu.memory_space<vmem>>, %arg7: memref<1x128x128xf32, #tpu.memory_space<vmem>>, %arg8: memref<1x384x128xf32, #tpu.memory_space<vmem>>, %arg9: memref<1x128x128xf32, #tpu.memory_space<vmem>>, %arg10: memref<1x512x512xf32, #tpu.memory_space<vmem>>, %arg11: memref<1x128x128xf32, #tpu.memory_space<vmem>>, %arg12: memref<1x8x128xf32, #tpu.memory_space<vmem>>, %arg13: memref<256x128xf32, #tpu.memory_space<vmem>>, %arg14: memref<1x128xf32, #tpu.memory_space<vmem>>, %arg15: memref<128x64xf32, #tpu.memory_space<vmem>>, %arg16: memref<1x64xf32, #tpu.memory_space<vmem>>, %arg17: memref<64x1xf32, #tpu.memory_space<vmem>>, %arg18: memref<1x1xf32, #tpu.memory_space<vmem>>, %arg19: memref<2x1xf32, #tpu.memory_space<vmem>>, %arg20: memref<32x128xf32, #tpu.memory_space<vmem>>) attributes {dimension_semantics = [#tpu.dimension_semantics<arbitrary>], iteration_bounds = array<i64: 6>, scalar_prefetch = 0 : i64, scratch_operands = 1 : i64, tpu.core_type = #tpu.core_type<tc>, window_params = [{pipeline_mode = #tpu.pipeline_mode<synchronous>, transform_indices = @transform_0, window_bounds = array<i64: 32, 128>}, {pipeline_mode = #tpu.pipeline_mode<synchronous>, transform_indices = @transform_1, window_bounds = array<i64: 128, 32>}, {pipeline_mode = #tpu.pipeline_mode<synchronous>, transform_indices = @transform_2, window_bounds = array<i64: 128, 32>}, {pipeline_mode = #tpu.pipeline_mode<synchronous>, transform_indices = @transform_3, window_bounds = array<i64: 128, 128>}, {pipeline_mode = #tpu.pipeline_mode<synchronous>, transform_indices = @transform_4, window_bounds = array<i64: 32, 8>}, {pipeline_mode = #tpu.pipeline_mode<synchronous>, transform_indices = @transform_5, window_bounds = array<i64: 32, 2>}, {transform_indices = @transform_6, window_bounds = array<i64: 1, 128, 128>}, {transform_indices = @transform_7, window_bounds = array<i64: 1, 384, 128>}, {transform_indices = @transform_8, window_bounds = array<i64: 1, 128, 128>}, {transform_indices = @transform_9, window_bounds = array<i64: 1, 512, 512>}, {transform_indices = @transform_10, window_bounds = array<i64: 1, 128, 128>}, {transform_indices = @transform_11, window_bounds = array<i64: 1, 8, 128>}, {pipeline_mode = #tpu.pipeline_mode<synchronous>, transform_indices = @transform_12, window_bounds = array<i64: 256, 128>}, {pipeline_mode = #tpu.pipeline_mode<synchronous>, transform_indices = @transform_13, window_bounds = array<i64: 1, 128>}, {pipeline_mode = #tpu.pipeline_mode<synchronous>, transform_indices = @transform_14, window_bounds = array<i64: 128, 64>}, {pipeline_mode = #tpu.pipeline_mode<synchronous>, transform_indices = @transform_15, window_bounds = array<i64: 1, 64>}, {pipeline_mode = #tpu.pipeline_mode<synchronous>, transform_indices = @transform_16, window_bounds = array<i64: 64, 1>}, {pipeline_mode = #tpu.pipeline_mode<synchronous>, transform_indices = @transform_17, window_bounds = array<i64: 1, 1>}, {pipeline_mode = #tpu.pipeline_mode<synchronous>, transform_indices = @transform_18, window_bounds = array<i64: 2, 1>}]} {
    %c0_i32 = arith.constant 0 : i32
    %0 = arith.cmpi eq, %arg0, %c0_i32 : i32
    %1 = arith.extui %0 : i1 to i32
    %c0_i32_0 = arith.constant 0 : i32
    %2 = arith.cmpi ne, %1, %c0_i32_0 : i32
    scf.if %2 {
      %c0_86 = arith.constant 0 : index
      %c0_87 = arith.constant 0 : index
      %205 = vector.load %arg1[%c0_86, %c0_87] : memref<32x128xf32, #tpu.memory_space<vmem>>, vector<32x128xf32>
      %c0_88 = arith.constant 0 : index
      %c0_89 = arith.constant 0 : index
      %206 = vector.load %arg20[%c0_88, %c0_89] : memref<32x128xf32, #tpu.memory_space<vmem>>, vector<32x128xf32>
      tpu.vector_store %arg20[%c0_88, %c0_89], %205 {strides = array<i32>} : memref<32x128xf32, #tpu.memory_space<vmem>>, vector<32x128xf32>,
      %cst_90 = arith.constant 0.000000e+00 : f32
      %207 = vector.broadcast %cst_90 : f32 to vector<2x1xf32>
      %c0_91 = arith.constant 0 : index
      %c0_92 = arith.constant 0 : index
      %208 = vector.load %arg19[%c0_91, %c0_92] : memref<2x1xf32, #tpu.memory_space<vmem>>, vector<2x1xf32>
      tpu.vector_store %arg19[%c0_91, %c0_92], %207 {strides = array<i32>} : memref<2x1xf32, #tpu.memory_space<vmem>>, vector<2x1xf32>,
    } else {
    }
    %c0 = arith.constant 0 : index
    %c0_1 = arith.constant 0 : index
    %3 = vector.load %arg20[%c0, %c0_1] : memref<32x128xf32, #tpu.memory_space<vmem>>, vector<32x128xf32>
    %c0_2 = arith.constant 0 : index
    %c0_3 = arith.constant 0 : index
    %4 = vector.load %arg2[%c0_2, %c0_3] : memref<128x32xf32, #tpu.memory_space<vmem>>, vector<128x32xf32>
    %c0_4 = arith.constant 0 : index
    %c0_5 = arith.constant 0 : index
    %5 = vector.load %arg3[%c0_4, %c0_5] : memref<128x32xf32, #tpu.memory_space<vmem>>, vector<128x32xf32>
    %c0_6 = arith.constant 0 : index
    %c0_7 = arith.constant 0 : index
    %6 = vector.load %arg5[%c0_6, %c0_7] : memref<32x8xf32, #tpu.memory_space<vmem>>, vector<32x8xf32>
    %cst = arith.constant dense<0.000000e+00> : vector<128x128xf32>
    %7 = tpu.matmul %4, %3, %cst {dimension_numbers = #tpu.dot_dimension_numbers<[1], [0], [0], [1], [0, 0, 1, 1], [], []>} : vector<128x32xf32>, vector<32x128xf32>, vector<128x128xf32> -> vector<128x128xf32>
    %cst_8 = arith.constant dense<0.000000e+00> : vector<128x128xf32>
    %8 = tpu.matmul %5, %3, %cst_8 {dimension_numbers = #tpu.dot_dimension_numbers<[1], [0], [0], [1], [0, 0, 1, 1], [], []>} : vector<128x32xf32>, vector<32x128xf32>, vector<128x128xf32> -> vector<128x128xf32>
    %c0_9 = arith.constant 0 : index
    %c0_10 = arith.constant 0 : index
    %c0_11 = arith.constant 0 : index
    %9 = vector.load %arg12[%c0_9, %c0_10, %c0_11] : memref<1x8x128xf32, #tpu.memory_space<vmem>>, vector<1x1x128xf32>
    %10 = vector.shape_cast %9 : vector<1x1x128xf32> to vector<1x128xf32>
    %c0_12 = arith.constant 0 : index
    %c0_13 = arith.constant 0 : index
    %11 = vector.load %arg4[%c0_12, %c0_13] : memref<128x128xf32, #tpu.memory_space<vmem>>, vector<128x128xf32>
    %c0_14 = arith.constant 0 : index
    %c0_15 = arith.constant 0 : index
    %c0_16 = arith.constant 0 : index
    %12 = vector.load %arg7[%c0_14, %c0_15, %c0_16] : memref<1x128x128xf32, #tpu.memory_space<vmem>>, vector<1x128x128xf32>
    %13 = vector.shape_cast %12 : vector<1x128x128xf32> to vector<128x128xf32>
    %cst_17 = arith.constant dense<0.000000e+00> : vector<128x128xf32>
    %14 = tpu.matmul %11, %13, %cst_17 {dimension_numbers = #tpu.dot_dimension_numbers<[1], [0], [0], [1], [0, 0, 1, 1], [], []>} : vector<128x128xf32>, vector<128x128xf32>, vector<128x128xf32> -> vector<128x128xf32>
    %15 = vector.broadcast %10 : vector<1x128xf32> to vector<128x128xf32>
    %16 = arith.addf %14, %15 : vector<128x128xf32>
    %c0_18 = arith.constant 0 : index
    %c1 = arith.constant 1 : index
    %c0_19 = arith.constant 0 : index
    %17 = vector.load %arg12[%c0_18, %c1, %c0_19] : memref<1x8x128xf32, #tpu.memory_space<vmem>>, vector<1x1x128xf32>
    %18 = vector.shape_cast %17 : vector<1x1x128xf32> to vector<1x128xf32>
    %c0_20 = arith.constant 0 : index
    %c0_21 = arith.constant 0 : index
    %c0_22 = arith.constant 0 : index
    %19 = vector.load %arg8[%c0_20, %c0_21, %c0_22] : memref<1x384x128xf32, #tpu.memory_space<vmem>>, vector<1x128x128xf32>
    %20 = vector.shape_cast %19 : vector<1x128x128xf32> to vector<128x128xf32>
    %cst_23 = arith.constant dense<0.000000e+00> : vector<128x128xf32>
    %21 = tpu.matmul %8, %20, %cst_23 {dimension_numbers = #tpu.dot_dimension_numbers<[1], [0], [0], [1], [0, 0, 1, 1], [], []>} : vector<128x128xf32>, vector<128x128xf32>, vector<128x128xf32> -> vector<128x128xf32>
    %c0_24 = arith.constant 0 : index
    %c128 = arith.constant 128 : index
    %c0_25 = arith.constant 0 : index
    %22 = vector.load %arg8[%c0_24, %c128, %c0_25] : memref<1x384x128xf32, #tpu.memory_space<vmem>>, vector<1x128x128xf32>
    %23 = vector.shape_cast %22 : vector<1x128x128xf32> to vector<128x128xf32>
    %cst_26 = arith.constant dense<0.000000e+00> : vector<128x128xf32>
    %24 = tpu.matmul %7, %23, %cst_26 {dimension_numbers = #tpu.dot_dimension_numbers<[1], [0], [0], [1], [0, 0, 1, 1], [], []>} : vector<128x128xf32>, vector<128x128xf32>, vector<128x128xf32> -> vector<128x128xf32>
    %25 = arith.addf %21, %24 : vector<128x128xf32>
    %c0_27 = arith.constant 0 : index
    %c256 = arith.constant 256 : index
    %c0_28 = arith.constant 0 : index
    %26 = vector.load %arg8[%c0_27, %c256, %c0_28] : memref<1x384x128xf32, #tpu.memory_space<vmem>>, vector<1x128x128xf32>
    %27 = vector.shape_cast %26 : vector<1x128x128xf32> to vector<128x128xf32>
    %cst_29 = arith.constant dense<0.000000e+00> : vector<128x128xf32>
    %28 = tpu.matmul %16, %27, %cst_29 {dimension_numbers = #tpu.dot_dimension_numbers<[1], [0], [0], [1], [0, 0, 1, 1], [], []>} : vector<128x128xf32>, vector<128x128xf32>, vector<128x128xf32> -> vector<128x128xf32>
    %29 = arith.addf %25, %28 : vector<128x128xf32>
    %30 = vector.broadcast %18 : vector<1x128xf32> to vector<128x128xf32>
    %31 = arith.addf %29, %30 : vector<128x128xf32>
    %32 = vector.extract_strided_slice %6 {offsets = [0, 0], sizes = [32, 1], strides = [1, 1]} : vector<32x8xf32> to vector<32x1xf32>
    %33 = vector.extract_strided_slice %6 {offsets = [0, 5], sizes = [32, 1], strides = [1, 1]} : vector<32x8xf32> to vector<32x1xf32>
    %cst_30 = arith.constant dense<0.000000e+00> : vector<32x128xf32>
    %34 = tpu.matmul %5, %31, %cst_30 {dimension_numbers = #tpu.dot_dimension_numbers<[0], [0], [1], [1], [0, 1, 1, 1], [], []>} : vector<128x32xf32>, vector<128x128xf32>, vector<32x128xf32> -> vector<32x128xf32>
    %35 = arith.mulf %31, %31 : vector<128x128xf32>
    %cst_31 = arith.constant dense<0.000000e+00> : vector<32x128xf32>
    %36 = tpu.matmul %5, %35, %cst_31 {dimension_numbers = #tpu.dot_dimension_numbers<[0], [0], [1], [1], [0, 1, 1, 1], [], []>} : vector<128x32xf32>, vector<128x128xf32>, vector<32x128xf32> -> vector<32x128xf32>
    %37 = vector.broadcast %32 : vector<32x1xf32> to vector<32x128xf32>
    %38 = arith.mulf %34, %37 : vector<32x128xf32>
    %39 = vector.broadcast %32 : vector<32x1xf32> to vector<32x128xf32>
    %40 = arith.mulf %36, %39 : vector<32x128xf32>
    %41 = arith.mulf %38, %38 : vector<32x128xf32>
    %42 = arith.subf %40, %41 : vector<32x128xf32>
    %cst_32 = arith.constant 0.000000e+00 : f32
    %43 = vector.broadcast %cst_32 : f32 to vector<32x128xf32>
    %44 = arith.maximumf %42, %43 : vector<32x128xf32>
    %cst_33 = arith.constant 9.99999974E-6 : f32
    %45 = vector.broadcast %cst_33 : f32 to vector<32x128xf32>
    %46 = arith.addf %44, %45 : vector<32x128xf32>
    %47 = math.sqrt %46 : vector<32x128xf32>
    %cst_34 = arith.constant -1.000000e+30 : f32
    %48 = vector.broadcast %cst_34 : f32 to vector<32x128xf32>
    %cst_35 = arith.constant 1.000000e+30 : f32
    %49 = vector.broadcast %cst_35 : f32 to vector<32x128xf32>
    %50 = vector.extract_strided_slice %31 {offsets = [0, 0], sizes = [32, 128], strides = [1, 1]} : vector<128x128xf32> to vector<32x128xf32>
    %51 = vector.extract_strided_slice %5 {offsets = [0, 0], sizes = [32, 32], strides = [1, 1]} : vector<128x32xf32> to vector<32x32xf32>
    %cst_36 = arith.constant 1.000000e+00 : f32
    %52 = vector.broadcast %cst_36 : f32 to vector<32x32xf32>
    %53 = arith.subf %52, %51 : vector<32x32xf32>
    %cst_37 = arith.constant 1.000000e+30 : f32
    %54 = vector.broadcast %cst_37 : f32 to vector<32x32xf32>
    %55 = arith.mulf %53, %54 : vector<32x32xf32>
    %56 = vector.shape_cast %50 : vector<32x128xf32> to vector<32x1x128xf32>
    %57 = vector.shape_cast %55 : vector<32x32xf32> to vector<32x32x1xf32>
    %58 = vector.broadcast %56 : vector<32x1x128xf32> to vector<32x32x128xf32>
    %59 = vector.broadcast %57 : vector<32x32x1xf32> to vector<32x32x128xf32>
    %60 = arith.subf %58, %59 : vector<32x32x128xf32>
    %cst_38 = arith.constant dense<0xFF800000> : vector<32x128xf32>
    %61 = vector.multi_reduction <maximumf>, %60, %cst_38 [0] : vector<32x32x128xf32> to vector<32x128xf32>
    %62 = arith.maximumf %48, %61 : vector<32x128xf32>
    %63 = vector.broadcast %56 : vector<32x1x128xf32> to vector<32x32x128xf32>
    %64 = vector.broadcast %57 : vector<32x32x1xf32> to vector<32x32x128xf32>
    %65 = arith.addf %63, %64 : vector<32x32x128xf32>
    %cst_39 = arith.constant dense<0x7F800000> : vector<32x128xf32>
    %66 = vector.multi_reduction <minimumf>, %65, %cst_39 [0] : vector<32x32x128xf32> to vector<32x128xf32>
    %67 = arith.minimumf %49, %66 : vector<32x128xf32>
    %68 = vector.extract_strided_slice %31 {offsets = [32, 0], sizes = [32, 128], strides = [1, 1]} : vector<128x128xf32> to vector<32x128xf32>
    %69 = vector.extract_strided_slice %5 {offsets = [32, 0], sizes = [32, 32], strides = [1, 1]} : vector<128x32xf32> to vector<32x32xf32>
    %cst_40 = arith.constant 1.000000e+00 : f32
    %70 = vector.broadcast %cst_40 : f32 to vector<32x32xf32>
    %71 = arith.subf %70, %69 : vector<32x32xf32>
    %cst_41 = arith.constant 1.000000e+30 : f32
    %72 = vector.broadcast %cst_41 : f32 to vector<32x32xf32>
    %73 = arith.mulf %71, %72 : vector<32x32xf32>
    %74 = vector.shape_cast %68 : vector<32x128xf32> to vector<32x1x128xf32>
    %75 = vector.shape_cast %73 : vector<32x32xf32> to vector<32x32x1xf32>
    %76 = vector.broadcast %74 : vector<32x1x128xf32> to vector<32x32x128xf32>
    %77 = vector.broadcast %75 : vector<32x32x1xf32> to vector<32x32x128xf32>
    %78 = arith.subf %76, %77 : vector<32x32x128xf32>
    %cst_42 = arith.constant dense<0xFF800000> : vector<32x128xf32>
    %79 = vector.multi_reduction <maximumf>, %78, %cst_42 [0] : vector<32x32x128xf32> to vector<32x128xf32>
    %80 = arith.maximumf %62, %79 : vector<32x128xf32>
    %81 = vector.broadcast %74 : vector<32x1x128xf32> to vector<32x32x128xf32>
    %82 = vector.broadcast %75 : vector<32x32x1xf32> to vector<32x32x128xf32>
    %83 = arith.addf %81, %82 : vector<32x32x128xf32>
    %cst_43 = arith.constant dense<0x7F800000> : vector<32x128xf32>
    %84 = vector.multi_reduction <minimumf>, %83, %cst_43 [0] : vector<32x32x128xf32> to vector<32x128xf32>
    %85 = arith.minimumf %67, %84 : vector<32x128xf32>
    %86 = vector.extract_strided_slice %31 {offsets = [64, 0], sizes = [32, 128], strides = [1, 1]} : vector<128x128xf32> to vector<32x128xf32>
    %87 = vector.extract_strided_slice %5 {offsets = [64, 0], sizes = [32, 32], strides = [1, 1]} : vector<128x32xf32> to vector<32x32xf32>
    %cst_44 = arith.constant 1.000000e+00 : f32
    %88 = vector.broadcast %cst_44 : f32 to vector<32x32xf32>
    %89 = arith.subf %88, %87 : vector<32x32xf32>
    %cst_45 = arith.constant 1.000000e+30 : f32
    %90 = vector.broadcast %cst_45 : f32 to vector<32x32xf32>
    %91 = arith.mulf %89, %90 : vector<32x32xf32>
    %92 = vector.shape_cast %86 : vector<32x128xf32> to vector<32x1x128xf32>
    %93 = vector.shape_cast %91 : vector<32x32xf32> to vector<32x32x1xf32>
    %94 = vector.broadcast %92 : vector<32x1x128xf32> to vector<32x32x128xf32>
    %95 = vector.broadcast %93 : vector<32x32x1xf32> to vector<32x32x128xf32>
    %96 = arith.subf %94, %95 : vector<32x32x128xf32>
    %cst_46 = arith.constant dense<0xFF800000> : vector<32x128xf32>
    %97 = vector.multi_reduction <maximumf>, %96, %cst_46 [0] : vector<32x32x128xf32> to vector<32x128xf32>
    %98 = arith.maximumf %80, %97 : vector<32x128xf32>
    %99 = vector.broadcast %92 : vector<32x1x128xf32> to vector<32x32x128xf32>
    %100 = vector.broadcast %93 : vector<32x32x1xf32> to vector<32x32x128xf32>
    %101 = arith.addf %99, %100 : vector<32x32x128xf32>
    %cst_47 = arith.constant dense<0x7F800000> : vector<32x128xf32>
    %102 = vector.multi_reduction <minimumf>, %101, %cst_47 [0] : vector<32x32x128xf32> to vector<32x128xf32>
    %103 = arith.minimumf %85, %102 : vector<32x128xf32>
    %104 = vector.extract_strided_slice %31 {offsets = [96, 0], sizes = [32, 128], strides = [1, 1]} : vector<128x128xf32> to vector<32x128xf32>
    %105 = vector.extract_strided_slice %5 {offsets = [96, 0], sizes = [32, 32], strides = [1, 1]} : vector<128x32xf32> to vector<32x32xf32>
    %cst_48 = arith.constant 1.000000e+00 : f32
    %106 = vector.broadcast %cst_48 : f32 to vector<32x32xf32>
    %107 = arith.subf %106, %105 : vector<32x32xf32>
    %cst_49 = arith.constant 1.000000e+30 : f32
    %108 = vector.broadcast %cst_49 : f32 to vector<32x32xf32>
    %109 = arith.mulf %107, %108 : vector<32x32xf32>
    %110 = vector.shape_cast %104 : vector<32x128xf32> to vector<32x1x128xf32>
    %111 = vector.shape_cast %109 : vector<32x32xf32> to vector<32x32x1xf32>
    %112 = vector.broadcast %110 : vector<32x1x128xf32> to vector<32x32x128xf32>
    %113 = vector.broadcast %111 : vector<32x32x1xf32> to vector<32x32x128xf32>
    %114 = arith.subf %112, %113 : vector<32x32x128xf32>
    %cst_50 = arith.constant dense<0xFF800000> : vector<32x128xf32>
    %115 = vector.multi_reduction <maximumf>, %114, %cst_50 [0] : vector<32x32x128xf32> to vector<32x128xf32>
    %116 = arith.maximumf %98, %115 : vector<32x128xf32>
    %117 = vector.broadcast %110 : vector<32x1x128xf32> to vector<32x32x128xf32>
    %118 = vector.broadcast %111 : vector<32x32x1xf32> to vector<32x32x128xf32>
    %119 = arith.addf %117, %118 : vector<32x32x128xf32>
    %cst_51 = arith.constant dense<0x7F800000> : vector<32x128xf32>
    %120 = vector.multi_reduction <minimumf>, %119, %cst_51 [0] : vector<32x32x128xf32> to vector<32x128xf32>
    %121 = arith.minimumf %103, %120 : vector<32x128xf32>
    %cst_52 = arith.constant 5.000000e-01 : f32
    %122 = vector.broadcast %cst_52 : f32 to vector<32x1xf32>
    %123 = arith.cmpf ogt, %33, %122 : vector<32x1xf32>
    %cst_53 = arith.constant 0.000000e+00 : f32
    %124 = vector.shape_cast %123 : vector<32x1xi1> to vector<32x1xi1>
    %125 = vector.broadcast %124 : vector<32x1xi1> to vector<32x128xi1>
    %126 = vector.broadcast %cst_53 : f32 to vector<32x128xf32>
    %127 = arith.select %125, %116, %126 : vector<32x128xi1>, vector<32x128xf32>
    %cst_54 = arith.constant 5.000000e-01 : f32
    %128 = vector.broadcast %cst_54 : f32 to vector<32x1xf32>
    %129 = arith.cmpf ogt, %33, %128 : vector<32x1xf32>
    %cst_55 = arith.constant 0.000000e+00 : f32
    %130 = vector.shape_cast %129 : vector<32x1xi1> to vector<32x1xi1>
    %131 = vector.broadcast %130 : vector<32x1xi1> to vector<32x128xi1>
    %132 = vector.broadcast %cst_55 : f32 to vector<32x128xf32>
    %133 = arith.select %131, %121, %132 : vector<32x128xi1>, vector<32x128xf32>
    %134 = tpu.concatenate %38, %133, %127, %47 in 1 : vector<32x128xf32>, vector<32x128xf32>, vector<32x128xf32>, vector<32x128xf32> -> vector<32x512xf32>
    %c0_56 = arith.constant 0 : index
    %c2 = arith.constant 2 : index
    %c0_57 = arith.constant 0 : index
    %135 = vector.load %arg12[%c0_56, %c2, %c0_57] : memref<1x8x128xf32, #tpu.memory_space<vmem>>, vector<1x1x128xf32>
    %136 = vector.shape_cast %135 : vector<1x1x128xf32> to vector<1x128xf32>
    %c0_58 = arith.constant 0 : index
    %c0_59 = arith.constant 0 : index
    %c0_60 = arith.constant 0 : index
    %137 = vector.load %arg10[%c0_58, %c0_59, %c0_60] : memref<1x512x512xf32, #tpu.memory_space<vmem>>, vector<1x512x512xf32>
    %138 = vector.shape_cast %137 : vector<1x512x512xf32> to vector<512x512xf32>
    %cst_61 = arith.constant dense<0.000000e+00> : vector<32x512xf32>
    %139 = tpu.matmul %134, %138, %cst_61 {dimension_numbers = #tpu.dot_dimension_numbers<[1], [0], [0], [1], [0, 0, 1, 1], [], []>} : vector<32x512xf32>, vector<512x512xf32>, vector<32x512xf32> -> vector<32x512xf32>
    %c0_62 = arith.constant 0 : index
    %c0_63 = arith.constant 0 : index
    %c0_64 = arith.constant 0 : index
    %140 = vector.load %arg9[%c0_62, %c0_63, %c0_64] : memref<1x128x128xf32, #tpu.memory_space<vmem>>, vector<1x128x128xf32>
    %141 = vector.shape_cast %140 : vector<1x128x128xf32> to vector<128x128xf32>
    %cst_65 = arith.constant dense<0.000000e+00> : vector<32x128xf32>
    %142 = tpu.matmul %3, %141, %cst_65 {dimension_numbers = #tpu.dot_dimension_numbers<[1], [0], [0], [1], [0, 0, 1, 1], [], []>} : vector<32x128xf32>, vector<128x128xf32>, vector<32x128xf32> -> vector<32x128xf32>
    %143 = vector.broadcast %136 : vector<1x128xf32> to vector<32x128xf32>
    %144 = arith.addf %142, %143 : vector<32x128xf32>
    %145 = vector.extract_strided_slice %6 {offsets = [0, 1], sizes = [32, 1], strides = [1, 1]} : vector<32x8xf32> to vector<32x1xf32>
    %146 = vector.extract_strided_slice %139 {offsets = [0, 0], sizes = [32, 128], strides = [1, 1]} : vector<32x512xf32> to vector<32x128xf32>
    %147 = vector.broadcast %145 : vector<32x1xf32> to vector<32x128xf32>
    %148 = arith.mulf %147, %146 : vector<32x128xf32>
    %149 = arith.addf %144, %148 : vector<32x128xf32>
    %150 = vector.extract_strided_slice %6 {offsets = [0, 2], sizes = [32, 1], strides = [1, 1]} : vector<32x8xf32> to vector<32x1xf32>
    %151 = vector.extract_strided_slice %139 {offsets = [0, 128], sizes = [32, 128], strides = [1, 1]} : vector<32x512xf32> to vector<32x128xf32>
    %152 = vector.broadcast %150 : vector<32x1xf32> to vector<32x128xf32>
    %153 = arith.mulf %152, %151 : vector<32x128xf32>
    %154 = arith.addf %149, %153 : vector<32x128xf32>
    %155 = vector.extract_strided_slice %6 {offsets = [0, 3], sizes = [32, 1], strides = [1, 1]} : vector<32x8xf32> to vector<32x1xf32>
    %156 = vector.extract_strided_slice %139 {offsets = [0, 256], sizes = [32, 128], strides = [1, 1]} : vector<32x512xf32> to vector<32x128xf32>
    %157 = vector.broadcast %155 : vector<32x1xf32> to vector<32x128xf32>
    %158 = arith.mulf %157, %156 : vector<32x128xf32>
    %159 = arith.addf %154, %158 : vector<32x128xf32>
    %160 = vector.extract_strided_slice %6 {offsets = [0, 4], sizes = [32, 1], strides = [1, 1]} : vector<32x8xf32> to vector<32x1xf32>
    %161 = vector.extract_strided_slice %139 {offsets = [0, 384], sizes = [32, 128], strides = [1, 1]} : vector<32x512xf32> to vector<32x128xf32>
    %162 = vector.broadcast %160 : vector<32x1xf32> to vector<32x128xf32>
    %163 = arith.mulf %162, %161 : vector<32x128xf32>
    %164 = arith.addf %159, %163 : vector<32x128xf32>
    %c0_66 = arith.constant 0 : index
    %c3 = arith.constant 3 : index
    %c0_67 = arith.constant 0 : index
    %165 = vector.load %arg12[%c0_66, %c3, %c0_67] : memref<1x8x128xf32, #tpu.memory_space<vmem>>, vector<1x1x128xf32>
    %166 = vector.shape_cast %165 : vector<1x1x128xf32> to vector<1x128xf32>
    %c0_68 = arith.constant 0 : index
    %c0_69 = arith.constant 0 : index
    %c0_70 = arith.constant 0 : index
    %167 = vector.load %arg11[%c0_68, %c0_69, %c0_70] : memref<1x128x128xf32, #tpu.memory_space<vmem>>, vector<1x128x128xf32>
    %168 = vector.shape_cast %167 : vector<1x128x128xf32> to vector<128x128xf32>
    %cst_71 = arith.constant dense<0.000000e+00> : vector<32x128xf32>
    %169 = tpu.matmul %164, %168, %cst_71 {dimension_numbers = #tpu.dot_dimension_numbers<[1], [0], [0], [1], [0, 0, 1, 1], [], []>} : vector<32x128xf32>, vector<128x128xf32>, vector<32x128xf32> -> vector<32x128xf32>
    %170 = vector.broadcast %166 : vector<1x128xf32> to vector<32x128xf32>
    %171 = arith.addf %169, %170 : vector<32x128xf32>
    %c0_72 = arith.constant 0 : index
    %c4 = arith.constant 4 : index
    %c0_73 = arith.constant 0 : index
    %172 = vector.load %arg12[%c0_72, %c4, %c0_73] : memref<1x8x128xf32, #tpu.memory_space<vmem>>, vector<1x1x128xf32>
    %173 = vector.shape_cast %172 : vector<1x1x128xf32> to vector<1x128xf32>
    %c0_74 = arith.constant 0 : index
    %c5 = arith.constant 5 : index
    %c0_75 = arith.constant 0 : index
    %174 = vector.load %arg12[%c0_74, %c5, %c0_75] : memref<1x8x128xf32, #tpu.memory_space<vmem>>, vector<1x1x128xf32>
    %175 = vector.shape_cast %174 : vector<1x1x128xf32> to vector<1x128xf32>
    %cst_76 = arith.constant dense<0.000000e+00> : vector<128xf32>
    %176 = vector.multi_reduction <add>, %171, %cst_76 [0] : vector<32x128xf32> to vector<128xf32>
    %177 = vector.shape_cast %176 : vector<128xf32> to vector<1x128xf32>
    %cst_77 = arith.constant 3.200000e+01 : f32
    %178 = vector.broadcast %cst_77 : f32 to vector<1x128xf32>
    %179 = arith.divf %177, %178 : vector<1x128xf32>
    %180 = vector.broadcast %179 : vector<1x128xf32> to vector<32x128xf32>
    %181 = arith.subf %171, %180 : vector<32x128xf32>
    %182 = arith.mulf %181, %181 : vector<32x128xf32>
    %cst_78 = arith.constant dense<0.000000e+00> : vector<128xf32>
    %183 = vector.multi_reduction <add>, %182, %cst_78 [0] : vector<32x128xf32> to vector<128xf32>
    %184 = vector.shape_cast %183 : vector<128xf32> to vector<1x128xf32>
    %cst_79 = arith.constant 3.200000e+01 : f32
    %185 = vector.broadcast %cst_79 : f32 to vector<1x128xf32>
    %186 = arith.divf %184, %185 : vector<1x128xf32>
    %cst_80 = arith.constant 9.99999974E-6 : f32
    %187 = vector.broadcast %cst_80 : f32 to vector<1x128xf32>
    %188 = arith.addf %186, %187 : vector<1x128xf32>
    %189 = math.rsqrt %188 : vector<1x128xf32>
    %190 = vector.broadcast %189 : vector<1x128xf32> to vector<32x128xf32>
    %191 = arith.mulf %181, %190 : vector<32x128xf32>
    %192 = vector.broadcast %173 : vector<1x128xf32> to vector<32x128xf32>
    %193 = arith.mulf %191, %192 : vector<32x128xf32>
    %194 = vector.broadcast %175 : vector<1x128xf32> to vector<32x128xf32>
    %195 = arith.addf %193, %194 : vector<32x128xf32>
    %cst_81 = arith.constant 0.000000e+00 : f32
    %196 = vector.broadcast %cst_81 : f32 to vector<32x128xf32>
    %197 = arith.cmpf ogt, %195, %196 : vector<32x128xf32>
    %cst_82 = arith.constant 0.00999999977 : f32
    %198 = vector.broadcast %cst_82 : f32 to vector<32x128xf32>
    %199 = arith.mulf %198, %195 : vector<32x128xf32>
    %200 = arith.select %197, %195, %199 : vector<32x128xi1>, vector<32x128xf32>
    %c0_83 = arith.constant 0 : index
    %c0_84 = arith.constant 0 : index
    %201 = vector.load %arg20[%c0_83, %c0_84] : memref<32x128xf32, #tpu.memory_space<vmem>>, vector<32x128xf32>
    tpu.vector_store %arg20[%c0_83, %c0_84], %200 {strides = array<i32>} : memref<32x128xf32, #tpu.memory_space<vmem>>, vector<32x128xf32>,
    %c5_i32 = arith.constant 5 : i32
    %202 = arith.cmpi eq, %arg0, %c5_i32 : i32
    %203 = arith.extui %202 : i1 to i32
    %c0_i32_85 = arith.constant 0 : i32
    %204 = arith.cmpi ne, %203, %c0_i32_85 : i32
    scf.if %204 {
      %c0_86 = arith.constant 0 : index
      %c0_87 = arith.constant 0 : index
      %205 = vector.load %arg6[%c0_86, %c0_87] : memref<32x2xf32, #tpu.memory_space<vmem>>, vector<32x2xf32>
      %cst_88 = arith.constant dense<0.000000e+00> : vector<2x128xf32>
      %206 = tpu.matmul %205, %200, %cst_88 {dimension_numbers = #tpu.dot_dimension_numbers<[0], [0], [1], [1], [0, 1, 1, 1], [], []>} : vector<32x2xf32>, vector<32x128xf32>, vector<2x128xf32> -> vector<2x128xf32>
      %207 = vector.shape_cast %205 : vector<32x2xf32> to vector<32x2x1xf32>
      %cst_89 = arith.constant 0.000000e+00 : f32
      %208 = vector.broadcast %cst_89 : f32 to vector<32x2x1xf32>
      %209 = arith.cmpf ogt, %207, %208 : vector<32x2x1xf32>
      %210 = vector.shape_cast %200 : vector<32x128xf32> to vector<32x1x128xf32>
      %cst_90 = arith.constant -1.000000e+30 : f32
      %211 = vector.shape_cast %209 : vector<32x2x1xi1> to vector<32x2x1xi1>
      %212 = vector.broadcast %211 : vector<32x2x1xi1> to vector<32x2x128xi1>
      %213 = vector.shape_cast %210 : vector<32x1x128xf32> to vector<32x1x128xf32>
      %214 = vector.broadcast %213 : vector<32x1x128xf32> to vector<32x2x128xf32>
      %215 = vector.broadcast %cst_90 : f32 to vector<32x2x128xf32>
      %216 = arith.select %212, %214, %215 : vector<32x2x128xi1>, vector<32x2x128xf32>
      %cst_91 = arith.constant dense<0xFF800000> : vector<2x128xf32>
      %217 = vector.multi_reduction <maximumf>, %216, %cst_91 [0] : vector<32x2x128xf32> to vector<2x128xf32>
      %c0_92 = arith.constant 0 : index
      %c0_93 = arith.constant 0 : index
      %218 = vector.load %arg13[%c0_92, %c0_93] : memref<256x128xf32, #tpu.memory_space<vmem>>, vector<128x128xf32>
      %cst_94 = arith.constant dense<0.000000e+00> : vector<2x128xf32>
      %219 = tpu.matmul %206, %218, %cst_94 {dimension_numbers = #tpu.dot_dimension_numbers<[1], [0], [0], [1], [0, 0, 1, 1], [], []>} : vector<2x128xf32>, vector<128x128xf32>, vector<2x128xf32> -> vector<2x128xf32>
      %c128_95 = arith.constant 128 : index
      %c0_96 = arith.constant 0 : index
      %220 = vector.load %arg13[%c128_95, %c0_96] : memref<256x128xf32, #tpu.memory_space<vmem>>, vector<128x128xf32>
      %cst_97 = arith.constant dense<0.000000e+00> : vector<2x128xf32>
      %221 = tpu.matmul %217, %220, %cst_97 {dimension_numbers = #tpu.dot_dimension_numbers<[1], [0], [0], [1], [0, 0, 1, 1], [], []>} : vector<2x128xf32>, vector<128x128xf32>, vector<2x128xf32> -> vector<2x128xf32>
      %222 = arith.addf %219, %221 : vector<2x128xf32>
      %c0_98 = arith.constant 0 : index
      %c0_99 = arith.constant 0 : index
      %223 = vector.load %arg14[%c0_98, %c0_99] : memref<1x128xf32, #tpu.memory_space<vmem>>, vector<1x128xf32>
      %224 = vector.broadcast %223 : vector<1x128xf32> to vector<2x128xf32>
      %225 = arith.addf %222, %224 : vector<2x128xf32>
      %cst_100 = arith.constant 0.000000e+00 : f32
      %226 = vector.broadcast %cst_100 : f32 to vector<2x128xf32>
      %227 = arith.cmpf ogt, %225, %226 : vector<2x128xf32>
      %cst_101 = arith.constant 0.00999999977 : f32
      %228 = vector.broadcast %cst_101 : f32 to vector<2x128xf32>
      %229 = arith.mulf %228, %225 : vector<2x128xf32>
      %230 = arith.select %227, %225, %229 : vector<2x128xi1>, vector<2x128xf32>
      %c0_102 = arith.constant 0 : index
      %c0_103 = arith.constant 0 : index
      %231 = vector.load %arg15[%c0_102, %c0_103] : memref<128x64xf32, #tpu.memory_space<vmem>>, vector<128x64xf32>
      %cst_104 = arith.constant dense<0.000000e+00> : vector<2x64xf32>
      %232 = tpu.matmul %230, %231, %cst_104 {dimension_numbers = #tpu.dot_dimension_numbers<[1], [0], [0], [1], [0, 0, 1, 1], [], []>} : vector<2x128xf32>, vector<128x64xf32>, vector<2x64xf32> -> vector<2x64xf32>
      %c0_105 = arith.constant 0 : index
      %c0_106 = arith.constant 0 : index
      %233 = vector.load %arg16[%c0_105, %c0_106] : memref<1x64xf32, #tpu.memory_space<vmem>>, vector<1x64xf32>
      %234 = vector.broadcast %233 : vector<1x64xf32> to vector<2x64xf32>
      %235 = arith.addf %232, %234 : vector<2x64xf32>
      %cst_107 = arith.constant 0.000000e+00 : f32
      %236 = vector.broadcast %cst_107 : f32 to vector<2x64xf32>
      %237 = arith.cmpf ogt, %235, %236 : vector<2x64xf32>
      %cst_108 = arith.constant 0.00999999977 : f32
      %238 = vector.broadcast %cst_108 : f32 to vector<2x64xf32>
      %239 = arith.mulf %238, %235 : vector<2x64xf32>
      %240 = arith.select %237, %235, %239 : vector<2x64xi1>, vector<2x64xf32>
      %c0_109 = arith.constant 0 : index
      %c0_110 = arith.constant 0 : index
      %241 = vector.load %arg17[%c0_109, %c0_110] : memref<64x1xf32, #tpu.memory_space<vmem>>, vector<64x1xf32>
      %cst_111 = arith.constant dense<0.000000e+00> : vector<2x1xf32>
      %242 = tpu.matmul %240, %241, %cst_111 {dimension_numbers = #tpu.dot_dimension_numbers<[1], [0], [0], [1], [0, 0, 1, 1], [], []>} : vector<2x64xf32>, vector<64x1xf32>, vector<2x1xf32> -> vector<2x1xf32>
      %c0_112 = arith.constant 0 : index
      %c0_113 = arith.constant 0 : index
      %243 = vector.load %arg18[%c0_112, %c0_113] : memref<1x1xf32, #tpu.memory_space<vmem>>, vector<1x1xf32>
      %244 = vector.broadcast %243 : vector<1x1xf32> to vector<2x1xf32>
      %245 = arith.addf %242, %244 : vector<2x1xf32>
      %c0_114 = arith.constant 0 : index
      %c0_115 = arith.constant 0 : index
      %246 = vector.load %arg19[%c0_114, %c0_115] : memref<2x1xf32, #tpu.memory_space<vmem>>, vector<2x1xf32>
      tpu.vector_store %arg19[%c0_114, %c0_115], %245 {strides = array<i32>} : memref<2x1xf32, #tpu.memory_space<vmem>>, vector<2x1xf32>,
    } else {
    }
    return
  }
  func.func @transform_0(%arg0: i32) -> (i32, i32) {
    %c0_i32 = arith.constant 0 : i32
    %c0_i32_0 = arith.constant 0 : i32
    %c0_i32_1 = arith.constant 0 : i32
    return %c0_i32, %c0_i32_0 : i32, i32
  }
  func.func @transform_1(%arg0: i32) -> (i32, i32) {
    %c0_i32 = arith.constant 0 : i32
    %c0_i32_0 = arith.constant 0 : i32
    %c0_i32_1 = arith.constant 0 : i32
    return %c0_i32, %c0_i32_0 : i32, i32
  }
  func.func @transform_2(%arg0: i32) -> (i32, i32) {
    %c0_i32 = arith.constant 0 : i32
    %c0_i32_0 = arith.constant 0 : i32
    %c0_i32_1 = arith.constant 0 : i32
    return %c0_i32, %c0_i32_0 : i32, i32
  }
  func.func @transform_3(%arg0: i32) -> (i32, i32) {
    %c0_i32 = arith.constant 0 : i32
    %c0_i32_0 = arith.constant 0 : i32
    %c0_i32_1 = arith.constant 0 : i32
    return %c0_i32, %c0_i32_0 : i32, i32
  }
  func.func @transform_4(%arg0: i32) -> (i32, i32) {
    %c0_i32 = arith.constant 0 : i32
    %c0_i32_0 = arith.constant 0 : i32
    %c0_i32_1 = arith.constant 0 : i32
    return %c0_i32, %c0_i32_0 : i32, i32
  }
  func.func @transform_5(%arg0: i32) -> (i32, i32) {
    %c0_i32 = arith.constant 0 : i32
    %c0_i32_0 = arith.constant 0 : i32
    %c0_i32_1 = arith.constant 0 : i32
    return %c0_i32, %c0_i32_0 : i32, i32
  }
  func.func @transform_6(%arg0: i32) -> (i32, i32, i32) {
    %c0_i32 = arith.constant 0 : i32
    %c0_i32_0 = arith.constant 0 : i32
    %c0_i32_1 = arith.constant 0 : i32
    return %arg0, %c0_i32, %c0_i32_0 : i32, i32, i32
  }
  func.func @transform_7(%arg0: i32) -> (i32, i32, i32) {
    %c0_i32 = arith.constant 0 : i32
    %c0_i32_0 = arith.constant 0 : i32
    %c0_i32_1 = arith.constant 0 : i32
    return %arg0, %c0_i32, %c0_i32_0 : i32, i32, i32
  }
  func.func @transform_8(%arg0: i32) -> (i32, i32, i32) {
    %c0_i32 = arith.constant 0 : i32
    %c0_i32_0 = arith.constant 0 : i32
    %c0_i32_1 = arith.constant 0 : i32
    return %arg0, %c0_i32, %c0_i32_0 : i32, i32, i32
  }
  func.func @transform_9(%arg0: i32) -> (i32, i32, i32) {
    %c0_i32 = arith.constant 0 : i32
    %c0_i32_0 = arith.constant 0 : i32
    %c0_i32_1 = arith.constant 0 : i32
    return %arg0, %c0_i32, %c0_i32_0 : i32, i32, i32
  }
  func.func @transform_10(%arg0: i32) -> (i32, i32, i32) {
    %c0_i32 = arith.constant 0 : i32
    %c0_i32_0 = arith.constant 0 : i32
    %c0_i32_1 = arith.constant 0 : i32
    return %arg0, %c0_i32, %c0_i32_0 : i32, i32, i32
  }
  func.func @transform_11(%arg0: i32) -> (i32, i32, i32) {
    %c0_i32 = arith.constant 0 : i32
    %c0_i32_0 = arith.constant 0 : i32
    %c0_i32_1 = arith.constant 0 : i32
    return %arg0, %c0_i32, %c0_i32_0 : i32, i32, i32
  }
  func.func @transform_12(%arg0: i32) -> (i32, i32) {
    %c0_i32 = arith.constant 0 : i32
    %c0_i32_0 = arith.constant 0 : i32
    %c0_i32_1 = arith.constant 0 : i32
    return %c0_i32, %c0_i32_0 : i32, i32
  }
  func.func @transform_13(%arg0: i32) -> (i32, i32) {
    %c0_i32 = arith.constant 0 : i32
    %c0_i32_0 = arith.constant 0 : i32
    %c0_i32_1 = arith.constant 0 : i32
    return %c0_i32, %c0_i32_0 : i32, i32
  }
  func.func @transform_14(%arg0: i32) -> (i32, i32) {
    %c0_i32 = arith.constant 0 : i32
    %c0_i32_0 = arith.constant 0 : i32
    %c0_i32_1 = arith.constant 0 : i32
    return %c0_i32, %c0_i32_0 : i32, i32
  }
  func.func @transform_15(%arg0: i32) -> (i32, i32) {
    %c0_i32 = arith.constant 0 : i32
    %c0_i32_0 = arith.constant 0 : i32
    %c0_i32_1 = arith.constant 0 : i32
    return %c0_i32, %c0_i32_0 : i32, i32
  }
  func.func @transform_16(%arg0: i32) -> (i32, i32) {
    %c0_i32 = arith.constant 0 : i32
    %c0_i32_0 = arith.constant 0 : i32
    %c0_i32_1 = arith.constant 0 : i32
    return %c0_i32, %c0_i32_0 : i32, i32
  }
  func.func @transform_17(%arg0: i32) -> (i32, i32) {
    %c0_i32 = arith.constant 0 : i32
    %c0_i32_0 = arith.constant 0 : i32
    %c0_i32_1 = arith.constant 0 : i32
    return %c0_i32, %c0_i32_0 : i32, i32
  }
  func.func @transform_18(%arg0: i32) -> (i32, i32) {
    %c0_i32 = arith.constant 0 : i32
    %c0_i32_0 = arith.constant 0 : i32
    %c0_i32_1 = arith.constant 0 : i32
    return %c0_i32, %c0_i32_0 : i32, i32
  }
}

</mosaic_0001>

<llo_original>
// kernel: modified_pna_net.1
$region0: #{modified_pna_net.1}
  #allocation0 [shape = 'u32[]', space=smem, size = 0x4, offset = 0x4, fixed_abs, tag = 'smem constant byte address 0x4 - core index']
  #allocation1 [shape = 'u32[144,128]{1,0:T(1,128)}', space=vmem, size = 0x12000, scoped, tag = 'internal scratch']
  #allocation2 [shape = 'f32[32,128]{1,0:T(8,128)}', space=vmem, size = 0x4000, scoped, tag = 'scratch operand']
  #allocation3 [shape = 'f32[1,1]{1,0:T(1,128)S(1)}', space=vmem, size = 0x200, scoped, tag = 'scoped memory for modified_pna_net.1']
  %s0 = inlined_call_operand.vmem [shape: f32[32,128], index: 0, kind: input, shape index: {}]
  %s1 = inlined_call_operand.vmem [shape: f32[128,32], index: 1, kind: input, shape index: {}]
  %s2 = inlined_call_operand.vmem [shape: f32[128,32], index: 2, kind: input, shape index: {}]
  %s3 = inlined_call_operand.vmem [shape: f32[128,128], index: 3, kind: input, shape index: {}]
  %s4 = inlined_call_operand.vmem [shape: f32[32,8], index: 4, kind: input, shape index: {}]
  %s5 = inlined_call_operand.vmem [shape: f32[32,2], index: 5, kind: input, shape index: {}]
  %s6 = inlined_call_operand.hbm [shape: f32[6,128,128], index: 6, kind: input, shape index: {}]
  %s7 = inlined_call_operand.hbm [shape: f32[6,384,128], index: 7, kind: input, shape index: {}]
  %s8 = inlined_call_operand.hbm [shape: f32[6,128,128], index: 8, kind: input, shape index: {}]
  %s9 = inlined_call_operand.hbm [shape: f32[6,512,512], index: 9, kind: input, shape index: {}]
  %s10 = inlined_call_operand.hbm [shape: f32[6,128,128], index: 10, kind: input, shape index: {}]
  %s11 = inlined_call_operand.hbm [shape: f32[6,8,128], index: 11, kind: input, shape index: {}]
  %s12 = inlined_call_operand.hbm [shape: f32[256,128], index: 12, kind: input, shape index: {}]
  %s13 = inlined_call_operand.hbm [shape: f32[1,128], index: 13, kind: input, shape index: {}]
  %s14 = inlined_call_operand.vmem [shape: f32[128,64], index: 14, kind: input, shape index: {}]
  %s15 = inlined_call_operand.hbm [shape: f32[1,64], index: 15, kind: input, shape index: {}]
  %s16 = inlined_call_operand.vmem [shape: f32[64,1], index: 16, kind: input, shape index: {}]
  %s17 = inlined_call_operand.<no memory space> [shape: f32[1,1], index: 17, kind: input, shape index: {}]
  %s18 = inlined_call_operand.vmem [shape: f32[2,1], index: 18, kind: output, shape index: {}]
  %s19 = sld [smem:[#allocation0]]
  $region149: #{modified_pna_net.1} parent=0
    _
  %s21 = ssub.s32 1, %s19
  %s22 = scalar_select 0, %s21, %s19
  %v23 = vstv %s17
  %24 = vst [vmem:[#allocation3] sm:$0x1] %v23
  $region1: #{modified_pna_net.1} parent=0
    #allocation4 [shape = 'u8[131072]{0}', space=vmem, size = 0x20000, scoped, tag = 'input window, operand 6']
    #allocation5 [shape = 's32[2]{0}', space=sflag, size = 0x8, scoped, tag = 'scoped memory for modified_pna_net.1']
    #allocation6 [shape = 'u8[393216]{0}', space=vmem, size = 0x60000, scoped, tag = 'input window, operand 7']
    #allocation7 [shape = 's32[2]{0}', space=sflag, size = 0x8, scoped, tag = 'scoped memory for modified_pna_net.1']
    #allocation8 [shape = 'u8[131072]{0}', space=vmem, size = 0x20000, scoped, tag = 'input window, operand 8']
    #allocation9 [shape = 'u8[2097152]{0}', space=vmem, size = 0x200000, scoped, tag = 'input window, operand 9']
    #allocation10 [shape = 's32[2]{0}', space=sflag, size = 0x8, scoped, tag = 'scoped memory for modified_pna_net.1']
    #allocation11 [shape = 'u8[131072]{0}', space=vmem, size = 0x20000, scoped, tag = 'input window, operand 10']
    #allocation12 [shape = 'u8[8192]{0}', space=vmem, size = 0x2000, scoped, tag = 'input window, operand 11']
    #allocation13 [shape = 's32[2]{0}', space=sflag, size = 0x8, scoped, tag = 'scoped memory for modified_pna_net.1']
    #allocation14 [shape = 'u8[131072]{0}', space=vmem, size = 0x20000, scoped, tag = 'input window, operand 12, single buffered']
    #allocation15 [shape = 'u8[512]{0}', space=vmem, size = 0x400, scoped, tag = 'input window, operand 13, single buffered']
    #allocation16 [shape = 's32[1]{0}', space=sflag, size = 0x4, scoped, tag = 'scoped memory for modified_pna_net.1']
    #allocation17 [shape = 'u8[512]{0}', space=vmem, size = 0x400, scoped, tag = 'input window, operand 15, single buffered']
    %25 = vsyncpa [#allocation5], 0
    %s26 = scalar_lea.sflag [#allocation5], 1
    %27 = vsyncpa %s26, 0
    %28 = vsyncpa [#allocation7], 0
    %s29 = scalar_lea.sflag [#allocation7], 1
    %30 = vsyncpa %s29, 0
    %31 = vsyncpa [#allocation10], 0
    %s32 = scalar_lea.sflag [#allocation10], 1
    %33 = vsyncpa %s32, 0
    %34 = vsyncpa [#allocation13], 0
    %s35 = scalar_lea.sflag [#allocation13], 1
    %36 = vsyncpa %s35, 0
    %37 = vsyncpa [#allocation16], 0
    loop: start=0, step=1, limit=8
    $region2: #{modified_pna_net.1} parent=1 // loop_pre_header
      _
    $region3: #{modified_pna_net.1} parent=1 // loop_header
      %s39 = sphi 0, %s43
      %p40 = scmp.ge.s32.totalorder %s39, 8
      %s47 = sphi 0, %s47
      %s49 = sphi 0, %s47
      %s50 = sphi 0, %s49
      %s64 = sphi 0, %s50
      %s68 = sphi 0, %s68
      %s70 = sphi 0, %s68
      %s71 = sphi 0, %s70
      %s85 = sphi 0, %s71
      %s89 = sphi 0, %s89
      %s91 = sphi 0, %s89
      %s92 = sphi 0, %s91
      %s106 = sphi 0, %s92
      %s110 = sphi 0, %s110
      %s112 = sphi 0, %s110
      %s113 = sphi 0, %s112
      %s127 = sphi 0, %s113
      %s131 = sphi 0, %s131
      %s133 = sphi 0, %s131
      %s134 = sphi 0, %s133
      %s148 = sphi 0, %s134
      %s152 = sphi 0, %s152
      %s154 = sphi 0, %s152
      %s155 = sphi 0, %s154
      %s169 = sphi 0, %s155
      %s175 = sphi 0, %s177
      %s178 = sphi 0, %s175
      %s179 = sphi 0, %s178
      %s195 = sphi 0, %s179
      %s201 = sphi 0, %s203
      %s204 = sphi 0, %s201
      %s205 = sphi 0, %s204
      %s221 = sphi 0, %s205
      %s227 = sphi 0, %s229
      %s230 = sphi 0, %s227
      %s231 = sphi 0, %s230
      %s247 = sphi 0, %s231
      %s253 = sphi 0, %s255
      %s256 = sphi 0, %s253
      %s257 = sphi 0, %s256
      %s273 = sphi 0, %s257
      %s279 = sphi 0, %s281
      %s282 = sphi 0, %s279
      %s283 = sphi 0, %s282
      %s299 = sphi 0, %s283
      %s305 = sphi 0, %s307
      %s308 = sphi 0, %s305
      %s309 = sphi 0, %s308
      %s325 = sphi 0, %s309
      %s329 = sphi 0, %s329
      %s331 = sphi 0, %s329
      %s332 = sphi 0, %s331
      %s346 = sphi 0, %s332
      %s350 = sphi 0, %s350
      %s352 = sphi 0, %s350
      %s353 = sphi 0, %s352
      %s367 = sphi 0, %s353
      %s371 = sphi 0, %s371
      %s373 = sphi 0, %s371
      %s374 = sphi 0, %s373
      %s388 = sphi 0, %s374
      %s392 = sphi 0, %s392
      %s394 = sphi 0, %s392
      %s395 = sphi 0, %s394
      %s409 = sphi 0, %s395
      %s413 = sphi 0, %s413
      %s415 = sphi 0, %s413
      %s416 = sphi 0, %s415
      %s430 = sphi 0, %s416
      %s434 = sphi 0, %s434
      %s436 = sphi 0, %s434
      %s437 = sphi 0, %s436
      %s451 = sphi 0, %s437
      %s455 = sphi 0, %s455
      %s457 = sphi 0, %s455
      %s458 = sphi 0, %s457
      %s472 = sphi 0, %s458
    $region4: #{modified_pna_net.1} parent=1 // loop_header_branch
      %42 = sbr.rel (%p40) target = $region8
    $region5: #{modified_pna_net.1} parent=1 // loop_body
      %s44 = ssub.s32 %s39, 1
      %s45 = ssub.s32 %s39, 2
      %s46 = sadd.s32 %s39, 1
      %s48 = sadd.s32 %s47, 1
      %p51 = scmp.eq.s32.totalorder %s39, 5
      %p52 = scmp.ne.s32.totalorder %s47, %s49
      %p53 = scmp.eq.s32.totalorder %s39, 0
      %p54 = por %p52, %p53
      %p55 = scmp.ne.s32.totalorder %s47, %s49
      %p56 = scmp.eq.s32.totalorder %s44, 5
      %p57 = por %p55, %p56
      %p58 = scmp.ne.s32.totalorder %s49, %s50
      %p59 = scmp.eq.s32.totalorder %s44, 0
      %p60 = por %p58, %p59
      %p61 = scmp.ne.s32.totalorder %s49, %s50
      %p62 = scmp.eq.s32.totalorder %s45, 5
      %p63 = por %p61, %p62
      %p65 = scmp.ne.s32.totalorder %s50, %s64
      %p66 = scmp.eq.s32.totalorder %s45, 0
      %p67 = por %p65, %p66
      %s69 = sadd.s32 %s68, 1
      %p72 = scmp.eq.s32.totalorder %s39, 5
      %p73 = scmp.ne.s32.totalorder %s68, %s70
      %p74 = scmp.eq.s32.totalorder %s39, 0
      %p75 = por %p73, %p74
      %p76 = scmp.ne.s32.totalorder %s68, %s70
      %p77 = scmp.eq.s32.totalorder %s44, 5
      %p78 = por %p76, %p77
      %p79 = scmp.ne.s32.totalorder %s70, %s71
      %p80 = scmp.eq.s32.totalorder %s44, 0
      %p81 = por %p79, %p80
      %p82 = scmp.ne.s32.totalorder %s70, %s71
      %p83 = scmp.eq.s32.totalorder %s45, 5
      %p84 = por %p82, %p83
      %p86 = scmp.ne.s32.totalorder %s71, %s85
      %p87 = scmp.eq.s32.totalorder %s45, 0
      %p88 = por %p86, %p87
      %s90 = sadd.s32 %s89, 1
      %p93 = scmp.eq.s32.totalorder %s39, 5
      %p94 = scmp.ne.s32.totalorder %s89, %s91
      %p95 = scmp.eq.s32.totalorder %s39, 0
      %p96 = por %p94, %p95
      %p97 = scmp.ne.s32.totalorder %s89, %s91
      %p98 = scmp.eq.s32.totalorder %s44, 5
      %p99 = por %p97, %p98
      %p100 = scmp.ne.s32.totalorder %s91, %s92
      %p101 = scmp.eq.s32.totalorder %s44, 0
      %p102 = por %p100, %p101
      %p103 = scmp.ne.s32.totalorder %s91, %s92
      %p104 = scmp.eq.s32.totalorder %s45, 5
      %p105 = por %p103, %p104
      %p107 = scmp.ne.s32.totalorder %s92, %s106
      %p108 = scmp.eq.s32.totalorder %s45, 0
      %p109 = por %p107, %p108
      %s111 = sadd.s32 %s110, 1
      %p114 = scmp.eq.s32.totalorder %s39, 5
      %p115 = scmp.ne.s32.totalorder %s110, %s112
      %p116 = scmp.eq.s32.totalorder %s39, 0
      %p117 = por %p115, %p116
      %p118 = scmp.ne.s32.totalorder %s110, %s112
      %p119 = scmp.eq.s32.totalorder %s44, 5
      %p120 = por %p118, %p119
      %p121 = scmp.ne.s32.totalorder %s112, %s113
      %p122 = scmp.eq.s32.totalorder %s44, 0
      %p123 = por %p121, %p122
      %p124 = scmp.ne.s32.totalorder %s112, %s113
      %p125 = scmp.eq.s32.totalorder %s45, 5
      %p126 = por %p124, %p125
      %p128 = scmp.ne.s32.totalorder %s113, %s127
      %p129 = scmp.eq.s32.totalorder %s45, 0
      %p130 = por %p128, %p129
      %s132 = sadd.s32 %s131, 1
      %p135 = scmp.eq.s32.totalorder %s39, 5
      %p136 = scmp.ne.s32.totalorder %s131, %s133
      %p137 = scmp.eq.s32.totalorder %s39, 0
      %p138 = por %p136, %p137
      %p139 = scmp.ne.s32.totalorder %s131, %s133
      %p140 = scmp.eq.s32.totalorder %s44, 5
      %p141 = por %p139, %p140
      %p142 = scmp.ne.s32.totalorder %s133, %s134
      %p143 = scmp.eq.s32.totalorder %s44, 0
      %p144 = por %p142, %p143
      %p145 = scmp.ne.s32.totalorder %s133, %s134
      %p146 = scmp.eq.s32.totalorder %s45, 5
      %p147 = por %p145, %p146
      %p149 = scmp.ne.s32.totalorder %s134, %s148
      %p150 = scmp.eq.s32.totalorder %s45, 0
      %p151 = por %p149, %p150
      %s153 = sadd.s32 %s152, 1
      %p156 = scmp.eq.s32.totalorder %s39, 5
      %p157 = scmp.ne.s32.totalorder %s152, %s154
      %p158 = scmp.eq.s32.totalorder %s39, 0
      %p159 = por %p157, %p158
      %p160 = scmp.ne.s32.totalorder %s152, %s154
      %p161 = scmp.eq.s32.totalorder %s44, 5
      %p162 = por %p160, %p161
      %p163 = scmp.ne.s32.totalorder %s154, %s155
      %p164 = scmp.eq.s32.totalorder %s44, 0
      %p165 = por %p163, %p164
      %p166 = scmp.ne.s32.totalorder %s154, %s155
      %p167 = scmp.eq.s32.totalorder %s45, 5
      %p168 = por %p166, %p167
      %p170 = scmp.ne.s32.totalorder %s155, %s169
      %p171 = scmp.eq.s32.totalorder %s45, 0
      %p172 = por %p170, %p171
      %s173 = ssub.s32 %s39, %s46
      %p174 = scmp.eq.s32.totalorder %s173, 0
      %s176 = sadd.s32 %s175, 1
      %s177 = scalar_select %p174, %s175, %s176
      %p180 = pneg %p174
      %p181 = scmp.eq.s32.totalorder %s39, 5
      %p182 = por %p180, %p181
      %p183 = scmp.ne.s32.totalorder %s175, %s178
      %p184 = scmp.eq.s32.totalorder %s39, 0
      %p185 = por %p183, %p184
      %p186 = scmp.ne.s32.totalorder %s175, %s178
      %p187 = scmp.eq.s32.totalorder %s44, 5
      %p188 = por %p186, %p187
      %p189 = scmp.ne.s32.totalorder %s178, %s179
      %p190 = scmp.eq.s32.totalorder %s44, 0
      %p191 = por %p189, %p190
      %p192 = scmp.ne.s32.totalorder %s178, %s179
      %p193 = scmp.eq.s32.totalorder %s45, 5
      %p194 = por %p192, %p193
      %p196 = scmp.ne.s32.totalorder %s179, %s195
      %p197 = scmp.eq.s32.totalorder %s45, 0
      %p198 = por %p196, %p197
      %s199 = ssub.s32 %s39, %s46
      %p200 = scmp.eq.s32.totalorder %s199, 0
      %s202 = sadd.s32 %s201, 1
      %s203 = scalar_select %p200, %s201, %s202
      %p206 = pneg %p200
      %p207 = scmp.eq.s32.totalorder %s39, 5
      %p208 = por %p206, %p207
      %p209 = scmp.ne.s32.totalorder %s201, %s204
      %p210 = scmp.eq.s32.totalorder %s39, 0
      %p211 = por %p209, %p210
      %p212 = scmp.ne.s32.totalorder %s201, %s204
      %p213 = scmp.eq.s32.totalorder %s44, 5
      %p214 = por %p212, %p213
      %p215 = scmp.ne.s32.totalorder %s204, %s205
      %p216 = scmp.eq.s32.totalorder %s44, 0
      %p217 = por %p215, %p216
      %p218 = scmp.ne.s32.totalorder %s204, %s205
      %p219 = scmp.eq.s32.totalorder %s45, 5
      %p220 = por %p218, %p219
      %p222 = scmp.ne.s32.totalorder %s205, %s221
      %p223 = scmp.eq.s32.totalorder %s45, 0
      %p224 = por %p222, %p223
      %s225 = ssub.s32 %s39, %s46
      %p226 = scmp.eq.s32.totalorder %s225, 0
      %s228 = sadd.s32 %s227, 1
      %s229 = scalar_select %p226, %s227, %s228
      %p232 = pneg %p226
      %p233 = scmp.eq.s32.totalorder %s39, 5
      %p234 = por %p232, %p233
      %p235 = scmp.ne.s32.totalorder %s227, %s230
      %p236 = scmp.eq.s32.totalorder %s39, 0
      %p237 = por %p235, %p236
      %p238 = scmp.ne.s32.totalorder %s227, %s230
      %p239 = scmp.eq.s32.totalorder %s44, 5
      %p240 = por %p238, %p239
      %p241 = scmp.ne.s32.totalorder %s230, %s231
      %p242 = scmp.eq.s32.totalorder %s44, 0
      %p243 = por %p241, %p242
      %p244 = scmp.ne.s32.totalorder %s230, %s231
      %p245 = scmp.eq.s32.totalorder %s45, 5
      %p246 = por %p244, %p245
      %p248 = scmp.ne.s32.totalorder %s231, %s247
      %p249 = scmp.eq.s32.totalorder %s45, 0
      %p250 = por %p248, %p249
      %s251 = ssub.s32 %s39, %s46
      %p252 = scmp.eq.s32.totalorder %s251, 0
      %s254 = sadd.s32 %s253, 1
      %s255 = scalar_select %p252, %s253, %s254
      %p258 = pneg %p252
      %p259 = scmp.eq.s32.totalorder %s39, 5
      %p260 = por %p258, %p259
      %p261 = scmp.ne.s32.totalorder %s253, %s256
      %p262 = scmp.eq.s32.totalorder %s39, 0
      %p263 = por %p261, %p262
      %p264 = scmp.ne.s32.totalorder %s253, %s256
      %p265 = scmp.eq.s32.totalorder %s44, 5
      %p266 = por %p264, %p265
      %p267 = scmp.ne.s32.totalorder %s256, %s257
      %p268 = scmp.eq.s32.totalorder %s44, 0
      %p269 = por %p267, %p268
      %p270 = scmp.ne.s32.totalorder %s256, %s257
      %p271 = scmp.eq.s32.totalorder %s45, 5
      %p272 = por %p270, %p271
      %p274 = scmp.ne.s32.totalorder %s257, %s273
      %p275 = scmp.eq.s32.totalorder %s45, 0
      %p276 = por %p274, %p275
      %s277 = ssub.s32 %s39, %s46
      %p278 = scmp.eq.s32.totalorder %s277, 0
      %s280 = sadd.s32 %s279, 1
      %s281 = scalar_select %p278, %s279, %s280
      %p284 = pneg %p278
      %p285 = scmp.eq.s32.totalorder %s39, 5
      %p286 = por %p284, %p285
      %p287 = scmp.ne.s32.totalorder %s279, %s282
      %p288 = scmp.eq.s32.totalorder %s39, 0
      %p289 = por %p287, %p288
      %p290 = scmp.ne.s32.totalorder %s279, %s282
      %p291 = scmp.eq.s32.totalorder %s44, 5
      %p292 = por %p290, %p291
      %p293 = scmp.ne.s32.totalorder %s282, %s283
      %p294 = scmp.eq.s32.totalorder %s44, 0
      %p295 = por %p293, %p294
      %p296 = scmp.ne.s32.totalorder %s282, %s283
      %p297 = scmp.eq.s32.totalorder %s45, 5
      %p298 = por %p296, %p297
      %p300 = scmp.ne.s32.totalorder %s283, %s299
      %p301 = scmp.eq.s32.totalorder %s45, 0
      %p302 = por %p300, %p301
      %s303 = ssub.s32 %s39, %s46
      %p304 = scmp.eq.s32.totalorder %s303, 0
      %s306 = sadd.s32 %s305, 1
      %s307 = scalar_select %p304, %s305, %s306
      %p310 = pneg %p304
      %p311 = scmp.eq.s32.totalorder %s39, 5
      %p312 = por %p310, %p311
      %p313 = scmp.ne.s32.totalorder %s305, %s308
      %p314 = scmp.eq.s32.totalorder %s39, 0
      %p315 = por %p313, %p314
      %p316 = scmp.ne.s32.totalorder %s305, %s308
      %p317 = scmp.eq.s32.totalorder %s44, 5
      %p318 = por %p316, %p317
      %p319 = scmp.ne.s32.totalorder %s308, %s309
      %p320 = scmp.eq.s32.totalorder %s44, 0
      %p321 = por %p319, %p320
      %p322 = scmp.ne.s32.totalorder %s308, %s309
      %p323 = scmp.eq.s32.totalorder %s45, 5
      %p324 = por %p322, %p323
      %p326 = scmp.ne.s32.totalorder %s309, %s325
      %p327 = scmp.eq.s32.totalorder %s45, 0
      %p328 = por %p326, %p327
      %s330 = sadd.s32 %s329, 1
      %p333 = scmp.eq.s32.totalorder %s39, 5
      %p334 = scmp.ne.s32.totalorder %s329, %s331
      %p335 = scmp.eq.s32.totalorder %s39, 0
      %p336 = por %p334, %p335
      %p337 = scmp.ne.s32.totalorder %s329, %s331
      %p338 = scmp.eq.s32.totalorder %s44, 5
      %p339 = por %p337, %p338
      %p340 = scmp.ne.s32.totalorder %s331, %s332
      %p341 = scmp.eq.s32.totalorder %s44, 0
      %p342 = por %p340, %p341
      %p343 = scmp.ne.s32.totalorder %s331, %s332
      %p344 = scmp.eq.s32.totalorder %s45, 5
      %p345 = por %p343, %p344
      %p347 = scmp.ne.s32.totalorder %s332, %s346
      %p348 = scmp.eq.s32.totalorder %s45, 0
      %p349 = por %p347, %p348
      %s351 = sadd.s32 %s350, 1
      %p354 = scmp.eq.s32.totalorder %s39, 5
      %p355 = scmp.ne.s32.totalorder %s350, %s352
      %p356 = scmp.eq.s32.totalorder %s39, 0
      %p357 = por %p355, %p356
      %p358 = scmp.ne.s32.totalorder %s350, %s352
      %p359 = scmp.eq.s32.totalorder %s44, 5
      %p360 = por %p358, %p359
      %p361 = scmp.ne.s32.totalorder %s352, %s353
      %p362 = scmp.eq.s32.totalorder %s44, 0
      %p363 = por %p361, %p362
      %p364 = scmp.ne.s32.totalorder %s352, %s353
      %p365 = scmp.eq.s32.totalorder %s45, 5
      %p366 = por %p364, %p365
      %p368 = scmp.ne.s32.totalorder %s353, %s367
      %p369 = scmp.eq.s32.totalorder %s45, 0
      %p370 = por %p368, %p369
      %s372 = sadd.s32 %s371, 1
      %p375 = scmp.eq.s32.totalorder %s39, 5
      %p376 = scmp.ne.s32.totalorder %s371, %s373
      %p377 = scmp.eq.s32.totalorder %s39, 0
      %p378 = por %p376, %p377
      %p379 = scmp.ne.s32.totalorder %s371, %s373
      %p380 = scmp.eq.s32.totalorder %s44, 5
      %p381 = por %p379, %p380
      %p382 = scmp.ne.s32.totalorder %s373, %s374
      %p383 = scmp.eq.s32.totalorder %s44, 0
      %p384 = por %p382, %p383
      %p385 = scmp.ne.s32.totalorder %s373, %s374
      %p386 = scmp.eq.s32.totalorder %s45, 5
      %p387 = por %p385, %p386
      %p389 = scmp.ne.s32.totalorder %s374, %s388
      %p390 = scmp.eq.s32.totalorder %s45, 0
      %p391 = por %p389, %p390
      %s393 = sadd.s32 %s392, 1
      %p396 = scmp.eq.s32.totalorder %s39, 5
      %p397 = scmp.ne.s32.totalorder %s392, %s394
      %p398 = scmp.eq.s32.totalorder %s39, 0
      %p399 = por %p397, %p398
      %p400 = scmp.ne.s32.totalorder %s392, %s394
      %p401 = scmp.eq.s32.totalorder %s44, 5
      %p402 = por %p400, %p401
      %p403 = scmp.ne.s32.totalorder %s394, %s395
      %p404 = scmp.eq.s32.totalorder %s44, 0
      %p405 = por %p403, %p404
      %p406 = scmp.ne.s32.totalorder %s394, %s395
      %p407 = scmp.eq.s32.totalorder %s45, 5
      %p408 = por %p406, %p407
      %p410 = scmp.ne.s32.totalorder %s395, %s409
      %p411 = scmp.eq.s32.totalorder %s45, 0
      %p412 = por %p410, %p411
      %s414 = sadd.s32 %s413, 1
      %p417 = scmp.eq.s32.totalorder %s39, 5
      %p418 = scmp.ne.s32.totalorder %s413, %s415
      %p419 = scmp.eq.s32.totalorder %s39, 0
      %p420 = por %p418, %p419
      %p421 = scmp.ne.s32.totalorder %s413, %s415
      %p422 = scmp.eq.s32.totalorder %s44, 5
      %p423 = por %p421, %p422
      %p424 = scmp.ne.s32.totalorder %s415, %s416
      %p425 = scmp.eq.s32.totalorder %s44, 0
      %p426 = por %p424, %p425
      %p427 = scmp.ne.s32.totalorder %s415, %s416
      %p428 = scmp.eq.s32.totalorder %s45, 5
      %p429 = por %p427, %p428
      %p431 = scmp.ne.s32.totalorder %s416, %s430
      %p432 = scmp.eq.s32.totalorder %s45, 0
      %p433 = por %p431, %p432
      %s435 = sadd.s32 %s434, 1
      %p438 = scmp.eq.s32.totalorder %s39, 5
      %p439 = scmp.ne.s32.totalorder %s434, %s436
      %p440 = scmp.eq.s32.totalorder %s39, 0
      %p441 = por %p439, %p440
      %p442 = scmp.ne.s32.totalorder %s434, %s436
      %p443 = scmp.eq.s32.totalorder %s44, 5
      %p444 = por %p442, %p443
      %p445 = scmp.ne.s32.totalorder %s436, %s437
      %p446 = scmp.eq.s32.totalorder %s44, 0
      %p447 = por %p445, %p446
      %p448 = scmp.ne.s32.totalorder %s436, %s437
      %p449 = scmp.eq.s32.totalorder %s45, 5
      %p450 = por %p448, %p449
      %p452 = scmp.ne.s32.totalorder %s437, %s451
      %p453 = scmp.eq.s32.totalorder %s45, 0
      %p454 = por %p452, %p453
      %s456 = sadd.s32 %s455, 1
      %p459 = scmp.eq.s32.totalorder %s39, 5
      %p460 = scmp.ne.s32.totalorder %s455, %s457
      %p461 = scmp.eq.s32.totalorder %s39, 0
      %p462 = por %p460, %p461
      %p463 = scmp.ne.s32.totalorder %s455, %s457
      %p464 = scmp.eq.s32.totalorder %s44, 5
      %p465 = por %p463, %p464
      %p466 = scmp.ne.s32.totalorder %s457, %s458
      %p467 = scmp.eq.s32.totalorder %s44, 0
      %p468 = por %p466, %p467
      %p469 = scmp.ne.s32.totalorder %s457, %s458
      %p470 = scmp.eq.s32.totalorder %s45, 5
      %p471 = por %p469, %p470
      %p473 = scmp.ne.s32.totalorder %s458, %s472
      %p474 = scmp.eq.s32.totalorder %s45, 0
      %p475 = por %p473, %p474
      %p476 = scmp.le.s32.totalorder 1, %s39
      %p477 = scmp.lt.s32.totalorder %s39, 7
      %p478 = pnand %p476, %p477
      %p479 = pneg %p478
      // Predicated region
      $region9: #{modified_pna_net.1} parent=5 // pred_check
        _
      $region10: #{modified_pna_net.1} parent=5 // pred_check_branch
        %481 = sbr.rel (%p478) target = $region12
      $region11: #{modified_pna_net.1} parent=5 // pred_region
        %s482 = ssub.s32 %s39, 1
        // Predicated region
        $region13: #{modified_pna_net.1} parent=11 // pred_check
          %p483 = pneg %p60
        $region14: #{modified_pna_net.1} parent=11 // pred_check_branch
          %485 = sbr.rel (%p483) target = $region16
        $region15: #{modified_pna_net.1} parent=11 // pred_region
          _
        $region16: #{modified_pna_net.1} parent=11 // pred_fallthru
          _
        // Predicated region
        $region17: #{modified_pna_net.1} parent=11 // pred_check
          %p486 = pneg %p81
        $region18: #{modified_pna_net.1} parent=11 // pred_check_branch
          %488 = sbr.rel (%p486) target = $region20
        $region19: #{modified_pna_net.1} parent=11 // pred_region
          _
        $region20: #{modified_pna_net.1} parent=11 // pred_fallthru
          _
        // Predicated region
        $region21: #{modified_pna_net.1} parent=11 // pred_check
          %p489 = pneg %p102
        $region22: #{modified_pna_net.1} parent=11 // pred_check_branch
          %491 = sbr.rel (%p489) target = $region24
        $region23: #{modified_pna_net.1} parent=11 // pred_region
          _
        $region24: #{modified_pna_net.1} parent=11 // pred_fallthru
          _
        // Predicated region
        $region25: #{modified_pna_net.1} parent=11 // pred_check
          %p492 = pneg %p123
        $region26: #{modified_pna_net.1} parent=11 // pred_check_branch
          %494 = sbr.rel (%p492) target = $region28
        $region27: #{modified_pna_net.1} parent=11 // pred_region
          _
        $region28: #{modified_pna_net.1} parent=11 // pred_fallthru
          _
        // Predicated region
        $region29: #{modified_pna_net.1} parent=11 // pred_check
          %p495 = pneg %p144
        $region30: #{modified_pna_net.1} parent=11 // pred_check_branch
          %497 = sbr.rel (%p495) target = $region32
        $region31: #{modified_pna_net.1} parent=11 // pred_region
          _
        $region32: #{modified_pna_net.1} parent=11 // pred_fallthru
          _
        // Predicated region
        $region33: #{modified_pna_net.1} parent=11 // pred_check
          %p498 = pneg %p165
        $region34: #{modified_pna_net.1} parent=11 // pred_check_branch
          %500 = sbr.rel (%p498) target = $region36
        $region35: #{modified_pna_net.1} parent=11 // pred_region
          _
        $region36: #{modified_pna_net.1} parent=11 // pred_fallthru
          _
        // Predicated region
        $region37: #{modified_pna_net.1} parent=11 // pred_check
          %p501 = pneg %p342
        $region38: #{modified_pna_net.1} parent=11 // pred_check_branch
          %503 = sbr.rel (%p501) target = $region40
        $region39: #{modified_pna_net.1} parent=11 // pred_region
          %s505 = ssub.s32 4096, 4096
          %506 = vsyncadd [#allocation13], %s505
          %s507 = sshll.u32 [#allocation14], 4
          %s508 = int_to_ptr.vmem [resolvable:$true] %s507
          %513 = dma.hbm_to_vmem [thread:$0]  %s12, 4096, %s508, [#allocation13], 128, 128, 8
        $region40: #{modified_pna_net.1} parent=11 // pred_fallthru
          _
        // Predicated region
        $region41: #{modified_pna_net.1} parent=11 // pred_check
          %p514 = pneg %p363
        $region42: #{modified_pna_net.1} parent=11 // pred_check_branch
          %516 = sbr.rel (%p514) target = $region44
        $region43: #{modified_pna_net.1} parent=11 // pred_region
          %s518 = ssub.s32 16, 16
          %519 = vsyncadd [#allocation16], %s518
          %s521 = sshll.u32 [#allocation15], 4
          %s522 = int_to_ptr.vmem [resolvable:$true] %s521
          %524 = dma.hbm_to_vmem [thread:$0]  %s13, 16, %s522, [#allocation16]
        $region44: #{modified_pna_net.1} parent=11 // pred_fallthru
          _
        // Predicated region
        $region45: #{modified_pna_net.1} parent=11 // pred_check
          %p525 = pneg %p384
        $region46: #{modified_pna_net.1} parent=11 // pred_check_branch
          %527 = sbr.rel (%p525) target = $region48
        $region47: #{modified_pna_net.1} parent=11 // pred_region
          _
        $region48: #{modified_pna_net.1} parent=11 // pred_fallthru
          _
        // Predicated region
        $region49: #{modified_pna_net.1} parent=11 // pred_check
          %p528 = pneg %p405
        $region50: #{modified_pna_net.1} parent=11 // pred_check_branch
          %530 = sbr.rel (%p528) target = $region52
        $region51: #{modified_pna_net.1} parent=11 // pred_region
          %s532 = ssub.s32 16, 16
          %533 = vsyncadd [#allocation16], %s532
          %s535 = sshll.u32 [#allocation17], 4
          %s536 = int_to_ptr.vmem [resolvable:$true] %s535
          %538 = dma.hbm_to_vmem [thread:$0]  %s15, 16, %s536, [#allocation16]
        $region52: #{modified_pna_net.1} parent=11 // pred_fallthru
          _
        // Predicated region
        $region53: #{modified_pna_net.1} parent=11 // pred_check
          %p539 = pneg %p426
        $region54: #{modified_pna_net.1} parent=11 // pred_check_branch
          %541 = sbr.rel (%p539) target = $region56
        $region55: #{modified_pna_net.1} parent=11 // pred_region
          _
        $region56: #{modified_pna_net.1} parent=11 // pred_fallthru
          _
        // Predicated region
        $region57: #{modified_pna_net.1} parent=11 // pred_check
          %p542 = pneg %p447
        $region58: #{modified_pna_net.1} parent=11 // pred_check_branch
          %544 = sbr.rel (%p542) target = $region60
        $region59: #{modified_pna_net.1} parent=11 // pred_region
          _
        $region60: #{modified_pna_net.1} parent=11 // pred_fallthru
          _
      $region12: #{modified_pna_net.1} parent=5 // pred_fallthru
        _
      %p545 = scmp.lt.s32.totalorder %s39, 6
      // Predicated region
      $region61: #{modified_pna_net.1} parent=5 // pred_check
        %p546 = pneg %p545
      $region62: #{modified_pna_net.1} parent=5 // pred_check_branch
        %548 = sbr.rel (%p546) target = $region64
      $region63: #{modified_pna_net.1} parent=5 // pred_region
        // Predicated region
        $region65: #{modified_pna_net.1} parent=63 // pred_check
          %p549 = pneg %p185
        $region66: #{modified_pna_net.1} parent=63 // pred_check_branch
          %551 = sbr.rel (%p549) target = $region68
        $region67: #{modified_pna_net.1} parent=63 // pred_region
          %s552 = sand.u32 %s175, 1
          %s553 = scalar_lea.sflag [#allocation5], %s552
          %s554 = sand.u32 %s175, 1
          %s555 = smul.addr %s554, 128
          %s556 = scalar_lea.vmem [#allocation4], %s555
          %s558 = ssub.s32 2048, 2048
          %559 = vsyncadd %s553, %s558
          %s560 = smul.addr %s39, 16
          %s561 = smul.addr %s560, 128
          %s562 = scalar_lea.hbm %s6, %s561
          %s563 = sshll.u32 %s556, 4
          %s564 = int_to_ptr.vmem [resolvable:$true] %s563
          %569 = dma.hbm_to_vmem [thread:$0]  %s562, 2048, %s564, %s553, 128, 128, 8
        $region68: #{modified_pna_net.1} parent=63 // pred_fallthru
          _
        // Predicated region
        $region69: #{modified_pna_net.1} parent=63 // pred_check
          %p570 = pneg %p211
        $region70: #{modified_pna_net.1} parent=63 // pred_check_branch
          %572 = sbr.rel (%p570) target = $region72
        $region71: #{modified_pna_net.1} parent=63 // pred_region
          %s573 = sand.u32 %s39, 1
          %s574 = scalar_lea.sflag [#allocation7], %s573
          %s575 = sand.u32 %s201, 1
          %s576 = smul.addr %s575, 384
          %s577 = scalar_lea.vmem [#allocation6], %s576
          %s579 = ssub.s32 6144, 6144
          %580 = vsyncadd %s574, %s579
          %s581 = smul.addr %s39, 48
          %s582 = smul.addr %s581, 128
          %s583 = scalar_lea.hbm %s7, %s582
          %s584 = sshll.u32 %s577, 4
          %s585 = int_to_ptr.vmem [resolvable:$true] %s584
          %590 = dma.hbm_to_vmem [thread:$0]  %s583, 6144, %s585, %s574, 128, 128, 8
        $region72: #{modified_pna_net.1} parent=63 // pred_fallthru
          _
        // Predicated region
        $region73: #{modified_pna_net.1} parent=63 // pred_check
          %p591 = pneg %p237
        $region74: #{modified_pna_net.1} parent=63 // pred_check_branch
          %593 = sbr.rel (%p591) target = $region76
        $region75: #{modified_pna_net.1} parent=63 // pred_region
          %s594 = sand.u32 %s39, 1
          %s595 = scalar_lea.sflag [#allocation7], %s594
          %s596 = sand.u32 %s227, 1
          %s597 = smul.addr %s596, 128
          %s598 = scalar_lea.vmem [#allocation8], %s597
          %s600 = ssub.s32 2048, 2048
          %601 = vsyncadd %s595, %s600
          %s602 = smul.addr %s39, 16
          %s603 = smul.addr %s602, 128
          %s604 = scalar_lea.hbm %s8, %s603
          %s605 = sshll.u32 %s598, 4
          %s606 = int_to_ptr.vmem [resolvable:$true] %s605
          %611 = dma.hbm_to_vmem [thread:$0]  %s604, 2048, %s606, %s595, 128, 128, 8
        $region76: #{modified_pna_net.1} parent=63 // pred_fallthru
          _
        // Predicated region
        $region77: #{modified_pna_net.1} parent=63 // pred_check
          %p612 = pneg %p263
        $region78: #{modified_pna_net.1} parent=63 // pred_check_branch
          %614 = sbr.rel (%p612) target = $region80
        $region79: #{modified_pna_net.1} parent=63 // pred_region
          %s615 = sand.u32 %s39, 1
          %s616 = scalar_lea.sflag [#allocation10], %s615
          %s617 = sand.u32 %s253, 1
          %s618 = smul.addr %s617, 2048
          %s619 = scalar_lea.vmem [#allocation9], %s618
          %s621 = ssub.s32 32768, 32768
          %622 = vsyncadd %s616, %s621
          %s623 = smul.addr %s39, 256
          %s624 = smul.addr %s623, 128
          %s625 = scalar_lea.hbm %s9, %s624
          %s626 = sshll.u32 %s619, 4
          %s627 = int_to_ptr.vmem [resolvable:$true] %s626
          %632 = dma.hbm_to_vmem [thread:$0]  %s625, 32768, %s627, %s616, 512, 512, 32
        $region80: #{modified_pna_net.1} parent=63 // pred_fallthru
          _
        // Predicated region
        $region81: #{modified_pna_net.1} parent=63 // pred_check
          %p633 = pneg %p289
        $region82: #{modified_pna_net.1} parent=63 // pred_check_branch
          %635 = sbr.rel (%p633) target = $region84
        $region83: #{modified_pna_net.1} parent=63 // pred_region
          %s636 = sand.u32 %s39, 1
          %s637 = scalar_lea.sflag [#allocation10], %s636
          %s638 = sand.u32 %s279, 1
          %s639 = smul.addr %s638, 128
          %s640 = scalar_lea.vmem [#allocation11], %s639
          %s642 = ssub.s32 2048, 2048
          %643 = vsyncadd %s637, %s642
          %s644 = smul.addr %s39, 16
          %s645 = smul.addr %s644, 128
          %s646 = scalar_lea.hbm %s10, %s645
          %s647 = sshll.u32 %s640, 4
          %s648 = int_to_ptr.vmem [resolvable:$true] %s647
          %653 = dma.hbm_to_vmem [thread:$0]  %s646, 2048, %s648, %s637, 128, 128, 8
        $region84: #{modified_pna_net.1} parent=63 // pred_fallthru
          _
        // Predicated region
        $region85: #{modified_pna_net.1} parent=63 // pred_check
          %p654 = pneg %p315
        $region86: #{modified_pna_net.1} parent=63 // pred_check_branch
          %656 = sbr.rel (%p654) target = $region88
        $region87: #{modified_pna_net.1} parent=63 // pred_region
          %s657 = sand.u32 %s39, 1
          %s658 = scalar_lea.sflag [#allocation13], %s657
          %s659 = sand.u32 %s305, 1
          %s660 = smul.addr %s659, 8
          %s661 = scalar_lea.vmem [#allocation12], %s660
          %s663 = ssub.s32 128, 128
          %664 = vsyncadd %s658, %s663
          %s665 = smul.addr %s39, 128
          %s666 = scalar_lea.hbm %s11, %s665
          %s668 = sshll.u32 %s661, 4
          %s669 = int_to_ptr.vmem [resolvable:$true] %s668
          %671 = dma.hbm_to_vmem [thread:$0]  %s666, 128, %s669, %s658
        $region88: #{modified_pna_net.1} parent=63 // pred_fallthru
          _
      $region64: #{modified_pna_net.1} parent=5 // pred_fallthru
        _
      %p672 = scmp.le.s32.totalorder 1, %s39
      %p673 = scmp.lt.s32.totalorder %s39, 7
      %p674 = pnand %p672, %p673
      %p675 = pneg %p674
      // Predicated region
      $region89: #{modified_pna_net.1} parent=5 // pred_check
        _
      $region90: #{modified_pna_net.1} parent=5 // pred_check_branch
        %677 = sbr.rel (%p674) target = $region92
      $region91: #{modified_pna_net.1} parent=5 // pred_region
        %s678 = ssub.s32 %s39, 1
        %s679 = sand.u32 %s178, 1
        %s680 = scalar_lea.sflag [#allocation5], %s679
        %s681 = sand.u32 %s178, 1
        %s682 = smul.addr %s681, 128
        %s683 = scalar_lea.vmem [#allocation4], %s682
        // Predicated region
        $region93: #{modified_pna_net.1} parent=91 // pred_check
          %p684 = pneg %p191
        $region94: #{modified_pna_net.1} parent=91 // pred_check_branch
          %686 = sbr.rel (%p684) target = $region96
        $region95: #{modified_pna_net.1} parent=91 // pred_region
          %687 = dma.done %s680, 2048
        $region96: #{modified_pna_net.1} parent=91 // pred_fallthru
          _
        %s688 = sand.u32 %s44, 1
        %s689 = scalar_lea.sflag [#allocation7], %s688
        %s690 = sand.u32 %s204, 1
        %s691 = smul.addr %s690, 384
        %s692 = scalar_lea.vmem [#allocation6], %s691
        // Predicated region
        $region97: #{modified_pna_net.1} parent=91 // pred_check
          %p693 = pneg %p217
        $region98: #{modified_pna_net.1} parent=91 // pred_check_branch
          %695 = sbr.rel (%p693) target = $region100
        $region99: #{modified_pna_net.1} parent=91 // pred_region
          %696 = dma.done %s689, 6144
        $region100: #{modified_pna_net.1} parent=91 // pred_fallthru
          _
        %s697 = sand.u32 %s44, 1
        %s698 = scalar_lea.sflag [#allocation7], %s697
        %s699 = sand.u32 %s230, 1
        %s700 = smul.addr %s699, 128
        %s701 = scalar_lea.vmem [#allocation8], %s700
        // Predicated region
        $region101: #{modified_pna_net.1} parent=91 // pred_check
          %p702 = pneg %p243
        $region102: #{modified_pna_net.1} parent=91 // pred_check_branch
          %704 = sbr.rel (%p702) target = $region104
        $region103: #{modified_pna_net.1} parent=91 // pred_region
          %705 = dma.done %s698, 2048
        $region104: #{modified_pna_net.1} parent=91 // pred_fallthru
          _
        %s706 = sand.u32 %s44, 1
        %s707 = scalar_lea.sflag [#allocation10], %s706
        %s708 = sand.u32 %s256, 1
        %s709 = smul.addr %s708, 2048
        %s710 = scalar_lea.vmem [#allocation9], %s709
        // Predicated region
        $region105: #{modified_pna_net.1} parent=91 // pred_check
          %p711 = pneg %p269
        $region106: #{modified_pna_net.1} parent=91 // pred_check_branch
          %713 = sbr.rel (%p711) target = $region108
        $region107: #{modified_pna_net.1} parent=91 // pred_region
          %714 = dma.done %s707, 32768
        $region108: #{modified_pna_net.1} parent=91 // pred_fallthru
          _
        %s715 = sand.u32 %s44, 1
        %s716 = scalar_lea.sflag [#allocation10], %s715
        %s717 = sand.u32 %s282, 1
        %s718 = smul.addr %s717, 128
        %s719 = scalar_lea.vmem [#allocation11], %s718
        // Predicated region
        $region109: #{modified_pna_net.1} parent=91 // pred_check
          %p720 = pneg %p295
        $region110: #{modified_pna_net.1} parent=91 // pred_check_branch
          %722 = sbr.rel (%p720) target = $region112
        $region111: #{modified_pna_net.1} parent=91 // pred_region
          %723 = dma.done %s716, 2048
        $region112: #{modified_pna_net.1} parent=91 // pred_fallthru
          _
        %s724 = sand.u32 %s44, 1
        %s725 = scalar_lea.sflag [#allocation13], %s724
        %s726 = sand.u32 %s308, 1
        %s727 = smul.addr %s726, 8
        %s728 = scalar_lea.vmem [#allocation12], %s727
        // Predicated region
        $region113: #{modified_pna_net.1} parent=91 // pred_check
          %p729 = pneg %p321
        $region114: #{modified_pna_net.1} parent=91 // pred_check_branch
          %731 = sbr.rel (%p729) target = $region116
        $region115: #{modified_pna_net.1} parent=91 // pred_region
          %732 = dma.done %s725, 128
        $region116: #{modified_pna_net.1} parent=91 // pred_fallthru
          _
        // Predicated region
        $region117: #{modified_pna_net.1} parent=91 // pred_check
          %p733 = pneg %p342
        $region118: #{modified_pna_net.1} parent=91 // pred_check_branch
          %735 = sbr.rel (%p733) target = $region120
        $region119: #{modified_pna_net.1} parent=91 // pred_region
          %736 = dma.done [#allocation13], 4096
        $region120: #{modified_pna_net.1} parent=91 // pred_fallthru
          _
        // Predicated region
        $region121: #{modified_pna_net.1} parent=91 // pred_check
          %p737 = pneg %p363
        $region122: #{modified_pna_net.1} parent=91 // pred_check_branch
          %739 = sbr.rel (%p737) target = $region124
        $region123: #{modified_pna_net.1} parent=91 // pred_region
          %740 = dma.done [#allocation16], 16
        $region124: #{modified_pna_net.1} parent=91 // pred_fallthru
          _
        // Predicated region
        $region125: #{modified_pna_net.1} parent=91 // pred_check
          %p741 = pneg %p405
        $region126: #{modified_pna_net.1} parent=91 // pred_check_branch
          %743 = sbr.rel (%p741) target = $region128
        $region127: #{modified_pna_net.1} parent=91 // pred_region
          %744 = dma.done [#allocation16], 16
        $region128: #{modified_pna_net.1} parent=91 // pred_fallthru
          _
        %p745 = pneg %p60
        %p746 = pneg %p57
        %p747 = pneg %p81
        %p748 = pneg %p78
        %p749 = pneg %p102
        %p750 = pneg %p99
        %p751 = pneg %p123
        %p752 = pneg %p120
        %p753 = pneg %p144
        %p754 = pneg %p141
        %p755 = pneg %p165
        %p756 = pneg %p162
        %s757 = sand.u32 %s178, 1
        %s758 = scalar_lea.sflag [#allocation5], %s757
        %s759 = sand.u32 %s178, 1
        %s760 = smul.addr %s759, 128
        %s761 = scalar_lea.vmem [#allocation4], %s760
        %p762 = pneg %p191
        %p763 = pneg %p188
        %s764 = sand.u32 %s44, 1
        %s765 = scalar_lea.sflag [#allocation7], %s764
        %s766 = sand.u32 %s204, 1
        %s767 = smul.addr %s766, 384
        %s768 = scalar_lea.vmem [#allocation6], %s767
        %p769 = pneg %p217
        %p770 = pneg %p214
        %s771 = sand.u32 %s44, 1
        %s772 = scalar_lea.sflag [#allocation7], %s771
        %s773 = sand.u32 %s230, 1
        %s774 = smul.addr %s773, 128
        %s775 = scalar_lea.vmem [#allocation8], %s774
        %p776 = pneg %p243
        %p777 = pneg %p240
        %s778 = sand.u32 %s44, 1
        %s779 = scalar_lea.sflag [#allocation10], %s778
        %s780 = sand.u32 %s256, 1
        %s781 = smul.addr %s780, 2048
        %s782 = scalar_lea.vmem [#allocation9], %s781
        %p783 = pneg %p269
        %p784 = pneg %p266
        %s785 = sand.u32 %s44, 1
        %s786 = scalar_lea.sflag [#allocation10], %s785
        %s787 = sand.u32 %s282, 1
        %s788 = smul.addr %s787, 128
        %s789 = scalar_lea.vmem [#allocation11], %s788
        %p790 = pneg %p295
        %p791 = pneg %p292
        %s792 = sand.u32 %s44, 1
        %s793 = scalar_lea.sflag [#allocation13], %s792
        %s794 = sand.u32 %s308, 1
        %s795 = smul.addr %s794, 8
        %s796 = scalar_lea.vmem [#allocation12], %s795
        %p797 = pneg %p321
        %p798 = pneg %p318
        %p799 = pneg %p342
        %p800 = pneg %p339
        %p801 = pneg %p363
        %p802 = pneg %p360
        %p803 = pneg %p384
        %p804 = pneg %p381
        %p805 = pneg %p405
        %p806 = pneg %p402
        %p807 = pneg %p426
        %p808 = pneg %p423
        %p809 = pneg %p447
        %p810 = pneg %p444
        %p811 = pneg %p468
        %p812 = pneg %p465
        %p813 = scmp.eq.s32.totalorder %s44, 0
        // Predicated region
        $region129: #{modified_pna_net.1} parent=91 // pred_check
          %p814 = pneg %p813
        $region130: #{modified_pna_net.1} parent=91 // pred_check_branch
          %816 = sbr.rel (%p814) target = $region132
        $region131: #{modified_pna_net.1} parent=91 // pred_region
          %v817 = vld [vmem:[%s0] sm:$0xff]
          %v818 = vld [vmem:[%s0 + $0x8] sm:$0xff]
          %v819 = vld [vmem:[%s0 + $0x10] sm:$0xff]
          %v820 = vld [vmem:[%s0 + $0x18] sm:$0xff]
          %821 = vst [vmem:[#allocation2] sm:$0xff] %v817
          %822 = vst [vmem:[#allocation2 + $0x8] sm:$0xff] %v818
          %823 = vst [vmem:[#allocation2 + $0x10] sm:$0xff] %v819
          %824 = vst [vmem:[#allocation2 + $0x18] sm:$0xff] %v820
          %vm825 = vcmask 1024
          %826 = vst.msk [vmem:[%s18] sm:$0x3] %vm825, 0.0
        $region132: #{modified_pna_net.1} parent=91 // pred_fallthru
          _
        %v827 = vld [vmem:[#allocation2] sm:$0xff]
        %v828 = vld [vmem:[#allocation2 + $0x8] sm:$0xff]
        %v829 = vld [vmem:[#allocation2 + $0x10] sm:$0xff]
        %v830 = vld [vmem:[#allocation2 + $0x18] sm:$0xff]
        %v831 = vld [vmem:[%s1] sm:$0xff]
        %v832 = vld [vmem:[%s1 + $0x8] sm:$0xff]
        %v833 = vld [vmem:[%s1 + $0x10] sm:$0xff]
        %v834 = vld [vmem:[%s1 + $0x18] sm:$0xff]
        %v835 = vld [vmem:[%s1 + $0x20] sm:$0xff]
        %v836 = vld [vmem:[%s1 + $0x28] sm:$0xff]
        %v837 = vld [vmem:[%s1 + $0x30] sm:$0xff]
        %v838 = vld [vmem:[%s1 + $0x38] sm:$0xff]
        %v839 = vld [vmem:[%s1 + $0x40] sm:$0xff]
        %v840 = vld [vmem:[%s1 + $0x48] sm:$0xff]
        %v841 = vld [vmem:[%s1 + $0x50] sm:$0xff]
        %v842 = vld [vmem:[%s1 + $0x58] sm:$0xff]
        %v843 = vld [vmem:[%s1 + $0x60] sm:$0xff]
        %v844 = vld [vmem:[%s1 + $0x68] sm:$0xff]
        %v845 = vld [vmem:[%s1 + $0x70] sm:$0xff]
        %v846 = vld [vmem:[%s1 + $0x78] sm:$0xff]
        %v847 = vld [vmem:[%s2] sm:$0xff]
        %v848 = vld [vmem:[%s2 + $0x8] sm:$0xff]
        %v849 = vld [vmem:[%s2 + $0x10] sm:$0xff]
        %v850 = vld [vmem:[%s2 + $0x18] sm:$0xff]
        %v851 = vld [vmem:[%s2 + $0x20] sm:$0xff]
        %v852 = vld [vmem:[%s2 + $0x28] sm:$0xff]
        %v853 = vld [vmem:[%s2 + $0x30] sm:$0xff]
        %v854 = vld [vmem:[%s2 + $0x38] sm:$0xff]
        %v855 = vld [vmem:[%s2 + $0x40] sm:$0xff]
        %v856 = vld [vmem:[%s2 + $0x48] sm:$0xff]
        %v857 = vld [vmem:[%s2 + $0x50] sm:$0xff]
        %v858 = vld [vmem:[%s2 + $0x58] sm:$0xff]
        %v859 = vld [vmem:[%s2 + $0x60] sm:$0xff]
        %v860 = vld [vmem:[%s2 + $0x68] sm:$0xff]
        %v861 = vld [vmem:[%s2 + $0x70] sm:$0xff]
        %v862 = vld [vmem:[%s2 + $0x78] sm:$0xff]
        %v863 = vld [vmem:[%s4] sm:$0xff]
        %v864 = vld [vmem:[%s4 + $0x8] sm:$0xff]
        %v865 = vld [vmem:[%s4 + $0x10] sm:$0xff]
        %v866 = vld [vmem:[%s4 + $0x18] sm:$0xff]
        %vm867 = vcmask 261120
        %v869 = vsel %vm867, %v831, 0
        %v872 = vsel %vm867, %v832, 0
        %v875 = vsel %vm867, %v833, 0
        %v878 = vsel %vm867, %v834, 0
        %v881 = vsel %vm867, %v835, 0
        %v884 = vsel %vm867, %v836, 0
        %v887 = vsel %vm867, %v837, 0
        %v890 = vsel %vm867, %v838, 0
        %v893 = vsel %vm867, %v839, 0
        %v896 = vsel %vm867, %v840, 0
        %v899 = vsel %vm867, %v841, 0
        %v902 = vsel %vm867, %v842, 0
        %v905 = vsel %vm867, %v843, 0
        %v908 = vsel %vm867, %v844, 0
        %v911 = vsel %vm867, %v845, 0
        %v914 = vsel %vm867, %v846, 0
        %916 = vmatprep.subr.mxu0 0.0
        %917 = vmatpush1.msra.mxu0 %v827
        %918 = vmatprep.subr.mxu0 0.0
        %919 = vmatpush1.msra.mxu0 %v828
        %920 = vmatprep.subr.mxu0 0.0
        %921 = vmatpush1.msra.mxu0 %v829
        %922 = vmatprep.subr.mxu0 0.0
        %923 = vmatpush1.msra.mxu0 %v830
        %924 = vmatprep.subr.mxu0 0.0
        %925 = vmatpush1.msra.mxu0 0.0
        %926 = vmatprep.subr.mxu0 0.0
        %927 = vmatpush1.msra.mxu0 0.0
        %928 = vmatprep.subr.mxu0 0.0
        %929 = vmatpush1.msra.mxu0 0.0
        %930 = vmatprep.subr.mxu0 0.0
        %931 = vmatpush1.msra.mxu0 0.0
        %932 = vmatprep.subr.mxu0 0.0
        %933 = vmatpush1.msra.mxu0 0.0
        %934 = vmatprep.subr.mxu0 0.0
        %935 = vmatpush1.msra.mxu0 0.0
        %936 = vmatprep.subr.mxu0 0.0
        %937 = vmatpush1.msra.mxu0 0.0
        %938 = vmatprep.subr.mxu0 0.0
        %939 = vmatpush1.msra.mxu0 0.0
        %940 = vmatprep.subr.mxu0 0.0
        %941 = vmatpush1.msra.mxu0 0.0
        %942 = vmatprep.subr.mxu0 0.0
        %943 = vmatpush1.msra.mxu0 0.0
        %944 = vmatprep.subr.mxu0 0.0
        %945 = vmatpush1.msra.mxu0 0.0
        %946 = vmatprep.subr.mxu0 0.0
        %947 = vmatpush1.msra.mxu0 0.0
        %948 = vmatprep.subr.mxu0 0.0
        %949 = vmatpush1.msra.mxu0 0.0
        %950 = vmatprep.subr.mxu0 0.0
        %951 = vmatpush1.msra.mxu0 0.0
        %952 = vmatprep.subr.mxu0 0.0
        %953 = vmatpush1.msra.mxu0 0.0
        %954 = vmatprep.subr.mxu0 0.0
        %955 = vmatpush1.msra.mxu0 0.0
        %956 = vmatprep.subr.mxu0 0.0
        %957 = vmatpush1.msra.mxu0 0.0
        %958 = vmatprep.subr.mxu0 0.0
        %959 = vmatpush1.msra.mxu0 0.0
        %960 = vmatprep.subr.mxu0 0.0
        %961 = vmatpush1.msra.mxu0 0.0
        %962 = vmatprep.subr.mxu0 0.0
        %963 = vmatpush1.msra.mxu0 0.0
        %964 = vmatprep.subr.mxu0 0.0
        %965 = vmatpush1.msra.mxu0 0.0
        %966 = vmatprep.subr.mxu0 0.0
        %967 = vmatpush1.msra.mxu0 0.0
        %968 = vmatprep.subr.mxu0 0.0
        %969 = vmatpush1.msra.mxu0 0.0
        %970 = vmatprep.subr.mxu0 0.0
        %971 = vmatpush1.msra.mxu0 0.0
        %972 = vmatprep.subr.mxu0 0.0
        %973 = vmatpush1.msra.mxu0 0.0
        %974 = vmatprep.subr.mxu0 0.0
        %975 = vmatpush1.msra.mxu0 0.0
        %976 = vmatprep.subr.mxu0 0.0
        %977 = vmatpush1.msra.mxu0 0.0
        %978 = vmatprep.subr.mxu0 0.0
        %979 = vmatpush1.msra.mxu0 0.0
        %980 = vmatprep.mubr.f32.mxu0 0.0
        %981 = vmatmul.mubr.f32.gmra.mrb[0].mxu0 %v869
        %v982 = vpop.f32.mrb[0].mxu0
        %v983 = vadd.f32 0.0, %v982
        %v984 = vpop.f32.mrb[0].mxu0
        %985 = vmatprep.mubr.f32.mxu0 0.0
        %986 = vmatmul.mubr.f32.gmra.mrb[0].mxu0 %v872
        %v987 = vpop.f32.mrb[0].mxu0
        %v988 = vadd.f32 0.0, %v987
        %v989 = vpop.f32.mrb[0].mxu0
        %990 = vmatprep.mubr.f32.mxu0 0.0
        %991 = vmatmul.mubr.f32.gmra.mrb[0].mxu0 %v875
        %v992 = vpop.f32.mrb[0].mxu0
        %v993 = vadd.f32 0.0, %v992
        %v994 = vpop.f32.mrb[0].mxu0
        %995 = vmatprep.mubr.f32.mxu0 0.0
        %996 = vmatmul.mubr.f32.gmra.mrb[0].mxu0 %v878
        %v997 = vpop.f32.mrb[0].mxu0
        %v998 = vadd.f32 0.0, %v997
        %v999 = vpop.f32.mrb[0].mxu0
        %1000 = vmatprep.mubr.f32.mxu0 0.0
        %1001 = vmatmul.mubr.f32.gmra.mrb[0].mxu0 %v881
        %v1002 = vpop.f32.mrb[0].mxu0
        %v1003 = vadd.f32 0.0, %v1002
        %v1004 = vpop.f32.mrb[0].mxu0
        %1005 = vmatprep.mubr.f32.mxu0 0.0
        %1006 = vmatmul.mubr.f32.gmra.mrb[0].mxu0 %v884
        %v1007 = vpop.f32.mrb[0].mxu0
        %v1008 = vadd.f32 0.0, %v1007
        %v1009 = vpop.f32.mrb[0].mxu0
        %1010 = vmatprep.mubr.f32.mxu0 0.0
        %1011 = vmatmul.mubr.f32.gmra.mrb[0].mxu0 %v887
        %v1012 = vpop.f32.mrb[0].mxu0
        %v1013 = vadd.f32 0.0, %v1012
        %v1014 = vpop.f32.mrb[0].mxu0
        %1015 = vmatprep.mubr.f32.mxu0 0.0
        %1016 = vmatmul.mubr.f32.gmra.mrb[0].mxu0 %v890
        %v1017 = vpop.f32.mrb[0].mxu0
        %v1018 = vadd.f32 0.0, %v1017
        %v1019 = vpop.f32.mrb[0].mxu0
        %1020 = vmatprep.mubr.f32.mxu0 0.0
        %1021 = vmatmul.mubr.f32.gmra.mrb[0].mxu0 %v893
        %v1022 = vpop.f32.mrb[0].mxu0
        %v1023 = vadd.f32 0.0, %v1022
        %v1024 = vpop.f32.mrb[0].mxu0
        %1025 = vmatprep.mubr.f32.mxu0 0.0
        %1026 = vmatmul.mubr.f32.gmra.mrb[0].mxu0 %v896
        %v1027 = vpop.f32.mrb[0].mxu0
        %v1028 = vadd.f32 0.0, %v1027
        %v1029 = vpop.f32.mrb[0].mxu0
        %1030 = vmatprep.mubr.f32.mxu0 0.0
        %1031 = vmatmul.mubr.f32.gmra.mrb[0].mxu0 %v899
        %v1032 = vpop.f32.mrb[0].mxu0
        %v1033 = vadd.f32 0.0, %v1032
        %v1034 = vpop.f32.mrb[0].mxu0
        %1035 = vmatprep.mubr.f32.mxu0 0.0
        %1036 = vmatmul.mubr.f32.gmra.mrb[0].mxu0 %v902
        %v1037 = vpop.f32.mrb[0].mxu0
        %v1038 = vadd.f32 0.0, %v1037
        %v1039 = vpop.f32.mrb[0].mxu0
        %1040 = vmatprep.mubr.f32.mxu0 0.0
        %1041 = vmatmul.mubr.f32.gmra.mrb[0].mxu0 %v905
        %v1042 = vpop.f32.mrb[0].mxu0
        %v1043 = vadd.f32 0.0, %v1042
        %v1044 = vpop.f32.mrb[0].mxu0
        %1045 = vmatprep.mubr.f32.mxu0 0.0
        %1046 = vmatmul.mubr.f32.gmra.mrb[0].mxu0 %v908
        %v1047 = vpop.f32.mrb[0].mxu0
        %v1048 = vadd.f32 0.0, %v1047
        %v1049 = vpop.f32.mrb[0].mxu0
        %1050 = vmatprep.mubr.f32.mxu0 0.0
        %1051 = vmatmul.mubr.f32.gmra.mrb[0].mxu0 %v911
        %v1052 = vpop.f32.mrb[0].mxu0
        %v1053 = vadd.f32 0.0, %v1052
        %v1054 = vpop.f32.mrb[0].mxu0
        %1055 = vmatprep.mubr.f32.mxu0 0.0
        %1056 = vmatmul.mubr.f32.gmra.mrb[0].mxu0 %v914
        %v1057 = vpop.f32.mrb[0].mxu0
        %v1058 = vadd.f32 0.0, %v1057
        %v1059 = vpop.f32.mrb[0].mxu0
        %1060 = vdwg.mxu0
        %v1062 = vsel %vm867, %v847, 0
        %v1065 = vsel %vm867, %v848, 0
        %v1068 = vsel %vm867, %v849, 0
        %v1071 = vsel %vm867, %v850, 0
        %v1074 = vsel %vm867, %v851, 0
        %v1077 = vsel %vm867, %v852, 0
        %v1080 = vsel %vm867, %v853, 0
        %v1083 = vsel %vm867, %v854, 0
        %v1086 = vsel %vm867, %v855, 0
        %v1089 = vsel %vm867, %v856, 0
        %v1092 = vsel %vm867, %v857, 0
        %v1095 = vsel %vm867, %v858, 0
        %v1098 = vsel %vm867, %v859, 0
        %v1101 = vsel %vm867, %v860, 0
        %v1104 = vsel %vm867, %v861, 0
        %v1107 = vsel %vm867, %v862, 0
        %1109 = vmatprep.subr.mxu0 0.0
        %1110 = vmatpush1.msra.mxu0 %v827
        %1111 = vmatprep.subr.mxu0 0.0
        %1112 = vmatpush1.msra.mxu0 %v828
        %1113 = vmatprep.subr.mxu0 0.0
        %1114 = vmatpush1.msra.mxu0 %v829
        %1115 = vmatprep.subr.mxu0 0.0
        %1116 = vmatpush1.msra.mxu0 %v830
        %1117 = vmatprep.subr.mxu0 0.0
        %1118 = vmatpush1.msra.mxu0 0.0
        %1119 = vmatprep.subr.mxu0 0.0
        %1120 = vmatpush1.msra.mxu0 0.0
        %1121 = vmatprep.subr.mxu0 0.0
        %1122 = vmatpush1.msra.mxu0 0.0
        %1123 = vmatprep.subr.mxu0 0.0
        %1124 = vmatpush1.msra.mxu0 0.0
        %1125 = vmatprep.subr.mxu0 0.0
        %1126 = vmatpush1.msra.mxu0 0.0
        %1127 = vmatprep.subr.mxu0 0.0
        %1128 = vmatpush1.msra.mxu0 0.0
        %1129 = vmatprep.subr.mxu0 0.0
        %1130 = vmatpush1.msra.mxu0 0.0
        %1131 = vmatprep.subr.mxu0 0.0
        %1132 = vmatpush1.msra.mxu0 0.0
        %1133 = vmatprep.subr.mxu0 0.0
        %1134 = vmatpush1.msra.mxu0 0.0
        %1135 = vmatprep.subr.mxu0 0.0
        %1136 = vmatpush1.msra.mxu0 0.0
        %1137 = vmatprep.subr.mxu0 0.0
        %1138 = vmatpush1.msra.mxu0 0.0
        %1139 = vmatprep.subr.mxu0 0.0
        %1140 = vmatpush1.msra.mxu0 0.0
        %1141 = vmatprep.subr.mxu0 0.0
        %1142 = vmatpush1.msra.mxu0 0.0
        %1143 = vmatprep.subr.mxu0 0.0
        %1144 = vmatpush1.msra.mxu0 0.0
        %1145 = vmatprep.subr.mxu0 0.0
        %1146 = vmatpush1.msra.mxu0 0.0
        %1147 = vmatprep.subr.mxu0 0.0
        %1148 = vmatpush1.msra.mxu0 0.0
        %1149 = vmatprep.subr.mxu0 0.0
        %1150 = vmatpush1.msra.mxu0 0.0
        %1151 = vmatprep.subr.mxu0 0.0
        %1152 = vmatpush1.msra.mxu0 0.0
        %1153 = vmatprep.subr.mxu0 0.0
        %1154 = vmatpush1.msra.mxu0 0.0
        %1155 = vmatprep.subr.mxu0 0.0
        %1156 = vmatpush1.msra.mxu0 0.0
        %1157 = vmatprep.subr.mxu0 0.0
        %1158 = vmatpush1.msra.mxu0 0.0
        %1159 = vmatprep.subr.mxu0 0.0
        %1160 = vmatpush1.msra.mxu0 0.0
        %1161 = vmatprep.subr.mxu0 0.0
        %1162 = vmatpush1.msra.mxu0 0.0
        %1163 = vmatprep.subr.mxu0 0.0
        %1164 = vmatpush1.msra.mxu0 0.0
        %1165 = vmatprep.subr.mxu0 0.0
        %1166 = vmatpush1.msra.mxu0 0.0
        %1167 = vmatprep.subr.mxu0 0.0
        %1168 = vmatpush1.msra.mxu0 0.0
        %1169 = vmatprep.subr.mxu0 0.0
        %1170 = vmatpush1.msra.mxu0 0.0
        %1171 = vmatprep.subr.mxu0 0.0
        %1172 = vmatpush1.msra.mxu0 0.0
        %1173 = vmatprep.mubr.f32.mxu0 0.0
        %1174 = vmatmul.mubr.f32.gmra.mrb[0].mxu0 %v1062
        %v1175 = vpop.f32.mrb[0].mxu0
        %v1176 = vadd.f32 0.0, %v1175
        %v1177 = vpop.f32.mrb[0].mxu0
        %1178 = vmatprep.mubr.f32.mxu0 0.0
        %1179 = vmatmul.mubr.f32.gmra.mrb[0].mxu0 %v1065
        %v1180 = vpop.f32.mrb[0].mxu0
        %v1181 = vadd.f32 0.0, %v1180
        %v1182 = vpop.f32.mrb[0].mxu0
        %1183 = vmatprep.mubr.f32.mxu0 0.0
        %1184 = vmatmul.mubr.f32.gmra.mrb[0].mxu0 %v1068
        %v1185 = vpop.f32.mrb[0].mxu0
        %v1186 = vadd.f32 0.0, %v1185
        %v1187 = vpop.f32.mrb[0].mxu0
        %1188 = vmatprep.mubr.f32.mxu0 0.0
        %1189 = vmatmul.mubr.f32.gmra.mrb[0].mxu0 %v1071
        %v1190 = vpop.f32.mrb[0].mxu0
        %v1191 = vadd.f32 0.0, %v1190
        %v1192 = vpop.f32.mrb[0].mxu0
        %1193 = vmatprep.mubr.f32.mxu0 0.0
        %1194 = vmatmul.mubr.f32.gmra.mrb[0].mxu0 %v1074
        %v1195 = vpop.f32.mrb[0].mxu0
        %v1196 = vadd.f32 0.0, %v1195
        %v1197 = vpop.f32.mrb[0].mxu0
        %1198 = vmatprep.mubr.f32.mxu0 0.0
        %1199 = vmatmul.mubr.f32.gmra.mrb[0].mxu0 %v1077
        %v1200 = vpop.f32.mrb[0].mxu0
        %v1201 = vadd.f32 0.0, %v1200
        %v1202 = vpop.f32.mrb[0].mxu0
        %1203 = vmatprep.mubr.f32.mxu0 0.0
        %1204 = vmatmul.mubr.f32.gmra.mrb[0].mxu0 %v1080
        %v1205 = vpop.f32.mrb[0].mxu0
        %v1206 = vadd.f32 0.0, %v1205
        %v1207 = vpop.f32.mrb[0].mxu0
        %1208 = vmatprep.mubr.f32.mxu0 0.0
        %1209 = vmatmul.mubr.f32.gmra.mrb[0].mxu0 %v1083
        %v1210 = vpop.f32.mrb[0].mxu0
        %v1211 = vadd.f32 0.0, %v1210
        %v1212 = vpop.f32.mrb[0].mxu0
        %1213 = vmatprep.mubr.f32.mxu0 0.0
        %1214 = vmatmul.mubr.f32.gmra.mrb[0].mxu0 %v1086
        %v1215 = vpop.f32.mrb[0].mxu0
        %v1216 = vadd.f32 0.0, %v1215
        %v1217 = vpop.f32.mrb[0].mxu0
        %1218 = vmatprep.mubr.f32.mxu0 0.0
        %1219 = vmatmul.mubr.f32.gmra.mrb[0].mxu0 %v1089
        %v1220 = vpop.f32.mrb[0].mxu0
        %v1221 = vadd.f32 0.0, %v1220
        %v1222 = vpop.f32.mrb[0].mxu0
        %1223 = vmatprep.mubr.f32.mxu0 0.0
        %1224 = vmatmul.mubr.f32.gmra.mrb[0].mxu0 %v1092
        %v1225 = vpop.f32.mrb[0].mxu0
        %v1226 = vadd.f32 0.0, %v1225
        %v1227 = vpop.f32.mrb[0].mxu0
        %1228 = vmatprep.mubr.f32.mxu0 0.0
        %1229 = vmatmul.mubr.f32.gmra.mrb[0].mxu0 %v1095
        %v1230 = vpop.f32.mrb[0].mxu0
        %v1231 = vadd.f32 0.0, %v1230
        %v1232 = vpop.f32.mrb[0].mxu0
        %1233 = vmatprep.mubr.f32.mxu0 0.0
        %1234 = vmatmul.mubr.f32.gmra.mrb[0].mxu0 %v1098
        %v1235 = vpop.f32.mrb[0].mxu0
        %v1236 = vadd.f32 0.0, %v1235
        %v1237 = vpop.f32.mrb[0].mxu0
        %1238 = vmatprep.mubr.f32.mxu0 0.0
        %1239 = vmatmul.mubr.f32.gmra.mrb[0].mxu0 %v1101
        %v1240 = vpop.f32.mrb[0].mxu0
        %v1241 = vadd.f32 0.0, %v1240
        %v1242 = vpop.f32.mrb[0].mxu0
        %1243 = vmatprep.mubr.f32.mxu0 0.0
        %1244 = vmatmul.mubr.f32.gmra.mrb[0].mxu0 %v1104
        %v1245 = vpop.f32.mrb[0].mxu0
        %v1246 = vadd.f32 0.0, %v1245
        %v1247 = vpop.f32.mrb[0].mxu0
        %1248 = vmatprep.mubr.f32.mxu0 0.0
        %1249 = vmatmul.mubr.f32.gmra.mrb[0].mxu0 %v1107
        %v1250 = vpop.f32.mrb[0].mxu0
        %v1251 = vadd.f32 0.0, %v1250
        %v1252 = vpop.f32.mrb[0].mxu0
        %1253 = vdwg.mxu0
        %v1254 = vld [vmem:[%s728] sm:$0x1]
        %v1255 = vld [vmem:[%s3] sm:$0xff]
        %v1256 = vld [vmem:[%s3 + $0x8] sm:$0xff]
        %v1257 = vld [vmem:[%s3 + $0x10] sm:$0xff]
        %v1258 = vld [vmem:[%s3 + $0x18] sm:$0xff]
        %v1259 = vld [vmem:[%s3 + $0x20] sm:$0xff]
        %v1260 = vld [vmem:[%s3 + $0x28] sm:$0xff]
        %v1261 = vld [vmem:[%s3 + $0x30] sm:$0xff]
        %v1262 = vld [vmem:[%s3 + $0x38] sm:$0xff]
        %v1263 = vld [vmem:[%s3 + $0x40] sm:$0xff]
        %v1264 = vld [vmem:[%s3 + $0x48] sm:$0xff]
        %v1265 = vld [vmem:[%s3 + $0x50] sm:$0xff]
        %v1266 = vld [vmem:[%s3 + $0x58] sm:$0xff]
        %v1267 = vld [vmem:[%s3 + $0x60] sm:$0xff]
        %v1268 = vld [vmem:[%s3 + $0x68] sm:$0xff]
        %v1269 = vld [vmem:[%s3 + $0x70] sm:$0xff]
        %v1270 = vld [vmem:[%s3 + $0x78] sm:$0xff]
        %v1271 = vld [vmem:[%s683] sm:$0xff]
        %v1272 = vld [vmem:[%s683 + $0x8] sm:$0xff]
        %v1273 = vld [vmem:[%s683 + $0x10] sm:$0xff]
        %v1274 = vld [vmem:[%s683 + $0x18] sm:$0xff]
        %v1275 = vld [vmem:[%s683 + $0x20] sm:$0xff]
        %v1276 = vld [vmem:[%s683 + $0x28] sm:$0xff]
        %v1277 = vld [vmem:[%s683 + $0x30] sm:$0xff]
        %v1278 = vld [vmem:[%s683 + $0x38] sm:$0xff]
        %v1279 = vld [vmem:[%s683 + $0x40] sm:$0xff]
        %v1280 = vld [vmem:[%s683 + $0x48] sm:$0xff]
        %v1281 = vld [vmem:[%s683 + $0x50] sm:$0xff]
        %v1282 = vld [vmem:[%s683 + $0x58] sm:$0xff]
        %v1283 = vld [vmem:[%s683 + $0x60] sm:$0xff]
        %v1284 = vld [vmem:[%s683 + $0x68] sm:$0xff]
        %v1285 = vld [vmem:[%s683 + $0x70] sm:$0xff]
        %v1286 = vld [vmem:[%s683 + $0x78] sm:$0xff]
        %v1287 = vlaneseq
        %v1288 = vshrl.u32 %v1287, 7
        %v1289 = vsub.s32 0, %v1288
        %v1290 = vrot.slane %v1254, %v1289
        %1291 = vmatprep.subr.mxu0 0.0
        %1292 = vmatpush1.msra.mxu0 %v1271
        %1293 = vmatprep.subr.mxu0 0.0
        %1294 = vmatpush1.msra.mxu0 %v1272
        %1295 = vmatprep.subr.mxu0 0.0
        %1296 = vmatpush1.msra.mxu0 %v1273
        %1297 = vmatprep.subr.mxu0 0.0
        %1298 = vmatpush1.msra.mxu0 %v1274
        %1299 = vmatprep.subr.mxu0 0.0
        %1300 = vmatpush1.msra.mxu0 %v1275
        %1301 = vmatprep.subr.mxu0 0.0
        %1302 = vmatpush1.msra.mxu0 %v1276
        %1303 = vmatprep.subr.mxu0 0.0
        %1304 = vmatpush1.msra.mxu0 %v1277
        %1305 = vmatprep.subr.mxu0 0.0
        %1306 = vmatpush1.msra.mxu0 %v1278
        %1307 = vmatprep.subr.mxu0 0.0
        %1308 = vmatpush1.msra.mxu0 %v1279
        %1309 = vmatprep.subr.mxu0 0.0
        %1310 = vmatpush1.msra.mxu0 %v1280
        %1311 = vmatprep.subr.mxu0 0.0
        %1312 = vmatpush1.msra.mxu0 %v1281
        %1313 = vmatprep.subr.mxu0 0.0
        %1314 = vmatpush1.msra.mxu0 %v1282
        %1315 = vmatprep.subr.mxu0 0.0
        %1316 = vmatpush1.msra.mxu0 %v1283
        %1317 = vmatprep.subr.mxu0 0.0
        %1318 = vmatpush1.msra.mxu0 %v1284
        %1319 = vmatprep.subr.mxu0 0.0
        %1320 = vmatpush1.msra.mxu0 %v1285
        %1321 = vmatprep.subr.mxu0 0.0
        %1322 = vmatpush1.msra.mxu0 %v1286
        %1323 = vmatprep.subr.mxu0 0.0
        %1324 = vmatpush1.msra.mxu0 0.0
        %1325 = vmatprep.subr.mxu0 0.0
        %1326 = vmatpush1.msra.mxu0 0.0
        %1327 = vmatprep.subr.mxu0 0.0
        %1328 = vmatpush1.msra.mxu0 0.0
        %1329 = vmatprep.subr.mxu0 0.0
        %1330 = vmatpush1.msra.mxu0 0.0
        %1331 = vmatprep.subr.mxu0 0.0
        %1332 = vmatpush1.msra.mxu0 0.0
        %1333 = vmatprep.subr.mxu0 0.0
        %1334 = vmatpush1.msra.mxu0 0.0
        %1335 = vmatprep.subr.mxu0 0.0
        %1336 = vmatpush1.msra.mxu0 0.0
        %1337 = vmatprep.subr.mxu0 0.0
        %1338 = vmatpush1.msra.mxu0 0.0
        %1339 = vmatprep.subr.mxu0 0.0
        %1340 = vmatpush1.msra.mxu0 0.0
        %1341 = vmatprep.subr.mxu0 0.0
        %1342 = vmatpush1.msra.mxu0 0.0
        %1343 = vmatprep.subr.mxu0 0.0
        %1344 = vmatpush1.msra.mxu0 0.0
        %1345 = vmatprep.subr.mxu0 0.0
        %1346 = vmatpush1.msra.mxu0 0.0
        %1347 = vmatprep.subr.mxu0 0.0
        %1348 = vmatpush1.msra.mxu0 0.0
        %1349 = vmatprep.subr.mxu0 0.0
        %1350 = vmatpush1.msra.mxu0 0.0
        %1351 = vmatprep.subr.mxu0 0.0
        %1352 = vmatpush1.msra.mxu0 0.0
        %1353 = vmatprep.subr.mxu0 0.0
        %1354 = vmatpush1.msra.mxu0 0.0
        %1355 = vmatprep.mubr.f32.mxu0 0.0
        %1356 = vmatmul.mubr.f32.gmra.mrb[0].mxu0 %v1255
        %v1357 = vpop.f32.mrb[0].mxu0
        %v1358 = vadd.f32 %v1290, %v1357
        %v1359 = vpop.f32.mrb[0].mxu0
        %1360 = vmatprep.mubr.f32.mxu0 0.0
        %1361 = vmatmul.mubr.f32.gmra.mrb[0].mxu0 %v1256
        %v1362 = vpop.f32.mrb[0].mxu0
        %v1363 = vadd.f32 %v1290, %v1362
        %v1364 = vpop.f32.mrb[0].mxu0
        %1365 = vmatprep.mubr.f32.mxu0 0.0
        %1366 = vmatmul.mubr.f32.gmra.mrb[0].mxu0 %v1257
        %v1367 = vpop.f32.mrb[0].mxu0
        %v1368 = vadd.f32 %v1290, %v1367
        %v1369 = vpop.f32.mrb[0].mxu0
        %1370 = vmatprep.mubr.f32.mxu0 0.0
        %1371 = vmatmul.mubr.f32.gmra.mrb[0].mxu0 %v1258
        %v1372 = vpop.f32.mrb[0].mxu0
        %v1373 = vadd.f32 %v1290, %v1372
        %v1374 = vpop.f32.mrb[0].mxu0
        %1375 = vmatprep.mubr.f32.mxu0 0.0
        %1376 = vmatmul.mubr.f32.gmra.mrb[0].mxu0 %v1259
        %v1377 = vpop.f32.mrb[0].mxu0
        %v1378 = vadd.f32 %v1290, %v1377
        %v1379 = vpop.f32.mrb[0].mxu0
        %1380 = vmatprep.mubr.f32.mxu0 0.0
        %1381 = vmatmul.mubr.f32.gmra.mrb[0].mxu0 %v1260
        %v1382 = vpop.f32.mrb[0].mxu0
        %v1383 = vadd.f32 %v1290, %v1382
        %v1384 = vpop.f32.mrb[0].mxu0
        %1385 = vmatprep.mubr.f32.mxu0 0.0
        %1386 = vmatmul.mubr.f32.gmra.mrb[0].mxu0 %v1261
        %v1387 = vpop.f32.mrb[0].mxu0
        %v1388 = vadd.f32 %v1290, %v1387
        %v1389 = vpop.f32.mrb[0].mxu0
        %1390 = vmatprep.mubr.f32.mxu0 0.0
        %1391 = vmatmul.mubr.f32.gmra.mrb[0].mxu0 %v1262
        %v1392 = vpop.f32.mrb[0].mxu0
        %v1393 = vadd.f32 %v1290, %v1392
        %v1394 = vpop.f32.mrb[0].mxu0
        %1395 = vmatprep.mubr.f32.mxu0 0.0
        %1396 = vmatmul.mubr.f32.gmra.mrb[0].mxu0 %v1263
        %v1397 = vpop.f32.mrb[0].mxu0
        %v1398 = vadd.f32 %v1290, %v1397
        %v1399 = vpop.f32.mrb[0].mxu0
        %1400 = vmatprep.mubr.f32.mxu0 0.0
        %1401 = vmatmul.mubr.f32.gmra.mrb[0].mxu0 %v1264
        %v1402 = vpop.f32.mrb[0].mxu0
        %v1403 = vadd.f32 %v1290, %v1402
        %v1404 = vpop.f32.mrb[0].mxu0
        %1405 = vmatprep.mubr.f32.mxu0 0.0
        %1406 = vmatmul.mubr.f32.gmra.mrb[0].mxu0 %v1265
        %v1407 = vpop.f32.mrb[0].mxu0
        %v1408 = vadd.f32 %v1290, %v1407
        %v1409 = vpop.f32.mrb[0].mxu0
        %1410 = vmatprep.mubr.f32.mxu0 0.0
        %1411 = vmatmul.mubr.f32.gmra.mrb[0].mxu0 %v1266
        %v1412 = vpop.f32.mrb[0].mxu0
        %v1413 = vadd.f32 %v1290, %v1412
        %v1414 = vpop.f32.mrb[0].mxu0
        %1415 = vmatprep.mubr.f32.mxu0 0.0
        %1416 = vmatmul.mubr.f32.gmra.mrb[0].mxu0 %v1267
        %v1417 = vpop.f32.mrb[0].mxu0
        %v1418 = vadd.f32 %v1290, %v1417
        %v1419 = vpop.f32.mrb[0].mxu0
        %1420 = vmatprep.mubr.f32.mxu0 0.0
        %1421 = vmatmul.mubr.f32.gmra.mrb[0].mxu0 %v1268
        %v1422 = vpop.f32.mrb[0].mxu0
        %v1423 = vadd.f32 %v1290, %v1422
        %v1424 = vpop.f32.mrb[0].mxu0
        %1425 = vmatprep.mubr.f32.mxu0 0.0
        %1426 = vmatmul.mubr.f32.gmra.mrb[0].mxu0 %v1269
        %v1427 = vpop.f32.mrb[0].mxu0
        %v1428 = vadd.f32 %v1290, %v1427
        %v1429 = vpop.f32.mrb[0].mxu0
        %1430 = vmatprep.mubr.f32.mxu0 0.0
        %1431 = vmatmul.mubr.f32.gmra.mrb[0].mxu0 %v1270
        %v1432 = vpop.f32.mrb[0].mxu0
        %v1433 = vadd.f32 %v1290, %v1432
        %v1434 = vpop.f32.mrb[0].mxu0
        %1435 = vdwg.mxu0
        %v1436 = vld [vmem:[%s728 + $0x1] sm:$0x1]
        %v1437 = vld [vmem:[%s692] sm:$0xff]
        %v1438 = vld [vmem:[%s692 + $0x8] sm:$0xff]
        %v1439 = vld [vmem:[%s692 + $0x10] sm:$0xff]
        %v1440 = vld [vmem:[%s692 + $0x18] sm:$0xff]
        %v1441 = vld [vmem:[%s692 + $0x20] sm:$0xff]
        %v1442 = vld [vmem:[%s692 + $0x28] sm:$0xff]
        %v1443 = vld [vmem:[%s692 + $0x30] sm:$0xff]
        %v1444 = vld [vmem:[%s692 + $0x38] sm:$0xff]
        %v1445 = vld [vmem:[%s692 + $0x40] sm:$0xff]
        %v1446 = vld [vmem:[%s692 + $0x48] sm:$0xff]
        %v1447 = vld [vmem:[%s692 + $0x50] sm:$0xff]
        %v1448 = vld [vmem:[%s692 + $0x58] sm:$0xff]
        %v1449 = vld [vmem:[%s692 + $0x60] sm:$0xff]
        %v1450 = vld [vmem:[%s692 + $0x68] sm:$0xff]
        %v1451 = vld [vmem:[%s692 + $0x70] sm:$0xff]
        %v1452 = vld [vmem:[%s692 + $0x78] sm:$0xff]
        %v1453 = vld [vmem:[%s692 + $0x80] sm:$0xff]
        %v1454 = vld [vmem:[%s692 + $0x88] sm:$0xff]
        %v1455 = vld [vmem:[%s692 + $0x90] sm:$0xff]
        %v1456 = vld [vmem:[%s692 + $0x98] sm:$0xff]
        %v1457 = vld [vmem:[%s692 + $0xa0] sm:$0xff]
        %v1458 = vld [vmem:[%s692 + $0xa8] sm:$0xff]
        %v1459 = vld [vmem:[%s692 + $0xb0] sm:$0xff]
        %v1460 = vld [vmem:[%s692 + $0xb8] sm:$0xff]
        %v1461 = vld [vmem:[%s692 + $0xc0] sm:$0xff]
        %v1462 = vld [vmem:[%s692 + $0xc8] sm:$0xff]
        %v1463 = vld [vmem:[%s692 + $0xd0] sm:$0xff]
        %v1464 = vld [vmem:[%s692 + $0xd8] sm:$0xff]
        %v1465 = vld [vmem:[%s692 + $0xe0] sm:$0xff]
        %v1466 = vld [vmem:[%s692 + $0xe8] sm:$0xff]
        %v1467 = vld [vmem:[%s692 + $0xf0] sm:$0xff]
        %v1468 = vld [vmem:[%s692 + $0xf8] sm:$0xff]
        %1469 = vmatprep.subr.mxu0 0.0
        %1470 = vmatpush1.msra.mxu0 %v1453
        %1471 = vmatprep.subr.mxu0 0.0
        %1472 = vmatpush1.msra.mxu0 %v1454
        %1473 = vmatprep.subr.mxu0 0.0
        %1474 = vmatpush1.msra.mxu0 %v1455
        %1475 = vmatprep.subr.mxu0 0.0
        %1476 = vmatpush1.msra.mxu0 %v1456
        %1477 = vmatprep.subr.mxu0 0.0
        %1478 = vmatpush1.msra.mxu0 %v1457
        %1479 = vmatprep.subr.mxu0 0.0
        %1480 = vmatpush1.msra.mxu0 %v1458
        %1481 = vmatprep.subr.mxu0 0.0
        %1482 = vmatpush1.msra.mxu0 %v1459
        %1483 = vmatprep.subr.mxu0 0.0
        %1484 = vmatpush1.msra.mxu0 %v1460
        %1485 = vmatprep.subr.mxu0 0.0
        %1486 = vmatpush1.msra.mxu0 %v1461
        %1487 = vmatprep.subr.mxu0 0.0
        %1488 = vmatpush1.msra.mxu0 %v1462
        %1489 = vmatprep.subr.mxu0 0.0
        %1490 = vmatpush1.msra.mxu0 %v1463
        %1491 = vmatprep.subr.mxu0 0.0
        %1492 = vmatpush1.msra.mxu0 %v1464
        %1493 = vmatprep.subr.mxu0 0.0
        %1494 = vmatpush1.msra.mxu0 %v1465
        %1495 = vmatprep.subr.mxu0 0.0
        %1496 = vmatpush1.msra.mxu0 %v1466
        %1497 = vmatprep.subr.mxu0 0.0
        %1498 = vmatpush1.msra.mxu0 %v1467
        %1499 = vmatprep.subr.mxu0 0.0
        %1500 = vmatpush1.msra.mxu0 %v1468
        %1501 = vmatprep.subr.mxu0 0.0
        %1502 = vmatpush1.msra.mxu0 0.0
        %1503 = vmatprep.subr.mxu0 0.0
        %1504 = vmatpush1.msra.mxu0 0.0
        %1505 = vmatprep.subr.mxu0 0.0
        %1506 = vmatpush1.msra.mxu0 0.0
        %1507 = vmatprep.subr.mxu0 0.0
        %1508 = vmatpush1.msra.mxu0 0.0
        %1509 = vmatprep.subr.mxu0 0.0
        %1510 = vmatpush1.msra.mxu0 0.0
        %1511 = vmatprep.subr.mxu0 0.0
        %1512 = vmatpush1.msra.mxu0 0.0
        %1513 = vmatprep.subr.mxu0 0.0
        %1514 = vmatpush1.msra.mxu0 0.0
        %1515 = vmatprep.subr.mxu0 0.0
        %1516 = vmatpush1.msra.mxu0 0.0
        %1517 = vmatprep.subr.mxu0 0.0
        %1518 = vmatpush1.msra.mxu0 0.0
        %1519 = vmatprep.subr.mxu0 0.0
        %1520 = vmatpush1.msra.mxu0 0.0
        %1521 = vmatprep.subr.mxu0 0.0
        %1522 = vmatpush1.msra.mxu0 0.0
        %1523 = vmatprep.subr.mxu0 0.0
        %1524 = vmatpush1.msra.mxu0 0.0
        %1525 = vmatprep.subr.mxu0 0.0
        %1526 = vmatpush1.msra.mxu0 0.0
        %1527 = vmatprep.subr.mxu0 0.0
        %1528 = vmatpush1.msra.mxu0 0.0
        %1529 = vmatprep.subr.mxu0 0.0
        %1530 = vmatpush1.msra.mxu0 0.0
        %1531 = vmatprep.subr.mxu0 0.0
        %1532 = vmatpush1.msra.mxu0 0.0
        %1533 = vmatprep.mubr.f32.mxu0 0.0
        %1534 = vmatmul.mubr.f32.gmra.mrb[0].mxu0 %v983
        %v1535 = vpop.f32.mrb[0].mxu0
        %v1536 = vadd.f32 0.0, %v1535
        %v1537 = vpop.f32.mrb[0].mxu0
        %1538 = vmatprep.mubr.f32.mxu0 0.0
        %1539 = vmatmul.mubr.f32.gmra.mrb[0].mxu0 %v988
        %v1540 = vpop.f32.mrb[0].mxu0
        %v1541 = vadd.f32 0.0, %v1540
        %v1542 = vpop.f32.mrb[0].mxu0
        %1543 = vmatprep.mubr.f32.mxu0 0.0
        %1544 = vmatmul.mubr.f32.gmra.mrb[0].mxu0 %v993
        %v1545 = vpop.f32.mrb[0].mxu0
        %v1546 = vadd.f32 0.0, %v1545
        %v1547 = vpop.f32.mrb[0].mxu0
        %1548 = vmatprep.mubr.f32.mxu0 0.0
        %1549 = vmatmul.mubr.f32.gmra.mrb[0].mxu0 %v998
        %v1550 = vpop.f32.mrb[0].mxu0
        %v1551 = vadd.f32 0.0, %v1550
        %v1552 = vpop.f32.mrb[0].mxu0
        %1553 = vmatprep.mubr.f32.mxu0 0.0
        %1554 = vmatmul.mubr.f32.gmra.mrb[0].mxu0 %v1003
        %v1555 = vpop.f32.mrb[0].mxu0
        %v1556 = vadd.f32 0.0, %v1555
        %v1557 = vpop.f32.mrb[0].mxu0
        %1558 = vmatprep.mubr.f32.mxu0 0.0
        %1559 = vmatmul.mubr.f32.gmra.mrb[0].mxu0 %v1008
        %v1560 = vpop.f32.mrb[0].mxu0
        %v1561 = vadd.f32 0.0, %v1560
        %v1562 = vpop.f32.mrb[0].mxu0
        %1563 = vmatprep.mubr.f32.mxu0 0.0
        %1564 = vmatmul.mubr.f32.gmra.mrb[0].mxu0 %v1013
        %v1565 = vpop.f32.mrb[0].mxu0
        %v1566 = vadd.f32 0.0, %v1565
        %v1567 = vpop.f32.mrb[0].mxu0
        %1568 = vmatprep.mubr.f32.mxu0 0.0
        %1569 = vmatmul.mubr.f32.gmra.mrb[0].mxu0 %v1018
        %v1570 = vpop.f32.mrb[0].mxu0
        %v1571 = vadd.f32 0.0, %v1570
        %v1572 = vpop.f32.mrb[0].mxu0
        %1573 = vmatprep.mubr.f32.mxu0 0.0
        %1574 = vmatmul.mubr.f32.gmra.mrb[0].mxu0 %v1023
        %v1575 = vpop.f32.mrb[0].mxu0
        %v1576 = vadd.f32 0.0, %v1575
        %v1577 = vpop.f32.mrb[0].mxu0
        %1578 = vmatprep.mubr.f32.mxu0 0.0
        %1579 = vmatmul.mubr.f32.gmra.mrb[0].mxu0 %v1028
        %v1580 = vpop.f32.mrb[0].mxu0
        %v1581 = vadd.f32 0.0, %v1580
        %v1582 = vpop.f32.mrb[0].mxu0
        %1583 = vmatprep.mubr.f32.mxu0 0.0
        %1584 = vmatmul.mubr.f32.gmra.mrb[0].mxu0 %v1033
        %v1585 = vpop.f32.mrb[0].mxu0
        %v1586 = vadd.f32 0.0, %v1585
        %v1587 = vpop.f32.mrb[0].mxu0
        %1588 = vmatprep.mubr.f32.mxu0 0.0
        %1589 = vmatmul.mubr.f32.gmra.mrb[0].mxu0 %v1038
        %v1590 = vpop.f32.mrb[0].mxu0
        %v1591 = vadd.f32 0.0, %v1590
        %v1592 = vpop.f32.mrb[0].mxu0
        %1593 = vmatprep.mubr.f32.mxu0 0.0
        %1594 = vmatmul.mubr.f32.gmra.mrb[0].mxu0 %v1043
        %v1595 = vpop.f32.mrb[0].mxu0
        %v1596 = vadd.f32 0.0, %v1595
        %v1597 = vpop.f32.mrb[0].mxu0
        %1598 = vmatprep.mubr.f32.mxu0 0.0
        %1599 = vmatmul.mubr.f32.gmra.mrb[0].mxu0 %v1048
        %v1600 = vpop.f32.mrb[0].mxu0
        %v1601 = vadd.f32 0.0, %v1600
        %v1602 = vpop.f32.mrb[0].mxu0
        %1603 = vmatprep.mubr.f32.mxu0 0.0
        %1604 = vmatmul.mubr.f32.gmra.mrb[0].mxu0 %v1053
        %v1605 = vpop.f32.mrb[0].mxu0
        %v1606 = vadd.f32 0.0, %v1605
        %v1607 = vpop.f32.mrb[0].mxu0
        %1608 = vmatprep.mubr.f32.mxu0 0.0
        %1609 = vmatmul.mubr.f32.gmra.mrb[0].mxu0 %v1058
        %v1610 = vpop.f32.mrb[0].mxu0
        %v1611 = vadd.f32 0.0, %v1610
        %v1612 = vpop.f32.mrb[0].mxu0
        %1613 = vdwg.mxu0
        %1614 = vmatprep.subr.mxu0 0.0
        %1615 = vmatpush1.msra.mxu0 %v1437
        %1616 = vmatprep.subr.mxu0 0.0
        %1617 = vmatpush1.msra.mxu0 %v1438
        %1618 = vmatprep.subr.mxu0 0.0
        %1619 = vmatpush1.msra.mxu0 %v1439
        %1620 = vmatprep.subr.mxu0 0.0
        %1621 = vmatpush1.msra.mxu0 %v1440
        %1622 = vmatprep.subr.mxu0 0.0
        %1623 = vmatpush1.msra.mxu0 %v1441
        %1624 = vmatprep.subr.mxu0 0.0
        %1625 = vmatpush1.msra.mxu0 %v1442
        %1626 = vmatprep.subr.mxu0 0.0
        %1627 = vmatpush1.msra.mxu0 %v1443
        %1628 = vmatprep.subr.mxu0 0.0
        %1629 = vmatpush1.msra.mxu0 %v1444
        %1630 = vmatprep.subr.mxu0 0.0
        %1631 = vmatpush1.msra.mxu0 %v1445
        %1632 = vmatprep.subr.mxu0 0.0
        %1633 = vmatpush1.msra.mxu0 %v1446
        %1634 = vmatprep.subr.mxu0 0.0
        %1635 = vmatpush1.msra.mxu0 %v1447
        %1636 = vmatprep.subr.mxu0 0.0
        %1637 = vmatpush1.msra.mxu0 %v1448
        %1638 = vmatprep.subr.mxu0 0.0
        %1639 = vmatpush1.msra.mxu0 %v1449
        %1640 = vmatprep.subr.mxu0 0.0
        %1641 = vmatpush1.msra.mxu0 %v1450
        %1642 = vmatprep.subr.mxu0 0.0
        %1643 = vmatpush1.msra.mxu0 %v1451
        %1644 = vmatprep.subr.mxu0 0.0
        %1645 = vmatpush1.msra.mxu0 %v1452
        %1646 = vmatprep.subr.mxu0 0.0
        %1647 = vmatpush1.msra.mxu0 0.0
        %1648 = vmatprep.subr.mxu0 0.0
        %1649 = vmatpush1.msra.mxu0 0.0
        %1650 = vmatprep.subr.mxu0 0.0
        %1651 = vmatpush1.msra.mxu0 0.0
        %1652 = vmatprep.subr.mxu0 0.0
        %1653 = vmatpush1.msra.mxu0 0.0
        %1654 = vmatprep.subr.mxu0 0.0
        %1655 = vmatpush1.msra.mxu0 0.0
        %1656 = vmatprep.subr.mxu0 0.0
        %1657 = vmatpush1.msra.mxu0 0.0
        %1658 = vmatprep.subr.mxu0 0.0
        %1659 = vmatpush1.msra.mxu0 0.0
        %1660 = vmatprep.subr.mxu0 0.0
        %1661 = vmatpush1.msra.mxu0 0.0
        %1662 = vmatprep.subr.mxu0 0.0
        %1663 = vmatpush1.msra.mxu0 0.0
        %1664 = vmatprep.subr.mxu0 0.0
        %1665 = vmatpush1.msra.mxu0 0.0
        %1666 = vmatprep.subr.mxu0 0.0
        %1667 = vmatpush1.msra.mxu0 0.0
        %1668 = vmatprep.subr.mxu0 0.0
        %1669 = vmatpush1.msra.mxu0 0.0
        %1670 = vmatprep.subr.mxu0 0.0
        %1671 = vmatpush1.msra.mxu0 0.0
        %1672 = vmatprep.subr.mxu0 0.0
        %1673 = vmatpush1.msra.mxu0 0.0
        %1674 = vmatprep.subr.mxu0 0.0
        %1675 = vmatpush1.msra.mxu0 0.0
        %1676 = vmatprep.subr.mxu0 0.0
        %1677 = vmatpush1.msra.mxu0 0.0
        %1678 = vmatprep.mubr.f32.mxu0 0.0
        %1679 = vmatmul.mubr.f32.gmra.mrb[0].mxu0 %v1176
        %v1680 = vpop.f32.mrb[0].mxu0
        %v1681 = vadd.f32 %v1536, %v1680
        %v1682 = vpop.f32.mrb[0].mxu0
        %1683 = vmatprep.mubr.f32.mxu0 0.0
        %1684 = vmatmul.mubr.f32.gmra.mrb[0].mxu0 %v1181
        %v1685 = vpop.f32.mrb[0].mxu0
        %v1686 = vadd.f32 %v1541, %v1685
        %v1687 = vpop.f32.mrb[0].mxu0
        %1688 = vmatprep.mubr.f32.mxu0 0.0
        %1689 = vmatmul.mubr.f32.gmra.mrb[0].mxu0 %v1186
        %v1690 = vpop.f32.mrb[0].mxu0
        %v1691 = vadd.f32 %v1546, %v1690
        %v1692 = vpop.f32.mrb[0].mxu0
        %1693 = vmatprep.mubr.f32.mxu0 0.0
        %1694 = vmatmul.mubr.f32.gmra.mrb[0].mxu0 %v1191
        %v1695 = vpop.f32.mrb[0].mxu0
        %v1696 = vadd.f32 %v1551, %v1695
        %v1697 = vpop.f32.mrb[0].mxu0
        %1698 = vmatprep.mubr.f32.mxu0 0.0
        %1699 = vmatmul.mubr.f32.gmra.mrb[0].mxu0 %v1196
        %v1700 = vpop.f32.mrb[0].mxu0
        %v1701 = vadd.f32 %v1556, %v1700
        %v1702 = vpop.f32.mrb[0].mxu0
        %1703 = vmatprep.mubr.f32.mxu0 0.0
        %1704 = vmatmul.mubr.f32.gmra.mrb[0].mxu0 %v1201
        %v1705 = vpop.f32.mrb[0].mxu0
        %v1706 = vadd.f32 %v1561, %v1705
        %v1707 = vpop.f32.mrb[0].mxu0
        %1708 = vmatprep.mubr.f32.mxu0 0.0
        %1709 = vmatmul.mubr.f32.gmra.mrb[0].mxu0 %v1206
        %v1710 = vpop.f32.mrb[0].mxu0
        %v1711 = vadd.f32 %v1566, %v1710
        %v1712 = vpop.f32.mrb[0].mxu0
        %1713 = vmatprep.mubr.f32.mxu0 0.0
        %1714 = vmatmul.mubr.f32.gmra.mrb[0].mxu0 %v1211
        %v1715 = vpop.f32.mrb[0].mxu0
        %v1716 = vadd.f32 %v1571, %v1715
        %v1717 = vpop.f32.mrb[0].mxu0
        %1718 = vmatprep.mubr.f32.mxu0 0.0
        %1719 = vmatmul.mubr.f32.gmra.mrb[0].mxu0 %v1216
        %v1720 = vpop.f32.mrb[0].mxu0
        %v1721 = vadd.f32 %v1576, %v1720
        %v1722 = vpop.f32.mrb[0].mxu0
        %1723 = vmatprep.mubr.f32.mxu0 0.0
        %1724 = vmatmul.mubr.f32.gmra.mrb[0].mxu0 %v1221
        %v1725 = vpop.f32.mrb[0].mxu0
        %v1726 = vadd.f32 %v1581, %v1725
        %v1727 = vpop.f32.mrb[0].mxu0
        %1728 = vmatprep.mubr.f32.mxu0 0.0
        %1729 = vmatmul.mubr.f32.gmra.mrb[0].mxu0 %v1226
        %v1730 = vpop.f32.mrb[0].mxu0
        %v1731 = vadd.f32 %v1586, %v1730
        %v1732 = vpop.f32.mrb[0].mxu0
        %1733 = vmatprep.mubr.f32.mxu0 0.0
        %1734 = vmatmul.mubr.f32.gmra.mrb[0].mxu0 %v1231
        %v1735 = vpop.f32.mrb[0].mxu0
        %v1736 = vadd.f32 %v1591, %v1735
        %v1737 = vpop.f32.mrb[0].mxu0
        %1738 = vmatprep.mubr.f32.mxu0 0.0
        %1739 = vmatmul.mubr.f32.gmra.mrb[0].mxu0 %v1236
        %v1740 = vpop.f32.mrb[0].mxu0
        %v1741 = vadd.f32 %v1596, %v1740
        %v1742 = vpop.f32.mrb[0].mxu0
        %1743 = vmatprep.mubr.f32.mxu0 0.0
        %1744 = vmatmul.mubr.f32.gmra.mrb[0].mxu0 %v1241
        %v1745 = vpop.f32.mrb[0].mxu0
        %v1746 = vadd.f32 %v1601, %v1745
        %v1747 = vpop.f32.mrb[0].mxu0
        %1748 = vmatprep.mubr.f32.mxu0 0.0
        %1749 = vmatmul.mubr.f32.gmra.mrb[0].mxu0 %v1246
        %v1750 = vpop.f32.mrb[0].mxu0
        %v1751 = vadd.f32 %v1606, %v1750
        %v1752 = vpop.f32.mrb[0].mxu0
        %1753 = vmatprep.mubr.f32.mxu0 0.0
        %1754 = vmatmul.mubr.f32.gmra.mrb[0].mxu0 %v1251
        %v1755 = vpop.f32.mrb[0].mxu0
        %v1756 = vadd.f32 %v1611, %v1755
        %v1757 = vpop.f32.mrb[0].mxu0
        %1758 = vdwg.mxu0
        %v1759 = vld [vmem:[%s692 + $0x100] sm:$0xff]
        %v1760 = vld [vmem:[%s692 + $0x108] sm:$0xff]
        %v1761 = vld [vmem:[%s692 + $0x110] sm:$0xff]
        %v1762 = vld [vmem:[%s692 + $0x118] sm:$0xff]
        %v1763 = vld [vmem:[%s692 + $0x120] sm:$0xff]
        %v1764 = vld [vmem:[%s692 + $0x128] sm:$0xff]
        %v1765 = vld [vmem:[%s692 + $0x130] sm:$0xff]
        %v1766 = vld [vmem:[%s692 + $0x138] sm:$0xff]
        %v1767 = vld [vmem:[%s692 + $0x140] sm:$0xff]
        %v1768 = vld [vmem:[%s692 + $0x148] sm:$0xff]
        %v1769 = vld [vmem:[%s692 + $0x150] sm:$0xff]
        %v1770 = vld [vmem:[%s692 + $0x158] sm:$0xff]
        %v1771 = vld [vmem:[%s692 + $0x160] sm:$0xff]
        %v1772 = vld [vmem:[%s692 + $0x168] sm:$0xff]
        %v1773 = vld [vmem:[%s692 + $0x170] sm:$0xff]
        %v1774 = vld [vmem:[%s692 + $0x178] sm:$0xff]
        %1775 = vmatprep.subr.mxu0 0.0
        %1776 = vmatpush1.msra.mxu0 %v1759
        %1777 = vmatprep.subr.mxu0 0.0
        %1778 = vmatpush1.msra.mxu0 %v1760
        %1779 = vmatprep.subr.mxu0 0.0
        %1780 = vmatpush1.msra.mxu0 %v1761
        %1781 = vmatprep.subr.mxu0 0.0
        %1782 = vmatpush1.msra.mxu0 %v1762
        %1783 = vmatprep.subr.mxu0 0.0
        %1784 = vmatpush1.msra.mxu0 %v1763
        %1785 = vmatprep.subr.mxu0 0.0
        %1786 = vmatpush1.msra.mxu0 %v1764
        %1787 = vmatprep.subr.mxu0 0.0
        %1788 = vmatpush1.msra.mxu0 %v1765
        %1789 = vmatprep.subr.mxu0 0.0
        %1790 = vmatpush1.msra.mxu0 %v1766
        %1791 = vmatprep.subr.mxu0 0.0
        %1792 = vmatpush1.msra.mxu0 %v1767
        %1793 = vmatprep.subr.mxu0 0.0
        %1794 = vmatpush1.msra.mxu0 %v1768
        %1795 = vmatprep.subr.mxu0 0.0
        %1796 = vmatpush1.msra.mxu0 %v1769
        %1797 = vmatprep.subr.mxu0 0.0
        %1798 = vmatpush1.msra.mxu0 %v1770
        %1799 = vmatprep.subr.mxu0 0.0
        %1800 = vmatpush1.msra.mxu0 %v1771
        %1801 = vmatprep.subr.mxu0 0.0
        %1802 = vmatpush1.msra.mxu0 %v1772
        %1803 = vmatprep.subr.mxu0 0.0
        %1804 = vmatpush1.msra.mxu0 %v1773
        %1805 = vmatprep.subr.mxu0 0.0
        %1806 = vmatpush1.msra.mxu0 %v1774
        %1807 = vmatprep.subr.mxu0 0.0
        %1808 = vmatpush1.msra.mxu0 0.0
        %1809 = vmatprep.subr.mxu0 0.0
        %1810 = vmatpush1.msra.mxu0 0.0
        %1811 = vmatprep.subr.mxu0 0.0
        %1812 = vmatpush1.msra.mxu0 0.0
        %1813 = vmatprep.subr.mxu0 0.0
        %1814 = vmatpush1.msra.mxu0 0.0
        %1815 = vmatprep.subr.mxu0 0.0
        %1816 = vmatpush1.msra.mxu0 0.0
        %1817 = vmatprep.subr.mxu0 0.0
        %1818 = vmatpush1.msra.mxu0 0.0
        %1819 = vmatprep.subr.mxu0 0.0
        %1820 = vmatpush1.msra.mxu0 0.0
        %1821 = vmatprep.subr.mxu0 0.0
        %1822 = vmatpush1.msra.mxu0 0.0
        %1823 = vmatprep.subr.mxu0 0.0
        %1824 = vmatpush1.msra.mxu0 0.0
        %1825 = vmatprep.subr.mxu0 0.0
        %1826 = vmatpush1.msra.mxu0 0.0
        %1827 = vmatprep.subr.mxu0 0.0
        %1828 = vmatpush1.msra.mxu0 0.0
        %1829 = vmatprep.subr.mxu0 0.0
        %1830 = vmatpush1.msra.mxu0 0.0
        %1831 = vmatprep.subr.mxu0 0.0
        %1832 = vmatpush1.msra.mxu0 0.0
        %1833 = vmatprep.subr.mxu0 0.0
        %1834 = vmatpush1.msra.mxu0 0.0
        %1835 = vmatprep.subr.mxu0 0.0
        %1836 = vmatpush1.msra.mxu0 0.0
        %1837 = vmatprep.subr.mxu0 0.0
        %1838 = vmatpush1.msra.mxu0 0.0
        %1839 = vmatprep.mubr.f32.mxu0 0.0
        %1840 = vmatmul.mubr.f32.gmra.mrb[0].mxu0 %v1358
        %v1841 = vpop.f32.mrb[0].mxu0
        %v1842 = vadd.f32 0.0, %v1841
        %v1843 = vpop.f32.mrb[0].mxu0
        %1844 = vmatprep.mubr.f32.mxu0 0.0
        %1845 = vmatmul.mubr.f32.gmra.mrb[0].mxu0 %v1363
        %v1846 = vpop.f32.mrb[0].mxu0
        %v1847 = vadd.f32 0.0, %v1846
        %v1848 = vpop.f32.mrb[0].mxu0
        %1849 = vmatprep.mubr.f32.mxu0 0.0
        %1850 = vmatmul.mubr.f32.gmra.mrb[0].mxu0 %v1368
        %v1851 = vpop.f32.mrb[0].mxu0
        %v1852 = vadd.f32 0.0, %v1851
        %v1853 = vpop.f32.mrb[0].mxu0
        %1854 = vmatprep.mubr.f32.mxu0 0.0
        %1855 = vmatmul.mubr.f32.gmra.mrb[0].mxu0 %v1373
        %v1856 = vpop.f32.mrb[0].mxu0
        %v1857 = vadd.f32 0.0, %v1856
        %v1858 = vpop.f32.mrb[0].mxu0
        %1859 = vmatprep.mubr.f32.mxu0 0.0
        %1860 = vmatmul.mubr.f32.gmra.mrb[0].mxu0 %v1378
        %v1861 = vpop.f32.mrb[0].mxu0
        %v1862 = vadd.f32 0.0, %v1861
        %v1863 = vpop.f32.mrb[0].mxu0
        %1864 = vmatprep.mubr.f32.mxu0 0.0
        %1865 = vmatmul.mubr.f32.gmra.mrb[0].mxu0 %v1383
        %v1866 = vpop.f32.mrb[0].mxu0
        %v1867 = vadd.f32 0.0, %v1866
        %v1868 = vpop.f32.mrb[0].mxu0
        %1869 = vmatprep.mubr.f32.mxu0 0.0
        %1870 = vmatmul.mubr.f32.gmra.mrb[0].mxu0 %v1388
        %v1871 = vpop.f32.mrb[0].mxu0
        %v1872 = vadd.f32 0.0, %v1871
        %v1873 = vpop.f32.mrb[0].mxu0
        %1874 = vmatprep.mubr.f32.mxu0 0.0
        %1875 = vmatmul.mubr.f32.gmra.mrb[0].mxu0 %v1393
        %v1876 = vpop.f32.mrb[0].mxu0
        %v1877 = vadd.f32 0.0, %v1876
        %v1878 = vpop.f32.mrb[0].mxu0
        %1879 = vmatprep.mubr.f32.mxu0 0.0
        %1880 = vmatmul.mubr.f32.gmra.mrb[0].mxu0 %v1398
        %v1881 = vpop.f32.mrb[0].mxu0
        %v1882 = vadd.f32 0.0, %v1881
        %v1883 = vpop.f32.mrb[0].mxu0
        %1884 = vmatprep.mubr.f32.mxu0 0.0
        %1885 = vmatmul.mubr.f32.gmra.mrb[0].mxu0 %v1403
        %v1886 = vpop.f32.mrb[0].mxu0
        %v1887 = vadd.f32 0.0, %v1886
        %v1888 = vpop.f32.mrb[0].mxu0
        %1889 = vmatprep.mubr.f32.mxu0 0.0
        %1890 = vmatmul.mubr.f32.gmra.mrb[0].mxu0 %v1408
        %v1891 = vpop.f32.mrb[0].mxu0
        %v1892 = vadd.f32 0.0, %v1891
        %v1893 = vpop.f32.mrb[0].mxu0
        %1894 = vmatprep.mubr.f32.mxu0 0.0
        %1895 = vmatmul.mubr.f32.gmra.mrb[0].mxu0 %v1413
        %v1896 = vpop.f32.mrb[0].mxu0
        %v1897 = vadd.f32 0.0, %v1896
        %v1898 = vpop.f32.mrb[0].mxu0
        %1899 = vmatprep.mubr.f32.mxu0 0.0
        %1900 = vmatmul.mubr.f32.gmra.mrb[0].mxu0 %v1418
        %v1901 = vpop.f32.mrb[0].mxu0
        %v1902 = vadd.f32 0.0, %v1901
        %v1903 = vpop.f32.mrb[0].mxu0
        %1904 = vmatprep.mubr.f32.mxu0 0.0
        %1905 = vmatmul.mubr.f32.gmra.mrb[0].mxu0 %v1423
        %v1906 = vpop.f32.mrb[0].mxu0
        %v1907 = vadd.f32 0.0, %v1906
        %v1908 = vpop.f32.mrb[0].mxu0
        %1909 = vmatprep.mubr.f32.mxu0 0.0
        %1910 = vmatmul.mubr.f32.gmra.mrb[0].mxu0 %v1428
        %v1911 = vpop.f32.mrb[0].mxu0
        %v1912 = vadd.f32 0.0, %v1911
        %v1913 = vpop.f32.mrb[0].mxu0
        %1914 = vmatprep.mubr.f32.mxu0 0.0
        %1915 = vmatmul.mubr.f32.gmra.mrb[0].mxu0 %v1433
        %v1916 = vpop.f32.mrb[0].mxu0
        %v1917 = vadd.f32 0.0, %v1916
        %v1918 = vpop.f32.mrb[0].mxu0
        %1919 = vdwg.mxu0
        %v1920 = vadd.f32 %v1681, %v1842
        %v1921 = vadd.f32 %v1686, %v1847
        %v1922 = vadd.f32 %v1691, %v1852
        %v1923 = vadd.f32 %v1696, %v1857
        %v1924 = vadd.f32 %v1701, %v1862
        %v1925 = vadd.f32 %v1706, %v1867
        %v1926 = vadd.f32 %v1711, %v1872
        %v1927 = vadd.f32 %v1716, %v1877
        %v1928 = vadd.f32 %v1721, %v1882
        %v1929 = vadd.f32 %v1726, %v1887
        %v1930 = vadd.f32 %v1731, %v1892
        %v1931 = vadd.f32 %v1736, %v1897
        %v1932 = vadd.f32 %v1741, %v1902
        %v1933 = vadd.f32 %v1746, %v1907
        %v1934 = vadd.f32 %v1751, %v1912
        %v1935 = vadd.f32 %v1756, %v1917
        %v1936 = vlaneseq
        %v1937 = vshrl.u32 %v1936, 7
        %v1938 = vsub.s32 0, %v1937
        %v1939 = vrot.slane %v1436, %v1938
        %v1940 = vadd.f32 %v1920, %v1939
        %v1941 = vadd.f32 %v1921, %v1939
        %v1942 = vadd.f32 %v1922, %v1939
        %v1943 = vadd.f32 %v1923, %v1939
        %v1944 = vadd.f32 %v1924, %v1939
        %v1945 = vadd.f32 %v1925, %v1939
        %v1946 = vadd.f32 %v1926, %v1939
        %v1947 = vadd.f32 %v1927, %v1939
        %v1948 = vadd.f32 %v1928, %v1939
        %v1949 = vadd.f32 %v1929, %v1939
        %v1950 = vadd.f32 %v1930, %v1939
        %v1951 = vadd.f32 %v1931, %v1939
        %v1952 = vadd.f32 %v1932, %v1939
        %v1953 = vadd.f32 %v1933, %v1939
        %v1954 = vadd.f32 %v1934, %v1939
        %v1955 = vadd.f32 %v1935, %v1939
        %1956 = vxpose.xlu0.b32.start [1/16] %v847, 128
        %1957 = vxpose.xlu0.b32.cont [2/16] %v848, 128
        %1958 = vxpose.xlu0.b32.cont [3/16] %v849, 128
        %1959 = vxpose.xlu0.b32.cont [4/16] %v850, 128
        %1960 = vxpose.xlu0.b32.cont [5/16] %v851, 128
        %1961 = vxpose.xlu0.b32.cont [6/16] %v852, 128
        %1962 = vxpose.xlu0.b32.cont [7/16] %v853, 128
        %1963 = vxpose.xlu0.b32.cont [8/16] %v854, 128
        %1964 = vxpose.xlu0.b32.cont [9/16] %v855, 128
        %1965 = vxpose.xlu0.b32.cont [10/16] %v856, 128
        %1966 = vxpose.xlu0.b32.cont [11/16] %v857, 128
        %1967 = vxpose.xlu0.b32.cont [12/16] %v858, 128
        %1968 = vxpose.xlu0.b32.cont [13/16] %v859, 128
        %1969 = vxpose.xlu0.b32.cont [14/16] %v860, 128
        %1970 = vxpose.xlu0.b32.cont [15/16] %v861, 128
        %1971 = vxpose.xlu0.b32.end [16/16] %v862, 128
        %v1972 = vpop.trf.xlu0
        %v1973 = vpop.trf.xlu0
        %v1974 = vpop.trf.xlu0
        %v1975 = vpop.trf.xlu0
        %v1976 = vpop.trf.xlu0
        %v1977 = vpop.trf.xlu0
        %v1978 = vpop.trf.xlu0
        %v1979 = vpop.trf.xlu0
        %v1980 = vpop.trf.xlu0
        %v1981 = vpop.trf.xlu0
        %v1982 = vpop.trf.xlu0
        %v1983 = vpop.trf.xlu0
        %v1984 = vpop.trf.xlu0
        %v1985 = vpop.trf.xlu0
        %v1986 = vpop.trf.xlu0
        %v1987 = vpop.trf.xlu0
        %1988 = vmatprep.subr.mxu0 0.0
        %1989 = vmatpush1.msra.mxu0 %v1940
        %1990 = vmatprep.subr.mxu0 0.0
        %1991 = vmatpush1.msra.mxu0 %v1941
        %1992 = vmatprep.subr.mxu0 0.0
        %1993 = vmatpush1.msra.mxu0 %v1942
        %1994 = vmatprep.subr.mxu0 0.0
        %1995 = vmatpush1.msra.mxu0 %v1943
        %1996 = vmatprep.subr.mxu0 0.0
        %1997 = vmatpush1.msra.mxu0 %v1944
        %1998 = vmatprep.subr.mxu0 0.0
        %1999 = vmatpush1.msra.mxu0 %v1945
        %2000 = vmatprep.subr.mxu0 0.0
        %2001 = vmatpush1.msra.mxu0 %v1946
        %2002 = vmatprep.subr.mxu0 0.0
        %2003 = vmatpush1.msra.mxu0 %v1947
        %2004 = vmatprep.subr.mxu0 0.0
        %2005 = vmatpush1.msra.mxu0 %v1948
        %2006 = vmatprep.subr.mxu0 0.0
        %2007 = vmatpush1.msra.mxu0 %v1949
        %2008 = vmatprep.subr.mxu0 0.0
        %2009 = vmatpush1.msra.mxu0 %v1950
        %2010 = vmatprep.subr.mxu0 0.0
        %2011 = vmatpush1.msra.mxu0 %v1951
        %2012 = vmatprep.subr.mxu0 0.0
        %2013 = vmatpush1.msra.mxu0 %v1952
        %2014 = vmatprep.subr.mxu0 0.0
        %2015 = vmatpush1.msra.mxu0 %v1953
        %2016 = vmatprep.subr.mxu0 0.0
        %2017 = vmatpush1.msra.mxu0 %v1954
        %2018 = vmatprep.subr.mxu0 0.0
        %2019 = vmatpush1.msra.mxu0 %v1955
        %2020 = vmatprep.subr.mxu0 0.0
        %2021 = vmatpush1.msra.mxu0 0.0
        %2022 = vmatprep.subr.mxu0 0.0
        %2023 = vmatpush1.msra.mxu0 0.0
        %2024 = vmatprep.subr.mxu0 0.0
        %2025 = vmatpush1.msra.mxu0 0.0
        %2026 = vmatprep.subr.mxu0 0.0
        %2027 = vmatpush1.msra.mxu0 0.0
        %2028 = vmatprep.subr.mxu0 0.0
        %2029 = vmatpush1.msra.mxu0 0.0
        %2030 = vmatprep.subr.mxu0 0.0
        %2031 = vmatpush1.msra.mxu0 0.0
        %2032 = vmatprep.subr.mxu0 0.0
        %2033 = vmatpush1.msra.mxu0 0.0
        %2034 = vmatprep.subr.mxu0 0.0
        %2035 = vmatpush1.msra.mxu0 0.0
        %2036 = vmatprep.subr.mxu0 0.0
        %2037 = vmatpush1.msra.mxu0 0.0
        %2038 = vmatprep.subr.mxu0 0.0
        %2039 = vmatpush1.msra.mxu0 0.0
        %2040 = vmatprep.subr.mxu0 0.0
        %2041 = vmatpush1.msra.mxu0 0.0
        %2042 = vmatprep.subr.mxu0 0.0
        %2043 = vmatpush1.msra.mxu0 0.0
        %2044 = vmatprep.subr.mxu0 0.0
        %2045 = vmatpush1.msra.mxu0 0.0
        %2046 = vmatprep.subr.mxu0 0.0
        %2047 = vmatpush1.msra.mxu0 0.0
        %2048 = vmatprep.subr.mxu0 0.0
        %2049 = vmatpush1.msra.mxu0 0.0
        %2050 = vmatprep.subr.mxu0 0.0
        %2051 = vmatpush1.msra.mxu0 0.0
        %2052 = vmatprep.mubr.f32.mxu0 0.0
        %2053 = vmatmul.mubr.f32.gmra.mrb[0].mxu0 %v1972
        %v2054 = vpop.f32.mrb[0].mxu0
        %v2055 = vadd.f32 0.0, %v2054
        %v2056 = vpop.f32.mrb[0].mxu0
        %2057 = vmatprep.mubr.f32.mxu0 0.0
        %2058 = vmatmul.mubr.f32.gmra.mrb[0].mxu0 %v1973
        %v2059 = vpop.f32.mrb[0].mxu0
        %v2060 = vadd.f32 0.0, %v2059
        %v2061 = vpop.f32.mrb[0].mxu0
        %2062 = vmatprep.mubr.f32.mxu0 0.0
        %2063 = vmatmul.mubr.f32.gmra.mrb[0].mxu0 %v1974
        %v2064 = vpop.f32.mrb[0].mxu0
        %v2065 = vadd.f32 0.0, %v2064
        %v2066 = vpop.f32.mrb[0].mxu0
        %2067 = vmatprep.mubr.f32.mxu0 0.0
        %2068 = vmatmul.mubr.f32.gmra.mrb[0].mxu0 %v1975
        %v2069 = vpop.f32.mrb[0].mxu0
        %v2070 = vadd.f32 0.0, %v2069
        %v2071 = vpop.f32.mrb[0].mxu0
        %2072 = vdwg.mxu0
        %v2073 = vmul.f32 %v1940, %v1940
        %v2074 = vmul.f32 %v1941, %v1941
        %v2075 = vmul.f32 %v1942, %v1942
        %v2076 = vmul.f32 %v1943, %v1943
        %v2077 = vmul.f32 %v1944, %v1944
        %v2078 = vmul.f32 %v1945, %v1945
        %v2079 = vmul.f32 %v1946, %v1946
        %v2080 = vmul.f32 %v1947, %v1947
        %v2081 = vmul.f32 %v1948, %v1948
        %v2082 = vmul.f32 %v1949, %v1949
        %v2083 = vmul.f32 %v1950, %v1950
        %v2084 = vmul.f32 %v1951, %v1951
        %v2085 = vmul.f32 %v1952, %v1952
        %v2086 = vmul.f32 %v1953, %v1953
        %v2087 = vmul.f32 %v1954, %v1954
        %v2088 = vmul.f32 %v1955, %v1955
        %2089 = vmatprep.subr.mxu0 0.0
        %2090 = vmatpush1.msra.mxu0 %v2073
        %2091 = vmatprep.subr.mxu0 0.0
        %2092 = vmatpush1.msra.mxu0 %v2074
        %2093 = vmatprep.subr.mxu0 0.0
        %2094 = vmatpush1.msra.mxu0 %v2075
        %2095 = vmatprep.subr.mxu0 0.0
        %2096 = vmatpush1.msra.mxu0 %v2076
        %2097 = vmatprep.subr.mxu0 0.0
        %2098 = vmatpush1.msra.mxu0 %v2077
        %2099 = vmatprep.subr.mxu0 0.0
        %2100 = vmatpush1.msra.mxu0 %v2078
        %2101 = vmatprep.subr.mxu0 0.0
        %2102 = vmatpush1.msra.mxu0 %v2079
        %2103 = vmatprep.subr.mxu0 0.0
        %2104 = vmatpush1.msra.mxu0 %v2080
        %2105 = vmatprep.subr.mxu0 0.0
        %2106 = vmatpush1.msra.mxu0 %v2081
        %2107 = vmatprep.subr.mxu0 0.0
        %2108 = vmatpush1.msra.mxu0 %v2082
        %2109 = vmatprep.subr.mxu0 0.0
        %2110 = vmatpush1.msra.mxu0 %v2083
        %2111 = vmatprep.subr.mxu0 0.0
        %2112 = vmatpush1.msra.mxu0 %v2084
        %2113 = vmatprep.subr.mxu0 0.0
        %2114 = vmatpush1.msra.mxu0 %v2085
        %2115 = vmatprep.subr.mxu0 0.0
        %2116 = vmatpush1.msra.mxu0 %v2086
        %2117 = vmatprep.subr.mxu0 0.0
        %2118 = vmatpush1.msra.mxu0 %v2087
        %2119 = vmatprep.subr.mxu0 0.0
        %2120 = vmatpush1.msra.mxu0 %v2088
        %2121 = vmatprep.subr.mxu0 0.0
        %2122 = vmatpush1.msra.mxu0 0.0
        %2123 = vmatprep.subr.mxu0 0.0
        %2124 = vmatpush1.msra.mxu0 0.0
        %2125 = vmatprep.subr.mxu0 0.0
        %2126 = vmatpush1.msra.mxu0 0.0
        %2127 = vmatprep.subr.mxu0 0.0
        %2128 = vmatpush1.msra.mxu0 0.0
        %2129 = vmatprep.subr.mxu0 0.0
        %2130 = vmatpush1.msra.mxu0 0.0
        %2131 = vmatprep.subr.mxu0 0.0
        %2132 = vmatpush1.msra.mxu0 0.0
        %2133 = vmatprep.subr.mxu0 0.0
        %2134 = vmatpush1.msra.mxu0 0.0
        %2135 = vmatprep.subr.mxu0 0.0
        %2136 = vmatpush1.msra.mxu0 0.0
        %2137 = vmatprep.subr.mxu0 0.0
        %2138 = vmatpush1.msra.mxu0 0.0
        %2139 = vmatprep.subr.mxu0 0.0
        %2140 = vmatpush1.msra.mxu0 0.0
        %2141 = vmatprep.subr.mxu0 0.0
        %2142 = vmatpush1.msra.mxu0 0.0
        %2143 = vmatprep.subr.mxu0 0.0
        %2144 = vmatpush1.msra.mxu0 0.0
        %2145 = vmatprep.subr.mxu0 0.0
        %2146 = vmatpush1.msra.mxu0 0.0
        %2147 = vmatprep.subr.mxu0 0.0
        %2148 = vmatpush1.msra.mxu0 0.0
        %2149 = vmatprep.subr.mxu0 0.0
        %2150 = vmatpush1.msra.mxu0 0.0
        %2151 = vmatprep.subr.mxu0 0.0
        %2152 = vmatpush1.msra.mxu0 0.0
        %2153 = vmatprep.mubr.f32.mxu0 0.0
        %2154 = vmatmul.mubr.f32.gmra.mrb[0].mxu0 %v1972
        %v2155 = vpop.f32.mrb[0].mxu0
        %v2156 = vadd.f32 0.0, %v2155
        %v2157 = vpop.f32.mrb[0].mxu0
        %2158 = vmatprep.mubr.f32.mxu0 0.0
        %2159 = vmatmul.mubr.f32.gmra.mrb[0].mxu0 %v1973
        %v2160 = vpop.f32.mrb[0].mxu0
        %v2161 = vadd.f32 0.0, %v2160
        %v2162 = vpop.f32.mrb[0].mxu0
        %2163 = vmatprep.mubr.f32.mxu0 0.0
        %2164 = vmatmul.mubr.f32.gmra.mrb[0].mxu0 %v1974
        %v2165 = vpop.f32.mrb[0].mxu0
        %v2166 = vadd.f32 0.0, %v2165
        %v2167 = vpop.f32.mrb[0].mxu0
        %2168 = vmatprep.mubr.f32.mxu0 0.0
        %2169 = vmatmul.mubr.f32.gmra.mrb[0].mxu0 %v1975
        %v2170 = vpop.f32.mrb[0].mxu0
        %v2171 = vadd.f32 0.0, %v2170
        %v2172 = vpop.f32.mrb[0].mxu0
        %2173 = vdwg.mxu0
        %2175 = vset.pattern.permute.xlu0 0
        %2176 = vperm.xlu0 %2175, %v863
        %v2177 = vpop.permute.xlu0 %2176
        %2180 = vset.pattern.permute.xlu0 0
        %2181 = vperm.xlu0 %2180, %v864
        %v2182 = vpop.permute.xlu0 %2181
        %2185 = vset.pattern.permute.xlu0 0
        %2186 = vperm.xlu0 %2185, %v865
        %v2187 = vpop.permute.xlu0 %2186
        %2190 = vset.pattern.permute.xlu0 0
        %2191 = vperm.xlu0 %2190, %v866
        %v2192 = vpop.permute.xlu0 %2191
        %v2194 = vmul.f32 %v2055, %v2177
        %v2195 = vmul.f32 %v2060, %v2182
        %v2196 = vmul.f32 %v2065, %v2187
        %v2197 = vmul.f32 %v2070, %v2192
        %v2198 = vmul.f32 %v2156, %v2177
        %v2199 = vmul.f32 %v2161, %v2182
        %v2200 = vmul.f32 %v2166, %v2187
        %v2201 = vmul.f32 %v2171, %v2192
        %v2202 = vmul.f32 %v2194, %v2194
        %v2203 = vmul.f32 %v2195, %v2195
        %v2204 = vmul.f32 %v2196, %v2196
        %v2205 = vmul.f32 %v2197, %v2197
        %v2206 = vsub.f32 %v2198, %v2202
        %v2207 = vsub.f32 %v2199, %v2203
        %v2208 = vsub.f32 %v2200, %v2204
        %v2209 = vsub.f32 %v2201, %v2205
        %v2210 = vmax.f32 %v2206, 0.0
        %v2211 = vmax.f32 %v2207, 0.0
        %v2212 = vmax.f32 %v2208, 0.0
        %v2213 = vmax.f32 %v2209, 0.0
        %v2214 = vadd.f32 %v2210, 1e-05
        %v2215 = vadd.f32 %v2211, 1e-05
        %v2216 = vadd.f32 %v2212, 1e-05
        %v2217 = vadd.f32 %v2213, 1e-05
        %v2218 = vrsqrt.pop %v2214
        %v2219 = vmul.f32 %v2214, %v2218
        %vm2220 = vcmp.eq.f32.partialorder %v2214, inf
        %v2221 = vsel %vm2220, %v2214, %v2219
        %vm2222 = vcmp.eq.f32.partialorder %v2214, 0.0
        %v2223 = vand.u32 %v2214, 2147483648
        %v2224 = vsel %vm2222, %v2223, %v2221
        %v2225 = vrsqrt.pop %v2215
        %v2226 = vmul.f32 %v2215, %v2225
        %vm2227 = vcmp.eq.f32.partialorder %v2215, inf
        %v2228 = vsel %vm2227, %v2215, %v2226
        %vm2229 = vcmp.eq.f32.partialorder %v2215, 0.0
        %v2230 = vand.u32 %v2215, 2147483648
        %v2231 = vsel %vm2229, %v2230, %v2228
        %v2232 = vrsqrt.pop %v2216
        %v2233 = vmul.f32 %v2216, %v2232
        %vm2234 = vcmp.eq.f32.partialorder %v2216, inf
        %v2235 = vsel %vm2234, %v2216, %v2233
        %vm2236 = vcmp.eq.f32.partialorder %v2216, 0.0
        %v2237 = vand.u32 %v2216, 2147483648
        %v2238 = vsel %vm2236, %v2237, %v2235
        %v2239 = vrsqrt.pop %v2217
        %v2240 = vmul.f32 %v2217, %v2239
        %vm2241 = vcmp.eq.f32.partialorder %v2217, inf
        %v2242 = vsel %vm2241, %v2217, %v2240
        %vm2243 = vcmp.eq.f32.partialorder %v2217, 0.0
        %v2244 = vand.u32 %v2217, 2147483648
        %v2245 = vsel %vm2243, %v2244, %v2242
        %v2246 = vsub.f32 1.0, %v847
        %v2247 = vsub.f32 1.0, %v848
        %v2248 = vsub.f32 1.0, %v849
        %v2249 = vsub.f32 1.0, %v850
        %v2250 = vmul.f32 %v2246, 1e+30
        %v2251 = vmul.f32 %v2247, 1e+30
        %v2252 = vmul.f32 %v2248, 1e+30
        %v2253 = vmul.f32 %v2249, 1e+30
        %v2258 = vcombine.high %v1940, %v1940
        %v2260 = vunpack.c.l.s4 1966171168
        %v2261 = vunpack.c.0.s8 %v2260
        %v2262 = vlaneseq
        %v2263 = vshrl.u32 %v2262, 7
        %v2264 = vsub.s32 %v2261, %v2263
        %v2265 = vrot.slane %v1940, %v2264
        %v2267 = vunpack.c.l.s4 1966171168
        %v2268 = vunpack.c.0.s8 %v2267
        %v2269 = vlaneseq
        %v2270 = vshrl.u32 %v2269, 7
        %v2271 = vsub.s32 %v2268, %v2270
        %v2272 = vrot.slane %v2258, %v2271
        %v2273 = vcombine.high %v2265, %v2265
        %v2274 = vcombine.high %v2272, %v2272
        %v2276 = vunpack.c.l.s4 1966171168
        %v2277 = vunpack.c.0.s8 %v2276
        %v2278 = vlaneseq
        %v2279 = vshrl.u32 %v2278, 7
        %v2280 = vsub.s32 %v2277, %v2279
        %v2281 = vrot.slane %v2265, %v2280
        %v2283 = vunpack.c.l.s4 1966171168
        %v2284 = vunpack.c.0.s8 %v2283
        %v2285 = vlaneseq
        %v2286 = vshrl.u32 %v2285, 7
        %v2287 = vsub.s32 %v2284, %v2286
        %v2288 = vrot.slane %v2272, %v2287
        %v2290 = vunpack.c.l.s4 1966171168
        %v2291 = vunpack.c.0.s8 %v2290
        %v2292 = vlaneseq
        %v2293 = vshrl.u32 %v2292, 7
        %v2294 = vsub.s32 %v2291, %v2293
        %v2295 = vrot.slane %v2273, %v2294
        %v2297 = vunpack.c.l.s4 1966171168
        %v2298 = vunpack.c.0.s8 %v2297
        %v2299 = vlaneseq
        %v2300 = vshrl.u32 %v2299, 7
        %v2301 = vsub.s32 %v2298, %v2300
        %v2302 = vrot.slane %v2274, %v2301
        %v2303 = vcombine.high %v2281, %v2281
        %v2304 = vcombine.high %v2288, %v2288
        %v2305 = vcombine.high %v2295, %v2295
        %v2306 = vcombine.high %v2302, %v2302
        %v2307 = vcombine.high %v1941, %v1941
        %v2309 = vunpack.c.l.s4 1966171168
        %v2310 = vunpack.c.0.s8 %v2309
        %v2311 = vlaneseq
        %v2312 = vshrl.u32 %v2311, 7
        %v2313 = vsub.s32 %v2310, %v2312
        %v2314 = vrot.slane %v1941, %v2313
        %v2316 = vunpack.c.l.s4 1966171168
        %v2317 = vunpack.c.0.s8 %v2316
        %v2318 = vlaneseq
        %v2319 = vshrl.u32 %v2318, 7
        %v2320 = vsub.s32 %v2317, %v2319
        %v2321 = vrot.slane %v2307, %v2320
        %v2322 = vcombine.high %v2314, %v2314
        %v2323 = vcombine.high %v2321, %v2321
        %v2325 = vunpack.c.l.s4 1966171168
        %v2326 = vunpack.c.0.s8 %v2325
        %v2327 = vlaneseq
        %v2328 = vshrl.u32 %v2327, 7
        %v2329 = vsub.s32 %v2326, %v2328
        %v2330 = vrot.slane %v2314, %v2329
        %v2332 = vunpack.c.l.s4 1966171168
        %v2333 = vunpack.c.0.s8 %v2332
        %v2334 = vlaneseq
        %v2335 = vshrl.u32 %v2334, 7
        %v2336 = vsub.s32 %v2333, %v2335
        %v2337 = vrot.slane %v2321, %v2336
        %v2339 = vunpack.c.l.s4 1966171168
        %v2340 = vunpack.c.0.s8 %v2339
        %v2341 = vlaneseq
        %v2342 = vshrl.u32 %v2341, 7
        %v2343 = vsub.s32 %v2340, %v2342
        %v2344 = vrot.slane %v2322, %v2343
        %v2346 = vunpack.c.l.s4 1966171168
        %v2347 = vunpack.c.0.s8 %v2346
        %v2348 = vlaneseq
        %v2349 = vshrl.u32 %v2348, 7
        %v2350 = vsub.s32 %v2347, %v2349
        %v2351 = vrot.slane %v2323, %v2350
        %v2352 = vcombine.high %v2330, %v2330
        %v2353 = vcombine.high %v2337, %v2337
        %v2354 = vcombine.high %v2344, %v2344
        %v2355 = vcombine.high %v2351, %v2351
        %v2356 = vcombine.high %v1942, %v1942
        %v2358 = vunpack.c.l.s4 1966171168
        %v2359 = vunpack.c.0.s8 %v2358
        %v2360 = vlaneseq
        %v2361 = vshrl.u32 %v2360, 7
        %v2362 = vsub.s32 %v2359, %v2361
        %v2363 = vrot.slane %v1942, %v2362
        %v2365 = vunpack.c.l.s4 1966171168
        %v2366 = vunpack.c.0.s8 %v2365
        %v2367 = vlaneseq
        %v2368 = vshrl.u32 %v2367, 7
        %v2369 = vsub.s32 %v2366, %v2368
        %v2370 = vrot.slane %v2356, %v2369
        %v2371 = vcombine.high %v2363, %v2363
        %v2372 = vcombine.high %v2370, %v2370
        %v2374 = vunpack.c.l.s4 1966171168
        %v2375 = vunpack.c.0.s8 %v2374
        %v2376 = vlaneseq
        %v2377 = vshrl.u32 %v2376, 7
        %v2378 = vsub.s32 %v2375, %v2377
        %v2379 = vrot.slane %v2363, %v2378
        %v2381 = vunpack.c.l.s4 1966171168
        %v2382 = vunpack.c.0.s8 %v2381
        %v2383 = vlaneseq
        %v2384 = vshrl.u32 %v2383, 7
        %v2385 = vsub.s32 %v2382, %v2384
        %v2386 = vrot.slane %v2370, %v2385
        %v2388 = vunpack.c.l.s4 1966171168
        %v2389 = vunpack.c.0.s8 %v2388
        %v2390 = vlaneseq
        %v2391 = vshrl.u32 %v2390, 7
        %v2392 = vsub.s32 %v2389, %v2391
        %v2393 = vrot.slane %v2371, %v2392
        %v2395 = vunpack.c.l.s4 1966171168
        %v2396 = vunpack.c.0.s8 %v2395
        %v2397 = vlaneseq
        %v2398 = vshrl.u32 %v2397, 7
        %v2399 = vsub.s32 %v2396, %v2398
        %v2400 = vrot.slane %v2372, %v2399
        %v2401 = vcombine.high %v2379, %v2379
        %v2402 = vcombine.high %v2386, %v2386
        %v2403 = vcombine.high %v2393, %v2393
        %v2404 = vcombine.high %v2400, %v2400
        %v2405 = vcombine.high %v1943, %v1943
        %v2407 = vunpack.c.l.s4 1966171168
        %v2408 = vunpack.c.0.s8 %v2407
        %v2409 = vlaneseq
        %v2410 = vshrl.u32 %v2409, 7
        %v2411 = vsub.s32 %v2408, %v2410
        %v2412 = vrot.slane %v1943, %v2411
        %v2414 = vunpack.c.l.s4 1966171168
        %v2415 = vunpack.c.0.s8 %v2414
        %v2416 = vlaneseq
        %v2417 = vshrl.u32 %v2416, 7
        %v2418 = vsub.s32 %v2415, %v2417
        %v2419 = vrot.slane %v2405, %v2418
        %v2420 = vcombine.high %v2412, %v2412
        %v2421 = vcombine.high %v2419, %v2419
        %v2423 = vunpack.c.l.s4 1966171168
        %v2424 = vunpack.c.0.s8 %v2423
        %v2425 = vlaneseq
        %v2426 = vshrl.u32 %v2425, 7
        %v2427 = vsub.s32 %v2424, %v2426
        %v2428 = vrot.slane %v2412, %v2427
        %v2430 = vunpack.c.l.s4 1966171168
        %v2431 = vunpack.c.0.s8 %v2430
        %v2432 = vlaneseq
        %v2433 = vshrl.u32 %v2432, 7
        %v2434 = vsub.s32 %v2431, %v2433
        %v2435 = vrot.slane %v2419, %v2434
        %v2437 = vunpack.c.l.s4 1966171168
        %v2438 = vunpack.c.0.s8 %v2437
        %v2439 = vlaneseq
        %v2440 = vshrl.u32 %v2439, 7
        %v2441 = vsub.s32 %v2438, %v2440
        %v2442 = vrot.slane %v2420, %v2441
        %v2444 = vunpack.c.l.s4 1966171168
        %v2445 = vunpack.c.0.s8 %v2444
        %v2446 = vlaneseq
        %v2447 = vshrl.u32 %v2446, 7
        %v2448 = vsub.s32 %v2445, %v2447
        %v2449 = vrot.slane %v2421, %v2448
        %v2450 = vcombine.high %v2428, %v2428
        %v2451 = vcombine.high %v2435, %v2435
        %v2452 = vcombine.high %v2442, %v2442
        %v2453 = vcombine.high %v2449, %v2449
        %v2454 = vlaneseq
        %v2455 = vshrl.u32 %v2454, 7
        %v2456 = vsub.s32 0, %v2455
        %v2457 = vrot.slane %v2250, %v2456
        %2459 = vbcast.lane.b32.xlu0 %v2457, 256
        %v2460 = vpop.permute.xlu0 %2459
        %s2462 = sor.u32 256, 8
        %2463 = vbcast.lane.b32.xlu0 %v2457, %s2462
        %v2464 = vpop.permute.xlu0 %2463
        %s2466 = sor.u32 256, 16
        %2467 = vbcast.lane.b32.xlu0 %v2457, %s2466
        %v2468 = vpop.permute.xlu0 %2467
        %s2470 = sor.u32 256, 24
        %2471 = vbcast.lane.b32.xlu0 %v2457, %s2470
        %v2472 = vpop.permute.xlu0 %2471
        %v2473 = vlaneseq
        %v2474 = vshrl.u32 %v2473, 7
        %v2475 = vsub.s32 1, %v2474
        %v2476 = vrot.slane %v2250, %v2475
        %2478 = vbcast.lane.b32.xlu0 %v2476, 256
        %v2479 = vpop.permute.xlu0 %2478
        %s2481 = sor.u32 256, 8
        %2482 = vbcast.lane.b32.xlu0 %v2476, %s2481
        %v2483 = vpop.permute.xlu0 %2482
        %s2485 = sor.u32 256, 16
        %2486 = vbcast.lane.b32.xlu0 %v2476, %s2485
        %v2487 = vpop.permute.xlu0 %2486
        %s2489 = sor.u32 256, 24
        %2490 = vbcast.lane.b32.xlu0 %v2476, %s2489
        %v2491 = vpop.permute.xlu0 %2490
        %v2492 = vlaneseq
        %v2493 = vshrl.u32 %v2492, 7
        %v2494 = vsub.s32 2, %v2493
        %v2495 = vrot.slane %v2250, %v2494
        %2497 = vbcast.lane.b32.xlu0 %v2495, 256
        %v2498 = vpop.permute.xlu0 %2497
        %s2500 = sor.u32 256, 8
        %2501 = vbcast.lane.b32.xlu0 %v2495, %s2500
        %v2502 = vpop.permute.xlu0 %2501
        %s2504 = sor.u32 256, 16
        %2505 = vbcast.lane.b32.xlu0 %v2495, %s2504
        %v2506 = vpop.permute.xlu0 %2505
        %s2508 = sor.u32 256, 24
        %2509 = vbcast.lane.b32.xlu0 %v2495, %s2508
        %v2510 = vpop.permute.xlu0 %2509
        %v2511 = vlaneseq
        %v2512 = vshrl.u32 %v2511, 7
        %v2513 = vsub.s32 3, %v2512
        %v2514 = vrot.slane %v2250, %v2513
        %2516 = vbcast.lane.b32.xlu0 %v2514, 256
        %v2517 = vpop.permute.xlu0 %2516
        %s2519 = sor.u32 256, 8
        %2520 = vbcast.lane.b32.xlu0 %v2514, %s2519
        %v2521 = vpop.permute.xlu0 %2520
        %s2523 = sor.u32 256, 16
        %2524 = vbcast.lane.b32.xlu0 %v2514, %s2523
        %v2525 = vpop.permute.xlu0 %2524
        %s2527 = sor.u32 256, 24
        %2528 = vbcast.lane.b32.xlu0 %v2514, %s2527
        %v2529 = vpop.permute.xlu0 %2528
        %v2530 = vlaneseq
        %v2531 = vshrl.u32 %v2530, 7
        %v2532 = vsub.s32 4, %v2531
        %v2533 = vrot.slane %v2250, %v2532
        %2535 = vbcast.lane.b32.xlu0 %v2533, 256
        %v2536 = vpop.permute.xlu0 %2535
        %s2538 = sor.u32 256, 8
        %2539 = vbcast.lane.b32.xlu0 %v2533, %s2538
        %v2540 = vpop.permute.xlu0 %2539
        %s2542 = sor.u32 256, 16
        %2543 = vbcast.lane.b32.xlu0 %v2533, %s2542
        %v2544 = vpop.permute.xlu0 %2543
        %s2546 = sor.u32 256, 24
        %2547 = vbcast.lane.b32.xlu0 %v2533, %s2546
        %v2548 = vpop.permute.xlu0 %2547
        %v2549 = vlaneseq
        %v2550 = vshrl.u32 %v2549, 7
        %v2551 = vsub.s32 5, %v2550
        %v2552 = vrot.slane %v2250, %v2551
        %2554 = vbcast.lane.b32.xlu0 %v2552, 256
        %v2555 = vpop.permute.xlu0 %2554
        %s2557 = sor.u32 256, 8
        %2558 = vbcast.lane.b32.xlu0 %v2552, %s2557
        %v2559 = vpop.permute.xlu0 %2558
        %s2561 = sor.u32 256, 16
        %2562 = vbcast.lane.b32.xlu0 %v2552, %s2561
        %v2563 = vpop.permute.xlu0 %2562
        %s2565 = sor.u32 256, 24
        %2566 = vbcast.lane.b32.xlu0 %v2552, %s2565
        %v2567 = vpop.permute.xlu0 %2566
        %v2568 = vlaneseq
        %v2569 = vshrl.u32 %v2568, 7
        %v2570 = vsub.s32 6, %v2569
        %v2571 = vrot.slane %v2250, %v2570
        %2573 = vbcast.lane.b32.xlu0 %v2571, 256
        %v2574 = vpop.permute.xlu0 %2573
        %s2576 = sor.u32 256, 8
        %2577 = vbcast.lane.b32.xlu0 %v2571, %s2576
        %v2578 = vpop.permute.xlu0 %2577
        %s2580 = sor.u32 256, 16
        %2581 = vbcast.lane.b32.xlu0 %v2571, %s2580
        %v2582 = vpop.permute.xlu0 %2581
        %s2584 = sor.u32 256, 24
        %2585 = vbcast.lane.b32.xlu0 %v2571, %s2584
        %v2586 = vpop.permute.xlu0 %2585
        %v2587 = vlaneseq
        %v2588 = vshrl.u32 %v2587, 7
        %v2589 = vsub.s32 7, %v2588
        %v2590 = vrot.slane %v2250, %v2589
        %2592 = vbcast.lane.b32.xlu0 %v2590, 256
        %v2593 = vpop.permute.xlu0 %2592
        %s2595 = sor.u32 256, 8
        %2596 = vbcast.lane.b32.xlu0 %v2590, %s2595
        %v2597 = vpop.permute.xlu0 %2596
        %s2599 = sor.u32 256, 16
        %2600 = vbcast.lane.b32.xlu0 %v2590, %s2599
        %v2601 = vpop.permute.xlu0 %2600
        %s2603 = sor.u32 256, 24
        %2604 = vbcast.lane.b32.xlu0 %v2590, %s2603
        %v2605 = vpop.permute.xlu0 %2604
        %v2606 = vlaneseq
        %v2607 = vshrl.u32 %v2606, 7
        %v2608 = vsub.s32 0, %v2607
        %v2609 = vrot.slane %v2251, %v2608
        %2611 = vbcast.lane.b32.xlu0 %v2609, 256
        %v2612 = vpop.permute.xlu0 %2611
        %s2614 = sor.u32 256, 8
        %2615 = vbcast.lane.b32.xlu0 %v2609, %s2614
        %v2616 = vpop.permute.xlu0 %2615
        %s2618 = sor.u32 256, 16
        %2619 = vbcast.lane.b32.xlu0 %v2609, %s2618
        %v2620 = vpop.permute.xlu0 %2619
        %s2622 = sor.u32 256, 24
        %2623 = vbcast.lane.b32.xlu0 %v2609, %s2622
        %v2624 = vpop.permute.xlu0 %2623
        %v2625 = vlaneseq
        %v2626 = vshrl.u32 %v2625, 7
        %v2627 = vsub.s32 1, %v2626
        %v2628 = vrot.slane %v2251, %v2627
        %2630 = vbcast.lane.b32.xlu0 %v2628, 256
        %v2631 = vpop.permute.xlu0 %2630
        %s2633 = sor.u32 256, 8
        %2634 = vbcast.lane.b32.xlu0 %v2628, %s2633
        %v2635 = vpop.permute.xlu0 %2634
        %s2637 = sor.u32 256, 16
        %2638 = vbcast.lane.b32.xlu0 %v2628, %s2637
        %v2639 = vpop.permute.xlu0 %2638
        %s2641 = sor.u32 256, 24
        %2642 = vbcast.lane.b32.xlu0 %v2628, %s2641
        %v2643 = vpop.permute.xlu0 %2642
        %v2644 = vlaneseq
        %v2645 = vshrl.u32 %v2644, 7
        %v2646 = vsub.s32 2, %v2645
        %v2647 = vrot.slane %v2251, %v2646
        %2649 = vbcast.lane.b32.xlu0 %v2647, 256
        %v2650 = vpop.permute.xlu0 %2649
        %s2652 = sor.u32 256, 8
        %2653 = vbcast.lane.b32.xlu0 %v2647, %s2652
        %v2654 = vpop.permute.xlu0 %2653
        %s2656 = sor.u32 256, 16
        %2657 = vbcast.lane.b32.xlu0 %v2647, %s2656
        %v2658 = vpop.permute.xlu0 %2657
        %s2660 = sor.u32 256, 24
        %2661 = vbcast.lane.b32.xlu0 %v2647, %s2660
        %v2662 = vpop.permute.xlu0 %2661
        %v2663 = vlaneseq
        %v2664 = vshrl.u32 %v2663, 7
        %v2665 = vsub.s32 3, %v2664
        %v2666 = vrot.slane %v2251, %v2665
        %2668 = vbcast.lane.b32.xlu0 %v2666, 256
        %v2669 = vpop.permute.xlu0 %2668
        %s2671 = sor.u32 256, 8
        %2672 = vbcast.lane.b32.xlu0 %v2666, %s2671
        %v2673 = vpop.permute.xlu0 %2672
        %s2675 = sor.u32 256, 16
        %2676 = vbcast.lane.b32.xlu0 %v2666, %s2675
        %v2677 = vpop.permute.xlu0 %2676
        %s2679 = sor.u32 256, 24
        %2680 = vbcast.lane.b32.xlu0 %v2666, %s2679
        %v2681 = vpop.permute.xlu0 %2680
        %v2682 = vlaneseq
        %v2683 = vshrl.u32 %v2682, 7
        %v2684 = vsub.s32 4, %v2683
        %v2685 = vrot.slane %v2251, %v2684
        %2687 = vbcast.lane.b32.xlu0 %v2685, 256
        %v2688 = vpop.permute.xlu0 %2687
        %s2690 = sor.u32 256, 8
        %2691 = vbcast.lane.b32.xlu0 %v2685, %s2690
        %v2692 = vpop.permute.xlu0 %2691
        %s2694 = sor.u32 256, 16
        %2695 = vbcast.lane.b32.xlu0 %v2685, %s2694
        %v2696 = vpop.permute.xlu0 %2695
        %s2698 = sor.u32 256, 24
        %2699 = vbcast.lane.b32.xlu0 %v2685, %s2698
        %v2700 = vpop.permute.xlu0 %2699
        %v2701 = vlaneseq
        %v2702 = vshrl.u32 %v2701, 7
        %v2703 = vsub.s32 5, %v2702
        %v2704 = vrot.slane %v2251, %v2703
        %2706 = vbcast.lane.b32.xlu0 %v2704, 256
        %v2707 = vpop.permute.xlu0 %2706
        %s2709 = sor.u32 256, 8
        %2710 = vbcast.lane.b32.xlu0 %v2704, %s2709
        %v2711 = vpop.permute.xlu0 %2710
        %s2713 = sor.u32 256, 16
        %2714 = vbcast.lane.b32.xlu0 %v2704, %s2713
        %v2715 = vpop.permute.xlu0 %2714
        %s2717 = sor.u32 256, 24
        %2718 = vbcast.lane.b32.xlu0 %v2704, %s2717
        %v2719 = vpop.permute.xlu0 %2718
        %v2720 = vlaneseq
        %v2721 = vshrl.u32 %v2720, 7
        %v2722 = vsub.s32 6, %v2721
        %v2723 = vrot.slane %v2251, %v2722
        %2725 = vbcast.lane.b32.xlu0 %v2723, 256
        %v2726 = vpop.permute.xlu0 %2725
        %s2728 = sor.u32 256, 8
        %2729 = vbcast.lane.b32.xlu0 %v2723, %s2728
        %v2730 = vpop.permute.xlu0 %2729
        %s2732 = sor.u32 256, 16
        %2733 = vbcast.lane.b32.xlu0 %v2723, %s2732
        %v2734 = vpop.permute.xlu0 %2733
        %s2736 = sor.u32 256, 24
        %2737 = vbcast.lane.b32.xlu0 %v2723, %s2736
        %v2738 = vpop.permute.xlu0 %2737
        %v2739 = vlaneseq
        %v2740 = vshrl.u32 %v2739, 7
        %v2741 = vsub.s32 7, %v2740
        %v2742 = vrot.slane %v2251, %v2741
        %2744 = vbcast.lane.b32.xlu0 %v2742, 256
        %v2745 = vpop.permute.xlu0 %2744
        %s2747 = sor.u32 256, 8
        %2748 = vbcast.lane.b32.xlu0 %v2742, %s2747
        %v2749 = vpop.permute.xlu0 %2748
        %s2751 = sor.u32 256, 16
        %2752 = vbcast.lane.b32.xlu0 %v2742, %s2751
        %v2753 = vpop.permute.xlu0 %2752
        %s2755 = sor.u32 256, 24
        %2756 = vbcast.lane.b32.xlu0 %v2742, %s2755
        %v2757 = vpop.permute.xlu0 %2756
        %v2758 = vlaneseq
        %v2759 = vshrl.u32 %v2758, 7
        %v2760 = vsub.s32 0, %v2759
        %v2761 = vrot.slane %v2252, %v2760
        %2763 = vbcast.lane.b32.xlu0 %v2761, 256
        %v2764 = vpop.permute.xlu0 %2763
        %s2766 = sor.u32 256, 8
        %2767 = vbcast.lane.b32.xlu0 %v2761, %s2766
        %v2768 = vpop.permute.xlu0 %2767
        %s2770 = sor.u32 256, 16
        %2771 = vbcast.lane.b32.xlu0 %v2761, %s2770
        %v2772 = vpop.permute.xlu0 %2771
        %s2774 = sor.u32 256, 24
        %2775 = vbcast.lane.b32.xlu0 %v2761, %s2774
        %v2776 = vpop.permute.xlu0 %2775
        %v2777 = vlaneseq
        %v2778 = vshrl.u32 %v2777, 7
        %v2779 = vsub.s32 1, %v2778
        %v2780 = vrot.slane %v2252, %v2779
        %2782 = vbcast.lane.b32.xlu0 %v2780, 256
        %v2783 = vpop.permute.xlu0 %2782
        %s2785 = sor.u32 256, 8
        %2786 = vbcast.lane.b32.xlu0 %v2780, %s2785
        %v2787 = vpop.permute.xlu0 %2786
        %s2789 = sor.u32 256, 16
        %2790 = vbcast.lane.b32.xlu0 %v2780, %s2789
        %v2791 = vpop.permute.xlu0 %2790
        %s2793 = sor.u32 256, 24
        %2794 = vbcast.lane.b32.xlu0 %v2780, %s2793
        %v2795 = vpop.permute.xlu0 %2794
        %v2796 = vlaneseq
        %v2797 = vshrl.u32 %v2796, 7
        %v2798 = vsub.s32 2, %v2797
        %v2799 = vrot.slane %v2252, %v2798
        %2801 = vbcast.lane.b32.xlu0 %v2799, 256
        %v2802 = vpop.permute.xlu0 %2801
        %s2804 = sor.u32 256, 8
        %2805 = vbcast.lane.b32.xlu0 %v2799, %s2804
        %v2806 = vpop.permute.xlu0 %2805
        %s2808 = sor.u32 256, 16
        %2809 = vbcast.lane.b32.xlu0 %v2799, %s2808
        %v2810 = vpop.permute.xlu0 %2809
        %s2812 = sor.u32 256, 24
        %2813 = vbcast.lane.b32.xlu0 %v2799, %s2812
        %v2814 = vpop.permute.xlu0 %2813
        %v2815 = vlaneseq
        %v2816 = vshrl.u32 %v2815, 7
        %v2817 = vsub.s32 3, %v2816
        %v2818 = vrot.slane %v2252, %v2817
        %2820 = vbcast.lane.b32.xlu0 %v2818, 256
        %v2821 = vpop.permute.xlu0 %2820
        %s2823 = sor.u32 256, 8
        %2824 = vbcast.lane.b32.xlu0 %v2818, %s2823
        %v2825 = vpop.permute.xlu0 %2824
        %s2827 = sor.u32 256, 16
        %2828 = vbcast.lane.b32.xlu0 %v2818, %s2827
        %v2829 = vpop.permute.xlu0 %2828
        %s2831 = sor.u32 256, 24
        %2832 = vbcast.lane.b32.xlu0 %v2818, %s2831
        %v2833 = vpop.permute.xlu0 %2832
        %v2834 = vlaneseq
        %v2835 = vshrl.u32 %v2834, 7
        %v2836 = vsub.s32 4, %v2835
        %v2837 = vrot.slane %v2252, %v2836
        %2839 = vbcast.lane.b32.xlu0 %v2837, 256
        %v2840 = vpop.permute.xlu0 %2839
        %s2842 = sor.u32 256, 8
        %2843 = vbcast.lane.b32.xlu0 %v2837, %s2842
        %v2844 = vpop.permute.xlu0 %2843
        %s2846 = sor.u32 256, 16
        %2847 = vbcast.lane.b32.xlu0 %v2837, %s2846
        %v2848 = vpop.permute.xlu0 %2847
        %s2850 = sor.u32 256, 24
        %2851 = vbcast.lane.b32.xlu0 %v2837, %s2850
        %v2852 = vpop.permute.xlu0 %2851
        %v2853 = vlaneseq
        %v2854 = vshrl.u32 %v2853, 7
        %v2855 = vsub.s32 5, %v2854
        %v2856 = vrot.slane %v2252, %v2855
        %2858 = vbcast.lane.b32.xlu0 %v2856, 256
        %v2859 = vpop.permute.xlu0 %2858
        %s2861 = sor.u32 256, 8
        %2862 = vbcast.lane.b32.xlu0 %v2856, %s2861
        %v2863 = vpop.permute.xlu0 %2862
        %s2865 = sor.u32 256, 16
        %2866 = vbcast.lane.b32.xlu0 %v2856, %s2865
        %v2867 = vpop.permute.xlu0 %2866
        %s2869 = sor.u32 256, 24
        %2870 = vbcast.lane.b32.xlu0 %v2856, %s2869
        %v2871 = vpop.permute.xlu0 %2870
        %v2872 = vlaneseq
        %v2873 = vshrl.u32 %v2872, 7
        %v2874 = vsub.s32 6, %v2873
        %v2875 = vrot.slane %v2252, %v2874
        %2877 = vbcast.lane.b32.xlu0 %v2875, 256
        %v2878 = vpop.permute.xlu0 %2877
        %s2880 = sor.u32 256, 8
        %2881 = vbcast.lane.b32.xlu0 %v2875, %s2880
        %v2882 = vpop.permute.xlu0 %2881
        %s2884 = sor.u32 256, 16
        %2885 = vbcast.lane.b32.xlu0 %v2875, %s2884
        %v2886 = vpop.permute.xlu0 %2885
        %s2888 = sor.u32 256, 24
        %2889 = vbcast.lane.b32.xlu0 %v2875, %s2888
        %v2890 = vpop.permute.xlu0 %2889
        %v2891 = vlaneseq
        %v2892 = vshrl.u32 %v2891, 7
        %v2893 = vsub.s32 7, %v2892
        %v2894 = vrot.slane %v2252, %v2893
        %2896 = vbcast.lane.b32.xlu0 %v2894, 256
        %v2897 = vpop.permute.xlu0 %2896
        %s2899 = sor.u32 256, 8
        %2900 = vbcast.lane.b32.xlu0 %v2894, %s2899
        %v2901 = vpop.permute.xlu0 %2900
        %s2903 = sor.u32 256, 16
        %2904 = vbcast.lane.b32.xlu0 %v2894, %s2903
        %v2905 = vpop.permute.xlu0 %2904
        %s2907 = sor.u32 256, 24
        %2908 = vbcast.lane.b32.xlu0 %v2894, %s2907
        %v2909 = vpop.permute.xlu0 %2908
        %v2910 = vlaneseq
        %v2911 = vshrl.u32 %v2910, 7
        %v2912 = vsub.s32 0, %v2911
        %v2913 = vrot.slane %v2253, %v2912
        %2915 = vbcast.lane.b32.xlu0 %v2913, 256
        %v2916 = vpop.permute.xlu0 %2915
        %s2918 = sor.u32 256, 8
        %2919 = vbcast.lane.b32.xlu0 %v2913, %s2918
        %v2920 = vpop.permute.xlu0 %2919
        %s2922 = sor.u32 256, 16
        %2923 = vbcast.lane.b32.xlu0 %v2913, %s2922
        %v2924 = vpop.permute.xlu0 %2923
        %s2926 = sor.u32 256, 24
        %2927 = vbcast.lane.b32.xlu0 %v2913, %s2926
        %v2928 = vpop.permute.xlu0 %2927
        %v2929 = vlaneseq
        %v2930 = vshrl.u32 %v2929, 7
        %v2931 = vsub.s32 1, %v2930
        %v2932 = vrot.slane %v2253, %v2931
        %2934 = vbcast.lane.b32.xlu0 %v2932, 256
        %v2935 = vpop.permute.xlu0 %2934
        %s2937 = sor.u32 256, 8
        %2938 = vbcast.lane.b32.xlu0 %v2932, %s2937
        %v2939 = vpop.permute.xlu0 %2938
        %s2941 = sor.u32 256, 16
        %2942 = vbcast.lane.b32.xlu0 %v2932, %s2941
        %v2943 = vpop.permute.xlu0 %2942
        %s2945 = sor.u32 256, 24
        %2946 = vbcast.lane.b32.xlu0 %v2932, %s2945
        %v2947 = vpop.permute.xlu0 %2946
        %v2948 = vlaneseq
        %v2949 = vshrl.u32 %v2948, 7
        %v2950 = vsub.s32 2, %v2949
        %v2951 = vrot.slane %v2253, %v2950
        %2953 = vbcast.lane.b32.xlu0 %v2951, 256
        %v2954 = vpop.permute.xlu0 %2953
        %s2956 = sor.u32 256, 8
        %2957 = vbcast.lane.b32.xlu0 %v2951, %s2956
        %v2958 = vpop.permute.xlu0 %2957
        %s2960 = sor.u32 256, 16
        %2961 = vbcast.lane.b32.xlu0 %v2951, %s2960
        %v2962 = vpop.permute.xlu0 %2961
        %s2964 = sor.u32 256, 24
        %2965 = vbcast.lane.b32.xlu0 %v2951, %s2964
        %v2966 = vpop.permute.xlu0 %2965
        %v2967 = vlaneseq
        %v2968 = vshrl.u32 %v2967, 7
        %v2969 = vsub.s32 3, %v2968
        %v2970 = vrot.slane %v2253, %v2969
        %2972 = vbcast.lane.b32.xlu0 %v2970, 256
        %v2973 = vpop.permute.xlu0 %2972
        %s2975 = sor.u32 256, 8
        %2976 = vbcast.lane.b32.xlu0 %v2970, %s2975
        %v2977 = vpop.permute.xlu0 %2976
        %s2979 = sor.u32 256, 16
        %2980 = vbcast.lane.b32.xlu0 %v2970, %s2979
        %v2981 = vpop.permute.xlu0 %2980
        %s2983 = sor.u32 256, 24
        %2984 = vbcast.lane.b32.xlu0 %v2970, %s2983
        %v2985 = vpop.permute.xlu0 %2984
        %v2986 = vlaneseq
        %v2987 = vshrl.u32 %v2986, 7
        %v2988 = vsub.s32 4, %v2987
        %v2989 = vrot.slane %v2253, %v2988
        %2991 = vbcast.lane.b32.xlu0 %v2989, 256
        %v2992 = vpop.permute.xlu0 %2991
        %s2994 = sor.u32 256, 8
        %2995 = vbcast.lane.b32.xlu0 %v2989, %s2994
        %v2996 = vpop.permute.xlu0 %2995
        %s2998 = sor.u32 256, 16
        %2999 = vbcast.lane.b32.xlu0 %v2989, %s2998
        %v3000 = vpop.permute.xlu0 %2999
        %s3002 = sor.u32 256, 24
        %3003 = vbcast.lane.b32.xlu0 %v2989, %s3002
        %v3004 = vpop.permute.xlu0 %3003
        %v3005 = vlaneseq
        %v3006 = vshrl.u32 %v3005, 7
        %v3007 = vsub.s32 5, %v3006
        %v3008 = vrot.slane %v2253, %v3007
        %3010 = vbcast.lane.b32.xlu0 %v3008, 256
        %v3011 = vpop.permute.xlu0 %3010
        %s3013 = sor.u32 256, 8
        %3014 = vbcast.lane.b32.xlu0 %v3008, %s3013
        %v3015 = vpop.permute.xlu0 %3014
        %s3017 = sor.u32 256, 16
        %3018 = vbcast.lane.b32.xlu0 %v3008, %s3017
        %v3019 = vpop.permute.xlu0 %3018
        %s3021 = sor.u32 256, 24
        %3022 = vbcast.lane.b32.xlu0 %v3008, %s3021
        %v3023 = vpop.permute.xlu0 %3022
        %v3024 = vlaneseq
        %v3025 = vshrl.u32 %v3024, 7
        %v3026 = vsub.s32 6, %v3025
        %v3027 = vrot.slane %v2253, %v3026
        %3029 = vbcast.lane.b32.xlu0 %v3027, 256
        %v3030 = vpop.permute.xlu0 %3029
        %s3032 = sor.u32 256, 8
        %3033 = vbcast.lane.b32.xlu0 %v3027, %s3032
        %v3034 = vpop.permute.xlu0 %3033
        %s3036 = sor.u32 256, 16
        %3037 = vbcast.lane.b32.xlu0 %v3027, %s3036
        %v3038 = vpop.permute.xlu0 %3037
        %s3040 = sor.u32 256, 24
        %3041 = vbcast.lane.b32.xlu0 %v3027, %s3040
        %v3042 = vpop.permute.xlu0 %3041
        %v3043 = vlaneseq
        %v3044 = vshrl.u32 %v3043, 7
        %v3045 = vsub.s32 7, %v3044
        %v3046 = vrot.slane %v2253, %v3045
        %3048 = vbcast.lane.b32.xlu0 %v3046, 256
        %v3049 = vpop.permute.xlu0 %3048
        %s3051 = sor.u32 256, 8
        %3052 = vbcast.lane.b32.xlu0 %v3046, %s3051
        %v3053 = vpop.permute.xlu0 %3052
        %s3055 = sor.u32 256, 16
        %3056 = vbcast.lane.b32.xlu0 %v3046, %s3055
        %v3057 = vpop.permute.xlu0 %3056
        %s3059 = sor.u32 256, 24
        %3060 = vbcast.lane.b32.xlu0 %v3046, %s3059
        %v3061 = vpop.permute.xlu0 %3060
        %v3062 = vlaneseq
        %v3063 = vshrl.u32 %v3062, 7
        %v3064 = vsub.s32 0, %v3063
        %v3065 = vrot.slane %v2281, %v3064
        %v3066 = vlaneseq
        %v3067 = vshrl.u32 %v3066, 7
        %v3068 = vsub.s32 0, %v3067
        %v3069 = vrot.slane %v2295, %v3068
        %v3070 = vlaneseq
        %v3071 = vshrl.u32 %v3070, 7
        %v3072 = vsub.s32 0, %v3071
        %v3073 = vrot.slane %v2303, %v3072
        %v3074 = vlaneseq
        %v3075 = vshrl.u32 %v3074, 7
        %v3076 = vsub.s32 0, %v3075
        %v3077 = vrot.slane %v2305, %v3076
        %v3078 = vlaneseq
        %v3079 = vshrl.u32 %v3078, 7
        %v3080 = vsub.s32 0, %v3079
        %v3081 = vrot.slane %v2288, %v3080
        %v3082 = vlaneseq
        %v3083 = vshrl.u32 %v3082, 7
        %v3084 = vsub.s32 0, %v3083
        %v3085 = vrot.slane %v2302, %v3084
        %v3086 = vlaneseq
        %v3087 = vshrl.u32 %v3086, 7
        %v3088 = vsub.s32 0, %v3087
        %v3089 = vrot.slane %v2304, %v3088
        %v3090 = vlaneseq
        %v3091 = vshrl.u32 %v3090, 7
        %v3092 = vsub.s32 0, %v3091
        %v3093 = vrot.slane %v2306, %v3092
        %v3094 = vlaneseq
        %v3095 = vshrl.u32 %v3094, 7
        %v3096 = vsub.s32 0, %v3095
        %v3097 = vrot.slane %v2330, %v3096
        %v3098 = vlaneseq
        %v3099 = vshrl.u32 %v3098, 7
        %v3100 = vsub.s32 0, %v3099
        %v3101 = vrot.slane %v2344, %v3100
        %v3102 = vlaneseq
        %v3103 = vshrl.u32 %v3102, 7
        %v3104 = vsub.s32 0, %v3103
        %v3105 = vrot.slane %v2352, %v3104
        %v3106 = vlaneseq
        %v3107 = vshrl.u32 %v3106, 7
        %v3108 = vsub.s32 0, %v3107
        %v3109 = vrot.slane %v2354, %v3108
        %v3110 = vlaneseq
        %v3111 = vshrl.u32 %v3110, 7
        %v3112 = vsub.s32 0, %v3111
        %v3113 = vrot.slane %v2337, %v3112
        %v3114 = vlaneseq
        %v3115 = vshrl.u32 %v3114, 7
        %v3116 = vsub.s32 0, %v3115
        %v3117 = vrot.slane %v2351, %v3116
        %v3118 = vlaneseq
        %v3119 = vshrl.u32 %v3118, 7
        %v3120 = vsub.s32 0, %v3119
        %v3121 = vrot.slane %v2353, %v3120
        %v3122 = vlaneseq
        %v3123 = vshrl.u32 %v3122, 7
        %v3124 = vsub.s32 0, %v3123
        %v3125 = vrot.slane %v2355, %v3124
        %v3126 = vlaneseq
        %v3127 = vshrl.u32 %v3126, 7
        %v3128 = vsub.s32 0, %v3127
        %v3129 = vrot.slane %v2379, %v3128
        %v3130 = vlaneseq
        %v3131 = vshrl.u32 %v3130, 7
        %v3132 = vsub.s32 0, %v3131
        %v3133 = vrot.slane %v2393, %v3132
        %v3134 = vlaneseq
        %v3135 = vshrl.u32 %v3134, 7
        %v3136 = vsub.s32 0, %v3135
        %v3137 = vrot.slane %v2401, %v3136
        %v3138 = vlaneseq
        %v3139 = vshrl.u32 %v3138, 7
        %v3140 = vsub.s32 0, %v3139
        %v3141 = vrot.slane %v2403, %v3140
        %v3142 = vlaneseq
        %v3143 = vshrl.u32 %v3142, 7
        %v3144 = vsub.s32 0, %v3143
        %v3145 = vrot.slane %v2386, %v3144
        %v3146 = vlaneseq
        %v3147 = vshrl.u32 %v3146, 7
        %v3148 = vsub.s32 0, %v3147
        %v3149 = vrot.slane %v2400, %v3148
        %v3150 = vlaneseq
        %v3151 = vshrl.u32 %v3150, 7
        %v3152 = vsub.s32 0, %v3151
        %v3153 = vrot.slane %v2402, %v3152
        %v3154 = vlaneseq
        %v3155 = vshrl.u32 %v3154, 7
        %v3156 = vsub.s32 0, %v3155
        %v3157 = vrot.slane %v2404, %v3156
        %v3158 = vlaneseq
        %v3159 = vshrl.u32 %v3158, 7
        %v3160 = vsub.s32 0, %v3159
        %v3161 = vrot.slane %v2428, %v3160
        %v3162 = vlaneseq
        %v3163 = vshrl.u32 %v3162, 7
        %v3164 = vsub.s32 0, %v3163
        %v3165 = vrot.slane %v2442, %v3164
        %v3166 = vlaneseq
        %v3167 = vshrl.u32 %v3166, 7
        %v3168 = vsub.s32 0, %v3167
        %v3169 = vrot.slane %v2450, %v3168
        %v3170 = vlaneseq
        %v3171 = vshrl.u32 %v3170, 7
        %v3172 = vsub.s32 0, %v3171
        %v3173 = vrot.slane %v2452, %v3172
        %v3174 = vlaneseq
        %v3175 = vshrl.u32 %v3174, 7
        %v3176 = vsub.s32 0, %v3175
        %v3177 = vrot.slane %v2435, %v3176
        %v3178 = vlaneseq
        %v3179 = vshrl.u32 %v3178, 7
        %v3180 = vsub.s32 0, %v3179
        %v3181 = vrot.slane %v2449, %v3180
        %v3182 = vlaneseq
        %v3183 = vshrl.u32 %v3182, 7
        %v3184 = vsub.s32 0, %v3183
        %v3185 = vrot.slane %v2451, %v3184
        %v3186 = vlaneseq
        %v3187 = vshrl.u32 %v3186, 7
        %v3188 = vsub.s32 0, %v3187
        %v3189 = vrot.slane %v2453, %v3188
        %v3222 = vsub.f32 %v3065, %v2460
        %v3223 = vsub.f32 %v3065, %v2464
        %v3224 = vsub.f32 %v3065, %v2468
        %v3225 = vsub.f32 %v3065, %v2472
        %v3226 = vsub.f32 %v3069, %v2479
        %v3227 = vsub.f32 %v3069, %v2483
        %v3228 = vsub.f32 %v3069, %v2487
        %v3229 = vsub.f32 %v3069, %v2491
        %v3230 = vsub.f32 %v3073, %v2498
        %v3231 = vsub.f32 %v3073, %v2502
        %v3232 = vsub.f32 %v3073, %v2506
        %v3233 = vsub.f32 %v3073, %v2510
        %v3234 = vsub.f32 %v3077, %v2517
        %v3235 = vsub.f32 %v3077, %v2521
        %v3236 = vsub.f32 %v3077, %v2525
        %v3237 = vsub.f32 %v3077, %v2529
        %v3238 = vsub.f32 %v3081, %v2536
        %v3239 = vsub.f32 %v3081, %v2540
        %v3240 = vsub.f32 %v3081, %v2544
        %v3241 = vsub.f32 %v3081, %v2548
        %v3242 = vsub.f32 %v3085, %v2555
        %v3243 = vsub.f32 %v3085, %v2559
        %v3244 = vsub.f32 %v3085, %v2563
        %v3245 = vsub.f32 %v3085, %v2567
        %v3246 = vsub.f32 %v3089, %v2574
        %v3247 = vsub.f32 %v3089, %v2578
        %v3248 = vsub.f32 %v3089, %v2582
        %v3249 = vsub.f32 %v3089, %v2586
        %v3250 = vsub.f32 %v3093, %v2593
        %v3251 = vsub.f32 %v3093, %v2597
        %v3252 = vsub.f32 %v3093, %v2601
        %v3253 = vsub.f32 %v3093, %v2605
        %v3254 = vsub.f32 %v3097, %v2612
        %v3255 = vsub.f32 %v3097, %v2616
        %v3256 = vsub.f32 %v3097, %v2620
        %v3257 = vsub.f32 %v3097, %v2624
        %v3258 = vsub.f32 %v3101, %v2631
        %v3259 = vsub.f32 %v3101, %v2635
        %v3260 = vsub.f32 %v3101, %v2639
        %v3261 = vsub.f32 %v3101, %v2643
        %v3262 = vsub.f32 %v3105, %v2650
        %v3263 = vsub.f32 %v3105, %v2654
        %v3264 = vsub.f32 %v3105, %v2658
        %v3265 = vsub.f32 %v3105, %v2662
        %v3266 = vsub.f32 %v3109, %v2669
        %v3267 = vsub.f32 %v3109, %v2673
        %v3268 = vsub.f32 %v3109, %v2677
        %v3269 = vsub.f32 %v3109, %v2681
        %v3270 = vsub.f32 %v3113, %v2688
        %v3271 = vsub.f32 %v3113, %v2692
        %v3272 = vsub.f32 %v3113, %v2696
        %v3273 = vsub.f32 %v3113, %v2700
        %v3274 = vsub.f32 %v3117, %v2707
        %v3275 = vsub.f32 %v3117, %v2711
        %v3276 = vsub.f32 %v3117, %v2715
        %v3277 = vsub.f32 %v3117, %v2719
        %v3278 = vsub.f32 %v3121, %v2726
        %v3279 = vsub.f32 %v3121, %v2730
        %v3280 = vsub.f32 %v3121, %v2734
        %v3281 = vsub.f32 %v3121, %v2738
        %v3282 = vsub.f32 %v3125, %v2745
        %v3283 = vsub.f32 %v3125, %v2749
        %v3284 = vsub.f32 %v3125, %v2753
        %v3285 = vsub.f32 %v3125, %v2757
        %v3286 = vsub.f32 %v3129, %v2764
        %v3287 = vsub.f32 %v3129, %v2768
        %v3288 = vsub.f32 %v3129, %v2772
        %v3289 = vsub.f32 %v3129, %v2776
        %v3290 = vsub.f32 %v3133, %v2783
        %v3291 = vsub.f32 %v3133, %v2787
        %v3292 = vsub.f32 %v3133, %v2791
        %v3293 = vsub.f32 %v3133, %v2795
        %v3294 = vsub.f32 %v3137, %v2802
        %v3295 = vsub.f32 %v3137, %v2806
        %v3296 = vsub.f32 %v3137, %v2810
        %v3297 = vsub.f32 %v3137, %v2814
        %v3298 = vsub.f32 %v3141, %v2821
        %v3299 = vsub.f32 %v3141, %v2825
        %v3300 = vsub.f32 %v3141, %v2829
        %v3301 = vsub.f32 %v3141, %v2833
        %v3302 = vsub.f32 %v3145, %v2840
        %v3303 = vsub.f32 %v3145, %v2844
        %v3304 = vsub.f32 %v3145, %v2848
        %v3305 = vsub.f32 %v3145, %v2852
        %v3306 = vsub.f32 %v3149, %v2859
        %v3307 = vsub.f32 %v3149, %v2863
        %v3308 = vsub.f32 %v3149, %v2867
        %v3309 = vsub.f32 %v3149, %v2871
        %v3310 = vsub.f32 %v3153, %v2878
        %v3311 = vsub.f32 %v3153, %v2882
        %v3312 = vsub.f32 %v3153, %v2886
        %v3313 = vsub.f32 %v3153, %v2890
        %v3314 = vsub.f32 %v3157, %v2897
        %v3315 = vsub.f32 %v3157, %v2901
        %v3316 = vsub.f32 %v3157, %v2905
        %v3317 = vsub.f32 %v3157, %v2909
        %v3318 = vsub.f32 %v3161, %v2916
        %v3319 = vsub.f32 %v3161, %v2920
        %v3320 = vsub.f32 %v3161, %v2924
        %v3321 = vsub.f32 %v3161, %v2928
        %v3322 = vsub.f32 %v3165, %v2935
        %v3323 = vsub.f32 %v3165, %v2939
        %v3324 = vsub.f32 %v3165, %v2943
        %v3325 = vsub.f32 %v3165, %v2947
        %v3326 = vsub.f32 %v3169, %v2954
        %v3327 = vsub.f32 %v3169, %v2958
        %v3328 = vsub.f32 %v3169, %v2962
        %v3329 = vsub.f32 %v3169, %v2966
        %v3330 = vsub.f32 %v3173, %v2973
        %v3331 = vsub.f32 %v3173, %v2977
        %v3332 = vsub.f32 %v3173, %v2981
        %v3333 = vsub.f32 %v3173, %v2985
        %v3334 = vsub.f32 %v3177, %v2992
        %v3335 = vsub.f32 %v3177, %v2996
        %v3336 = vsub.f32 %v3177, %v3000
        %v3337 = vsub.f32 %v3177, %v3004
        %v3338 = vsub.f32 %v3181, %v3011
        %v3339 = vsub.f32 %v3181, %v3015
        %v3340 = vsub.f32 %v3181, %v3019
        %v3341 = vsub.f32 %v3181, %v3023
        %v3342 = vsub.f32 %v3185, %v3030
        %v3343 = vsub.f32 %v3185, %v3034
        %v3344 = vsub.f32 %v3185, %v3038
        %v3345 = vsub.f32 %v3185, %v3042
        %v3346 = vsub.f32 %v3189, %v3049
        %v3347 = vsub.f32 %v3189, %v3053
        %v3348 = vsub.f32 %v3189, %v3057
        %v3349 = vsub.f32 %v3189, %v3061
        %v3350 = vmax.f32 %v3222, %v3226
        %v3351 = vmax.f32 %v3350, %v3230
        %v3352 = vmax.f32 %v3351, %v3234
        %v3353 = vmax.f32 %v3352, %v3238
        %v3354 = vmax.f32 %v3353, %v3242
        %v3355 = vmax.f32 %v3354, %v3246
        %v3356 = vmax.f32 %v3355, %v3250
        %v3357 = vmax.f32 %v3356, %v3254
        %v3358 = vmax.f32 %v3357, %v3258
        %v3359 = vmax.f32 %v3358, %v3262
        %v3360 = vmax.f32 %v3359, %v3266
        %v3361 = vmax.f32 %v3360, %v3270
        %v3362 = vmax.f32 %v3361, %v3274
        %v3363 = vmax.f32 %v3362, %v3278
        %v3364 = vmax.f32 %v3363, %v3282
        %v3365 = vmax.f32 %v3364, %v3286
        %v3366 = vmax.f32 %v3365, %v3290
        %v3367 = vmax.f32 %v3366, %v3294
        %v3368 = vmax.f32 %v3367, %v3298
        %v3369 = vmax.f32 %v3368, %v3302
        %v3370 = vmax.f32 %v3369, %v3306
        %v3371 = vmax.f32 %v3370, %v3310
        %v3372 = vmax.f32 %v3371, %v3314
        %v3373 = vmax.f32 %v3372, %v3318
        %v3374 = vmax.f32 %v3373, %v3322
        %v3375 = vmax.f32 %v3374, %v3326
        %v3376 = vmax.f32 %v3375, %v3330
        %v3377 = vmax.f32 %v3376, %v3334
        %v3378 = vmax.f32 %v3377, %v3338
        %v3379 = vmax.f32 %v3378, %v3342
        %v3380 = vmax.f32 %v3379, %v3346
        %v3381 = vmax.f32 %v3223, %v3227
        %v3382 = vmax.f32 %v3381, %v3231
        %v3383 = vmax.f32 %v3382, %v3235
        %v3384 = vmax.f32 %v3383, %v3239
        %v3385 = vmax.f32 %v3384, %v3243
        %v3386 = vmax.f32 %v3385, %v3247
        %v3387 = vmax.f32 %v3386, %v3251
        %v3388 = vmax.f32 %v3387, %v3255
        %v3389 = vmax.f32 %v3388, %v3259
        %v3390 = vmax.f32 %v3389, %v3263
        %v3391 = vmax.f32 %v3390, %v3267
        %v3392 = vmax.f32 %v3391, %v3271
        %v3393 = vmax.f32 %v3392, %v3275
        %v3394 = vmax.f32 %v3393, %v3279
        %v3395 = vmax.f32 %v3394, %v3283
        %v3396 = vmax.f32 %v3395, %v3287
        %v3397 = vmax.f32 %v3396, %v3291
        %v3398 = vmax.f32 %v3397, %v3295
        %v3399 = vmax.f32 %v3398, %v3299
        %v3400 = vmax.f32 %v3399, %v3303
        %v3401 = vmax.f32 %v3400, %v3307
        %v3402 = vmax.f32 %v3401, %v3311
        %v3403 = vmax.f32 %v3402, %v3315
        %v3404 = vmax.f32 %v3403, %v3319
        %v3405 = vmax.f32 %v3404, %v3323
        %v3406 = vmax.f32 %v3405, %v3327
        %v3407 = vmax.f32 %v3406, %v3331
        %v3408 = vmax.f32 %v3407, %v3335
        %v3409 = vmax.f32 %v3408, %v3339
        %v3410 = vmax.f32 %v3409, %v3343
        %v3411 = vmax.f32 %v3410, %v3347
        %v3412 = vmax.f32 %v3224, %v3228
        %v3413 = vmax.f32 %v3412, %v3232
        %v3414 = vmax.f32 %v3413, %v3236
        %v3415 = vmax.f32 %v3414, %v3240
        %v3416 = vmax.f32 %v3415, %v3244
        %v3417 = vmax.f32 %v3416, %v3248
        %v3418 = vmax.f32 %v3417, %v3252
        %v3419 = vmax.f32 %v3418, %v3256
        %v3420 = vmax.f32 %v3419, %v3260
        %v3421 = vmax.f32 %v3420, %v3264
        %v3422 = vmax.f32 %v3421, %v3268
        %v3423 = vmax.f32 %v3422, %v3272
        %v3424 = vmax.f32 %v3423, %v3276
        %v3425 = vmax.f32 %v3424, %v3280
        %v3426 = vmax.f32 %v3425, %v3284
        %v3427 = vmax.f32 %v3426, %v3288
        %v3428 = vmax.f32 %v3427, %v3292
        %v3429 = vmax.f32 %v3428, %v3296
        %v3430 = vmax.f32 %v3429, %v3300
        %v3431 = vmax.f32 %v3430, %v3304
        %v3432 = vmax.f32 %v3431, %v3308
        %v3433 = vmax.f32 %v3432, %v3312
        %v3434 = vmax.f32 %v3433, %v3316
        %v3435 = vmax.f32 %v3434, %v3320
        %v3436 = vmax.f32 %v3435, %v3324
        %v3437 = vmax.f32 %v3436, %v3328
        %v3438 = vmax.f32 %v3437, %v3332
        %v3439 = vmax.f32 %v3438, %v3336
        %v3440 = vmax.f32 %v3439, %v3340
        %v3441 = vmax.f32 %v3440, %v3344
        %v3442 = vmax.f32 %v3441, %v3348
        %v3443 = vmax.f32 %v3225, %v3229
        %v3444 = vmax.f32 %v3443, %v3233
        %v3445 = vmax.f32 %v3444, %v3237
        %v3446 = vmax.f32 %v3445, %v3241
        %v3447 = vmax.f32 %v3446, %v3245
        %v3448 = vmax.f32 %v3447, %v3249
        %v3449 = vmax.f32 %v3448, %v3253
        %v3450 = vmax.f32 %v3449, %v3257
        %v3451 = vmax.f32 %v3450, %v3261
        %v3452 = vmax.f32 %v3451, %v3265
        %v3453 = vmax.f32 %v3452, %v3269
        %v3454 = vmax.f32 %v3453, %v3273
        %v3455 = vmax.f32 %v3454, %v3277
        %v3456 = vmax.f32 %v3455, %v3281
        %v3457 = vmax.f32 %v3456, %v3285
        %v3458 = vmax.f32 %v3457, %v3289
        %v3459 = vmax.f32 %v3458, %v3293
        %v3460 = vmax.f32 %v3459, %v3297
        %v3461 = vmax.f32 %v3460, %v3301
        %v3462 = vmax.f32 %v3461, %v3305
        %v3463 = vmax.f32 %v3462, %v3309
        %v3464 = vmax.f32 %v3463, %v3313
        %v3465 = vmax.f32 %v3464, %v3317
        %v3466 = vmax.f32 %v3465, %v3321
        %v3467 = vmax.f32 %v3466, %v3325
        %v3468 = vmax.f32 %v3467, %v3329
        %v3469 = vmax.f32 %v3468, %v3333
        %v3470 = vmax.f32 %v3469, %v3337
        %v3471 = vmax.f32 %v3470, %v3341
        %v3472 = vmax.f32 %v3471, %v3345
        %v3473 = vmax.f32 %v3472, %v3349
        %v3474 = vmax.f32 %v3380, -1e+30
        %v3475 = vmax.f32 %v3411, -1e+30
        %v3476 = vmax.f32 %v3442, -1e+30
        %v3477 = vmax.f32 %v3473, -1e+30
        %v3478 = vadd.f32 %v3065, %v2460
        %v3479 = vadd.f32 %v3065, %v2464
        %v3480 = vadd.f32 %v3065, %v2468
        %v3481 = vadd.f32 %v3065, %v2472
        %v3482 = vadd.f32 %v3069, %v2479
        %v3483 = vadd.f32 %v3069, %v2483
        %v3484 = vadd.f32 %v3069, %v2487
        %v3485 = vadd.f32 %v3069, %v2491
        %v3486 = vadd.f32 %v3073, %v2498
        %v3487 = vadd.f32 %v3073, %v2502
        %v3488 = vadd.f32 %v3073, %v2506
        %v3489 = vadd.f32 %v3073, %v2510
        %v3490 = vadd.f32 %v3077, %v2517
        %v3491 = vadd.f32 %v3077, %v2521
        %v3492 = vadd.f32 %v3077, %v2525
        %v3493 = vadd.f32 %v3077, %v2529
        %v3494 = vadd.f32 %v3081, %v2536
        %v3495 = vadd.f32 %v3081, %v2540
        %v3496 = vadd.f32 %v3081, %v2544
        %v3497 = vadd.f32 %v3081, %v2548
        %v3498 = vadd.f32 %v3085, %v2555
        %v3499 = vadd.f32 %v3085, %v2559
        %v3500 = vadd.f32 %v3085, %v2563
        %v3501 = vadd.f32 %v3085, %v2567
        %v3502 = vadd.f32 %v3089, %v2574
        %v3503 = vadd.f32 %v3089, %v2578
        %v3504 = vadd.f32 %v3089, %v2582
        %v3505 = vadd.f32 %v3089, %v2586
        %v3506 = vadd.f32 %v3093, %v2593
        %v3507 = vadd.f32 %v3093, %v2597
        %v3508 = vadd.f32 %v3093, %v2601
        %v3509 = vadd.f32 %v3093, %v2605
        %v3510 = vadd.f32 %v3097, %v2612
        %v3511 = vadd.f32 %v3097, %v2616
        %v3512 = vadd.f32 %v3097, %v2620
        %v3513 = vadd.f32 %v3097, %v2624
        %v3514 = vadd.f32 %v3101, %v2631
        %v3515 = vadd.f32 %v3101, %v2635
        %v3516 = vadd.f32 %v3101, %v2639
        %v3517 = vadd.f32 %v3101, %v2643
        %v3518 = vadd.f32 %v3105, %v2650
        %v3519 = vadd.f32 %v3105, %v2654
        %v3520 = vadd.f32 %v3105, %v2658
        %v3521 = vadd.f32 %v3105, %v2662
        %v3522 = vadd.f32 %v3109, %v2669
        %v3523 = vadd.f32 %v3109, %v2673
        %v3524 = vadd.f32 %v3109, %v2677
        %v3525 = vadd.f32 %v3109, %v2681
        %v3526 = vadd.f32 %v3113, %v2688
        %v3527 = vadd.f32 %v3113, %v2692
        %v3528 = vadd.f32 %v3113, %v2696
        %v3529 = vadd.f32 %v3113, %v2700
        %v3530 = vadd.f32 %v3117, %v2707
        %v3531 = vadd.f32 %v3117, %v2711
        %v3532 = vadd.f32 %v3117, %v2715
        %v3533 = vadd.f32 %v3117, %v2719
        %v3534 = vadd.f32 %v3121, %v2726
        %v3535 = vadd.f32 %v3121, %v2730
        %v3536 = vadd.f32 %v3121, %v2734
        %v3537 = vadd.f32 %v3121, %v2738
        %v3538 = vadd.f32 %v3125, %v2745
        %v3539 = vadd.f32 %v3125, %v2749
        %v3540 = vadd.f32 %v3125, %v2753
        %v3541 = vadd.f32 %v3125, %v2757
        %v3542 = vadd.f32 %v3129, %v2764
        %v3543 = vadd.f32 %v3129, %v2768
        %v3544 = vadd.f32 %v3129, %v2772
        %v3545 = vadd.f32 %v3129, %v2776
        %v3546 = vadd.f32 %v3133, %v2783
        %v3547 = vadd.f32 %v3133, %v2787
        %v3548 = vadd.f32 %v3133, %v2791
        %v3549 = vadd.f32 %v3133, %v2795
        %v3550 = vadd.f32 %v3137, %v2802
        %v3551 = vadd.f32 %v3137, %v2806
        %v3552 = vadd.f32 %v3137, %v2810
        %v3553 = vadd.f32 %v3137, %v2814
        %v3554 = vadd.f32 %v3141, %v2821
        %v3555 = vadd.f32 %v3141, %v2825
        %v3556 = vadd.f32 %v3141, %v2829
        %v3557 = vadd.f32 %v3141, %v2833
        %v3558 = vadd.f32 %v3145, %v2840
        %v3559 = vadd.f32 %v3145, %v2844
        %v3560 = vadd.f32 %v3145, %v2848
        %v3561 = vadd.f32 %v3145, %v2852
        %v3562 = vadd.f32 %v3149, %v2859
        %v3563 = vadd.f32 %v3149, %v2863
        %v3564 = vadd.f32 %v3149, %v2867
        %v3565 = vadd.f32 %v3149, %v2871
        %v3566 = vadd.f32 %v3153, %v2878
        %v3567 = vadd.f32 %v3153, %v2882
        %v3568 = vadd.f32 %v3153, %v2886
        %v3569 = vadd.f32 %v3153, %v2890
        %v3570 = vadd.f32 %v3157, %v2897
        %v3571 = vadd.f32 %v3157, %v2901
        %v3572 = vadd.f32 %v3157, %v2905
        %v3573 = vadd.f32 %v3157, %v2909
        %v3574 = vadd.f32 %v3161, %v2916
        %v3575 = vadd.f32 %v3161, %v2920
        %v3576 = vadd.f32 %v3161, %v2924
        %v3577 = vadd.f32 %v3161, %v2928
        %v3578 = vadd.f32 %v3165, %v2935
        %v3579 = vadd.f32 %v3165, %v2939
        %v3580 = vadd.f32 %v3165, %v2943
        %v3581 = vadd.f32 %v3165, %v2947
        %v3582 = vadd.f32 %v3169, %v2954
        %v3583 = vadd.f32 %v3169, %v2958
        %v3584 = vadd.f32 %v3169, %v2962
        %v3585 = vadd.f32 %v3169, %v2966
        %v3586 = vadd.f32 %v3173, %v2973
        %v3587 = vadd.f32 %v3173, %v2977
        %v3588 = vadd.f32 %v3173, %v2981
        %v3589 = vadd.f32 %v3173, %v2985
        %v3590 = vadd.f32 %v3177, %v2992
        %v3591 = vadd.f32 %v3177, %v2996
        %v3592 = vadd.f32 %v3177, %v3000
        %v3593 = vadd.f32 %v3177, %v3004
        %v3594 = vadd.f32 %v3181, %v3011
        %v3595 = vadd.f32 %v3181, %v3015
        %v3596 = vadd.f32 %v3181, %v3019
        %v3597 = vadd.f32 %v3181, %v3023
        %v3598 = vadd.f32 %v3185, %v3030
        %v3599 = vadd.f32 %v3185, %v3034
        %v3600 = vadd.f32 %v3185, %v3038
        %v3601 = vadd.f32 %v3185, %v3042
        %v3602 = vadd.f32 %v3189, %v3049
        %v3603 = vadd.f32 %v3189, %v3053
        %v3604 = vadd.f32 %v3189, %v3057
        %v3605 = vadd.f32 %v3189, %v3061
        %v3606 = vmin.f32 %v3478, %v3482
        %v3607 = vmin.f32 %v3606, %v3486
        %v3608 = vmin.f32 %v3607, %v3490
        %v3609 = vmin.f32 %v3608, %v3494
        %v3610 = vmin.f32 %v3609, %v3498
        %v3611 = vmin.f32 %v3610, %v3502
        %v3612 = vmin.f32 %v3611, %v3506
        %v3613 = vmin.f32 %v3612, %v3510
        %v3614 = vmin.f32 %v3613, %v3514
        %v3615 = vmin.f32 %v3614, %v3518
        %v3616 = vmin.f32 %v3615, %v3522
        %v3617 = vmin.f32 %v3616, %v3526
        %v3618 = vmin.f32 %v3617, %v3530
        %v3619 = vmin.f32 %v3618, %v3534
        %v3620 = vmin.f32 %v3619, %v3538
        %v3621 = vmin.f32 %v3620, %v3542
        %v3622 = vmin.f32 %v3621, %v3546
        %v3623 = vmin.f32 %v3622, %v3550
        %v3624 = vmin.f32 %v3623, %v3554
        %v3625 = vmin.f32 %v3624, %v3558
        %v3626 = vmin.f32 %v3625, %v3562
        %v3627 = vmin.f32 %v3626, %v3566
        %v3628 = vmin.f32 %v3627, %v3570
        %v3629 = vmin.f32 %v3628, %v3574
        %v3630 = vmin.f32 %v3629, %v3578
        %v3631 = vmin.f32 %v3630, %v3582
        %v3632 = vmin.f32 %v3631, %v3586
        %v3633 = vmin.f32 %v3632, %v3590
        %v3634 = vmin.f32 %v3633, %v3594
        %v3635 = vmin.f32 %v3634, %v3598
        %v3636 = vmin.f32 %v3635, %v3602
        %v3637 = vmin.f32 %v3479, %v3483
        %v3638 = vmin.f32 %v3637, %v3487
        %v3639 = vmin.f32 %v3638, %v3491
        %v3640 = vmin.f32 %v3639, %v3495
        %v3641 = vmin.f32 %v3640, %v3499
        %v3642 = vmin.f32 %v3641, %v3503
        %v3643 = vmin.f32 %v3642, %v3507
        %v3644 = vmin.f32 %v3643, %v3511
        %v3645 = vmin.f32 %v3644, %v3515
        %v3646 = vmin.f32 %v3645, %v3519
        %v3647 = vmin.f32 %v3646, %v3523
        %v3648 = vmin.f32 %v3647, %v3527
        %v3649 = vmin.f32 %v3648, %v3531
        %v3650 = vmin.f32 %v3649, %v3535
        %v3651 = vmin.f32 %v3650, %v3539
        %v3652 = vmin.f32 %v3651, %v3543
        %v3653 = vmin.f32 %v3652, %v3547
        %v3654 = vmin.f32 %v3653, %v3551
        %v3655 = vmin.f32 %v3654, %v3555
        %v3656 = vmin.f32 %v3655, %v3559
        %v3657 = vmin.f32 %v3656, %v3563
        %v3658 = vmin.f32 %v3657, %v3567
        %v3659 = vmin.f32 %v3658, %v3571
        %v3660 = vmin.f32 %v3659, %v3575
        %v3661 = vmin.f32 %v3660, %v3579
        %v3662 = vmin.f32 %v3661, %v3583
        %v3663 = vmin.f32 %v3662, %v3587
        %v3664 = vmin.f32 %v3663, %v3591
        %v3665 = vmin.f32 %v3664, %v3595
        %v3666 = vmin.f32 %v3665, %v3599
        %v3667 = vmin.f32 %v3666, %v3603
        %v3668 = vmin.f32 %v3480, %v3484
        %v3669 = vmin.f32 %v3668, %v3488
        %v3670 = vmin.f32 %v3669, %v3492
        %v3671 = vmin.f32 %v3670, %v3496
        %v3672 = vmin.f32 %v3671, %v3500
        %v3673 = vmin.f32 %v3672, %v3504
        %v3674 = vmin.f32 %v3673, %v3508
        %v3675 = vmin.f32 %v3674, %v3512
        %v3676 = vmin.f32 %v3675, %v3516
        %v3677 = vmin.f32 %v3676, %v3520
        %v3678 = vmin.f32 %v3677, %v3524
        %v3679 = vmin.f32 %v3678, %v3528
        %v3680 = vmin.f32 %v3679, %v3532
        %v3681 = vmin.f32 %v3680, %v3536
        %v3682 = vmin.f32 %v3681, %v3540
        %v3683 = vmin.f32 %v3682, %v3544
        %v3684 = vmin.f32 %v3683, %v3548
        %v3685 = vmin.f32 %v3684, %v3552
        %v3686 = vmin.f32 %v3685, %v3556
        %v3687 = vmin.f32 %v3686, %v3560
        %v3688 = vmin.f32 %v3687, %v3564
        %v3689 = vmin.f32 %v3688, %v3568
        %v3690 = vmin.f32 %v3689, %v3572
        %v3691 = vmin.f32 %v3690, %v3576
        %v3692 = vmin.f32 %v3691, %v3580
        %v3693 = vmin.f32 %v3692, %v3584
        %v3694 = vmin.f32 %v3693, %v3588
        %v3695 = vmin.f32 %v3694, %v3592
        %v3696 = vmin.f32 %v3695, %v3596
        %v3697 = vmin.f32 %v3696, %v3600
        %v3698 = vmin.f32 %v3697, %v3604
        %v3699 = vmin.f32 %v3481, %v3485
        %v3700 = vmin.f32 %v3699, %v3489
        %v3701 = vmin.f32 %v3700, %v3493
        %v3702 = vmin.f32 %v3701, %v3497
        %v3703 = vmin.f32 %v3702, %v3501
        %v3704 = vmin.f32 %v3703, %v3505
        %v3705 = vmin.f32 %v3704, %v3509
        %v3706 = vmin.f32 %v3705, %v3513
        %v3707 = vmin.f32 %v3706, %v3517
        %v3708 = vmin.f32 %v3707, %v3521
        %v3709 = vmin.f32 %v3708, %v3525
        %v3710 = vmin.f32 %v3709, %v3529
        %v3711 = vmin.f32 %v3710, %v3533
        %v3712 = vmin.f32 %v3711, %v3537
        %v3713 = vmin.f32 %v3712, %v3541
        %v3714 = vmin.f32 %v3713, %v3545
        %v3715 = vmin.f32 %v3714, %v3549
        %v3716 = vmin.f32 %v3715, %v3553
        %v3717 = vmin.f32 %v3716, %v3557
        %v3718 = vmin.f32 %v3717, %v3561
        %v3719 = vmin.f32 %v3718, %v3565
        %v3720 = vmin.f32 %v3719, %v3569
        %v3721 = vmin.f32 %v3720, %v3573
        %v3722 = vmin.f32 %v3721, %v3577
        %v3723 = vmin.f32 %v3722, %v3581
        %v3724 = vmin.f32 %v3723, %v3585
        %v3725 = vmin.f32 %v3724, %v3589
        %v3726 = vmin.f32 %v3725, %v3593
        %v3727 = vmin.f32 %v3726, %v3597
        %v3728 = vmin.f32 %v3727, %v3601
        %v3729 = vmin.f32 %v3728, %v3605
        %v3730 = vmin.f32 %v3636, 1e+30
        %v3731 = vmin.f32 %v3667, 1e+30
        %v3732 = vmin.f32 %v3698, 1e+30
        %v3733 = vmin.f32 %v3729, 1e+30
        %v3734 = vsub.f32 1.0, %v851
        %v3735 = vsub.f32 1.0, %v852
        %v3736 = vsub.f32 1.0, %v853
        %v3737 = vsub.f32 1.0, %v854
        %v3738 = vmul.f32 %v3734, 1e+30
        %v3739 = vmul.f32 %v3735, 1e+30
        %v3740 = vmul.f32 %v3736, 1e+30
        %v3741 = vmul.f32 %v3737, 1e+30
        %v3746 = vcombine.high %v1944, %v1944
        %v3748 = vunpack.c.l.s4 1966171168
        %v3749 = vunpack.c.0.s8 %v3748
        %v3750 = vlaneseq
        %v3751 = vshrl.u32 %v3750, 7
        %v3752 = vsub.s32 %v3749, %v3751
        %v3753 = vrot.slane %v1944, %v3752
        %v3755 = vunpack.c.l.s4 1966171168
        %v3756 = vunpack.c.0.s8 %v3755
        %v3757 = vlaneseq
        %v3758 = vshrl.u32 %v3757, 7
        %v3759 = vsub.s32 %v3756, %v3758
        %v3760 = vrot.slane %v3746, %v3759
        %v3761 = vcombine.high %v3753, %v3753
        %v3762 = vcombine.high %v3760, %v3760
        %v3764 = vunpack.c.l.s4 1966171168
        %v3765 = vunpack.c.0.s8 %v3764
        %v3766 = vlaneseq
        %v3767 = vshrl.u32 %v3766, 7
        %v3768 = vsub.s32 %v3765, %v3767
        %v3769 = vrot.slane %v3753, %v3768
        %v3771 = vunpack.c.l.s4 1966171168
        %v3772 = vunpack.c.0.s8 %v3771
        %v3773 = vlaneseq
        %v3774 = vshrl.u32 %v3773, 7
        %v3775 = vsub.s32 %v3772, %v3774
        %v3776 = vrot.slane %v3760, %v3775
        %v3778 = vunpack.c.l.s4 1966171168
        %v3779 = vunpack.c.0.s8 %v3778
        %v3780 = vlaneseq
        %v3781 = vshrl.u32 %v3780, 7
        %v3782 = vsub.s32 %v3779, %v3781
        %v3783 = vrot.slane %v3761, %v3782
        %v3785 = vunpack.c.l.s4 1966171168
        %v3786 = vunpack.c.0.s8 %v3785
        %v3787 = vlaneseq
        %v3788 = vshrl.u32 %v3787, 7
        %v3789 = vsub.s32 %v3786, %v3788
        %v3790 = vrot.slane %v3762, %v3789
        %v3791 = vcombine.high %v3769, %v3769
        %v3792 = vcombine.high %v3776, %v3776
        %v3793 = vcombine.high %v3783, %v3783
        %v3794 = vcombine.high %v3790, %v3790
        %v3795 = vcombine.high %v1945, %v1945
        %v3797 = vunpack.c.l.s4 1966171168
        %v3798 = vunpack.c.0.s8 %v3797
        %v3799 = vlaneseq
        %v3800 = vshrl.u32 %v3799, 7
        %v3801 = vsub.s32 %v3798, %v3800
        %v3802 = vrot.slane %v1945, %v3801
        %v3804 = vunpack.c.l.s4 1966171168
        %v3805 = vunpack.c.0.s8 %v3804
        %v3806 = vlaneseq
        %v3807 = vshrl.u32 %v3806, 7
        %v3808 = vsub.s32 %v3805, %v3807
        %v3809 = vrot.slane %v3795, %v3808
        %v3810 = vcombine.high %v3802, %v3802
        %v3811 = vcombine.high %v3809, %v3809
        %v3813 = vunpack.c.l.s4 1966171168
        %v3814 = vunpack.c.0.s8 %v3813
        %v3815 = vlaneseq
        %v3816 = vshrl.u32 %v3815, 7
        %v3817 = vsub.s32 %v3814, %v3816
        %v3818 = vrot.slane %v3802, %v3817
        %v3820 = vunpack.c.l.s4 1966171168
        %v3821 = vunpack.c.0.s8 %v3820
        %v3822 = vlaneseq
        %v3823 = vshrl.u32 %v3822, 7
        %v3824 = vsub.s32 %v3821, %v3823
        %v3825 = vrot.slane %v3809, %v3824
        %v3827 = vunpack.c.l.s4 1966171168
        %v3828 = vunpack.c.0.s8 %v3827
        %v3829 = vlaneseq
        %v3830 = vshrl.u32 %v3829, 7
        %v3831 = vsub.s32 %v3828, %v3830
        %v3832 = vrot.slane %v3810, %v3831
        %v3834 = vunpack.c.l.s4 1966171168
        %v3835 = vunpack.c.0.s8 %v3834
        %v3836 = vlaneseq
        %v3837 = vshrl.u32 %v3836, 7
        %v3838 = vsub.s32 %v3835, %v3837
        %v3839 = vrot.slane %v3811, %v3838
        %v3840 = vcombine.high %v3818, %v3818
        %v3841 = vcombine.high %v3825, %v3825
        %v3842 = vcombine.high %v3832, %v3832
        %v3843 = vcombine.high %v3839, %v3839
        %v3844 = vcombine.high %v1946, %v1946
        %v3846 = vunpack.c.l.s4 1966171168
        %v3847 = vunpack.c.0.s8 %v3846
        %v3848 = vlaneseq
        %v3849 = vshrl.u32 %v3848, 7
        %v3850 = vsub.s32 %v3847, %v3849
        %v3851 = vrot.slane %v1946, %v3850
        %v3853 = vunpack.c.l.s4 1966171168
        %v3854 = vunpack.c.0.s8 %v3853
        %v3855 = vlaneseq
        %v3856 = vshrl.u32 %v3855, 7
        %v3857 = vsub.s32 %v3854, %v3856
        %v3858 = vrot.slane %v3844, %v3857
        %v3859 = vcombine.high %v3851, %v3851
        %v3860 = vcombine.high %v3858, %v3858
        %v3862 = vunpack.c.l.s4 1966171168
        %v3863 = vunpack.c.0.s8 %v3862
        %v3864 = vlaneseq
        %v3865 = vshrl.u32 %v3864, 7
        %v3866 = vsub.s32 %v3863, %v3865
        %v3867 = vrot.slane %v3851, %v3866
        %v3869 = vunpack.c.l.s4 1966171168
        %v3870 = vunpack.c.0.s8 %v3869
        %v3871 = vlaneseq
        %v3872 = vshrl.u32 %v3871, 7
        %v3873 = vsub.s32 %v3870, %v3872
        %v3874 = vrot.slane %v3858, %v3873
        %v3876 = vunpack.c.l.s4 1966171168
        %v3877 = vunpack.c.0.s8 %v3876
        %v3878 = vlaneseq
        %v3879 = vshrl.u32 %v3878, 7
        %v3880 = vsub.s32 %v3877, %v3879
        %v3881 = vrot.slane %v3859, %v3880
        %v3883 = vunpack.c.l.s4 1966171168
        %v3884 = vunpack.c.0.s8 %v3883
        %v3885 = vlaneseq
        %v3886 = vshrl.u32 %v3885, 7
        %v3887 = vsub.s32 %v3884, %v3886
        %v3888 = vrot.slane %v3860, %v3887
        %v3889 = vcombine.high %v3867, %v3867
        %v3890 = vcombine.high %v3874, %v3874
        %v3891 = vcombine.high %v3881, %v3881
        %v3892 = vcombine.high %v3888, %v3888
        %v3893 = vcombine.high %v1947, %v1947
        %v3895 = vunpack.c.l.s4 1966171168
        %v3896 = vunpack.c.0.s8 %v3895
        %v3897 = vlaneseq
        %v3898 = vshrl.u32 %v3897, 7
        %v3899 = vsub.s32 %v3896, %v3898
        %v3900 = vrot.slane %v1947, %v3899
        %v3902 = vunpack.c.l.s4 1966171168
        %v3903 = vunpack.c.0.s8 %v3902
        %v3904 = vlaneseq
        %v3905 = vshrl.u32 %v3904, 7
        %v3906 = vsub.s32 %v3903, %v3905
        %v3907 = vrot.slane %v3893, %v3906
        %v3908 = vcombine.high %v3900, %v3900
        %v3909 = vcombine.high %v3907, %v3907
        %v3911 = vunpack.c.l.s4 1966171168
        %v3912 = vunpack.c.0.s8 %v3911
        %v3913 = vlaneseq
        %v3914 = vshrl.u32 %v3913, 7
        %v3915 = vsub.s32 %v3912, %v3914
        %v3916 = vrot.slane %v3900, %v3915
        %v3918 = vunpack.c.l.s4 1966171168
        %v3919 = vunpack.c.0.s8 %v3918
        %v3920 = vlaneseq
        %v3921 = vshrl.u32 %v3920, 7
        %v3922 = vsub.s32 %v3919, %v3921
        %v3923 = vrot.slane %v3907, %v3922
        %v3925 = vunpack.c.l.s4 1966171168
        %v3926 = vunpack.c.0.s8 %v3925
        %v3927 = vlaneseq
        %v3928 = vshrl.u32 %v3927, 7
        %v3929 = vsub.s32 %v3926, %v3928
        %v3930 = vrot.slane %v3908, %v3929
        %v3932 = vunpack.c.l.s4 1966171168
        %v3933 = vunpack.c.0.s8 %v3932
        %v3934 = vlaneseq
        %v3935 = vshrl.u32 %v3934, 7
        %v3936 = vsub.s32 %v3933, %v3935
        %v3937 = vrot.slane %v3909, %v3936
        %v3938 = vcombine.high %v3916, %v3916
        %v3939 = vcombine.high %v3923, %v3923
        %v3940 = vcombine.high %v3930, %v3930
        %v3941 = vcombine.high %v3937, %v3937
        %v3942 = vlaneseq
        %v3943 = vshrl.u32 %v3942, 7
        %v3944 = vsub.s32 0, %v3943
        %v3945 = vrot.slane %v3738, %v3944
        %3947 = vbcast.lane.b32.xlu0 %v3945, 256
        %v3948 = vpop.permute.xlu0 %3947
        %s3950 = sor.u32 256, 8
        %3951 = vbcast.lane.b32.xlu0 %v3945, %s3950
        %v3952 = vpop.permute.xlu0 %3951
        %s3954 = sor.u32 256, 16
        %3955 = vbcast.lane.b32.xlu0 %v3945, %s3954
        %v3956 = vpop.permute.xlu0 %3955
        %s3958 = sor.u32 256, 24
        %3959 = vbcast.lane.b32.xlu0 %v3945, %s3958
        %v3960 = vpop.permute.xlu0 %3959
        %v3961 = vlaneseq
        %v3962 = vshrl.u32 %v3961, 7
        %v3963 = vsub.s32 1, %v3962
        %v3964 = vrot.slane %v3738, %v3963
        %3966 = vbcast.lane.b32.xlu0 %v3964, 256
        %v3967 = vpop.permute.xlu0 %3966
        %s3969 = sor.u32 256, 8
        %3970 = vbcast.lane.b32.xlu0 %v3964, %s3969
        %v3971 = vpop.permute.xlu0 %3970
        %s3973 = sor.u32 256, 16
        %3974 = vbcast.lane.b32.xlu0 %v3964, %s3973
        %v3975 = vpop.permute.xlu0 %3974
        %s3977 = sor.u32 256, 24
        %3978 = vbcast.lane.b32.xlu0 %v3964, %s3977
        %v3979 = vpop.permute.xlu0 %3978
        %v3980 = vlaneseq
        %v3981 = vshrl.u32 %v3980, 7
        %v3982 = vsub.s32 2, %v3981
        %v3983 = vrot.slane %v3738, %v3982
        %3985 = vbcast.lane.b32.xlu0 %v3983, 256
        %v3986 = vpop.permute.xlu0 %3985
        %s3988 = sor.u32 256, 8
        %3989 = vbcast.lane.b32.xlu0 %v3983, %s3988
        %v3990 = vpop.permute.xlu0 %3989
        %s3992 = sor.u32 256, 16
        %3993 = vbcast.lane.b32.xlu0 %v3983, %s3992
        %v3994 = vpop.permute.xlu0 %3993
        %s3996 = sor.u32 256, 24
        %3997 = vbcast.lane.b32.xlu0 %v3983, %s3996
        %v3998 = vpop.permute.xlu0 %3997
        %v3999 = vlaneseq
        %v4000 = vshrl.u32 %v3999, 7
        %v4001 = vsub.s32 3, %v4000
        %v4002 = vrot.slane %v3738, %v4001
        %4004 = vbcast.lane.b32.xlu0 %v4002, 256
        %v4005 = vpop.permute.xlu0 %4004
        %s4007 = sor.u32 256, 8
        %4008 = vbcast.lane.b32.xlu0 %v4002, %s4007
        %v4009 = vpop.permute.xlu0 %4008
        %s4011 = sor.u32 256, 16
        %4012 = vbcast.lane.b32.xlu0 %v4002, %s4011
        %v4013 = vpop.permute.xlu0 %4012
        %s4015 = sor.u32 256, 24
        %4016 = vbcast.lane.b32.xlu0 %v4002, %s4015
        %v4017 = vpop.permute.xlu0 %4016
        %v4018 = vlaneseq
        %v4019 = vshrl.u32 %v4018, 7
        %v4020 = vsub.s32 4, %v4019
        %v4021 = vrot.slane %v3738, %v4020
        %4023 = vbcast.lane.b32.xlu0 %v4021, 256
        %v4024 = vpop.permute.xlu0 %4023
        %s4026 = sor.u32 256, 8
        %4027 = vbcast.lane.b32.xlu0 %v4021, %s4026
        %v4028 = vpop.permute.xlu0 %4027
        %s4030 = sor.u32 256, 16
        %4031 = vbcast.lane.b32.xlu0 %v4021, %s4030
        %v4032 = vpop.permute.xlu0 %4031
        %s4034 = sor.u32 256, 24
        %4035 = vbcast.lane.b32.xlu0 %v4021, %s4034
        %v4036 = vpop.permute.xlu0 %4035
        %v4037 = vlaneseq
        %v4038 = vshrl.u32 %v4037, 7
        %v4039 = vsub.s32 5, %v4038
        %v4040 = vrot.slane %v3738, %v4039
        %4042 = vbcast.lane.b32.xlu0 %v4040, 256
        %v4043 = vpop.permute.xlu0 %4042
        %s4045 = sor.u32 256, 8
        %4046 = vbcast.lane.b32.xlu0 %v4040, %s4045
        %v4047 = vpop.permute.xlu0 %4046
        %s4049 = sor.u32 256, 16
        %4050 = vbcast.lane.b32.xlu0 %v4040, %s4049
        %v4051 = vpop.permute.xlu0 %4050
        %s4053 = sor.u32 256, 24
        %4054 = vbcast.lane.b32.xlu0 %v4040, %s4053
        %v4055 = vpop.permute.xlu0 %4054
        %v4056 = vlaneseq
        %v4057 = vshrl.u32 %v4056, 7
        %v4058 = vsub.s32 6, %v4057
        %v4059 = vrot.slane %v3738, %v4058
        %4061 = vbcast.lane.b32.xlu0 %v4059, 256
        %v4062 = vpop.permute.xlu0 %4061
        %s4064 = sor.u32 256, 8
        %4065 = vbcast.lane.b32.xlu0 %v4059, %s4064
        %v4066 = vpop.permute.xlu0 %4065
        %s4068 = sor.u32 256, 16
        %4069 = vbcast.lane.b32.xlu0 %v4059, %s4068
        %v4070 = vpop.permute.xlu0 %4069
        %s4072 = sor.u32 256, 24
        %4073 = vbcast.lane.b32.xlu0 %v4059, %s4072
        %v4074 = vpop.permute.xlu0 %4073
        %v4075 = vlaneseq
        %v4076 = vshrl.u32 %v4075, 7
        %v4077 = vsub.s32 7, %v4076
        %v4078 = vrot.slane %v3738, %v4077
        %4080 = vbcast.lane.b32.xlu0 %v4078, 256
        %v4081 = vpop.permute.xlu0 %4080
        %s4083 = sor.u32 256, 8
        %4084 = vbcast.lane.b32.xlu0 %v4078, %s4083
        %v4085 = vpop.permute.xlu0 %4084
        %s4087 = sor.u32 256, 16
        %4088 = vbcast.lane.b32.xlu0 %v4078, %s4087
        %v4089 = vpop.permute.xlu0 %4088
        %s4091 = sor.u32 256, 24
        %4092 = vbcast.lane.b32.xlu0 %v4078, %s4091
        %v4093 = vpop.permute.xlu0 %4092
        %v4094 = vlaneseq
        %v4095 = vshrl.u32 %v4094, 7
        %v4096 = vsub.s32 0, %v4095
        %v4097 = vrot.slane %v3739, %v4096
        %4099 = vbcast.lane.b32.xlu0 %v4097, 256
        %v4100 = vpop.permute.xlu0 %4099
        %s4102 = sor.u32 256, 8
        %4103 = vbcast.lane.b32.xlu0 %v4097, %s4102
        %v4104 = vpop.permute.xlu0 %4103
        %s4106 = sor.u32 256, 16
        %4107 = vbcast.lane.b32.xlu0 %v4097, %s4106
        %v4108 = vpop.permute.xlu0 %4107
        %s4110 = sor.u32 256, 24
        %4111 = vbcast.lane.b32.xlu0 %v4097, %s4110
        %v4112 = vpop.permute.xlu0 %4111
        %v4113 = vlaneseq
        %v4114 = vshrl.u32 %v4113, 7
        %v4115 = vsub.s32 1, %v4114
        %v4116 = vrot.slane %v3739, %v4115
        %4118 = vbcast.lane.b32.xlu0 %v4116, 256
        %v4119 = vpop.permute.xlu0 %4118
        %s4121 = sor.u32 256, 8
        %4122 = vbcast.lane.b32.xlu0 %v4116, %s4121
        %v4123 = vpop.permute.xlu0 %4122
        %s4125 = sor.u32 256, 16
        %4126 = vbcast.lane.b32.xlu0 %v4116, %s4125
        %v4127 = vpop.permute.xlu0 %4126
        %s4129 = sor.u32 256, 24
        %4130 = vbcast.lane.b32.xlu0 %v4116, %s4129
        %v4131 = vpop.permute.xlu0 %4130
        %v4132 = vlaneseq
        %v4133 = vshrl.u32 %v4132, 7
        %v4134 = vsub.s32 2, %v4133
        %v4135 = vrot.slane %v3739, %v4134
        %4137 = vbcast.lane.b32.xlu0 %v4135, 256
        %v4138 = vpop.permute.xlu0 %4137
        %s4140 = sor.u32 256, 8
        %4141 = vbcast.lane.b32.xlu0 %v4135, %s4140
        %v4142 = vpop.permute.xlu0 %4141
        %s4144 = sor.u32 256, 16
        %4145 = vbcast.lane.b32.xlu0 %v4135, %s4144
        %v4146 = vpop.permute.xlu0 %4145
        %s4148 = sor.u32 256, 24
        %4149 = vbcast.lane.b32.xlu0 %v4135, %s4148
        %v4150 = vpop.permute.xlu0 %4149
        %v4151 = vlaneseq
        %v4152 = vshrl.u32 %v4151, 7
        %v4153 = vsub.s32 3, %v4152
        %v4154 = vrot.slane %v3739, %v4153
        %4156 = vbcast.lane.b32.xlu0 %v4154, 256
        %v4157 = vpop.permute.xlu0 %4156
        %s4159 = sor.u32 256, 8
        %4160 = vbcast.lane.b32.xlu0 %v4154, %s4159
        %v4161 = vpop.permute.xlu0 %4160
        %s4163 = sor.u32 256, 16
        %4164 = vbcast.lane.b32.xlu0 %v4154, %s4163
        %v4165 = vpop.permute.xlu0 %4164
        %s4167 = sor.u32 256, 24
        %4168 = vbcast.lane.b32.xlu0 %v4154, %s4167
        %v4169 = vpop.permute.xlu0 %4168
        %v4170 = vlaneseq
        %v4171 = vshrl.u32 %v4170, 7
        %v4172 = vsub.s32 4, %v4171
        %v4173 = vrot.slane %v3739, %v4172
        %4175 = vbcast.lane.b32.xlu0 %v4173, 256
        %v4176 = vpop.permute.xlu0 %4175
        %s4178 = sor.u32 256, 8
        %4179 = vbcast.lane.b32.xlu0 %v4173, %s4178
        %v4180 = vpop.permute.xlu0 %4179
        %s4182 = sor.u32 256, 16
        %4183 = vbcast.lane.b32.xlu0 %v4173, %s4182
        %v4184 = vpop.permute.xlu0 %4183
        %s4186 = sor.u32 256, 24
        %4187 = vbcast.lane.b32.xlu0 %v4173, %s4186
        %v4188 = vpop.permute.xlu0 %4187
        %v4189 = vlaneseq
        %v4190 = vshrl.u32 %v4189, 7
        %v4191 = vsub.s32 5, %v4190
        %v4192 = vrot.slane %v3739, %v4191
        %4194 = vbcast.lane.b32.xlu0 %v4192, 256
        %v4195 = vpop.permute.xlu0 %4194
        %s4197 = sor.u32 256, 8
        %4198 = vbcast.lane.b32.xlu0 %v4192, %s4197
        %v4199 = vpop.permute.xlu0 %4198
        %s4201 = sor.u32 256, 16
        %4202 = vbcast.lane.b32.xlu0 %v4192, %s4201
        %v4203 = vpop.permute.xlu0 %4202
        %s4205 = sor.u32 256, 24
        %4206 = vbcast.lane.b32.xlu0 %v4192, %s4205
        %v4207 = vpop.permute.xlu0 %4206
        %v4208 = vlaneseq
        %v4209 = vshrl.u32 %v4208, 7
        %v4210 = vsub.s32 6, %v4209
        %v4211 = vrot.slane %v3739, %v4210
        %4213 = vbcast.lane.b32.xlu0 %v4211, 256
        %v4214 = vpop.permute.xlu0 %4213
        %s4216 = sor.u32 256, 8
        %4217 = vbcast.lane.b32.xlu0 %v4211, %s4216
        %v4218 = vpop.permute.xlu0 %4217
        %s4220 = sor.u32 256, 16
        %4221 = vbcast.lane.b32.xlu0 %v4211, %s4220
        %v4222 = vpop.permute.xlu0 %4221
        %s4224 = sor.u32 256, 24
        %4225 = vbcast.lane.b32.xlu0 %v4211, %s4224
        %v4226 = vpop.permute.xlu0 %4225
        %v4227 = vlaneseq
        %v4228 = vshrl.u32 %v4227, 7
        %v4229 = vsub.s32 7, %v4228
        %v4230 = vrot.slane %v3739, %v4229
        %4232 = vbcast.lane.b32.xlu0 %v4230, 256
        %v4233 = vpop.permute.xlu0 %4232
        %s4235 = sor.u32 256, 8
        %4236 = vbcast.lane.b32.xlu0 %v4230, %s4235
        %v4237 = vpop.permute.xlu0 %4236
        %s4239 = sor.u32 256, 16
        %4240 = vbcast.lane.b32.xlu0 %v4230, %s4239
        %v4241 = vpop.permute.xlu0 %4240
        %s4243 = sor.u32 256, 24
        %4244 = vbcast.lane.b32.xlu0 %v4230, %s4243
        %v4245 = vpop.permute.xlu0 %4244
        %v4246 = vlaneseq
        %v4247 = vshrl.u32 %v4246, 7
        %v4248 = vsub.s32 0, %v4247
        %v4249 = vrot.slane %v3740, %v4248
        %4251 = vbcast.lane.b32.xlu0 %v4249, 256
        %v4252 = vpop.permute.xlu0 %4251
        %s4254 = sor.u32 256, 8
        %4255 = vbcast.lane.b32.xlu0 %v4249, %s4254
        %v4256 = vpop.permute.xlu0 %4255
        %s4258 = sor.u32 256, 16
        %4259 = vbcast.lane.b32.xlu0 %v4249, %s4258
        %v4260 = vpop.permute.xlu0 %4259
        %s4262 = sor.u32 256, 24
        %4263 = vbcast.lane.b32.xlu0 %v4249, %s4262
        %v4264 = vpop.permute.xlu0 %4263
        %v4265 = vlaneseq
        %v4266 = vshrl.u32 %v4265, 7
        %v4267 = vsub.s32 1, %v4266
        %v4268 = vrot.slane %v3740, %v4267
        %4270 = vbcast.lane.b32.xlu0 %v4268, 256
        %v4271 = vpop.permute.xlu0 %4270
        %s4273 = sor.u32 256, 8
        %4274 = vbcast.lane.b32.xlu0 %v4268, %s4273
        %v4275 = vpop.permute.xlu0 %4274
        %s4277 = sor.u32 256, 16
        %4278 = vbcast.lane.b32.xlu0 %v4268, %s4277
        %v4279 = vpop.permute.xlu0 %4278
        %s4281 = sor.u32 256, 24
        %4282 = vbcast.lane.b32.xlu0 %v4268, %s4281
        %v4283 = vpop.permute.xlu0 %4282
        %v4284 = vlaneseq
        %v4285 = vshrl.u32 %v4284, 7
        %v4286 = vsub.s32 2, %v4285
        %v4287 = vrot.slane %v3740, %v4286
        %4289 = vbcast.lane.b32.xlu0 %v4287, 256
        %v4290 = vpop.permute.xlu0 %4289
        %s4292 = sor.u32 256, 8
        %4293 = vbcast.lane.b32.xlu0 %v4287, %s4292
        %v4294 = vpop.permute.xlu0 %4293
        %s4296 = sor.u32 256, 16
        %4297 = vbcast.lane.b32.xlu0 %v4287, %s4296
        %v4298 = vpop.permute.xlu0 %4297
        %s4300 = sor.u32 256, 24
        %4301 = vbcast.lane.b32.xlu0 %v4287, %s4300
        %v4302 = vpop.permute.xlu0 %4301
        %v4303 = vlaneseq
        %v4304 = vshrl.u32 %v4303, 7
        %v4305 = vsub.s32 3, %v4304
        %v4306 = vrot.slane %v3740, %v4305
        %4308 = vbcast.lane.b32.xlu0 %v4306, 256
        %v4309 = vpop.permute.xlu0 %4308
        %s4311 = sor.u32 256, 8
        %4312 = vbcast.lane.b32.xlu0 %v4306, %s4311
        %v4313 = vpop.permute.xlu0 %4312
        %s4315 = sor.u32 256, 16
        %4316 = vbcast.lane.b32.xlu0 %v4306, %s4315
        %v4317 = vpop.permute.xlu0 %4316
        %s4319 = sor.u32 256, 24
        %4320 = vbcast.lane.b32.xlu0 %v4306, %s4319
        %v4321 = vpop.permute.xlu0 %4320
        %v4322 = vlaneseq
        %v4323 = vshrl.u32 %v4322, 7
        %v4324 = vsub.s32 4, %v4323
        %v4325 = vrot.slane %v3740, %v4324
        %4327 = vbcast.lane.b32.xlu0 %v4325, 256
        %v4328 = vpop.permute.xlu0 %4327
        %s4330 = sor.u32 256, 8
        %4331 = vbcast.lane.b32.xlu0 %v4325, %s4330
        %v4332 = vpop.permute.xlu0 %4331
        %s4334 = sor.u32 256, 16
        %4335 = vbcast.lane.b32.xlu0 %v4325, %s4334
        %v4336 = vpop.permute.xlu0 %4335
        %s4338 = sor.u32 256, 24
        %4339 = vbcast.lane.b32.xlu0 %v4325, %s4338
        %v4340 = vpop.permute.xlu0 %4339
        %v4341 = vlaneseq
        %v4342 = vshrl.u32 %v4341, 7
        %v4343 = vsub.s32 5, %v4342
        %v4344 = vrot.slane %v3740, %v4343
        %4346 = vbcast.lane.b32.xlu0 %v4344, 256
        %v4347 = vpop.permute.xlu0 %4346
        %s4349 = sor.u32 256, 8
        %4350 = vbcast.lane.b32.xlu0 %v4344, %s4349
        %v4351 = vpop.permute.xlu0 %4350
        %s4353 = sor.u32 256, 16
        %4354 = vbcast.lane.b32.xlu0 %v4344, %s4353
        %v4355 = vpop.permute.xlu0 %4354
        %s4357 = sor.u32 256, 24
        %4358 = vbcast.lane.b32.xlu0 %v4344, %s4357
        %v4359 = vpop.permute.xlu0 %4358
        %v4360 = vlaneseq
        %v4361 = vshrl.u32 %v4360, 7
        %v4362 = vsub.s32 6, %v4361
        %v4363 = vrot.slane %v3740, %v4362
        %4365 = vbcast.lane.b32.xlu0 %v4363, 256
        %v4366 = vpop.permute.xlu0 %4365
        %s4368 = sor.u32 256, 8
        %4369 = vbcast.lane.b32.xlu0 %v4363, %s4368
        %v4370 = vpop.permute.xlu0 %4369
        %s4372 = sor.u32 256, 16
        %4373 = vbcast.lane.b32.xlu0 %v4363, %s4372
        %v4374 = vpop.permute.xlu0 %4373
        %s4376 = sor.u32 256, 24
        %4377 = vbcast.lane.b32.xlu0 %v4363, %s4376
        %v4378 = vpop.permute.xlu0 %4377
        %v4379 = vlaneseq
        %v4380 = vshrl.u32 %v4379, 7
        %v4381 = vsub.s32 7, %v4380
        %v4382 = vrot.slane %v3740, %v4381
        %4384 = vbcast.lane.b32.xlu0 %v4382, 256
        %v4385 = vpop.permute.xlu0 %4384
        %s4387 = sor.u32 256, 8
        %4388 = vbcast.lane.b32.xlu0 %v4382, %s4387
        %v4389 = vpop.permute.xlu0 %4388
        %s4391 = sor.u32 256, 16
        %4392 = vbcast.lane.b32.xlu0 %v4382, %s4391
        %v4393 = vpop.permute.xlu0 %4392
        %s4395 = sor.u32 256, 24
        %4396 = vbcast.lane.b32.xlu0 %v4382, %s4395
        %v4397 = vpop.permute.xlu0 %4396
        %v4398 = vlaneseq
        %v4399 = vshrl.u32 %v4398, 7
        %v4400 = vsub.s32 0, %v4399
        %v4401 = vrot.slane %v3741, %v4400
        %4403 = vbcast.lane.b32.xlu0 %v4401, 256
        %v4404 = vpop.permute.xlu0 %4403
        %s4406 = sor.u32 256, 8
        %4407 = vbcast.lane.b32.xlu0 %v4401, %s4406
        %v4408 = vpop.permute.xlu0 %4407
        %s4410 = sor.u32 256, 16
        %4411 = vbcast.lane.b32.xlu0 %v4401, %s4410
        %v4412 = vpop.permute.xlu0 %4411
        %s4414 = sor.u32 256, 24
        %4415 = vbcast.lane.b32.xlu0 %v4401, %s4414
        %v4416 = vpop.permute.xlu0 %4415
        %v4417 = vlaneseq
        %v4418 = vshrl.u32 %v4417, 7
        %v4419 = vsub.s32 1, %v4418
        %v4420 = vrot.slane %v3741, %v4419
        %4422 = vbcast.lane.b32.xlu0 %v4420, 256
        %v4423 = vpop.permute.xlu0 %4422
        %s4425 = sor.u32 256, 8
        %4426 = vbcast.lane.b32.xlu0 %v4420, %s4425
        %v4427 = vpop.permute.xlu0 %4426
        %s4429 = sor.u32 256, 16
        %4430 = vbcast.lane.b32.xlu0 %v4420, %s4429
        %v4431 = vpop.permute.xlu0 %4430
        %s4433 = sor.u32 256, 24
        %4434 = vbcast.lane.b32.xlu0 %v4420, %s4433
        %v4435 = vpop.permute.xlu0 %4434
        %v4436 = vlaneseq
        %v4437 = vshrl.u32 %v4436, 7
        %v4438 = vsub.s32 2, %v4437
        %v4439 = vrot.slane %v3741, %v4438
        %4441 = vbcast.lane.b32.xlu0 %v4439, 256
        %v4442 = vpop.permute.xlu0 %4441
        %s4444 = sor.u32 256, 8
        %4445 = vbcast.lane.b32.xlu0 %v4439, %s4444
        %v4446 = vpop.permute.xlu0 %4445
        %s4448 = sor.u32 256, 16
        %4449 = vbcast.lane.b32.xlu0 %v4439, %s4448
        %v4450 = vpop.permute.xlu0 %4449
        %s4452 = sor.u32 256, 24
        %4453 = vbcast.lane.b32.xlu0 %v4439, %s4452
        %v4454 = vpop.permute.xlu0 %4453
        %v4455 = vlaneseq
        %v4456 = vshrl.u32 %v4455, 7
        %v4457 = vsub.s32 3, %v4456
        %v4458 = vrot.slane %v3741, %v4457
        %4460 = vbcast.lane.b32.xlu0 %v4458, 256
        %v4461 = vpop.permute.xlu0 %4460
        %s4463 = sor.u32 256, 8
        %4464 = vbcast.lane.b32.xlu0 %v4458, %s4463
        %v4465 = vpop.permute.xlu0 %4464
        %s4467 = sor.u32 256, 16
        %4468 = vbcast.lane.b32.xlu0 %v4458, %s4467
        %v4469 = vpop.permute.xlu0 %4468
        %s4471 = sor.u32 256, 24
        %4472 = vbcast.lane.b32.xlu0 %v4458, %s4471
        %v4473 = vpop.permute.xlu0 %4472
        %v4474 = vlaneseq
        %v4475 = vshrl.u32 %v4474, 7
        %v4476 = vsub.s32 4, %v4475
        %v4477 = vrot.slane %v3741, %v4476
        %4479 = vbcast.lane.b32.xlu0 %v4477, 256
        %v4480 = vpop.permute.xlu0 %4479
        %s4482 = sor.u32 256, 8
        %4483 = vbcast.lane.b32.xlu0 %v4477, %s4482
        %v4484 = vpop.permute.xlu0 %4483
        %s4486 = sor.u32 256, 16
        %4487 = vbcast.lane.b32.xlu0 %v4477, %s4486
        %v4488 = vpop.permute.xlu0 %4487
        %s4490 = sor.u32 256, 24
        %4491 = vbcast.lane.b32.xlu0 %v4477, %s4490
        %v4492 = vpop.permute.xlu0 %4491
        %v4493 = vlaneseq
        %v4494 = vshrl.u32 %v4493, 7
        %v4495 = vsub.s32 5, %v4494
        %v4496 = vrot.slane %v3741, %v4495
        %4498 = vbcast.lane.b32.xlu0 %v4496, 256
        %v4499 = vpop.permute.xlu0 %4498
        %s4501 = sor.u32 256, 8
        %4502 = vbcast.lane.b32.xlu0 %v4496, %s4501
        %v4503 = vpop.permute.xlu0 %4502
        %s4505 = sor.u32 256, 16
        %4506 = vbcast.lane.b32.xlu0 %v4496, %s4505
        %v4507 = vpop.permute.xlu0 %4506
        %s4509 = sor.u32 256, 24
        %4510 = vbcast.lane.b32.xlu0 %v4496, %s4509
        %v4511 = vpop.permute.xlu0 %4510
        %v4512 = vlaneseq
        %v4513 = vshrl.u32 %v4512, 7
        %v4514 = vsub.s32 6, %v4513
        %v4515 = vrot.slane %v3741, %v4514
        %4517 = vbcast.lane.b32.xlu0 %v4515, 256
        %v4518 = vpop.permute.xlu0 %4517
        %s4520 = sor.u32 256, 8
        %4521 = vbcast.lane.b32.xlu0 %v4515, %s4520
        %v4522 = vpop.permute.xlu0 %4521
        %s4524 = sor.u32 256, 16
        %4525 = vbcast.lane.b32.xlu0 %v4515, %s4524
        %v4526 = vpop.permute.xlu0 %4525
        %s4528 = sor.u32 256, 24
        %4529 = vbcast.lane.b32.xlu0 %v4515, %s4528
        %v4530 = vpop.permute.xlu0 %4529
        %v4531 = vlaneseq
        %v4532 = vshrl.u32 %v4531, 7
        %v4533 = vsub.s32 7, %v4532
        %v4534 = vrot.slane %v3741, %v4533
        %4536 = vbcast.lane.b32.xlu0 %v4534, 256
        %v4537 = vpop.permute.xlu0 %4536
        %s4539 = sor.u32 256, 8
        %4540 = vbcast.lane.b32.xlu0 %v4534, %s4539
        %v4541 = vpop.permute.xlu0 %4540
        %s4543 = sor.u32 256, 16
        %4544 = vbcast.lane.b32.xlu0 %v4534, %s4543
        %v4545 = vpop.permute.xlu0 %4544
        %s4547 = sor.u32 256, 24
        %4548 = vbcast.lane.b32.xlu0 %v4534, %s4547
        %v4549 = vpop.permute.xlu0 %4548
        %v4550 = vlaneseq
        %v4551 = vshrl.u32 %v4550, 7
        %v4552 = vsub.s32 0, %v4551
        %v4553 = vrot.slane %v3769, %v4552
        %v4554 = vlaneseq
        %v4555 = vshrl.u32 %v4554, 7
        %v4556 = vsub.s32 0, %v4555
        %v4557 = vrot.slane %v3783, %v4556
        %v4558 = vlaneseq
        %v4559 = vshrl.u32 %v4558, 7
        %v4560 = vsub.s32 0, %v4559
        %v4561 = vrot.slane %v3791, %v4560
        %v4562 = vlaneseq
        %v4563 = vshrl.u32 %v4562, 7
        %v4564 = vsub.s32 0, %v4563
        %v4565 = vrot.slane %v3793, %v4564
        %v4566 = vlaneseq
        %v4567 = vshrl.u32 %v4566, 7
        %v4568 = vsub.s32 0, %v4567
        %v4569 = vrot.slane %v3776, %v4568
        %v4570 = vlaneseq
        %v4571 = vshrl.u32 %v4570, 7
        %v4572 = vsub.s32 0, %v4571
        %v4573 = vrot.slane %v3790, %v4572
        %v4574 = vlaneseq
        %v4575 = vshrl.u32 %v4574, 7
        %v4576 = vsub.s32 0, %v4575
        %v4577 = vrot.slane %v3792, %v4576
        %v4578 = vlaneseq
        %v4579 = vshrl.u32 %v4578, 7
        %v4580 = vsub.s32 0, %v4579
        %v4581 = vrot.slane %v3794, %v4580
        %v4582 = vlaneseq
        %v4583 = vshrl.u32 %v4582, 7
        %v4584 = vsub.s32 0, %v4583
        %v4585 = vrot.slane %v3818, %v4584
        %v4586 = vlaneseq
        %v4587 = vshrl.u32 %v4586, 7
        %v4588 = vsub.s32 0, %v4587
        %v4589 = vrot.slane %v3832, %v4588
        %v4590 = vlaneseq
        %v4591 = vshrl.u32 %v4590, 7
        %v4592 = vsub.s32 0, %v4591
        %v4593 = vrot.slane %v3840, %v4592
        %v4594 = vlaneseq
        %v4595 = vshrl.u32 %v4594, 7
        %v4596 = vsub.s32 0, %v4595
        %v4597 = vrot.slane %v3842, %v4596
        %v4598 = vlaneseq
        %v4599 = vshrl.u32 %v4598, 7
        %v4600 = vsub.s32 0, %v4599
        %v4601 = vrot.slane %v3825, %v4600
        %v4602 = vlaneseq
        %v4603 = vshrl.u32 %v4602, 7
        %v4604 = vsub.s32 0, %v4603
        %v4605 = vrot.slane %v3839, %v4604
        %v4606 = vlaneseq
        %v4607 = vshrl.u32 %v4606, 7
        %v4608 = vsub.s32 0, %v4607
        %v4609 = vrot.slane %v3841, %v4608
        %v4610 = vlaneseq
        %v4611 = vshrl.u32 %v4610, 7
        %v4612 = vsub.s32 0, %v4611
        %v4613 = vrot.slane %v3843, %v4612
        %v4614 = vlaneseq
        %v4615 = vshrl.u32 %v4614, 7
        %v4616 = vsub.s32 0, %v4615
        %v4617 = vrot.slane %v3867, %v4616
        %v4618 = vlaneseq
        %v4619 = vshrl.u32 %v4618, 7
        %v4620 = vsub.s32 0, %v4619
        %v4621 = vrot.slane %v3881, %v4620
        %v4622 = vlaneseq
        %v4623 = vshrl.u32 %v4622, 7
        %v4624 = vsub.s32 0, %v4623
        %v4625 = vrot.slane %v3889, %v4624
        %v4626 = vlaneseq
        %v4627 = vshrl.u32 %v4626, 7
        %v4628 = vsub.s32 0, %v4627
        %v4629 = vrot.slane %v3891, %v4628
        %v4630 = vlaneseq
        %v4631 = vshrl.u32 %v4630, 7
        %v4632 = vsub.s32 0, %v4631
        %v4633 = vrot.slane %v3874, %v4632
        %v4634 = vlaneseq
        %v4635 = vshrl.u32 %v4634, 7
        %v4636 = vsub.s32 0, %v4635
        %v4637 = vrot.slane %v3888, %v4636
        %v4638 = vlaneseq
        %v4639 = vshrl.u32 %v4638, 7
        %v4640 = vsub.s32 0, %v4639
        %v4641 = vrot.slane %v3890, %v4640
        %v4642 = vlaneseq
        %v4643 = vshrl.u32 %v4642, 7
        %v4644 = vsub.s32 0, %v4643
        %v4645 = vrot.slane %v3892, %v4644
        %v4646 = vlaneseq
        %v4647 = vshrl.u32 %v4646, 7
        %v4648 = vsub.s32 0, %v4647
        %v4649 = vrot.slane %v3916, %v4648
        %v4650 = vlaneseq
        %v4651 = vshrl.u32 %v4650, 7
        %v4652 = vsub.s32 0, %v4651
        %v4653 = vrot.slane %v3930, %v4652
        %v4654 = vlaneseq
        %v4655 = vshrl.u32 %v4654, 7
        %v4656 = vsub.s32 0, %v4655
        %v4657 = vrot.slane %v3938, %v4656
        %v4658 = vlaneseq
        %v4659 = vshrl.u32 %v4658, 7
        %v4660 = vsub.s32 0, %v4659
        %v4661 = vrot.slane %v3940, %v4660
        %v4662 = vlaneseq
        %v4663 = vshrl.u32 %v4662, 7
        %v4664 = vsub.s32 0, %v4663
        %v4665 = vrot.slane %v3923, %v4664
        %v4666 = vlaneseq
        %v4667 = vshrl.u32 %v4666, 7
        %v4668 = vsub.s32 0, %v4667
        %v4669 = vrot.slane %v3937, %v4668
        %v4670 = vlaneseq
        %v4671 = vshrl.u32 %v4670, 7
        %v4672 = vsub.s32 0, %v4671
        %v4673 = vrot.slane %v3939, %v4672
        %v4674 = vlaneseq
        %v4675 = vshrl.u32 %v4674, 7
        %v4676 = vsub.s32 0, %v4675
        %v4677 = vrot.slane %v3941, %v4676
        %v4710 = vsub.f32 %v4553, %v3948
        %v4711 = vsub.f32 %v4553, %v3952
        %v4712 = vsub.f32 %v4553, %v3956
        %v4713 = vsub.f32 %v4553, %v3960
        %v4714 = vsub.f32 %v4557, %v3967
        %v4715 = vsub.f32 %v4557, %v3971
        %v4716 = vsub.f32 %v4557, %v3975
        %v4717 = vsub.f32 %v4557, %v3979
        %v4718 = vsub.f32 %v4561, %v3986
        %v4719 = vsub.f32 %v4561, %v3990
        %v4720 = vsub.f32 %v4561, %v3994
        %v4721 = vsub.f32 %v4561, %v3998
        %v4722 = vsub.f32 %v4565, %v4005
        %v4723 = vsub.f32 %v4565, %v4009
        %v4724 = vsub.f32 %v4565, %v4013
        %v4725 = vsub.f32 %v4565, %v4017
        %v4726 = vsub.f32 %v4569, %v4024
        %v4727 = vsub.f32 %v4569, %v4028
        %v4728 = vsub.f32 %v4569, %v4032
        %v4729 = vsub.f32 %v4569, %v4036
        %v4730 = vsub.f32 %v4573, %v4043
        %v4731 = vsub.f32 %v4573, %v4047
        %v4732 = vsub.f32 %v4573, %v4051
        %v4733 = vsub.f32 %v4573, %v4055
        %v4734 = vsub.f32 %v4577, %v4062
        %v4735 = vsub.f32 %v4577, %v4066
        %v4736 = vsub.f32 %v4577, %v4070
        %v4737 = vsub.f32 %v4577, %v4074
        %v4738 = vsub.f32 %v4581, %v4081
        %v4739 = vsub.f32 %v4581, %v4085
        %v4740 = vsub.f32 %v4581, %v4089
        %v4741 = vsub.f32 %v4581, %v4093
        %v4742 = vsub.f32 %v4585, %v4100
        %v4743 = vsub.f32 %v4585, %v4104
        %v4744 = vsub.f32 %v4585, %v4108
        %v4745 = vsub.f32 %v4585, %v4112
        %v4746 = vsub.f32 %v4589, %v4119
        %v4747 = vsub.f32 %v4589, %v4123
        %v4748 = vsub.f32 %v4589, %v4127
        %v4749 = vsub.f32 %v4589, %v4131
        %v4750 = vsub.f32 %v4593, %v4138
        %v4751 = vsub.f32 %v4593, %v4142
        %v4752 = vsub.f32 %v4593, %v4146
        %v4753 = vsub.f32 %v4593, %v4150
        %v4754 = vsub.f32 %v4597, %v4157
        %v4755 = vsub.f32 %v4597, %v4161
        %v4756 = vsub.f32 %v4597, %v4165
        %v4757 = vsub.f32 %v4597, %v4169
        %v4758 = vsub.f32 %v4601, %v4176
        %v4759 = vsub.f32 %v4601, %v4180
        %v4760 = vsub.f32 %v4601, %v4184
        %v4761 = vsub.f32 %v4601, %v4188
        %v4762 = vsub.f32 %v4605, %v4195
        %v4763 = vsub.f32 %v4605, %v4199
        %v4764 = vsub.f32 %v4605, %v4203
        %v4765 = vsub.f32 %v4605, %v4207
        %v4766 = vsub.f32 %v4609, %v4214
        %v4767 = vsub.f32 %v4609, %v4218
        %v4768 = vsub.f32 %v4609, %v4222
        %v4769 = vsub.f32 %v4609, %v4226
        %v4770 = vsub.f32 %v4613, %v4233
        %v4771 = vsub.f32 %v4613, %v4237
        %v4772 = vsub.f32 %v4613, %v4241
        %v4773 = vsub.f32 %v4613, %v4245
        %v4774 = vsub.f32 %v4617, %v4252
        %v4775 = vsub.f32 %v4617, %v4256
        %v4776 = vsub.f32 %v4617, %v4260
        %v4777 = vsub.f32 %v4617, %v4264
        %v4778 = vsub.f32 %v4621, %v4271
        %v4779 = vsub.f32 %v4621, %v4275
        %v4780 = vsub.f32 %v4621, %v4279
        %v4781 = vsub.f32 %v4621, %v4283
        %v4782 = vsub.f32 %v4625, %v4290
        %v4783 = vsub.f32 %v4625, %v4294
        %v4784 = vsub.f32 %v4625, %v4298
        %v4785 = vsub.f32 %v4625, %v4302
        %v4786 = vsub.f32 %v4629, %v4309
        %v4787 = vsub.f32 %v4629, %v4313
        %v4788 = vsub.f32 %v4629, %v4317
        %v4789 = vsub.f32 %v4629, %v4321
        %v4790 = vsub.f32 %v4633, %v4328
        %v4791 = vsub.f32 %v4633, %v4332
        %v4792 = vsub.f32 %v4633, %v4336
        %v4793 = vsub.f32 %v4633, %v4340
        %v4794 = vsub.f32 %v4637, %v4347
        %v4795 = vsub.f32 %v4637, %v4351
        %v4796 = vsub.f32 %v4637, %v4355
        %v4797 = vsub.f32 %v4637, %v4359
        %v4798 = vsub.f32 %v4641, %v4366
        %v4799 = vsub.f32 %v4641, %v4370
        %v4800 = vsub.f32 %v4641, %v4374
        %v4801 = vsub.f32 %v4641, %v4378
        %v4802 = vsub.f32 %v4645, %v4385
        %v4803 = vsub.f32 %v4645, %v4389
        %v4804 = vsub.f32 %v4645, %v4393
        %v4805 = vsub.f32 %v4645, %v4397
        %v4806 = vsub.f32 %v4649, %v4404
        %v4807 = vsub.f32 %v4649, %v4408
        %v4808 = vsub.f32 %v4649, %v4412
        %v4809 = vsub.f32 %v4649, %v4416
        %v4810 = vsub.f32 %v4653, %v4423
        %v4811 = vsub.f32 %v4653, %v4427
        %v4812 = vsub.f32 %v4653, %v4431
        %v4813 = vsub.f32 %v4653, %v4435
        %v4814 = vsub.f32 %v4657, %v4442
        %v4815 = vsub.f32 %v4657, %v4446
        %v4816 = vsub.f32 %v4657, %v4450
        %v4817 = vsub.f32 %v4657, %v4454
        %v4818 = vsub.f32 %v4661, %v4461
        %v4819 = vsub.f32 %v4661, %v4465
        %v4820 = vsub.f32 %v4661, %v4469
        %v4821 = vsub.f32 %v4661, %v4473
        %v4822 = vsub.f32 %v4665, %v4480
        %v4823 = vsub.f32 %v4665, %v4484
        %v4824 = vsub.f32 %v4665, %v4488
        %v4825 = vsub.f32 %v4665, %v4492
        %v4826 = vsub.f32 %v4669, %v4499
        %v4827 = vsub.f32 %v4669, %v4503
        %v4828 = vsub.f32 %v4669, %v4507
        %v4829 = vsub.f32 %v4669, %v4511
        %v4830 = vsub.f32 %v4673, %v4518
        %v4831 = vsub.f32 %v4673, %v4522
        %v4832 = vsub.f32 %v4673, %v4526
        %v4833 = vsub.f32 %v4673, %v4530
        %v4834 = vsub.f32 %v4677, %v4537
        %v4835 = vsub.f32 %v4677, %v4541
        %v4836 = vsub.f32 %v4677, %v4545
        %v4837 = vsub.f32 %v4677, %v4549
        %v4838 = vmax.f32 %v4710, %v4714
        %v4839 = vmax.f32 %v4838, %v4718
        %v4840 = vmax.f32 %v4839, %v4722
        %v4841 = vmax.f32 %v4840, %v4726
        %v4842 = vmax.f32 %v4841, %v4730
        %v4843 = vmax.f32 %v4842, %v4734
        %v4844 = vmax.f32 %v4843, %v4738
        %v4845 = vmax.f32 %v4844, %v4742
        %v4846 = vmax.f32 %v4845, %v4746
        %v4847 = vmax.f32 %v4846, %v4750
        %v4848 = vmax.f32 %v4847, %v4754
        %v4849 = vmax.f32 %v4848, %v4758
        %v4850 = vmax.f32 %v4849, %v4762
        %v4851 = vmax.f32 %v4850, %v4766
        %v4852 = vmax.f32 %v4851, %v4770
        %v4853 = vmax.f32 %v4852, %v4774
        %v4854 = vmax.f32 %v4853, %v4778
        %v4855 = vmax.f32 %v4854, %v4782
        %v4856 = vmax.f32 %v4855, %v4786
        %v4857 = vmax.f32 %v4856, %v4790
        %v4858 = vmax.f32 %v4857, %v4794
        %v4859 = vmax.f32 %v4858, %v4798
        %v4860 = vmax.f32 %v4859, %v4802
        %v4861 = vmax.f32 %v4860, %v4806
        %v4862 = vmax.f32 %v4861, %v4810
        %v4863 = vmax.f32 %v4862, %v4814
        %v4864 = vmax.f32 %v4863, %v4818
        %v4865 = vmax.f32 %v4864, %v4822
        %v4866 = vmax.f32 %v4865, %v4826
        %v4867 = vmax.f32 %v4866, %v4830
        %v4868 = vmax.f32 %v4867, %v4834
        %v4869 = vmax.f32 %v4711, %v4715
        %v4870 = vmax.f32 %v4869, %v4719
        %v4871 = vmax.f32 %v4870, %v4723
        %v4872 = vmax.f32 %v4871, %v4727
        %v4873 = vmax.f32 %v4872, %v4731
        %v4874 = vmax.f32 %v4873, %v4735
        %v4875 = vmax.f32 %v4874, %v4739
        %v4876 = vmax.f32 %v4875, %v4743
        %v4877 = vmax.f32 %v4876, %v4747
        %v4878 = vmax.f32 %v4877, %v4751
        %v4879 = vmax.f32 %v4878, %v4755
        %v4880 = vmax.f32 %v4879, %v4759
        %v4881 = vmax.f32 %v4880, %v4763
        %v4882 = vmax.f32 %v4881, %v4767
        %v4883 = vmax.f32 %v4882, %v4771
        %v4884 = vmax.f32 %v4883, %v4775
        %v4885 = vmax.f32 %v4884, %v4779
        %v4886 = vmax.f32 %v4885, %v4783
        %v4887 = vmax.f32 %v4886, %v4787
        %v4888 = vmax.f32 %v4887, %v4791
        %v4889 = vmax.f32 %v4888, %v4795
        %v4890 = vmax.f32 %v4889, %v4799
        %v4891 = vmax.f32 %v4890, %v4803
        %v4892 = vmax.f32 %v4891, %v4807
        %v4893 = vmax.f32 %v4892, %v4811
        %v4894 = vmax.f32 %v4893, %v4815
        %v4895 = vmax.f32 %v4894, %v4819
        %v4896 = vmax.f32 %v4895, %v4823
        %v4897 = vmax.f32 %v4896, %v4827
        %v4898 = vmax.f32 %v4897, %v4831
        %v4899 = vmax.f32 %v4898, %v4835
        %v4900 = vmax.f32 %v4712, %v4716
        %v4901 = vmax.f32 %v4900, %v4720
        %v4902 = vmax.f32 %v4901, %v4724
        %v4903 = vmax.f32 %v4902, %v4728
        %v4904 = vmax.f32 %v4903, %v4732
        %v4905 = vmax.f32 %v4904, %v4736
        %v4906 = vmax.f32 %v4905, %v4740
        %v4907 = vmax.f32 %v4906, %v4744
        %v4908 = vmax.f32 %v4907, %v4748
        %v4909 = vmax.f32 %v4908, %v4752
        %v4910 = vmax.f32 %v4909, %v4756
        %v4911 = vmax.f32 %v4910, %v4760
        %v4912 = vmax.f32 %v4911, %v4764
        %v4913 = vmax.f32 %v4912, %v4768
        %v4914 = vmax.f32 %v4913, %v4772
        %v4915 = vmax.f32 %v4914, %v4776
        %v4916 = vmax.f32 %v4915, %v4780
        %v4917 = vmax.f32 %v4916, %v4784
        %v4918 = vmax.f32 %v4917, %v4788
        %v4919 = vmax.f32 %v4918, %v4792
        %v4920 = vmax.f32 %v4919, %v4796
        %v4921 = vmax.f32 %v4920, %v4800
        %v4922 = vmax.f32 %v4921, %v4804
        %v4923 = vmax.f32 %v4922, %v4808
        %v4924 = vmax.f32 %v4923, %v4812
        %v4925 = vmax.f32 %v4924, %v4816
        %v4926 = vmax.f32 %v4925, %v4820
        %v4927 = vmax.f32 %v4926, %v4824
        %v4928 = vmax.f32 %v4927, %v4828
        %v4929 = vmax.f32 %v4928, %v4832
        %v4930 = vmax.f32 %v4929, %v4836
        %v4931 = vmax.f32 %v4713, %v4717
        %v4932 = vmax.f32 %v4931, %v4721
        %v4933 = vmax.f32 %v4932, %v4725
        %v4934 = vmax.f32 %v4933, %v4729
        %v4935 = vmax.f32 %v4934, %v4733
        %v4936 = vmax.f32 %v4935, %v4737
        %v4937 = vmax.f32 %v4936, %v4741
        %v4938 = vmax.f32 %v4937, %v4745
        %v4939 = vmax.f32 %v4938, %v4749
        %v4940 = vmax.f32 %v4939, %v4753
        %v4941 = vmax.f32 %v4940, %v4757
        %v4942 = vmax.f32 %v4941, %v4761
        %v4943 = vmax.f32 %v4942, %v4765
        %v4944 = vmax.f32 %v4943, %v4769
        %v4945 = vmax.f32 %v4944, %v4773
        %v4946 = vmax.f32 %v4945, %v4777
        %v4947 = vmax.f32 %v4946, %v4781
        %v4948 = vmax.f32 %v4947, %v4785
        %v4949 = vmax.f32 %v4948, %v4789
        %v4950 = vmax.f32 %v4949, %v4793
        %v4951 = vmax.f32 %v4950, %v4797
        %v4952 = vmax.f32 %v4951, %v4801
        %v4953 = vmax.f32 %v4952, %v4805
        %v4954 = vmax.f32 %v4953, %v4809
        %v4955 = vmax.f32 %v4954, %v4813
        %v4956 = vmax.f32 %v4955, %v4817
        %v4957 = vmax.f32 %v4956, %v4821
        %v4958 = vmax.f32 %v4957, %v4825
        %v4959 = vmax.f32 %v4958, %v4829
        %v4960 = vmax.f32 %v4959, %v4833
        %v4961 = vmax.f32 %v4960, %v4837
        %v4962 = vmax.f32 %v3474, %v4868
        %v4963 = vmax.f32 %v3475, %v4899
        %v4964 = vmax.f32 %v3476, %v4930
        %v4965 = vmax.f32 %v3477, %v4961
        %v4966 = vadd.f32 %v4553, %v3948
        %v4967 = vadd.f32 %v4553, %v3952
        %v4968 = vadd.f32 %v4553, %v3956
        %v4969 = vadd.f32 %v4553, %v3960
        %v4970 = vadd.f32 %v4557, %v3967
        %v4971 = vadd.f32 %v4557, %v3971
        %v4972 = vadd.f32 %v4557, %v3975
        %v4973 = vadd.f32 %v4557, %v3979
        %v4974 = vadd.f32 %v4561, %v3986
        %v4975 = vadd.f32 %v4561, %v3990
        %v4976 = vadd.f32 %v4561, %v3994
        %v4977 = vadd.f32 %v4561, %v3998
        %v4978 = vadd.f32 %v4565, %v4005
        %v4979 = vadd.f32 %v4565, %v4009
        %v4980 = vadd.f32 %v4565, %v4013
        %v4981 = vadd.f32 %v4565, %v4017
        %v4982 = vadd.f32 %v4569, %v4024
        %v4983 = vadd.f32 %v4569, %v4028
        %v4984 = vadd.f32 %v4569, %v4032
        %v4985 = vadd.f32 %v4569, %v4036
        %v4986 = vadd.f32 %v4573, %v4043
        %v4987 = vadd.f32 %v4573, %v4047
        %v4988 = vadd.f32 %v4573, %v4051
        %v4989 = vadd.f32 %v4573, %v4055
        %v4990 = vadd.f32 %v4577, %v4062
        %v4991 = vadd.f32 %v4577, %v4066
        %v4992 = vadd.f32 %v4577, %v4070
        %v4993 = vadd.f32 %v4577, %v4074
        %v4994 = vadd.f32 %v4581, %v4081
        %v4995 = vadd.f32 %v4581, %v4085
        %v4996 = vadd.f32 %v4581, %v4089
        %v4997 = vadd.f32 %v4581, %v4093
        %v4998 = vadd.f32 %v4585, %v4100
        %v4999 = vadd.f32 %v4585, %v4104
        %v5000 = vadd.f32 %v4585, %v4108
        %v5001 = vadd.f32 %v4585, %v4112
        %v5002 = vadd.f32 %v4589, %v4119
        %v5003 = vadd.f32 %v4589, %v4123
        %v5004 = vadd.f32 %v4589, %v4127
        %v5005 = vadd.f32 %v4589, %v4131
        %v5006 = vadd.f32 %v4593, %v4138
        %v5007 = vadd.f32 %v4593, %v4142
        %v5008 = vadd.f32 %v4593, %v4146
        %v5009 = vadd.f32 %v4593, %v4150
        %v5010 = vadd.f32 %v4597, %v4157
        %v5011 = vadd.f32 %v4597, %v4161
        %v5012 = vadd.f32 %v4597, %v4165
        %v5013 = vadd.f32 %v4597, %v4169
        %v5014 = vadd.f32 %v4601, %v4176
        %v5015 = vadd.f32 %v4601, %v4180
        %v5016 = vadd.f32 %v4601, %v4184
        %v5017 = vadd.f32 %v4601, %v4188
        %v5018 = vadd.f32 %v4605, %v4195
        %v5019 = vadd.f32 %v4605, %v4199
        %v5020 = vadd.f32 %v4605, %v4203
        %v5021 = vadd.f32 %v4605, %v4207
        %v5022 = vadd.f32 %v4609, %v4214
        %v5023 = vadd.f32 %v4609, %v4218
        %v5024 = vadd.f32 %v4609, %v4222
        %v5025 = vadd.f32 %v4609, %v4226
        %v5026 = vadd.f32 %v4613, %v4233
        %v5027 = vadd.f32 %v4613, %v4237
        %v5028 = vadd.f32 %v4613, %v4241
        %v5029 = vadd.f32 %v4613, %v4245
        %v5030 = vadd.f32 %v4617, %v4252
        %v5031 = vadd.f32 %v4617, %v4256
        %v5032 = vadd.f32 %v4617, %v4260
        %v5033 = vadd.f32 %v4617, %v4264
        %v5034 = vadd.f32 %v4621, %v4271
        %v5035 = vadd.f32 %v4621, %v4275
        %v5036 = vadd.f32 %v4621, %v4279
        %v5037 = vadd.f32 %v4621, %v4283
        %v5038 = vadd.f32 %v4625, %v4290
        %v5039 = vadd.f32 %v4625, %v4294
        %v5040 = vadd.f32 %v4625, %v4298
        %v5041 = vadd.f32 %v4625, %v4302
        %v5042 = vadd.f32 %v4629, %v4309
        %v5043 = vadd.f32 %v4629, %v4313
        %v5044 = vadd.f32 %v4629, %v4317
        %v5045 = vadd.f32 %v4629, %v4321
        %v5046 = vadd.f32 %v4633, %v4328
        %v5047 = vadd.f32 %v4633, %v4332
        %v5048 = vadd.f32 %v4633, %v4336
        %v5049 = vadd.f32 %v4633, %v4340
        %v5050 = vadd.f32 %v4637, %v4347
        %v5051 = vadd.f32 %v4637, %v4351
        %v5052 = vadd.f32 %v4637, %v4355
        %v5053 = vadd.f32 %v4637, %v4359
        %v5054 = vadd.f32 %v4641, %v4366
        %v5055 = vadd.f32 %v4641, %v4370
        %v5056 = vadd.f32 %v4641, %v4374
        %v5057 = vadd.f32 %v4641, %v4378
        %v5058 = vadd.f32 %v4645, %v4385
        %v5059 = vadd.f32 %v4645, %v4389
        %v5060 = vadd.f32 %v4645, %v4393
        %v5061 = vadd.f32 %v4645, %v4397
        %v5062 = vadd.f32 %v4649, %v4404
        %v5063 = vadd.f32 %v4649, %v4408
        %v5064 = vadd.f32 %v4649, %v4412
        %v5065 = vadd.f32 %v4649, %v4416
        %v5066 = vadd.f32 %v4653, %v4423
        %v5067 = vadd.f32 %v4653, %v4427
        %v5068 = vadd.f32 %v4653, %v4431
        %v5069 = vadd.f32 %v4653, %v4435
        %v5070 = vadd.f32 %v4657, %v4442
        %v5071 = vadd.f32 %v4657, %v4446
        %v5072 = vadd.f32 %v4657, %v4450
        %v5073 = vadd.f32 %v4657, %v4454
        %v5074 = vadd.f32 %v4661, %v4461
        %v5075 = vadd.f32 %v4661, %v4465
        %v5076 = vadd.f32 %v4661, %v4469
        %v5077 = vadd.f32 %v4661, %v4473
        %v5078 = vadd.f32 %v4665, %v4480
        %v5079 = vadd.f32 %v4665, %v4484
        %v5080 = vadd.f32 %v4665, %v4488
        %v5081 = vadd.f32 %v4665, %v4492
        %v5082 = vadd.f32 %v4669, %v4499
        %v5083 = vadd.f32 %v4669, %v4503
        %v5084 = vadd.f32 %v4669, %v4507
        %v5085 = vadd.f32 %v4669, %v4511
        %v5086 = vadd.f32 %v4673, %v4518
        %v5087 = vadd.f32 %v4673, %v4522
        %v5088 = vadd.f32 %v4673, %v4526
        %v5089 = vadd.f32 %v4673, %v4530
        %v5090 = vadd.f32 %v4677, %v4537
        %v5091 = vadd.f32 %v4677, %v4541
        %v5092 = vadd.f32 %v4677, %v4545
        %v5093 = vadd.f32 %v4677, %v4549
        %v5094 = vmin.f32 %v4966, %v4970
        %v5095 = vmin.f32 %v5094, %v4974
        %v5096 = vmin.f32 %v5095, %v4978
        %v5097 = vmin.f32 %v5096, %v4982
        %v5098 = vmin.f32 %v5097, %v4986
        %v5099 = vmin.f32 %v5098, %v4990
        %v5100 = vmin.f32 %v5099, %v4994
        %v5101 = vmin.f32 %v5100, %v4998
        %v5102 = vmin.f32 %v5101, %v5002
        %v5103 = vmin.f32 %v5102, %v5006
        %v5104 = vmin.f32 %v5103, %v5010
        %v5105 = vmin.f32 %v5104, %v5014
        %v5106 = vmin.f32 %v5105, %v5018
        %v5107 = vmin.f32 %v5106, %v5022
        %v5108 = vmin.f32 %v5107, %v5026
        %v5109 = vmin.f32 %v5108, %v5030
        %v5110 = vmin.f32 %v5109, %v5034
        %v5111 = vmin.f32 %v5110, %v5038
        %v5112 = vmin.f32 %v5111, %v5042
        %v5113 = vmin.f32 %v5112, %v5046
        %v5114 = vmin.f32 %v5113, %v5050
        %v5115 = vmin.f32 %v5114, %v5054
        %v5116 = vmin.f32 %v5115, %v5058
        %v5117 = vmin.f32 %v5116, %v5062
        %v5118 = vmin.f32 %v5117, %v5066
        %v5119 = vmin.f32 %v5118, %v5070
        %v5120 = vmin.f32 %v5119, %v5074
        %v5121 = vmin.f32 %v5120, %v5078
        %v5122 = vmin.f32 %v5121, %v5082
        %v5123 = vmin.f32 %v5122, %v5086
        %v5124 = vmin.f32 %v5123, %v5090
        %v5125 = vmin.f32 %v4967, %v4971
        %v5126 = vmin.f32 %v5125, %v4975
        %v5127 = vmin.f32 %v5126, %v4979
        %v5128 = vmin.f32 %v5127, %v4983
        %v5129 = vmin.f32 %v5128, %v4987
        %v5130 = vmin.f32 %v5129, %v4991
        %v5131 = vmin.f32 %v5130, %v4995
        %v5132 = vmin.f32 %v5131, %v4999
        %v5133 = vmin.f32 %v5132, %v5003
        %v5134 = vmin.f32 %v5133, %v5007
        %v5135 = vmin.f32 %v5134, %v5011
        %v5136 = vmin.f32 %v5135, %v5015
        %v5137 = vmin.f32 %v5136, %v5019
        %v5138 = vmin.f32 %v5137, %v5023
        %v5139 = vmin.f32 %v5138, %v5027
        %v5140 = vmin.f32 %v5139, %v5031
        %v5141 = vmin.f32 %v5140, %v5035
        %v5142 = vmin.f32 %v5141, %v5039
        %v5143 = vmin.f32 %v5142, %v5043
        %v5144 = vmin.f32 %v5143, %v5047
        %v5145 = vmin.f32 %v5144, %v5051
        %v5146 = vmin.f32 %v5145, %v5055
        %v5147 = vmin.f32 %v5146, %v5059
        %v5148 = vmin.f32 %v5147, %v5063
        %v5149 = vmin.f32 %v5148, %v5067
        %v5150 = vmin.f32 %v5149, %v5071
        %v5151 = vmin.f32 %v5150, %v5075
        %v5152 = vmin.f32 %v5151, %v5079
        %v5153 = vmin.f32 %v5152, %v5083
        %v5154 = vmin.f32 %v5153, %v5087
        %v5155 = vmin.f32 %v5154, %v5091
        %v5156 = vmin.f32 %v4968, %v4972
        %v5157 = vmin.f32 %v5156, %v4976
        %v5158 = vmin.f32 %v5157, %v4980
        %v5159 = vmin.f32 %v5158, %v4984
        %v5160 = vmin.f32 %v5159, %v4988
        %v5161 = vmin.f32 %v5160, %v4992
        %v5162 = vmin.f32 %v5161, %v4996
        %v5163 = vmin.f32 %v5162, %v5000
        %v5164 = vmin.f32 %v5163, %v5004
        %v5165 = vmin.f32 %v5164, %v5008
        %v5166 = vmin.f32 %v5165, %v5012
        %v5167 = vmin.f32 %v5166, %v5016
        %v5168 = vmin.f32 %v5167, %v5020
        %v5169 = vmin.f32 %v5168, %v5024
        %v5170 = vmin.f32 %v5169, %v5028
        %v5171 = vmin.f32 %v5170, %v5032
        %v5172 = vmin.f32 %v5171, %v5036
        %v5173 = vmin.f32 %v5172, %v5040
        %v5174 = vmin.f32 %v5173, %v5044
        %v5175 = vmin.f32 %v5174, %v5048
        %v5176 = vmin.f32 %v5175, %v5052
        %v5177 = vmin.f32 %v5176, %v5056
        %v5178 = vmin.f32 %v5177, %v5060
        %v5179 = vmin.f32 %v5178, %v5064
        %v5180 = vmin.f32 %v5179, %v5068
        %v5181 = vmin.f32 %v5180, %v5072
        %v5182 = vmin.f32 %v5181, %v5076
        %v5183 = vmin.f32 %v5182, %v5080
        %v5184 = vmin.f32 %v5183, %v5084
        %v5185 = vmin.f32 %v5184, %v5088
        %v5186 = vmin.f32 %v5185, %v5092
        %v5187 = vmin.f32 %v4969, %v4973
        %v5188 = vmin.f32 %v5187, %v4977
        %v5189 = vmin.f32 %v5188, %v4981
        %v5190 = vmin.f32 %v5189, %v4985
        %v5191 = vmin.f32 %v5190, %v4989
        %v5192 = vmin.f32 %v5191, %v4993
        %v5193 = vmin.f32 %v5192, %v4997
        %v5194 = vmin.f32 %v5193, %v5001
        %v5195 = vmin.f32 %v5194, %v5005
        %v5196 = vmin.f32 %v5195, %v5009
        %v5197 = vmin.f32 %v5196, %v5013
        %v5198 = vmin.f32 %v5197, %v5017
        %v5199 = vmin.f32 %v5198, %v5021
        %v5200 = vmin.f32 %v5199, %v5025
        %v5201 = vmin.f32 %v5200, %v5029
        %v5202 = vmin.f32 %v5201, %v5033
        %v5203 = vmin.f32 %v5202, %v5037
        %v5204 = vmin.f32 %v5203, %v5041
        %v5205 = vmin.f32 %v5204, %v5045
        %v5206 = vmin.f32 %v5205, %v5049
        %v5207 = vmin.f32 %v5206, %v5053
        %v5208 = vmin.f32 %v5207, %v5057
        %v5209 = vmin.f32 %v5208, %v5061
        %v5210 = vmin.f32 %v5209, %v5065
        %v5211 = vmin.f32 %v5210, %v5069
        %v5212 = vmin.f32 %v5211, %v5073
        %v5213 = vmin.f32 %v5212, %v5077
        %v5214 = vmin.f32 %v5213, %v5081
        %v5215 = vmin.f32 %v5214, %v5085
        %v5216 = vmin.f32 %v5215, %v5089
        %v5217 = vmin.f32 %v5216, %v5093
        %v5218 = vmin.f32 %v3730, %v5124
        %v5219 = vmin.f32 %v3731, %v5155
        %v5220 = vmin.f32 %v3732, %v5186
        %v5221 = vmin.f32 %v3733, %v5217
        %v5222 = vsub.f32 1.0, %v855
        %v5223 = vsub.f32 1.0, %v856
        %v5224 = vsub.f32 1.0, %v857
        %v5225 = vsub.f32 1.0, %v858
        %v5226 = vmul.f32 %v5222, 1e+30
        %v5227 = vmul.f32 %v5223, 1e+30
        %v5228 = vmul.f32 %v5224, 1e+30
        %v5229 = vmul.f32 %v5225, 1e+30
        %v5234 = vcombine.high %v1948, %v1948
        %v5236 = vunpack.c.l.s4 1966171168
        %v5237 = vunpack.c.0.s8 %v5236
        %v5238 = vlaneseq
        %v5239 = vshrl.u32 %v5238, 7
        %v5240 = vsub.s32 %v5237, %v5239
        %v5241 = vrot.slane %v1948, %v5240
        %v5243 = vunpack.c.l.s4 1966171168
        %v5244 = vunpack.c.0.s8 %v5243
        %v5245 = vlaneseq
        %v5246 = vshrl.u32 %v5245, 7
        %v5247 = vsub.s32 %v5244, %v5246
        %v5248 = vrot.slane %v5234, %v5247
        %v5249 = vcombine.high %v5241, %v5241
        %v5250 = vcombine.high %v5248, %v5248
        %v5252 = vunpack.c.l.s4 1966171168
        %v5253 = vunpack.c.0.s8 %v5252
        %v5254 = vlaneseq
        %v5255 = vshrl.u32 %v5254, 7
        %v5256 = vsub.s32 %v5253, %v5255
        %v5257 = vrot.slane %v5241, %v5256
        %v5259 = vunpack.c.l.s4 1966171168
        %v5260 = vunpack.c.0.s8 %v5259
        %v5261 = vlaneseq
        %v5262 = vshrl.u32 %v5261, 7
        %v5263 = vsub.s32 %v5260, %v5262
        %v5264 = vrot.slane %v5248, %v5263
        %v5266 = vunpack.c.l.s4 1966171168
        %v5267 = vunpack.c.0.s8 %v5266
        %v5268 = vlaneseq
        %v5269 = vshrl.u32 %v5268, 7
        %v5270 = vsub.s32 %v5267, %v5269
        %v5271 = vrot.slane %v5249, %v5270
        %v5273 = vunpack.c.l.s4 1966171168
        %v5274 = vunpack.c.0.s8 %v5273
        %v5275 = vlaneseq
        %v5276 = vshrl.u32 %v5275, 7
        %v5277 = vsub.s32 %v5274, %v5276
        %v5278 = vrot.slane %v5250, %v5277
        %v5279 = vcombine.high %v5257, %v5257
        %v5280 = vcombine.high %v5264, %v5264
        %v5281 = vcombine.high %v5271, %v5271
        %v5282 = vcombine.high %v5278, %v5278
        %v5283 = vcombine.high %v1949, %v1949
        %v5285 = vunpack.c.l.s4 1966171168
        %v5286 = vunpack.c.0.s8 %v5285
        %v5287 = vlaneseq
        %v5288 = vshrl.u32 %v5287, 7
        %v5289 = vsub.s32 %v5286, %v5288
        %v5290 = vrot.slane %v1949, %v5289
        %v5292 = vunpack.c.l.s4 1966171168
        %v5293 = vunpack.c.0.s8 %v5292
        %v5294 = vlaneseq
        %v5295 = vshrl.u32 %v5294, 7
        %v5296 = vsub.s32 %v5293, %v5295
        %v5297 = vrot.slane %v5283, %v5296
        %v5298 = vcombine.high %v5290, %v5290
        %v5299 = vcombine.high %v5297, %v5297
        %v5301 = vunpack.c.l.s4 1966171168
        %v5302 = vunpack.c.0.s8 %v5301
        %v5303 = vlaneseq
        %v5304 = vshrl.u32 %v5303, 7
        %v5305 = vsub.s32 %v5302, %v5304
        %v5306 = vrot.slane %v5290, %v5305
        %v5308 = vunpack.c.l.s4 1966171168
        %v5309 = vunpack.c.0.s8 %v5308
        %v5310 = vlaneseq
        %v5311 = vshrl.u32 %v5310, 7
        %v5312 = vsub.s32 %v5309, %v5311
        %v5313 = vrot.slane %v5297, %v5312
        %v5315 = vunpack.c.l.s4 1966171168
        %v5316 = vunpack.c.0.s8 %v5315
        %v5317 = vlaneseq
        %v5318 = vshrl.u32 %v5317, 7
        %v5319 = vsub.s32 %v5316, %v5318
        %v5320 = vrot.slane %v5298, %v5319
        %v5322 = vunpack.c.l.s4 1966171168
        %v5323 = vunpack.c.0.s8 %v5322
        %v5324 = vlaneseq
        %v5325 = vshrl.u32 %v5324, 7
        %v5326 = vsub.s32 %v5323, %v5325
        %v5327 = vrot.slane %v5299, %v5326
        %v5328 = vcombine.high %v5306, %v5306
        %v5329 = vcombine.high %v5313, %v5313
        %v5330 = vcombine.high %v5320, %v5320
        %v5331 = vcombine.high %v5327, %v5327
        %v5332 = vcombine.high %v1950, %v1950
        %v5334 = vunpack.c.l.s4 1966171168
        %v5335 = vunpack.c.0.s8 %v5334
        %v5336 = vlaneseq
        %v5337 = vshrl.u32 %v5336, 7
        %v5338 = vsub.s32 %v5335, %v5337
        %v5339 = vrot.slane %v1950, %v5338
        %v5341 = vunpack.c.l.s4 1966171168
        %v5342 = vunpack.c.0.s8 %v5341
        %v5343 = vlaneseq
        %v5344 = vshrl.u32 %v5343, 7
        %v5345 = vsub.s32 %v5342, %v5344
        %v5346 = vrot.slane %v5332, %v5345
        %v5347 = vcombine.high %v5339, %v5339
        %v5348 = vcombine.high %v5346, %v5346
        %v5350 = vunpack.c.l.s4 1966171168
        %v5351 = vunpack.c.0.s8 %v5350
        %v5352 = vlaneseq
        %v5353 = vshrl.u32 %v5352, 7
        %v5354 = vsub.s32 %v5351, %v5353
        %v5355 = vrot.slane %v5339, %v5354
        %v5357 = vunpack.c.l.s4 1966171168
        %v5358 = vunpack.c.0.s8 %v5357
        %v5359 = vlaneseq
        %v5360 = vshrl.u32 %v5359, 7
        %v5361 = vsub.s32 %v5358, %v5360
        %v5362 = vrot.slane %v5346, %v5361
        %v5364 = vunpack.c.l.s4 1966171168
        %v5365 = vunpack.c.0.s8 %v5364
        %v5366 = vlaneseq
        %v5367 = vshrl.u32 %v5366, 7
        %v5368 = vsub.s32 %v5365, %v5367
        %v5369 = vrot.slane %v5347, %v5368
        %v5371 = vunpack.c.l.s4 1966171168
        %v5372 = vunpack.c.0.s8 %v5371
        %v5373 = vlaneseq
        %v5374 = vshrl.u32 %v5373, 7
        %v5375 = vsub.s32 %v5372, %v5374
        %v5376 = vrot.slane %v5348, %v5375
        %v5377 = vcombine.high %v5355, %v5355
        %v5378 = vcombine.high %v5362, %v5362
        %v5379 = vcombine.high %v5369, %v5369
        %v5380 = vcombine.high %v5376, %v5376
        %v5381 = vcombine.high %v1951, %v1951
        %v5383 = vunpack.c.l.s4 1966171168
        %v5384 = vunpack.c.0.s8 %v5383
        %v5385 = vlaneseq
        %v5386 = vshrl.u32 %v5385, 7
        %v5387 = vsub.s32 %v5384, %v5386
        %v5388 = vrot.slane %v1951, %v5387
        %v5390 = vunpack.c.l.s4 1966171168
        %v5391 = vunpack.c.0.s8 %v5390
        %v5392 = vlaneseq
        %v5393 = vshrl.u32 %v5392, 7
        %v5394 = vsub.s32 %v5391, %v5393
        %v5395 = vrot.slane %v5381, %v5394
        %v5396 = vcombine.high %v5388, %v5388
        %v5397 = vcombine.high %v5395, %v5395
        %v5399 = vunpack.c.l.s4 1966171168
        %v5400 = vunpack.c.0.s8 %v5399
        %v5401 = vlaneseq
        %v5402 = vshrl.u32 %v5401, 7
        %v5403 = vsub.s32 %v5400, %v5402
        %v5404 = vrot.slane %v5388, %v5403
        %v5406 = vunpack.c.l.s4 1966171168
        %v5407 = vunpack.c.0.s8 %v5406
        %v5408 = vlaneseq
        %v5409 = vshrl.u32 %v5408, 7
        %v5410 = vsub.s32 %v5407, %v5409
        %v5411 = vrot.slane %v5395, %v5410
        %v5413 = vunpack.c.l.s4 1966171168
        %v5414 = vunpack.c.0.s8 %v5413
        %v5415 = vlaneseq
        %v5416 = vshrl.u32 %v5415, 7
        %v5417 = vsub.s32 %v5414, %v5416
        %v5418 = vrot.slane %v5396, %v5417
        %v5420 = vunpack.c.l.s4 1966171168
        %v5421 = vunpack.c.0.s8 %v5420
        %v5422 = vlaneseq
        %v5423 = vshrl.u32 %v5422, 7
        %v5424 = vsub.s32 %v5421, %v5423
        %v5425 = vrot.slane %v5397, %v5424
        %v5426 = vcombine.high %v5404, %v5404
        %v5427 = vcombine.high %v5411, %v5411
        %v5428 = vcombine.high %v5418, %v5418
        %v5429 = vcombine.high %v5425, %v5425
        %v5430 = vlaneseq
        %v5431 = vshrl.u32 %v5430, 7
        %v5432 = vsub.s32 0, %v5431
        %v5433 = vrot.slane %v5226, %v5432
        %5435 = vbcast.lane.b32.xlu0 %v5433, 256
        %v5436 = vpop.permute.xlu0 %5435
        %s5438 = sor.u32 256, 8
        %5439 = vbcast.lane.b32.xlu0 %v5433, %s5438
        %v5440 = vpop.permute.xlu0 %5439
        %s5442 = sor.u32 256, 16
        %5443 = vbcast.lane.b32.xlu0 %v5433, %s5442
        %v5444 = vpop.permute.xlu0 %5443
        %s5446 = sor.u32 256, 24
        %5447 = vbcast.lane.b32.xlu0 %v5433, %s5446
        %v5448 = vpop.permute.xlu0 %5447
        %v5449 = vlaneseq
        %v5450 = vshrl.u32 %v5449, 7
        %v5451 = vsub.s32 1, %v5450
        %v5452 = vrot.slane %v5226, %v5451
        %5454 = vbcast.lane.b32.xlu0 %v5452, 256
        %v5455 = vpop.permute.xlu0 %5454
        %s5457 = sor.u32 256, 8
        %5458 = vbcast.lane.b32.xlu0 %v5452, %s5457
        %v5459 = vpop.permute.xlu0 %5458
        %s5461 = sor.u32 256, 16
        %5462 = vbcast.lane.b32.xlu0 %v5452, %s5461
        %v5463 = vpop.permute.xlu0 %5462
        %s5465 = sor.u32 256, 24
        %5466 = vbcast.lane.b32.xlu0 %v5452, %s5465
        %v5467 = vpop.permute.xlu0 %5466
        %v5468 = vlaneseq
        %v5469 = vshrl.u32 %v5468, 7
        %v5470 = vsub.s32 2, %v5469
        %v5471 = vrot.slane %v5226, %v5470
        %5473 = vbcast.lane.b32.xlu0 %v5471, 256
        %v5474 = vpop.permute.xlu0 %5473
        %s5476 = sor.u32 256, 8
        %5477 = vbcast.lane.b32.xlu0 %v5471, %s5476
        %v5478 = vpop.permute.xlu0 %5477
        %s5480 = sor.u32 256, 16
        %5481 = vbcast.lane.b32.xlu0 %v5471, %s5480
        %v5482 = vpop.permute.xlu0 %5481
        %s5484 = sor.u32 256, 24
        %5485 = vbcast.lane.b32.xlu0 %v5471, %s5484
        %v5486 = vpop.permute.xlu0 %5485
        %v5487 = vlaneseq
        %v5488 = vshrl.u32 %v5487, 7
        %v5489 = vsub.s32 3, %v5488
        %v5490 = vrot.slane %v5226, %v5489
        %5492 = vbcast.lane.b32.xlu0 %v5490, 256
        %v5493 = vpop.permute.xlu0 %5492
        %s5495 = sor.u32 256, 8
        %5496 = vbcast.lane.b32.xlu0 %v5490, %s5495
        %v5497 = vpop.permute.xlu0 %5496
        %s5499 = sor.u32 256, 16
        %5500 = vbcast.lane.b32.xlu0 %v5490, %s5499
        %v5501 = vpop.permute.xlu0 %5500
        %s5503 = sor.u32 256, 24
        %5504 = vbcast.lane.b32.xlu0 %v5490, %s5503
        %v5505 = vpop.permute.xlu0 %5504
        %v5506 = vlaneseq
        %v5507 = vshrl.u32 %v5506, 7
        %v5508 = vsub.s32 4, %v5507
        %v5509 = vrot.slane %v5226, %v5508
        %5511 = vbcast.lane.b32.xlu0 %v5509, 256
        %v5512 = vpop.permute.xlu0 %5511
        %s5514 = sor.u32 256, 8
        %5515 = vbcast.lane.b32.xlu0 %v5509, %s5514
        %v5516 = vpop.permute.xlu0 %5515
        %s5518 = sor.u32 256, 16
        %5519 = vbcast.lane.b32.xlu0 %v5509, %s5518
        %v5520 = vpop.permute.xlu0 %5519
        %s5522 = sor.u32 256, 24
        %5523 = vbcast.lane.b32.xlu0 %v5509, %s5522
        %v5524 = vpop.permute.xlu0 %5523
        %v5525 = vlaneseq
        %v5526 = vshrl.u32 %v5525, 7
        %v5527 = vsub.s32 5, %v5526
        %v5528 = vrot.slane %v5226, %v5527
        %5530 = vbcast.lane.b32.xlu0 %v5528, 256
        %v5531 = vpop.permute.xlu0 %5530
        %s5533 = sor.u32 256, 8
        %5534 = vbcast.lane.b32.xlu0 %v5528, %s5533
        %v5535 = vpop.permute.xlu0 %5534
        %s5537 = sor.u32 256, 16
        %5538 = vbcast.lane.b32.xlu0 %v5528, %s5537
        %v5539 = vpop.permute.xlu0 %5538
        %s5541 = sor.u32 256, 24
        %5542 = vbcast.lane.b32.xlu0 %v5528, %s5541
        %v5543 = vpop.permute.xlu0 %5542
        %v5544 = vlaneseq
        %v5545 = vshrl.u32 %v5544, 7
        %v5546 = vsub.s32 6, %v5545
        %v5547 = vrot.slane %v5226, %v5546
        %5549 = vbcast.lane.b32.xlu0 %v5547, 256
        %v5550 = vpop.permute.xlu0 %5549
        %s5552 = sor.u32 256, 8
        %5553 = vbcast.lane.b32.xlu0 %v5547, %s5552
        %v5554 = vpop.permute.xlu0 %5553
        %s5556 = sor.u32 256, 16
        %5557 = vbcast.lane.b32.xlu0 %v5547, %s5556
        %v5558 = vpop.permute.xlu0 %5557
        %s5560 = sor.u32 256, 24
        %5561 = vbcast.lane.b32.xlu0 %v5547, %s5560
        %v5562 = vpop.permute.xlu0 %5561
        %v5563 = vlaneseq
        %v5564 = vshrl.u32 %v5563, 7
        %v5565 = vsub.s32 7, %v5564
        %v5566 = vrot.slane %v5226, %v5565
        %5568 = vbcast.lane.b32.xlu0 %v5566, 256
        %v5569 = vpop.permute.xlu0 %5568
        %s5571 = sor.u32 256, 8
        %5572 = vbcast.lane.b32.xlu0 %v5566, %s5571
        %v5573 = vpop.permute.xlu0 %5572
        %s5575 = sor.u32 256, 16
        %5576 = vbcast.lane.b32.xlu0 %v5566, %s5575
        %v5577 = vpop.permute.xlu0 %5576
        %s5579 = sor.u32 256, 24
        %5580 = vbcast.lane.b32.xlu0 %v5566, %s5579
        %v5581 = vpop.permute.xlu0 %5580
        %v5582 = vlaneseq
        %v5583 = vshrl.u32 %v5582, 7
        %v5584 = vsub.s32 0, %v5583
        %v5585 = vrot.slane %v5227, %v5584
        %5587 = vbcast.lane.b32.xlu0 %v5585, 256
        %v5588 = vpop.permute.xlu0 %5587
        %s5590 = sor.u32 256, 8
        %5591 = vbcast.lane.b32.xlu0 %v5585, %s5590
        %v5592 = vpop.permute.xlu0 %5591
        %s5594 = sor.u32 256, 16
        %5595 = vbcast.lane.b32.xlu0 %v5585, %s5594
        %v5596 = vpop.permute.xlu0 %5595
        %s5598 = sor.u32 256, 24
        %5599 = vbcast.lane.b32.xlu0 %v5585, %s5598
        %v5600 = vpop.permute.xlu0 %5599
        %v5601 = vlaneseq
        %v5602 = vshrl.u32 %v5601, 7
        %v5603 = vsub.s32 1, %v5602
        %v5604 = vrot.slane %v5227, %v5603
        %5606 = vbcast.lane.b32.xlu0 %v5604, 256
        %v5607 = vpop.permute.xlu0 %5606
        %s5609 = sor.u32 256, 8
        %5610 = vbcast.lane.b32.xlu0 %v5604, %s5609
        %v5611 = vpop.permute.xlu0 %5610
        %s5613 = sor.u32 256, 16
        %5614 = vbcast.lane.b32.xlu0 %v5604, %s5613
        %v5615 = vpop.permute.xlu0 %5614
        %s5617 = sor.u32 256, 24
        %5618 = vbcast.lane.b32.xlu0 %v5604, %s5617
        %v5619 = vpop.permute.xlu0 %5618
        %v5620 = vlaneseq
        %v5621 = vshrl.u32 %v5620, 7
        %v5622 = vsub.s32 2, %v5621
        %v5623 = vrot.slane %v5227, %v5622
        %5625 = vbcast.lane.b32.xlu0 %v5623, 256
        %v5626 = vpop.permute.xlu0 %5625
        %s5628 = sor.u32 256, 8
        %5629 = vbcast.lane.b32.xlu0 %v5623, %s5628
        %v5630 = vpop.permute.xlu0 %5629
        %s5632 = sor.u32 256, 16
        %5633 = vbcast.lane.b32.xlu0 %v5623, %s5632
        %v5634 = vpop.permute.xlu0 %5633
        %s5636 = sor.u32 256, 24
        %5637 = vbcast.lane.b32.xlu0 %v5623, %s5636
        %v5638 = vpop.permute.xlu0 %5637
        %v5639 = vlaneseq
        %v5640 = vshrl.u32 %v5639, 7
        %v5641 = vsub.s32 3, %v5640
        %v5642 = vrot.slane %v5227, %v5641
        %5644 = vbcast.lane.b32.xlu0 %v5642, 256
        %v5645 = vpop.permute.xlu0 %5644
        %s5647 = sor.u32 256, 8
        %5648 = vbcast.lane.b32.xlu0 %v5642, %s5647
        %v5649 = vpop.permute.xlu0 %5648
        %s5651 = sor.u32 256, 16
        %5652 = vbcast.lane.b32.xlu0 %v5642, %s5651
        %v5653 = vpop.permute.xlu0 %5652
        %s5655 = sor.u32 256, 24
        %5656 = vbcast.lane.b32.xlu0 %v5642, %s5655
        %v5657 = vpop.permute.xlu0 %5656
        %v5658 = vlaneseq
        %v5659 = vshrl.u32 %v5658, 7
        %v5660 = vsub.s32 4, %v5659
        %v5661 = vrot.slane %v5227, %v5660
        %5663 = vbcast.lane.b32.xlu0 %v5661, 256
        %v5664 = vpop.permute.xlu0 %5663
        %s5666 = sor.u32 256, 8
        %5667 = vbcast.lane.b32.xlu0 %v5661, %s5666
        %v5668 = vpop.permute.xlu0 %5667
        %s5670 = sor.u32 256, 16
        %5671 = vbcast.lane.b32.xlu0 %v5661, %s5670
        %v5672 = vpop.permute.xlu0 %5671
        %s5674 = sor.u32 256, 24
        %5675 = vbcast.lane.b32.xlu0 %v5661, %s5674
        %v5676 = vpop.permute.xlu0 %5675
        %v5677 = vlaneseq
        %v5678 = vshrl.u32 %v5677, 7
        %v5679 = vsub.s32 5, %v5678
        %v5680 = vrot.slane %v5227, %v5679
        %5682 = vbcast.lane.b32.xlu0 %v5680, 256
        %v5683 = vpop.permute.xlu0 %5682
        %s5685 = sor.u32 256, 8
        %5686 = vbcast.lane.b32.xlu0 %v5680, %s5685
        %v5687 = vpop.permute.xlu0 %5686
        %s5689 = sor.u32 256, 16
        %5690 = vbcast.lane.b32.xlu0 %v5680, %s5689
        %v5691 = vpop.permute.xlu0 %5690
        %s5693 = sor.u32 256, 24
        %5694 = vbcast.lane.b32.xlu0 %v5680, %s5693
        %v5695 = vpop.permute.xlu0 %5694
        %v5696 = vlaneseq
        %v5697 = vshrl.u32 %v5696, 7
        %v5698 = vsub.s32 6, %v5697
        %v5699 = vrot.slane %v5227, %v5698
        %5701 = vbcast.lane.b32.xlu0 %v5699, 256
        %v5702 = vpop.permute.xlu0 %5701
        %s5704 = sor.u32 256, 8
        %5705 = vbcast.lane.b32.xlu0 %v5699, %s5704
        %v5706 = vpop.permute.xlu0 %5705
        %s5708 = sor.u32 256, 16
        %5709 = vbcast.lane.b32.xlu0 %v5699, %s5708
        %v5710 = vpop.permute.xlu0 %5709
        %s5712 = sor.u32 256, 24
        %5713 = vbcast.lane.b32.xlu0 %v5699, %s5712
        %v5714 = vpop.permute.xlu0 %5713
        %v5715 = vlaneseq
        %v5716 = vshrl.u32 %v5715, 7
        %v5717 = vsub.s32 7, %v5716
        %v5718 = vrot.slane %v5227, %v5717
        %5720 = vbcast.lane.b32.xlu0 %v5718, 256
        %v5721 = vpop.permute.xlu0 %5720
        %s5723 = sor.u32 256, 8
        %5724 = vbcast.lane.b32.xlu0 %v5718, %s5723
        %v5725 = vpop.permute.xlu0 %5724
        %s5727 = sor.u32 256, 16
        %5728 = vbcast.lane.b32.xlu0 %v5718, %s5727
        %v5729 = vpop.permute.xlu0 %5728
        %s5731 = sor.u32 256, 24
        %5732 = vbcast.lane.b32.xlu0 %v5718, %s5731
        %v5733 = vpop.permute.xlu0 %5732
        %v5734 = vlaneseq
        %v5735 = vshrl.u32 %v5734, 7
        %v5736 = vsub.s32 0, %v5735
        %v5737 = vrot.slane %v5228, %v5736
        %5739 = vbcast.lane.b32.xlu0 %v5737, 256
        %v5740 = vpop.permute.xlu0 %5739
        %s5742 = sor.u32 256, 8
        %5743 = vbcast.lane.b32.xlu0 %v5737, %s5742
        %v5744 = vpop.permute.xlu0 %5743
        %s5746 = sor.u32 256, 16
        %5747 = vbcast.lane.b32.xlu0 %v5737, %s5746
        %v5748 = vpop.permute.xlu0 %5747
        %s5750 = sor.u32 256, 24
        %5751 = vbcast.lane.b32.xlu0 %v5737, %s5750
        %v5752 = vpop.permute.xlu0 %5751
        %v5753 = vlaneseq
        %v5754 = vshrl.u32 %v5753, 7
        %v5755 = vsub.s32 1, %v5754
        %v5756 = vrot.slane %v5228, %v5755
        %5758 = vbcast.lane.b32.xlu0 %v5756, 256
        %v5759 = vpop.permute.xlu0 %5758
        %s5761 = sor.u32 256, 8
        %5762 = vbcast.lane.b32.xlu0 %v5756, %s5761
        %v5763 = vpop.permute.xlu0 %5762
        %s5765 = sor.u32 256, 16
        %5766 = vbcast.lane.b32.xlu0 %v5756, %s5765
        %v5767 = vpop.permute.xlu0 %5766
        %s5769 = sor.u32 256, 24
        %5770 = vbcast.lane.b32.xlu0 %v5756, %s5769
        %v5771 = vpop.permute.xlu0 %5770
        %v5772 = vlaneseq
        %v5773 = vshrl.u32 %v5772, 7
        %v5774 = vsub.s32 2, %v5773
        %v5775 = vrot.slane %v5228, %v5774
        %5777 = vbcast.lane.b32.xlu0 %v5775, 256
        %v5778 = vpop.permute.xlu0 %5777
        %s5780 = sor.u32 256, 8
        %5781 = vbcast.lane.b32.xlu0 %v5775, %s5780
        %v5782 = vpop.permute.xlu0 %5781
        %s5784 = sor.u32 256, 16
        %5785 = vbcast.lane.b32.xlu0 %v5775, %s5784
        %v5786 = vpop.permute.xlu0 %5785
        %s5788 = sor.u32 256, 24
        %5789 = vbcast.lane.b32.xlu0 %v5775, %s5788
        %v5790 = vpop.permute.xlu0 %5789
        %v5791 = vlaneseq
        %v5792 = vshrl.u32 %v5791, 7
        %v5793 = vsub.s32 3, %v5792
        %v5794 = vrot.slane %v5228, %v5793
        %5796 = vbcast.lane.b32.xlu0 %v5794, 256
        %v5797 = vpop.permute.xlu0 %5796
        %s5799 = sor.u32 256, 8
        %5800 = vbcast.lane.b32.xlu0 %v5794, %s5799
        %v5801 = vpop.permute.xlu0 %5800
        %s5803 = sor.u32 256, 16
        %5804 = vbcast.lane.b32.xlu0 %v5794, %s5803
        %v5805 = vpop.permute.xlu0 %5804
        %s5807 = sor.u32 256, 24
        %5808 = vbcast.lane.b32.xlu0 %v5794, %s5807
        %v5809 = vpop.permute.xlu0 %5808
        %v5810 = vlaneseq
        %v5811 = vshrl.u32 %v5810, 7
        %v5812 = vsub.s32 4, %v5811
        %v5813 = vrot.slane %v5228, %v5812
        %5815 = vbcast.lane.b32.xlu0 %v5813, 256
        %v5816 = vpop.permute.xlu0 %5815
        %s5818 = sor.u32 256, 8
        %5819 = vbcast.lane.b32.xlu0 %v5813, %s5818
        %v5820 = vpop.permute.xlu0 %5819
        %s5822 = sor.u32 256, 16
        %5823 = vbcast.lane.b32.xlu0 %v5813, %s5822
        %v5824 = vpop.permute.xlu0 %5823
        %s5826 = sor.u32 256, 24
        %5827 = vbcast.lane.b32.xlu0 %v5813, %s5826
        %v5828 = vpop.permute.xlu0 %5827
        %v5829 = vlaneseq
        %v5830 = vshrl.u32 %v5829, 7
        %v5831 = vsub.s32 5, %v5830
        %v5832 = vrot.slane %v5228, %v5831
        %5834 = vbcast.lane.b32.xlu0 %v5832, 256
        %v5835 = vpop.permute.xlu0 %5834
        %s5837 = sor.u32 256, 8
        %5838 = vbcast.lane.b32.xlu0 %v5832, %s5837
        %v5839 = vpop.permute.xlu0 %5838
        %s5841 = sor.u32 256, 16
        %5842 = vbcast.lane.b32.xlu0 %v5832, %s5841
        %v5843 = vpop.permute.xlu0 %5842
        %s5845 = sor.u32 256, 24
        %5846 = vbcast.lane.b32.xlu0 %v5832, %s5845
        %v5847 = vpop.permute.xlu0 %5846
        %v5848 = vlaneseq
        %v5849 = vshrl.u32 %v5848, 7
        %v5850 = vsub.s32 6, %v5849
        %v5851 = vrot.slane %v5228, %v5850
        %5853 = vbcast.lane.b32.xlu0 %v5851, 256
        %v5854 = vpop.permute.xlu0 %5853
        %s5856 = sor.u32 256, 8
        %5857 = vbcast.lane.b32.xlu0 %v5851, %s5856
        %v5858 = vpop.permute.xlu0 %5857
        %s5860 = sor.u32 256, 16
        %5861 = vbcast.lane.b32.xlu0 %v5851, %s5860
        %v5862 = vpop.permute.xlu0 %5861
        %s5864 = sor.u32 256, 24
        %5865 = vbcast.lane.b32.xlu0 %v5851, %s5864
        %v5866 = vpop.permute.xlu0 %5865
        %v5867 = vlaneseq
        %v5868 = vshrl.u32 %v5867, 7
        %v5869 = vsub.s32 7, %v5868
        %v5870 = vrot.slane %v5228, %v5869
        %5872 = vbcast.lane.b32.xlu0 %v5870, 256
        %v5873 = vpop.permute.xlu0 %5872
        %s5875 = sor.u32 256, 8
        %5876 = vbcast.lane.b32.xlu0 %v5870, %s5875
        %v5877 = vpop.permute.xlu0 %5876
        %s5879 = sor.u32 256, 16
        %5880 = vbcast.lane.b32.xlu0 %v5870, %s5879
        %v5881 = vpop.permute.xlu0 %5880
        %s5883 = sor.u32 256, 24
        %5884 = vbcast.lane.b32.xlu0 %v5870, %s5883
        %v5885 = vpop.permute.xlu0 %5884
        %v5886 = vlaneseq
        %v5887 = vshrl.u32 %v5886, 7
        %v5888 = vsub.s32 0, %v5887
        %v5889 = vrot.slane %v5229, %v5888
        %5891 = vbcast.lane.b32.xlu0 %v5889, 256
        %v5892 = vpop.permute.xlu0 %5891
        %s5894 = sor.u32 256, 8
        %5895 = vbcast.lane.b32.xlu0 %v5889, %s5894
        %v5896 = vpop.permute.xlu0 %5895
        %s5898 = sor.u32 256, 16
        %5899 = vbcast.lane.b32.xlu0 %v5889, %s5898
        %v5900 = vpop.permute.xlu0 %5899
        %s5902 = sor.u32 256, 24
        %5903 = vbcast.lane.b32.xlu0 %v5889, %s5902
        %v5904 = vpop.permute.xlu0 %5903
        %v5905 = vlaneseq
        %v5906 = vshrl.u32 %v5905, 7
        %v5907 = vsub.s32 1, %v5906
        %v5908 = vrot.slane %v5229, %v5907
        %5910 = vbcast.lane.b32.xlu0 %v5908, 256
        %v5911 = vpop.permute.xlu0 %5910
        %s5913 = sor.u32 256, 8
        %5914 = vbcast.lane.b32.xlu0 %v5908, %s5913
        %v5915 = vpop.permute.xlu0 %5914
        %s5917 = sor.u32 256, 16
        %5918 = vbcast.lane.b32.xlu0 %v5908, %s5917
        %v5919 = vpop.permute.xlu0 %5918
        %s5921 = sor.u32 256, 24
        %5922 = vbcast.lane.b32.xlu0 %v5908, %s5921
        %v5923 = vpop.permute.xlu0 %5922
        %v5924 = vlaneseq
        %v5925 = vshrl.u32 %v5924, 7
        %v5926 = vsub.s32 2, %v5925
        %v5927 = vrot.slane %v5229, %v5926
        %5929 = vbcast.lane.b32.xlu0 %v5927, 256
        %v5930 = vpop.permute.xlu0 %5929
        %s5932 = sor.u32 256, 8
        %5933 = vbcast.lane.b32.xlu0 %v5927, %s5932
        %v5934 = vpop.permute.xlu0 %5933
        %s5936 = sor.u32 256, 16
        %5937 = vbcast.lane.b32.xlu0 %v5927, %s5936
        %v5938 = vpop.permute.xlu0 %5937
        %s5940 = sor.u32 256, 24
        %5941 = vbcast.lane.b32.xlu0 %v5927, %s5940
        %v5942 = vpop.permute.xlu0 %5941
        %v5943 = vlaneseq
        %v5944 = vshrl.u32 %v5943, 7
        %v5945 = vsub.s32 3, %v5944
        %v5946 = vrot.slane %v5229, %v5945
        %5948 = vbcast.lane.b32.xlu0 %v5946, 256
        %v5949 = vpop.permute.xlu0 %5948
        %s5951 = sor.u32 256, 8
        %5952 = vbcast.lane.b32.xlu0 %v5946, %s5951
        %v5953 = vpop.permute.xlu0 %5952
        %s5955 = sor.u32 256, 16
        %5956 = vbcast.lane.b32.xlu0 %v5946, %s5955
        %v5957 = vpop.permute.xlu0 %5956
        %s5959 = sor.u32 256, 24
        %5960 = vbcast.lane.b32.xlu0 %v5946, %s5959
        %v5961 = vpop.permute.xlu0 %5960
        %v5962 = vlaneseq
        %v5963 = vshrl.u32 %v5962, 7
        %v5964 = vsub.s32 4, %v5963
        %v5965 = vrot.slane %v5229, %v5964
        %5967 = vbcast.lane.b32.xlu0 %v5965, 256
        %v5968 = vpop.permute.xlu0 %5967
        %s5970 = sor.u32 256, 8
        %5971 = vbcast.lane.b32.xlu0 %v5965, %s5970
        %v5972 = vpop.permute.xlu0 %5971
        %s5974 = sor.u32 256, 16
        %5975 = vbcast.lane.b32.xlu0 %v5965, %s5974
        %v5976 = vpop.permute.xlu0 %5975
        %s5978 = sor.u32 256, 24
        %5979 = vbcast.lane.b32.xlu0 %v5965, %s5978
        %v5980 = vpop.permute.xlu0 %5979
        %v5981 = vlaneseq
        %v5982 = vshrl.u32 %v5981, 7
        %v5983 = vsub.s32 5, %v5982
        %v5984 = vrot.slane %v5229, %v5983
        %5986 = vbcast.lane.b32.xlu0 %v5984, 256
        %v5987 = vpop.permute.xlu0 %5986
        %s5989 = sor.u32 256, 8
        %5990 = vbcast.lane.b32.xlu0 %v5984, %s5989
        %v5991 = vpop.permute.xlu0 %5990
        %s5993 = sor.u32 256, 16
        %5994 = vbcast.lane.b32.xlu0 %v5984, %s5993
        %v5995 = vpop.permute.xlu0 %5994
        %s5997 = sor.u32 256, 24
        %5998 = vbcast.lane.b32.xlu0 %v5984, %s5997
        %v5999 = vpop.permute.xlu0 %5998
        %v6000 = vlaneseq
        %v6001 = vshrl.u32 %v6000, 7
        %v6002 = vsub.s32 6, %v6001
        %v6003 = vrot.slane %v5229, %v6002
        %6005 = vbcast.lane.b32.xlu0 %v6003, 256
        %v6006 = vpop.permute.xlu0 %6005
        %s6008 = sor.u32 256, 8
        %6009 = vbcast.lane.b32.xlu0 %v6003, %s6008
        %v6010 = vpop.permute.xlu0 %6009
        %s6012 = sor.u32 256, 16
        %6013 = vbcast.lane.b32.xlu0 %v6003, %s6012
        %v6014 = vpop.permute.xlu0 %6013
        %s6016 = sor.u32 256, 24
        %6017 = vbcast.lane.b32.xlu0 %v6003, %s6016
        %v6018 = vpop.permute.xlu0 %6017
        %v6019 = vlaneseq
        %v6020 = vshrl.u32 %v6019, 7
        %v6021 = vsub.s32 7, %v6020
        %v6022 = vrot.slane %v5229, %v6021
        %6024 = vbcast.lane.b32.xlu0 %v6022, 256
        %v6025 = vpop.permute.xlu0 %6024
        %s6027 = sor.u32 256, 8
        %6028 = vbcast.lane.b32.xlu0 %v6022, %s6027
        %v6029 = vpop.permute.xlu0 %6028
        %s6031 = sor.u32 256, 16
        %6032 = vbcast.lane.b32.xlu0 %v6022, %s6031
        %v6033 = vpop.permute.xlu0 %6032
        %s6035 = sor.u32 256, 24
        %6036 = vbcast.lane.b32.xlu0 %v6022, %s6035
        %v6037 = vpop.permute.xlu0 %6036
        %v6038 = vlaneseq
        %v6039 = vshrl.u32 %v6038, 7
        %v6040 = vsub.s32 0, %v6039
        %v6041 = vrot.slane %v5257, %v6040
        %v6042 = vlaneseq
        %v6043 = vshrl.u32 %v6042, 7
        %v6044 = vsub.s32 0, %v6043
        %v6045 = vrot.slane %v5271, %v6044
        %v6046 = vlaneseq
        %v6047 = vshrl.u32 %v6046, 7
        %v6048 = vsub.s32 0, %v6047
        %v6049 = vrot.slane %v5279, %v6048
        %v6050 = vlaneseq
        %v6051 = vshrl.u32 %v6050, 7
        %v6052 = vsub.s32 0, %v6051
        %v6053 = vrot.slane %v5281, %v6052
        %v6054 = vlaneseq
        %v6055 = vshrl.u32 %v6054, 7
        %v6056 = vsub.s32 0, %v6055
        %v6057 = vrot.slane %v5264, %v6056
        %v6058 = vlaneseq
        %v6059 = vshrl.u32 %v6058, 7
        %v6060 = vsub.s32 0, %v6059
        %v6061 = vrot.slane %v5278, %v6060
        %v6062 = vlaneseq
        %v6063 = vshrl.u32 %v6062, 7
        %v6064 = vsub.s32 0, %v6063
        %v6065 = vrot.slane %v5280, %v6064
        %v6066 = vlaneseq
        %v6067 = vshrl.u32 %v6066, 7
        %v6068 = vsub.s32 0, %v6067
        %v6069 = vrot.slane %v5282, %v6068
        %v6070 = vlaneseq
        %v6071 = vshrl.u32 %v6070, 7
        %v6072 = vsub.s32 0, %v6071
        %v6073 = vrot.slane %v5306, %v6072
        %v6074 = vlaneseq
        %v6075 = vshrl.u32 %v6074, 7
        %v6076 = vsub.s32 0, %v6075
        %v6077 = vrot.slane %v5320, %v6076
        %v6078 = vlaneseq
        %v6079 = vshrl.u32 %v6078, 7
        %v6080 = vsub.s32 0, %v6079
        %v6081 = vrot.slane %v5328, %v6080
        %v6082 = vlaneseq
        %v6083 = vshrl.u32 %v6082, 7
        %v6084 = vsub.s32 0, %v6083
        %v6085 = vrot.slane %v5330, %v6084
        %v6086 = vlaneseq
        %v6087 = vshrl.u32 %v6086, 7
        %v6088 = vsub.s32 0, %v6087
        %v6089 = vrot.slane %v5313, %v6088
        %v6090 = vlaneseq
        %v6091 = vshrl.u32 %v6090, 7
        %v6092 = vsub.s32 0, %v6091
        %v6093 = vrot.slane %v5327, %v6092
        %v6094 = vlaneseq
        %v6095 = vshrl.u32 %v6094, 7
        %v6096 = vsub.s32 0, %v6095
        %v6097 = vrot.slane %v5329, %v6096
        %v6098 = vlaneseq
        %v6099 = vshrl.u32 %v6098, 7
        %v6100 = vsub.s32 0, %v6099
        %v6101 = vrot.slane %v5331, %v6100
        %v6102 = vlaneseq
        %v6103 = vshrl.u32 %v6102, 7
        %v6104 = vsub.s32 0, %v6103
        %v6105 = vrot.slane %v5355, %v6104
        %v6106 = vlaneseq
        %v6107 = vshrl.u32 %v6106, 7
        %v6108 = vsub.s32 0, %v6107
        %v6109 = vrot.slane %v5369, %v6108
        %v6110 = vlaneseq
        %v6111 = vshrl.u32 %v6110, 7
        %v6112 = vsub.s32 0, %v6111
        %v6113 = vrot.slane %v5377, %v6112
        %v6114 = vlaneseq
        %v6115 = vshrl.u32 %v6114, 7
        %v6116 = vsub.s32 0, %v6115
        %v6117 = vrot.slane %v5379, %v6116
        %v6118 = vlaneseq
        %v6119 = vshrl.u32 %v6118, 7
        %v6120 = vsub.s32 0, %v6119
        %v6121 = vrot.slane %v5362, %v6120
        %v6122 = vlaneseq
        %v6123 = vshrl.u32 %v6122, 7
        %v6124 = vsub.s32 0, %v6123
        %v6125 = vrot.slane %v5376, %v6124
        %v6126 = vlaneseq
        %v6127 = vshrl.u32 %v6126, 7
        %v6128 = vsub.s32 0, %v6127
        %v6129 = vrot.slane %v5378, %v6128
        %v6130 = vlaneseq
        %v6131 = vshrl.u32 %v6130, 7
        %v6132 = vsub.s32 0, %v6131
        %v6133 = vrot.slane %v5380, %v6132
        %v6134 = vlaneseq
        %v6135 = vshrl.u32 %v6134, 7
        %v6136 = vsub.s32 0, %v6135
        %v6137 = vrot.slane %v5404, %v6136
        %v6138 = vlaneseq
        %v6139 = vshrl.u32 %v6138, 7
        %v6140 = vsub.s32 0, %v6139
        %v6141 = vrot.slane %v5418, %v6140
        %v6142 = vlaneseq
        %v6143 = vshrl.u32 %v6142, 7
        %v6144 = vsub.s32 0, %v6143
        %v6145 = vrot.slane %v5426, %v6144
        %v6146 = vlaneseq
        %v6147 = vshrl.u32 %v6146, 7
        %v6148 = vsub.s32 0, %v6147
        %v6149 = vrot.slane %v5428, %v6148
        %v6150 = vlaneseq
        %v6151 = vshrl.u32 %v6150, 7
        %v6152 = vsub.s32 0, %v6151
        %v6153 = vrot.slane %v5411, %v6152
        %v6154 = vlaneseq
        %v6155 = vshrl.u32 %v6154, 7
        %v6156 = vsub.s32 0, %v6155
        %v6157 = vrot.slane %v5425, %v6156
        %v6158 = vlaneseq
        %v6159 = vshrl.u32 %v6158, 7
        %v6160 = vsub.s32 0, %v6159
        %v6161 = vrot.slane %v5427, %v6160
        %v6162 = vlaneseq
        %v6163 = vshrl.u32 %v6162, 7
        %v6164 = vsub.s32 0, %v6163
        %v6165 = vrot.slane %v5429, %v6164
        %v6198 = vsub.f32 %v6041, %v5436
        %v6199 = vsub.f32 %v6041, %v5440
        %v6200 = vsub.f32 %v6041, %v5444
        %v6201 = vsub.f32 %v6041, %v5448
        %v6202 = vsub.f32 %v6045, %v5455
        %v6203 = vsub.f32 %v6045, %v5459
        %v6204 = vsub.f32 %v6045, %v5463
        %v6205 = vsub.f32 %v6045, %v5467
        %v6206 = vsub.f32 %v6049, %v5474
        %v6207 = vsub.f32 %v6049, %v5478
        %v6208 = vsub.f32 %v6049, %v5482
        %v6209 = vsub.f32 %v6049, %v5486
        %v6210 = vsub.f32 %v6053, %v5493
        %v6211 = vsub.f32 %v6053, %v5497
        %v6212 = vsub.f32 %v6053, %v5501
        %v6213 = vsub.f32 %v6053, %v5505
        %v6214 = vsub.f32 %v6057, %v5512
        %v6215 = vsub.f32 %v6057, %v5516
        %v6216 = vsub.f32 %v6057, %v5520
        %v6217 = vsub.f32 %v6057, %v5524
        %v6218 = vsub.f32 %v6061, %v5531
        %v6219 = vsub.f32 %v6061, %v5535
        %v6220 = vsub.f32 %v6061, %v5539
        %v6221 = vsub.f32 %v6061, %v5543
        %v6222 = vsub.f32 %v6065, %v5550
        %v6223 = vsub.f32 %v6065, %v5554
        %v6224 = vsub.f32 %v6065, %v5558
        %v6225 = vsub.f32 %v6065, %v5562
        %v6226 = vsub.f32 %v6069, %v5569
        %v6227 = vsub.f32 %v6069, %v5573
        %v6228 = vsub.f32 %v6069, %v5577
        %v6229 = vsub.f32 %v6069, %v5581
        %v6230 = vsub.f32 %v6073, %v5588
        %v6231 = vsub.f32 %v6073, %v5592
        %v6232 = vsub.f32 %v6073, %v5596
        %v6233 = vsub.f32 %v6073, %v5600
        %v6234 = vsub.f32 %v6077, %v5607
        %v6235 = vsub.f32 %v6077, %v5611
        %v6236 = vsub.f32 %v6077, %v5615
        %v6237 = vsub.f32 %v6077, %v5619
        %v6238 = vsub.f32 %v6081, %v5626
        %v6239 = vsub.f32 %v6081, %v5630
        %v6240 = vsub.f32 %v6081, %v5634
        %v6241 = vsub.f32 %v6081, %v5638
        %v6242 = vsub.f32 %v6085, %v5645
        %v6243 = vsub.f32 %v6085, %v5649
        %v6244 = vsub.f32 %v6085, %v5653
        %v6245 = vsub.f32 %v6085, %v5657
        %v6246 = vsub.f32 %v6089, %v5664
        %v6247 = vsub.f32 %v6089, %v5668
        %v6248 = vsub.f32 %v6089, %v5672
        %v6249 = vsub.f32 %v6089, %v5676
        %v6250 = vsub.f32 %v6093, %v5683
        %v6251 = vsub.f32 %v6093, %v5687
        %v6252 = vsub.f32 %v6093, %v5691
        %v6253 = vsub.f32 %v6093, %v5695
        %v6254 = vsub.f32 %v6097, %v5702
        %v6255 = vsub.f32 %v6097, %v5706
        %v6256 = vsub.f32 %v6097, %v5710
        %v6257 = vsub.f32 %v6097, %v5714
        %v6258 = vsub.f32 %v6101, %v5721
        %v6259 = vsub.f32 %v6101, %v5725
        %v6260 = vsub.f32 %v6101, %v5729
        %v6261 = vsub.f32 %v6101, %v5733
        %v6262 = vsub.f32 %v6105, %v5740
        %v6263 = vsub.f32 %v6105, %v5744
        %v6264 = vsub.f32 %v6105, %v5748
        %v6265 = vsub.f32 %v6105, %v5752
        %v6266 = vsub.f32 %v6109, %v5759
        %v6267 = vsub.f32 %v6109, %v5763
        %v6268 = vsub.f32 %v6109, %v5767
        %v6269 = vsub.f32 %v6109, %v5771
        %v6270 = vsub.f32 %v6113, %v5778
        %v6271 = vsub.f32 %v6113, %v5782
        %v6272 = vsub.f32 %v6113, %v5786
        %v6273 = vsub.f32 %v6113, %v5790
        %v6274 = vsub.f32 %v6117, %v5797
        %v6275 = vsub.f32 %v6117, %v5801
        %v6276 = vsub.f32 %v6117, %v5805
        %v6277 = vsub.f32 %v6117, %v5809
        %v6278 = vsub.f32 %v6121, %v5816
        %v6279 = vsub.f32 %v6121, %v5820
        %v6280 = vsub.f32 %v6121, %v5824
        %v6281 = vsub.f32 %v6121, %v5828
        %v6282 = vsub.f32 %v6125, %v5835
        %v6283 = vsub.f32 %v6125, %v5839
        %v6284 = vsub.f32 %v6125, %v5843
        %v6285 = vsub.f32 %v6125, %v5847
        %v6286 = vsub.f32 %v6129, %v5854
        %v6287 = vsub.f32 %v6129, %v5858
        %v6288 = vsub.f32 %v6129, %v5862
        %v6289 = vsub.f32 %v6129, %v5866
        %v6290 = vsub.f32 %v6133, %v5873
        %v6291 = vsub.f32 %v6133, %v5877
        %v6292 = vsub.f32 %v6133, %v5881
        %v6293 = vsub.f32 %v6133, %v5885
        %v6294 = vsub.f32 %v6137, %v5892
        %v6295 = vsub.f32 %v6137, %v5896
        %v6296 = vsub.f32 %v6137, %v5900
        %v6297 = vsub.f32 %v6137, %v5904
        %v6298 = vsub.f32 %v6141, %v5911
        %v6299 = vsub.f32 %v6141, %v5915
        %v6300 = vsub.f32 %v6141, %v5919
        %v6301 = vsub.f32 %v6141, %v5923
        %v6302 = vsub.f32 %v6145, %v5930
        %v6303 = vsub.f32 %v6145, %v5934
        %v6304 = vsub.f32 %v6145, %v5938
        %v6305 = vsub.f32 %v6145, %v5942
        %v6306 = vsub.f32 %v6149, %v5949
        %v6307 = vsub.f32 %v6149, %v5953
        %v6308 = vsub.f32 %v6149, %v5957
        %v6309 = vsub.f32 %v6149, %v5961
        %v6310 = vsub.f32 %v6153, %v5968
        %v6311 = vsub.f32 %v6153, %v5972
        %v6312 = vsub.f32 %v6153, %v5976
        %v6313 = vsub.f32 %v6153, %v5980
        %v6314 = vsub.f32 %v6157, %v5987
        %v6315 = vsub.f32 %v6157, %v5991
        %v6316 = vsub.f32 %v6157, %v5995
        %v6317 = vsub.f32 %v6157, %v5999
        %v6318 = vsub.f32 %v6161, %v6006
        %v6319 = vsub.f32 %v6161, %v6010
        %v6320 = vsub.f32 %v6161, %v6014
        %v6321 = vsub.f32 %v6161, %v6018
        %v6322 = vsub.f32 %v6165, %v6025
        %v6323 = vsub.f32 %v6165, %v6029
        %v6324 = vsub.f32 %v6165, %v6033
        %v6325 = vsub.f32 %v6165, %v6037
        %v6326 = vmax.f32 %v6198, %v6202
        %v6327 = vmax.f32 %v6326, %v6206
        %v6328 = vmax.f32 %v6327, %v6210
        %v6329 = vmax.f32 %v6328, %v6214
        %v6330 = vmax.f32 %v6329, %v6218
        %v6331 = vmax.f32 %v6330, %v6222
        %v6332 = vmax.f32 %v6331, %v6226
        %v6333 = vmax.f32 %v6332, %v6230
        %v6334 = vmax.f32 %v6333, %v6234
        %v6335 = vmax.f32 %v6334, %v6238
        %v6336 = vmax.f32 %v6335, %v6242
        %v6337 = vmax.f32 %v6336, %v6246
        %v6338 = vmax.f32 %v6337, %v6250
        %v6339 = vmax.f32 %v6338, %v6254
        %v6340 = vmax.f32 %v6339, %v6258
        %v6341 = vmax.f32 %v6340, %v6262
        %v6342 = vmax.f32 %v6341, %v6266
        %v6343 = vmax.f32 %v6342, %v6270
        %v6344 = vmax.f32 %v6343, %v6274
        %v6345 = vmax.f32 %v6344, %v6278
        %v6346 = vmax.f32 %v6345, %v6282
        %v6347 = vmax.f32 %v6346, %v6286
        %v6348 = vmax.f32 %v6347, %v6290
        %v6349 = vmax.f32 %v6348, %v6294
        %v6350 = vmax.f32 %v6349, %v6298
        %v6351 = vmax.f32 %v6350, %v6302
        %v6352 = vmax.f32 %v6351, %v6306
        %v6353 = vmax.f32 %v6352, %v6310
        %v6354 = vmax.f32 %v6353, %v6314
        %v6355 = vmax.f32 %v6354, %v6318
        %v6356 = vmax.f32 %v6355, %v6322
        %v6357 = vmax.f32 %v6199, %v6203
        %v6358 = vmax.f32 %v6357, %v6207
        %v6359 = vmax.f32 %v6358, %v6211
        %v6360 = vmax.f32 %v6359, %v6215
        %v6361 = vmax.f32 %v6360, %v6219
        %v6362 = vmax.f32 %v6361, %v6223
        %v6363 = vmax.f32 %v6362, %v6227
        %v6364 = vmax.f32 %v6363, %v6231
        %v6365 = vmax.f32 %v6364, %v6235
        %v6366 = vmax.f32 %v6365, %v6239
        %v6367 = vmax.f32 %v6366, %v6243
        %v6368 = vmax.f32 %v6367, %v6247
        %v6369 = vmax.f32 %v6368, %v6251
        %v6370 = vmax.f32 %v6369, %v6255
        %v6371 = vmax.f32 %v6370, %v6259
        %v6372 = vmax.f32 %v6371, %v6263
        %v6373 = vmax.f32 %v6372, %v6267
        %v6374 = vmax.f32 %v6373, %v6271
        %v6375 = vmax.f32 %v6374, %v6275
        %v6376 = vmax.f32 %v6375, %v6279
        %v6377 = vmax.f32 %v6376, %v6283
        %v6378 = vmax.f32 %v6377, %v6287
        %v6379 = vmax.f32 %v6378, %v6291
        %v6380 = vmax.f32 %v6379, %v6295
        %v6381 = vmax.f32 %v6380, %v6299
        %v6382 = vmax.f32 %v6381, %v6303
        %v6383 = vmax.f32 %v6382, %v6307
        %v6384 = vmax.f32 %v6383, %v6311
        %v6385 = vmax.f32 %v6384, %v6315
        %v6386 = vmax.f32 %v6385, %v6319
        %v6387 = vmax.f32 %v6386, %v6323
        %v6388 = vmax.f32 %v6200, %v6204
        %v6389 = vmax.f32 %v6388, %v6208
        %v6390 = vmax.f32 %v6389, %v6212
        %v6391 = vmax.f32 %v6390, %v6216
        %v6392 = vmax.f32 %v6391, %v6220
        %v6393 = vmax.f32 %v6392, %v6224
        %v6394 = vmax.f32 %v6393, %v6228
        %v6395 = vmax.f32 %v6394, %v6232
        %v6396 = vmax.f32 %v6395, %v6236
        %v6397 = vmax.f32 %v6396, %v6240
        %v6398 = vmax.f32 %v6397, %v6244
        %v6399 = vmax.f32 %v6398, %v6248
        %v6400 = vmax.f32 %v6399, %v6252
        %v6401 = vmax.f32 %v6400, %v6256
        %v6402 = vmax.f32 %v6401, %v6260
        %v6403 = vmax.f32 %v6402, %v6264
        %v6404 = vmax.f32 %v6403, %v6268
        %v6405 = vmax.f32 %v6404, %v6272
        %v6406 = vmax.f32 %v6405, %v6276
        %v6407 = vmax.f32 %v6406, %v6280
        %v6408 = vmax.f32 %v6407, %v6284
        %v6409 = vmax.f32 %v6408, %v6288
        %v6410 = vmax.f32 %v6409, %v6292
        %v6411 = vmax.f32 %v6410, %v6296
        %v6412 = vmax.f32 %v6411, %v6300
        %v6413 = vmax.f32 %v6412, %v6304
        %v6414 = vmax.f32 %v6413, %v6308
        %v6415 = vmax.f32 %v6414, %v6312
        %v6416 = vmax.f32 %v6415, %v6316
        %v6417 = vmax.f32 %v6416, %v6320
        %v6418 = vmax.f32 %v6417, %v6324
        %v6419 = vmax.f32 %v6201, %v6205
        %v6420 = vmax.f32 %v6419, %v6209
        %v6421 = vmax.f32 %v6420, %v6213
        %v6422 = vmax.f32 %v6421, %v6217
        %v6423 = vmax.f32 %v6422, %v6221
        %v6424 = vmax.f32 %v6423, %v6225
        %v6425 = vmax.f32 %v6424, %v6229
        %v6426 = vmax.f32 %v6425, %v6233
        %v6427 = vmax.f32 %v6426, %v6237
        %v6428 = vmax.f32 %v6427, %v6241
        %v6429 = vmax.f32 %v6428, %v6245
        %v6430 = vmax.f32 %v6429, %v6249
        %v6431 = vmax.f32 %v6430, %v6253
        %v6432 = vmax.f32 %v6431, %v6257
        %v6433 = vmax.f32 %v6432, %v6261
        %v6434 = vmax.f32 %v6433, %v6265
        %v6435 = vmax.f32 %v6434, %v6269
        %v6436 = vmax.f32 %v6435, %v6273
        %v6437 = vmax.f32 %v6436, %v6277
        %v6438 = vmax.f32 %v6437, %v6281
        %v6439 = vmax.f32 %v6438, %v6285
        %v6440 = vmax.f32 %v6439, %v6289
        %v6441 = vmax.f32 %v6440, %v6293
        %v6442 = vmax.f32 %v6441, %v6297
        %v6443 = vmax.f32 %v6442, %v6301
        %v6444 = vmax.f32 %v6443, %v6305
        %v6445 = vmax.f32 %v6444, %v6309
        %v6446 = vmax.f32 %v6445, %v6313
        %v6447 = vmax.f32 %v6446, %v6317
        %v6448 = vmax.f32 %v6447, %v6321
        %v6449 = vmax.f32 %v6448, %v6325
        %v6450 = vmax.f32 %v4962, %v6356
        %v6451 = vmax.f32 %v4963, %v6387
        %v6452 = vmax.f32 %v4964, %v6418
        %v6453 = vmax.f32 %v4965, %v6449
        %v6454 = vadd.f32 %v6041, %v5436
        %v6455 = vadd.f32 %v6041, %v5440
        %v6456 = vadd.f32 %v6041, %v5444
        %v6457 = vadd.f32 %v6041, %v5448
        %v6458 = vadd.f32 %v6045, %v5455
        %v6459 = vadd.f32 %v6045, %v5459
        %v6460 = vadd.f32 %v6045, %v5463
        %v6461 = vadd.f32 %v6045, %v5467
        %v6462 = vadd.f32 %v6049, %v5474
        %v6463 = vadd.f32 %v6049, %v5478
        %v6464 = vadd.f32 %v6049, %v5482
        %v6465 = vadd.f32 %v6049, %v5486
        %v6466 = vadd.f32 %v6053, %v5493
        %v6467 = vadd.f32 %v6053, %v5497
        %v6468 = vadd.f32 %v6053, %v5501
        %v6469 = vadd.f32 %v6053, %v5505
        %v6470 = vadd.f32 %v6057, %v5512
        %v6471 = vadd.f32 %v6057, %v5516
        %v6472 = vadd.f32 %v6057, %v5520
        %v6473 = vadd.f32 %v6057, %v5524
        %v6474 = vadd.f32 %v6061, %v5531
        %v6475 = vadd.f32 %v6061, %v5535
        %v6476 = vadd.f32 %v6061, %v5539
        %v6477 = vadd.f32 %v6061, %v5543
        %v6478 = vadd.f32 %v6065, %v5550
        %v6479 = vadd.f32 %v6065, %v5554
        %v6480 = vadd.f32 %v6065, %v5558
        %v6481 = vadd.f32 %v6065, %v5562
        %v6482 = vadd.f32 %v6069, %v5569
        %v6483 = vadd.f32 %v6069, %v5573
        %v6484 = vadd.f32 %v6069, %v5577
        %v6485 = vadd.f32 %v6069, %v5581
        %v6486 = vadd.f32 %v6073, %v5588
        %v6487 = vadd.f32 %v6073, %v5592
        %v6488 = vadd.f32 %v6073, %v5596
        %v6489 = vadd.f32 %v6073, %v5600
        %v6490 = vadd.f32 %v6077, %v5607
        %v6491 = vadd.f32 %v6077, %v5611
        %v6492 = vadd.f32 %v6077, %v5615
        %v6493 = vadd.f32 %v6077, %v5619
        %v6494 = vadd.f32 %v6081, %v5626
        %v6495 = vadd.f32 %v6081, %v5630
        %v6496 = vadd.f32 %v6081, %v5634
        %v6497 = vadd.f32 %v6081, %v5638
        %v6498 = vadd.f32 %v6085, %v5645
        %v6499 = vadd.f32 %v6085, %v5649
        %v6500 = vadd.f32 %v6085, %v5653
        %v6501 = vadd.f32 %v6085, %v5657
        %v6502 = vadd.f32 %v6089, %v5664
        %v6503 = vadd.f32 %v6089, %v5668
        %v6504 = vadd.f32 %v6089, %v5672
        %v6505 = vadd.f32 %v6089, %v5676
        %v6506 = vadd.f32 %v6093, %v5683
        %v6507 = vadd.f32 %v6093, %v5687
        %v6508 = vadd.f32 %v6093, %v5691
        %v6509 = vadd.f32 %v6093, %v5695
        %v6510 = vadd.f32 %v6097, %v5702
        %v6511 = vadd.f32 %v6097, %v5706
        %v6512 = vadd.f32 %v6097, %v5710
        %v6513 = vadd.f32 %v6097, %v5714
        %v6514 = vadd.f32 %v6101, %v5721
        %v6515 = vadd.f32 %v6101, %v5725
        %v6516 = vadd.f32 %v6101, %v5729
        %v6517 = vadd.f32 %v6101, %v5733
        %v6518 = vadd.f32 %v6105, %v5740
        %v6519 = vadd.f32 %v6105, %v5744
        %v6520 = vadd.f32 %v6105, %v5748
        %v6521 = vadd.f32 %v6105, %v5752
        %v6522 = vadd.f32 %v6109, %v5759
        %v6523 = vadd.f32 %v6109, %v5763
        %v6524 = vadd.f32 %v6109, %v5767
        %v6525 = vadd.f32 %v6109, %v5771
        %v6526 = vadd.f32 %v6113, %v5778
        %v6527 = vadd.f32 %v6113, %v5782
        %v6528 = vadd.f32 %v6113, %v5786
        %v6529 = vadd.f32 %v6113, %v5790
        %v6530 = vadd.f32 %v6117, %v5797
        %v6531 = vadd.f32 %v6117, %v5801
        %v6532 = vadd.f32 %v6117, %v5805
        %v6533 = vadd.f32 %v6117, %v5809
        %v6534 = vadd.f32 %v6121, %v5816
        %v6535 = vadd.f32 %v6121, %v5820
        %v6536 = vadd.f32 %v6121, %v5824
        %v6537 = vadd.f32 %v6121, %v5828
        %v6538 = vadd.f32 %v6125, %v5835
        %v6539 = vadd.f32 %v6125, %v5839
        %v6540 = vadd.f32 %v6125, %v5843
        %v6541 = vadd.f32 %v6125, %v5847
        %v6542 = vadd.f32 %v6129, %v5854
        %v6543 = vadd.f32 %v6129, %v5858
        %v6544 = vadd.f32 %v6129, %v5862
        %v6545 = vadd.f32 %v6129, %v5866
        %v6546 = vadd.f32 %v6133, %v5873
        %v6547 = vadd.f32 %v6133, %v5877
        %v6548 = vadd.f32 %v6133, %v5881
        %v6549 = vadd.f32 %v6133, %v5885
        %v6550 = vadd.f32 %v6137, %v5892
        %v6551 = vadd.f32 %v6137, %v5896
        %v6552 = vadd.f32 %v6137, %v5900
        %v6553 = vadd.f32 %v6137, %v5904
        %v6554 = vadd.f32 %v6141, %v5911
        %v6555 = vadd.f32 %v6141, %v5915
        %v6556 = vadd.f32 %v6141, %v5919
        %v6557 = vadd.f32 %v6141, %v5923
        %v6558 = vadd.f32 %v6145, %v5930
        %v6559 = vadd.f32 %v6145, %v5934
        %v6560 = vadd.f32 %v6145, %v5938
        %v6561 = vadd.f32 %v6145, %v5942
        %v6562 = vadd.f32 %v6149, %v5949
        %v6563 = vadd.f32 %v6149, %v5953
        %v6564 = vadd.f32 %v6149, %v5957
        %v6565 = vadd.f32 %v6149, %v5961
        %v6566 = vadd.f32 %v6153, %v5968
        %v6567 = vadd.f32 %v6153, %v5972
        %v6568 = vadd.f32 %v6153, %v5976
        %v6569 = vadd.f32 %v6153, %v5980
        %v6570 = vadd.f32 %v6157, %v5987
        %v6571 = vadd.f32 %v6157, %v5991
        %v6572 = vadd.f32 %v6157, %v5995
        %v6573 = vadd.f32 %v6157, %v5999
        %v6574 = vadd.f32 %v6161, %v6006
        %v6575 = vadd.f32 %v6161, %v6010
        %v6576 = vadd.f32 %v6161, %v6014
        %v6577 = vadd.f32 %v6161, %v6018
        %v6578 = vadd.f32 %v6165, %v6025
        %v6579 = vadd.f32 %v6165, %v6029
        %v6580 = vadd.f32 %v6165, %v6033
        %v6581 = vadd.f32 %v6165, %v6037
        %v6582 = vmin.f32 %v6454, %v6458
        %v6583 = vmin.f32 %v6582, %v6462
        %v6584 = vmin.f32 %v6583, %v6466
        %v6585 = vmin.f32 %v6584, %v6470
        %v6586 = vmin.f32 %v6585, %v6474
        %v6587 = vmin.f32 %v6586, %v6478
        %v6588 = vmin.f32 %v6587, %v6482
        %v6589 = vmin.f32 %v6588, %v6486
        %v6590 = vmin.f32 %v6589, %v6490
        %v6591 = vmin.f32 %v6590, %v6494
        %v6592 = vmin.f32 %v6591, %v6498
        %v6593 = vmin.f32 %v6592, %v6502
        %v6594 = vmin.f32 %v6593, %v6506
        %v6595 = vmin.f32 %v6594, %v6510
        %v6596 = vmin.f32 %v6595, %v6514
        %v6597 = vmin.f32 %v6596, %v6518
        %v6598 = vmin.f32 %v6597, %v6522
        %v6599 = vmin.f32 %v6598, %v6526
        %v6600 = vmin.f32 %v6599, %v6530
        %v6601 = vmin.f32 %v6600, %v6534
        %v6602 = vmin.f32 %v6601, %v6538
        %v6603 = vmin.f32 %v6602, %v6542
        %v6604 = vmin.f32 %v6603, %v6546
        %v6605 = vmin.f32 %v6604, %v6550
        %v6606 = vmin.f32 %v6605, %v6554
        %v6607 = vmin.f32 %v6606, %v6558
        %v6608 = vmin.f32 %v6607, %v6562
        %v6609 = vmin.f32 %v6608, %v6566
        %v6610 = vmin.f32 %v6609, %v6570
        %v6611 = vmin.f32 %v6610, %v6574
        %v6612 = vmin.f32 %v6611, %v6578
        %v6613 = vmin.f32 %v6455, %v6459
        %v6614 = vmin.f32 %v6613, %v6463
        %v6615 = vmin.f32 %v6614, %v6467
        %v6616 = vmin.f32 %v6615, %v6471
        %v6617 = vmin.f32 %v6616, %v6475
        %v6618 = vmin.f32 %v6617, %v6479
        %v6619 = vmin.f32 %v6618, %v6483
        %v6620 = vmin.f32 %v6619, %v6487
        %v6621 = vmin.f32 %v6620, %v6491
        %v6622 = vmin.f32 %v6621, %v6495
        %v6623 = vmin.f32 %v6622, %v6499
        %v6624 = vmin.f32 %v6623, %v6503
        %v6625 = vmin.f32 %v6624, %v6507
        %v6626 = vmin.f32 %v6625, %v6511
        %v6627 = vmin.f32 %v6626, %v6515
        %v6628 = vmin.f32 %v6627, %v6519
        %v6629 = vmin.f32 %v6628, %v6523
        %v6630 = vmin.f32 %v6629, %v6527
        %v6631 = vmin.f32 %v6630, %v6531
        %v6632 = vmin.f32 %v6631, %v6535
        %v6633 = vmin.f32 %v6632, %v6539
        %v6634 = vmin.f32 %v6633, %v6543
        %v6635 = vmin.f32 %v6634, %v6547
        %v6636 = vmin.f32 %v6635, %v6551
        %v6637 = vmin.f32 %v6636, %v6555
        %v6638 = vmin.f32 %v6637, %v6559
        %v6639 = vmin.f32 %v6638, %v6563
        %v6640 = vmin.f32 %v6639, %v6567
        %v6641 = vmin.f32 %v6640, %v6571
        %v6642 = vmin.f32 %v6641, %v6575
        %v6643 = vmin.f32 %v6642, %v6579
        %v6644 = vmin.f32 %v6456, %v6460
        %v6645 = vmin.f32 %v6644, %v6464
        %v6646 = vmin.f32 %v6645, %v6468
        %v6647 = vmin.f32 %v6646, %v6472
        %v6648 = vmin.f32 %v6647, %v6476
        %v6649 = vmin.f32 %v6648, %v6480
        %v6650 = vmin.f32 %v6649, %v6484
        %v6651 = vmin.f32 %v6650, %v6488
        %v6652 = vmin.f32 %v6651, %v6492
        %v6653 = vmin.f32 %v6652, %v6496
        %v6654 = vmin.f32 %v6653, %v6500
        %v6655 = vmin.f32 %v6654, %v6504
        %v6656 = vmin.f32 %v6655, %v6508
        %v6657 = vmin.f32 %v6656, %v6512
        %v6658 = vmin.f32 %v6657, %v6516
        %v6659 = vmin.f32 %v6658, %v6520
        %v6660 = vmin.f32 %v6659, %v6524
        %v6661 = vmin.f32 %v6660, %v6528
        %v6662 = vmin.f32 %v6661, %v6532
        %v6663 = vmin.f32 %v6662, %v6536
        %v6664 = vmin.f32 %v6663, %v6540
        %v6665 = vmin.f32 %v6664, %v6544
        %v6666 = vmin.f32 %v6665, %v6548
        %v6667 = vmin.f32 %v6666, %v6552
        %v6668 = vmin.f32 %v6667, %v6556
        %v6669 = vmin.f32 %v6668, %v6560
        %v6670 = vmin.f32 %v6669, %v6564
        %v6671 = vmin.f32 %v6670, %v6568
        %v6672 = vmin.f32 %v6671, %v6572
        %v6673 = vmin.f32 %v6672, %v6576
        %v6674 = vmin.f32 %v6673, %v6580
        %v6675 = vmin.f32 %v6457, %v6461
        %v6676 = vmin.f32 %v6675, %v6465
        %v6677 = vmin.f32 %v6676, %v6469
        %v6678 = vmin.f32 %v6677, %v6473
        %v6679 = vmin.f32 %v6678, %v6477
        %v6680 = vmin.f32 %v6679, %v6481
        %v6681 = vmin.f32 %v6680, %v6485
        %v6682 = vmin.f32 %v6681, %v6489
        %v6683 = vmin.f32 %v6682, %v6493
        %v6684 = vmin.f32 %v6683, %v6497
        %v6685 = vmin.f32 %v6684, %v6501
        %v6686 = vmin.f32 %v6685, %v6505
        %v6687 = vmin.f32 %v6686, %v6509
        %v6688 = vmin.f32 %v6687, %v6513
        %v6689 = vmin.f32 %v6688, %v6517
        %v6690 = vmin.f32 %v6689, %v6521
        %v6691 = vmin.f32 %v6690, %v6525
        %v6692 = vmin.f32 %v6691, %v6529
        %v6693 = vmin.f32 %v6692, %v6533
        %v6694 = vmin.f32 %v6693, %v6537
        %v6695 = vmin.f32 %v6694, %v6541
        %v6696 = vmin.f32 %v6695, %v6545
        %v6697 = vmin.f32 %v6696, %v6549
        %v6698 = vmin.f32 %v6697, %v6553
        %v6699 = vmin.f32 %v6698, %v6557
        %v6700 = vmin.f32 %v6699, %v6561
        %v6701 = vmin.f32 %v6700, %v6565
        %v6702 = vmin.f32 %v6701, %v6569
        %v6703 = vmin.f32 %v6702, %v6573
        %v6704 = vmin.f32 %v6703, %v6577
        %v6705 = vmin.f32 %v6704, %v6581
        %v6706 = vmin.f32 %v5218, %v6612
        %v6707 = vmin.f32 %v5219, %v6643
        %v6708 = vmin.f32 %v5220, %v6674
        %v6709 = vmin.f32 %v5221, %v6705
        %v6710 = vsub.f32 1.0, %v859
        %v6711 = vsub.f32 1.0, %v860
        %v6712 = vsub.f32 1.0, %v861
        %v6713 = vsub.f32 1.0, %v862
        %v6714 = vmul.f32 %v6710, 1e+30
        %v6715 = vmul.f32 %v6711, 1e+30
        %v6716 = vmul.f32 %v6712, 1e+30
        %v6717 = vmul.f32 %v6713, 1e+30
        %v6722 = vcombine.high %v1952, %v1952
        %v6724 = vunpack.c.l.s4 1966171168
        %v6725 = vunpack.c.0.s8 %v6724
        %v6726 = vlaneseq
        %v6727 = vshrl.u32 %v6726, 7
        %v6728 = vsub.s32 %v6725, %v6727
        %v6729 = vrot.slane %v1952, %v6728
        %v6731 = vunpack.c.l.s4 1966171168
        %v6732 = vunpack.c.0.s8 %v6731
        %v6733 = vlaneseq
        %v6734 = vshrl.u32 %v6733, 7
        %v6735 = vsub.s32 %v6732, %v6734
        %v6736 = vrot.slane %v6722, %v6735
        %v6737 = vcombine.high %v6729, %v6729
        %v6738 = vcombine.high %v6736, %v6736
        %v6740 = vunpack.c.l.s4 1966171168
        %v6741 = vunpack.c.0.s8 %v6740
        %v6742 = vlaneseq
        %v6743 = vshrl.u32 %v6742, 7
        %v6744 = vsub.s32 %v6741, %v6743
        %v6745 = vrot.slane %v6729, %v6744
        %v6747 = vunpack.c.l.s4 1966171168
        %v6748 = vunpack.c.0.s8 %v6747
        %v6749 = vlaneseq
        %v6750 = vshrl.u32 %v6749, 7
        %v6751 = vsub.s32 %v6748, %v6750
        %v6752 = vrot.slane %v6736, %v6751
        %v6754 = vunpack.c.l.s4 1966171168
        %v6755 = vunpack.c.0.s8 %v6754
        %v6756 = vlaneseq
        %v6757 = vshrl.u32 %v6756, 7
        %v6758 = vsub.s32 %v6755, %v6757
        %v6759 = vrot.slane %v6737, %v6758
        %v6761 = vunpack.c.l.s4 1966171168
        %v6762 = vunpack.c.0.s8 %v6761
        %v6763 = vlaneseq
        %v6764 = vshrl.u32 %v6763, 7
        %v6765 = vsub.s32 %v6762, %v6764
        %v6766 = vrot.slane %v6738, %v6765
        %v6767 = vcombine.high %v6745, %v6745
        %v6768 = vcombine.high %v6752, %v6752
        %v6769 = vcombine.high %v6759, %v6759
        %v6770 = vcombine.high %v6766, %v6766
        %v6771 = vcombine.high %v1953, %v1953
        %v6773 = vunpack.c.l.s4 1966171168
        %v6774 = vunpack.c.0.s8 %v6773
        %v6775 = vlaneseq
        %v6776 = vshrl.u32 %v6775, 7
        %v6777 = vsub.s32 %v6774, %v6776
        %v6778 = vrot.slane %v1953, %v6777
        %v6780 = vunpack.c.l.s4 1966171168
        %v6781 = vunpack.c.0.s8 %v6780
        %v6782 = vlaneseq
        %v6783 = vshrl.u32 %v6782, 7
        %v6784 = vsub.s32 %v6781, %v6783
        %v6785 = vrot.slane %v6771, %v6784
        %v6786 = vcombine.high %v6778, %v6778
        %v6787 = vcombine.high %v6785, %v6785
        %v6789 = vunpack.c.l.s4 1966171168
        %v6790 = vunpack.c.0.s8 %v6789
        %v6791 = vlaneseq
        %v6792 = vshrl.u32 %v6791, 7
        %v6793 = vsub.s32 %v6790, %v6792
        %v6794 = vrot.slane %v6778, %v6793
        %v6796 = vunpack.c.l.s4 1966171168
        %v6797 = vunpack.c.0.s8 %v6796
        %v6798 = vlaneseq
        %v6799 = vshrl.u32 %v6798, 7
        %v6800 = vsub.s32 %v6797, %v6799
        %v6801 = vrot.slane %v6785, %v6800
        %v6803 = vunpack.c.l.s4 1966171168
        %v6804 = vunpack.c.0.s8 %v6803
        %v6805 = vlaneseq
        %v6806 = vshrl.u32 %v6805, 7
        %v6807 = vsub.s32 %v6804, %v6806
        %v6808 = vrot.slane %v6786, %v6807
        %v6810 = vunpack.c.l.s4 1966171168
        %v6811 = vunpack.c.0.s8 %v6810
        %v6812 = vlaneseq
        %v6813 = vshrl.u32 %v6812, 7
        %v6814 = vsub.s32 %v6811, %v6813
        %v6815 = vrot.slane %v6787, %v6814
        %v6816 = vcombine.high %v6794, %v6794
        %v6817 = vcombine.high %v6801, %v6801
        %v6818 = vcombine.high %v6808, %v6808
        %v6819 = vcombine.high %v6815, %v6815
        %v6820 = vcombine.high %v1954, %v1954
        %v6822 = vunpack.c.l.s4 1966171168
        %v6823 = vunpack.c.0.s8 %v6822
        %v6824 = vlaneseq
        %v6825 = vshrl.u32 %v6824, 7
        %v6826 = vsub.s32 %v6823, %v6825
        %v6827 = vrot.slane %v1954, %v6826
        %v6829 = vunpack.c.l.s4 1966171168
        %v6830 = vunpack.c.0.s8 %v6829
        %v6831 = vlaneseq
        %v6832 = vshrl.u32 %v6831, 7
        %v6833 = vsub.s32 %v6830, %v6832
        %v6834 = vrot.slane %v6820, %v6833
        %v6835 = vcombine.high %v6827, %v6827
        %v6836 = vcombine.high %v6834, %v6834
        %v6838 = vunpack.c.l.s4 1966171168
        %v6839 = vunpack.c.0.s8 %v6838
        %v6840 = vlaneseq
        %v6841 = vshrl.u32 %v6840, 7
        %v6842 = vsub.s32 %v6839, %v6841
        %v6843 = vrot.slane %v6827, %v6842
        %v6845 = vunpack.c.l.s4 1966171168
        %v6846 = vunpack.c.0.s8 %v6845
        %v6847 = vlaneseq
        %v6848 = vshrl.u32 %v6847, 7
        %v6849 = vsub.s32 %v6846, %v6848
        %v6850 = vrot.slane %v6834, %v6849
        %v6852 = vunpack.c.l.s4 1966171168
        %v6853 = vunpack.c.0.s8 %v6852
        %v6854 = vlaneseq
        %v6855 = vshrl.u32 %v6854, 7
        %v6856 = vsub.s32 %v6853, %v6855
        %v6857 = vrot.slane %v6835, %v6856
        %v6859 = vunpack.c.l.s4 1966171168
        %v6860 = vunpack.c.0.s8 %v6859
        %v6861 = vlaneseq
        %v6862 = vshrl.u32 %v6861, 7
        %v6863 = vsub.s32 %v6860, %v6862
        %v6864 = vrot.slane %v6836, %v6863
        %v6865 = vcombine.high %v6843, %v6843
        %v6866 = vcombine.high %v6850, %v6850
        %v6867 = vcombine.high %v6857, %v6857
        %v6868 = vcombine.high %v6864, %v6864
        %v6869 = vcombine.high %v1955, %v1955
        %v6871 = vunpack.c.l.s4 1966171168
        %v6872 = vunpack.c.0.s8 %v6871
        %v6873 = vlaneseq
        %v6874 = vshrl.u32 %v6873, 7
        %v6875 = vsub.s32 %v6872, %v6874
        %v6876 = vrot.slane %v1955, %v6875
        %v6878 = vunpack.c.l.s4 1966171168
        %v6879 = vunpack.c.0.s8 %v6878
        %v6880 = vlaneseq
        %v6881 = vshrl.u32 %v6880, 7
        %v6882 = vsub.s32 %v6879, %v6881
        %v6883 = vrot.slane %v6869, %v6882
        %v6884 = vcombine.high %v6876, %v6876
        %v6885 = vcombine.high %v6883, %v6883
        %v6887 = vunpack.c.l.s4 1966171168
        %v6888 = vunpack.c.0.s8 %v6887
        %v6889 = vlaneseq
        %v6890 = vshrl.u32 %v6889, 7
        %v6891 = vsub.s32 %v6888, %v6890
        %v6892 = vrot.slane %v6876, %v6891
        %v6894 = vunpack.c.l.s4 1966171168
        %v6895 = vunpack.c.0.s8 %v6894
        %v6896 = vlaneseq
        %v6897 = vshrl.u32 %v6896, 7
        %v6898 = vsub.s32 %v6895, %v6897
        %v6899 = vrot.slane %v6883, %v6898
        %v6901 = vunpack.c.l.s4 1966171168
        %v6902 = vunpack.c.0.s8 %v6901
        %v6903 = vlaneseq
        %v6904 = vshrl.u32 %v6903, 7
        %v6905 = vsub.s32 %v6902, %v6904
        %v6906 = vrot.slane %v6884, %v6905
        %v6908 = vunpack.c.l.s4 1966171168
        %v6909 = vunpack.c.0.s8 %v6908
        %v6910 = vlaneseq
        %v6911 = vshrl.u32 %v6910, 7
        %v6912 = vsub.s32 %v6909, %v6911
        %v6913 = vrot.slane %v6885, %v6912
        %v6914 = vcombine.high %v6892, %v6892
        %v6915 = vcombine.high %v6899, %v6899
        %v6916 = vcombine.high %v6906, %v6906
        %v6917 = vcombine.high %v6913, %v6913
        %v6918 = vlaneseq
        %v6919 = vshrl.u32 %v6918, 7
        %v6920 = vsub.s32 0, %v6919
        %v6921 = vrot.slane %v6714, %v6920
        %6923 = vbcast.lane.b32.xlu0 %v6921, 256
        %v6924 = vpop.permute.xlu0 %6923
        %s6926 = sor.u32 256, 8
        %6927 = vbcast.lane.b32.xlu0 %v6921, %s6926
        %v6928 = vpop.permute.xlu0 %6927
        %s6930 = sor.u32 256, 16
        %6931 = vbcast.lane.b32.xlu0 %v6921, %s6930
        %v6932 = vpop.permute.xlu0 %6931
        %s6934 = sor.u32 256, 24
        %6935 = vbcast.lane.b32.xlu0 %v6921, %s6934
        %v6936 = vpop.permute.xlu0 %6935
        %v6937 = vlaneseq
        %v6938 = vshrl.u32 %v6937, 7
        %v6939 = vsub.s32 1, %v6938
        %v6940 = vrot.slane %v6714, %v6939
        %6942 = vbcast.lane.b32.xlu0 %v6940, 256
        %v6943 = vpop.permute.xlu0 %6942
        %s6945 = sor.u32 256, 8
        %6946 = vbcast.lane.b32.xlu0 %v6940, %s6945
        %v6947 = vpop.permute.xlu0 %6946
        %s6949 = sor.u32 256, 16
        %6950 = vbcast.lane.b32.xlu0 %v6940, %s6949
        %v6951 = vpop.permute.xlu0 %6950
        %s6953 = sor.u32 256, 24
        %6954 = vbcast.lane.b32.xlu0 %v6940, %s6953
        %v6955 = vpop.permute.xlu0 %6954
        %v6956 = vlaneseq
        %v6957 = vshrl.u32 %v6956, 7
        %v6958 = vsub.s32 2, %v6957
        %v6959 = vrot.slane %v6714, %v6958
        %6961 = vbcast.lane.b32.xlu0 %v6959, 256
        %v6962 = vpop.permute.xlu0 %6961
        %s6964 = sor.u32 256, 8
        %6965 = vbcast.lane.b32.xlu0 %v6959, %s6964
        %v6966 = vpop.permute.xlu0 %6965
        %s6968 = sor.u32 256, 16
        %6969 = vbcast.lane.b32.xlu0 %v6959, %s6968
        %v6970 = vpop.permute.xlu0 %6969
        %s6972 = sor.u32 256, 24
        %6973 = vbcast.lane.b32.xlu0 %v6959, %s6972
        %v6974 = vpop.permute.xlu0 %6973
        %v6975 = vlaneseq
        %v6976 = vshrl.u32 %v6975, 7
        %v6977 = vsub.s32 3, %v6976
        %v6978 = vrot.slane %v6714, %v6977
        %6980 = vbcast.lane.b32.xlu0 %v6978, 256
        %v6981 = vpop.permute.xlu0 %6980
        %s6983 = sor.u32 256, 8
        %6984 = vbcast.lane.b32.xlu0 %v6978, %s6983
        %v6985 = vpop.permute.xlu0 %6984
        %s6987 = sor.u32 256, 16
        %6988 = vbcast.lane.b32.xlu0 %v6978, %s6987
        %v6989 = vpop.permute.xlu0 %6988
        %s6991 = sor.u32 256, 24
        %6992 = vbcast.lane.b32.xlu0 %v6978, %s6991
        %v6993 = vpop.permute.xlu0 %6992
        %v6994 = vlaneseq
        %v6995 = vshrl.u32 %v6994, 7
        %v6996 = vsub.s32 4, %v6995
        %v6997 = vrot.slane %v6714, %v6996
        %6999 = vbcast.lane.b32.xlu0 %v6997, 256
        %v7000 = vpop.permute.xlu0 %6999
        %s7002 = sor.u32 256, 8
        %7003 = vbcast.lane.b32.xlu0 %v6997, %s7002
        %v7004 = vpop.permute.xlu0 %7003
        %s7006 = sor.u32 256, 16
        %7007 = vbcast.lane.b32.xlu0 %v6997, %s7006
        %v7008 = vpop.permute.xlu0 %7007
        %s7010 = sor.u32 256, 24
        %7011 = vbcast.lane.b32.xlu0 %v6997, %s7010
        %v7012 = vpop.permute.xlu0 %7011
        %v7013 = vlaneseq
        %v7014 = vshrl.u32 %v7013, 7
        %v7015 = vsub.s32 5, %v7014
        %v7016 = vrot.slane %v6714, %v7015
        %7018 = vbcast.lane.b32.xlu0 %v7016, 256
        %v7019 = vpop.permute.xlu0 %7018
        %s7021 = sor.u32 256, 8
        %7022 = vbcast.lane.b32.xlu0 %v7016, %s7021
        %v7023 = vpop.permute.xlu0 %7022
        %s7025 = sor.u32 256, 16
        %7026 = vbcast.lane.b32.xlu0 %v7016, %s7025
        %v7027 = vpop.permute.xlu0 %7026
        %s7029 = sor.u32 256, 24
        %7030 = vbcast.lane.b32.xlu0 %v7016, %s7029
        %v7031 = vpop.permute.xlu0 %7030
        %v7032 = vlaneseq
        %v7033 = vshrl.u32 %v7032, 7
        %v7034 = vsub.s32 6, %v7033
        %v7035 = vrot.slane %v6714, %v7034
        %7037 = vbcast.lane.b32.xlu0 %v7035, 256
        %v7038 = vpop.permute.xlu0 %7037
        %s7040 = sor.u32 256, 8
        %7041 = vbcast.lane.b32.xlu0 %v7035, %s7040
        %v7042 = vpop.permute.xlu0 %7041
        %s7044 = sor.u32 256, 16
        %7045 = vbcast.lane.b32.xlu0 %v7035, %s7044
        %v7046 = vpop.permute.xlu0 %7045
        %s7048 = sor.u32 256, 24
        %7049 = vbcast.lane.b32.xlu0 %v7035, %s7048
        %v7050 = vpop.permute.xlu0 %7049
        %v7051 = vlaneseq
        %v7052 = vshrl.u32 %v7051, 7
        %v7053 = vsub.s32 7, %v7052
        %v7054 = vrot.slane %v6714, %v7053
        %7056 = vbcast.lane.b32.xlu0 %v7054, 256
        %v7057 = vpop.permute.xlu0 %7056
        %s7059 = sor.u32 256, 8
        %7060 = vbcast.lane.b32.xlu0 %v7054, %s7059
        %v7061 = vpop.permute.xlu0 %7060
        %s7063 = sor.u32 256, 16
        %7064 = vbcast.lane.b32.xlu0 %v7054, %s7063
        %v7065 = vpop.permute.xlu0 %7064
        %s7067 = sor.u32 256, 24
        %7068 = vbcast.lane.b32.xlu0 %v7054, %s7067
        %v7069 = vpop.permute.xlu0 %7068
        %v7070 = vlaneseq
        %v7071 = vshrl.u32 %v7070, 7
        %v7072 = vsub.s32 0, %v7071
        %v7073 = vrot.slane %v6715, %v7072
        %7075 = vbcast.lane.b32.xlu0 %v7073, 256
        %v7076 = vpop.permute.xlu0 %7075
        %s7078 = sor.u32 256, 8
        %7079 = vbcast.lane.b32.xlu0 %v7073, %s7078
        %v7080 = vpop.permute.xlu0 %7079
        %s7082 = sor.u32 256, 16
        %7083 = vbcast.lane.b32.xlu0 %v7073, %s7082
        %v7084 = vpop.permute.xlu0 %7083
        %s7086 = sor.u32 256, 24
        %7087 = vbcast.lane.b32.xlu0 %v7073, %s7086
        %v7088 = vpop.permute.xlu0 %7087
        %v7089 = vlaneseq
        %v7090 = vshrl.u32 %v7089, 7
        %v7091 = vsub.s32 1, %v7090
        %v7092 = vrot.slane %v6715, %v7091
        %7094 = vbcast.lane.b32.xlu0 %v7092, 256
        %v7095 = vpop.permute.xlu0 %7094
        %s7097 = sor.u32 256, 8
        %7098 = vbcast.lane.b32.xlu0 %v7092, %s7097
        %v7099 = vpop.permute.xlu0 %7098
        %s7101 = sor.u32 256, 16
        %7102 = vbcast.lane.b32.xlu0 %v7092, %s7101
        %v7103 = vpop.permute.xlu0 %7102
        %s7105 = sor.u32 256, 24
        %7106 = vbcast.lane.b32.xlu0 %v7092, %s7105
        %v7107 = vpop.permute.xlu0 %7106
        %v7108 = vlaneseq
        %v7109 = vshrl.u32 %v7108, 7
        %v7110 = vsub.s32 2, %v7109
        %v7111 = vrot.slane %v6715, %v7110
        %7113 = vbcast.lane.b32.xlu0 %v7111, 256
        %v7114 = vpop.permute.xlu0 %7113
        %s7116 = sor.u32 256, 8
        %7117 = vbcast.lane.b32.xlu0 %v7111, %s7116
        %v7118 = vpop.permute.xlu0 %7117
        %s7120 = sor.u32 256, 16
        %7121 = vbcast.lane.b32.xlu0 %v7111, %s7120
        %v7122 = vpop.permute.xlu0 %7121
        %s7124 = sor.u32 256, 24
        %7125 = vbcast.lane.b32.xlu0 %v7111, %s7124
        %v7126 = vpop.permute.xlu0 %7125
        %v7127 = vlaneseq
        %v7128 = vshrl.u32 %v7127, 7
        %v7129 = vsub.s32 3, %v7128
        %v7130 = vrot.slane %v6715, %v7129
        %7132 = vbcast.lane.b32.xlu0 %v7130, 256
        %v7133 = vpop.permute.xlu0 %7132
        %s7135 = sor.u32 256, 8
        %7136 = vbcast.lane.b32.xlu0 %v7130, %s7135
        %v7137 = vpop.permute.xlu0 %7136
        %s7139 = sor.u32 256, 16
        %7140 = vbcast.lane.b32.xlu0 %v7130, %s7139
        %v7141 = vpop.permute.xlu0 %7140
        %s7143 = sor.u32 256, 24
        %7144 = vbcast.lane.b32.xlu0 %v7130, %s7143
        %v7145 = vpop.permute.xlu0 %7144
        %v7146 = vlaneseq
        %v7147 = vshrl.u32 %v7146, 7
        %v7148 = vsub.s32 4, %v7147
        %v7149 = vrot.slane %v6715, %v7148
        %7151 = vbcast.lane.b32.xlu0 %v7149, 256
        %v7152 = vpop.permute.xlu0 %7151
        %s7154 = sor.u32 256, 8
        %7155 = vbcast.lane.b32.xlu0 %v7149, %s7154
        %v7156 = vpop.permute.xlu0 %7155
        %s7158 = sor.u32 256, 16
        %7159 = vbcast.lane.b32.xlu0 %v7149, %s7158
        %v7160 = vpop.permute.xlu0 %7159
        %s7162 = sor.u32 256, 24
        %7163 = vbcast.lane.b32.xlu0 %v7149, %s7162
        %v7164 = vpop.permute.xlu0 %7163
        %v7165 = vlaneseq
        %v7166 = vshrl.u32 %v7165, 7
        %v7167 = vsub.s32 5, %v7166
        %v7168 = vrot.slane %v6715, %v7167
        %7170 = vbcast.lane.b32.xlu0 %v7168, 256
        %v7171 = vpop.permute.xlu0 %7170
        %s7173 = sor.u32 256, 8
        %7174 = vbcast.lane.b32.xlu0 %v7168, %s7173
        %v7175 = vpop.permute.xlu0 %7174
        %s7177 = sor.u32 256, 16
        %7178 = vbcast.lane.b32.xlu0 %v7168, %s7177
        %v7179 = vpop.permute.xlu0 %7178
        %s7181 = sor.u32 256, 24
        %7182 = vbcast.lane.b32.xlu0 %v7168, %s7181
        %v7183 = vpop.permute.xlu0 %7182
        %v7184 = vlaneseq
        %v7185 = vshrl.u32 %v7184, 7
        %v7186 = vsub.s32 6, %v7185
        %v7187 = vrot.slane %v6715, %v7186
        %7189 = vbcast.lane.b32.xlu0 %v7187, 256
        %v7190 = vpop.permute.xlu0 %7189
        %s7192 = sor.u32 256, 8
        %7193 = vbcast.lane.b32.xlu0 %v7187, %s7192
        %v7194 = vpop.permute.xlu0 %7193
        %s7196 = sor.u32 256, 16
        %7197 = vbcast.lane.b32.xlu0 %v7187, %s7196
        %v7198 = vpop.permute.xlu0 %7197
        %s7200 = sor.u32 256, 24
        %7201 = vbcast.lane.b32.xlu0 %v7187, %s7200
        %v7202 = vpop.permute.xlu0 %7201
        %v7203 = vlaneseq
        %v7204 = vshrl.u32 %v7203, 7
        %v7205 = vsub.s32 7, %v7204
        %v7206 = vrot.slane %v6715, %v7205
        %7208 = vbcast.lane.b32.xlu0 %v7206, 256
        %v7209 = vpop.permute.xlu0 %7208
        %s7211 = sor.u32 256, 8
        %7212 = vbcast.lane.b32.xlu0 %v7206, %s7211
        %v7213 = vpop.permute.xlu0 %7212
        %s7215 = sor.u32 256, 16
        %7216 = vbcast.lane.b32.xlu0 %v7206, %s7215
        %v7217 = vpop.permute.xlu0 %7216
        %s7219 = sor.u32 256, 24
        %7220 = vbcast.lane.b32.xlu0 %v7206, %s7219
        %v7221 = vpop.permute.xlu0 %7220
        %v7222 = vlaneseq
        %v7223 = vshrl.u32 %v7222, 7
        %v7224 = vsub.s32 0, %v7223
        %v7225 = vrot.slane %v6716, %v7224
        %7227 = vbcast.lane.b32.xlu0 %v7225, 256
        %v7228 = vpop.permute.xlu0 %7227
        %s7230 = sor.u32 256, 8
        %7231 = vbcast.lane.b32.xlu0 %v7225, %s7230
        %v7232 = vpop.permute.xlu0 %7231
        %s7234 = sor.u32 256, 16
        %7235 = vbcast.lane.b32.xlu0 %v7225, %s7234
        %v7236 = vpop.permute.xlu0 %7235
        %s7238 = sor.u32 256, 24
        %7239 = vbcast.lane.b32.xlu0 %v7225, %s7238
        %v7240 = vpop.permute.xlu0 %7239
        %v7241 = vlaneseq
        %v7242 = vshrl.u32 %v7241, 7
        %v7243 = vsub.s32 1, %v7242
        %v7244 = vrot.slane %v6716, %v7243
        %7246 = vbcast.lane.b32.xlu0 %v7244, 256
        %v7247 = vpop.permute.xlu0 %7246
        %s7249 = sor.u32 256, 8
        %7250 = vbcast.lane.b32.xlu0 %v7244, %s7249
        %v7251 = vpop.permute.xlu0 %7250
        %s7253 = sor.u32 256, 16
        %7254 = vbcast.lane.b32.xlu0 %v7244, %s7253
        %v7255 = vpop.permute.xlu0 %7254
        %s7257 = sor.u32 256, 24
        %7258 = vbcast.lane.b32.xlu0 %v7244, %s7257
        %v7259 = vpop.permute.xlu0 %7258
        %v7260 = vlaneseq
        %v7261 = vshrl.u32 %v7260, 7
        %v7262 = vsub.s32 2, %v7261
        %v7263 = vrot.slane %v6716, %v7262
        %7265 = vbcast.lane.b32.xlu0 %v7263, 256
        %v7266 = vpop.permute.xlu0 %7265
        %s7268 = sor.u32 256, 8
        %7269 = vbcast.lane.b32.xlu0 %v7263, %s7268
        %v7270 = vpop.permute.xlu0 %7269
        %s7272 = sor.u32 256, 16
        %7273 = vbcast.lane.b32.xlu0 %v7263, %s7272
        %v7274 = vpop.permute.xlu0 %7273
        %s7276 = sor.u32 256, 24
        %7277 = vbcast.lane.b32.xlu0 %v7263, %s7276
        %v7278 = vpop.permute.xlu0 %7277
        %v7279 = vlaneseq
        %v7280 = vshrl.u32 %v7279, 7
        %v7281 = vsub.s32 3, %v7280
        %v7282 = vrot.slane %v6716, %v7281
        %7284 = vbcast.lane.b32.xlu0 %v7282, 256
        %v7285 = vpop.permute.xlu0 %7284
        %s7287 = sor.u32 256, 8
        %7288 = vbcast.lane.b32.xlu0 %v7282, %s7287
        %v7289 = vpop.permute.xlu0 %7288
        %s7291 = sor.u32 256, 16
        %7292 = vbcast.lane.b32.xlu0 %v7282, %s7291
        %v7293 = vpop.permute.xlu0 %7292
        %s7295 = sor.u32 256, 24
        %7296 = vbcast.lane.b32.xlu0 %v7282, %s7295
        %v7297 = vpop.permute.xlu0 %7296
        %v7298 = vlaneseq
        %v7299 = vshrl.u32 %v7298, 7
        %v7300 = vsub.s32 4, %v7299
        %v7301 = vrot.slane %v6716, %v7300
        %7303 = vbcast.lane.b32.xlu0 %v7301, 256
        %v7304 = vpop.permute.xlu0 %7303
        %s7306 = sor.u32 256, 8
        %7307 = vbcast.lane.b32.xlu0 %v7301, %s7306
        %v7308 = vpop.permute.xlu0 %7307
        %s7310 = sor.u32 256, 16
        %7311 = vbcast.lane.b32.xlu0 %v7301, %s7310
        %v7312 = vpop.permute.xlu0 %7311
        %s7314 = sor.u32 256, 24
        %7315 = vbcast.lane.b32.xlu0 %v7301, %s7314
        %v7316 = vpop.permute.xlu0 %7315
        %v7317 = vlaneseq
        %v7318 = vshrl.u32 %v7317, 7
        %v7319 = vsub.s32 5, %v7318
        %v7320 = vrot.slane %v6716, %v7319
        %7322 = vbcast.lane.b32.xlu0 %v7320, 256
        %v7323 = vpop.permute.xlu0 %7322
        %s7325 = sor.u32 256, 8
        %7326 = vbcast.lane.b32.xlu0 %v7320, %s7325
        %v7327 = vpop.permute.xlu0 %7326
        %s7329 = sor.u32 256, 16
        %7330 = vbcast.lane.b32.xlu0 %v7320, %s7329
        %v7331 = vpop.permute.xlu0 %7330
        %s7333 = sor.u32 256, 24
        %7334 = vbcast.lane.b32.xlu0 %v7320, %s7333
        %v7335 = vpop.permute.xlu0 %7334
        %v7336 = vlaneseq
        %v7337 = vshrl.u32 %v7336, 7
        %v7338 = vsub.s32 6, %v7337
        %v7339 = vrot.slane %v6716, %v7338
        %7341 = vbcast.lane.b32.xlu0 %v7339, 256
        %v7342 = vpop.permute.xlu0 %7341
        %s7344 = sor.u32 256, 8
        %7345 = vbcast.lane.b32.xlu0 %v7339, %s7344
        %v7346 = vpop.permute.xlu0 %7345
        %s7348 = sor.u32 256, 16
        %7349 = vbcast.lane.b32.xlu0 %v7339, %s7348
        %v7350 = vpop.permute.xlu0 %7349
        %s7352 = sor.u32 256, 24
        %7353 = vbcast.lane.b32.xlu0 %v7339, %s7352
        %v7354 = vpop.permute.xlu0 %7353
        %v7355 = vlaneseq
        %v7356 = vshrl.u32 %v7355, 7
        %v7357 = vsub.s32 7, %v7356
        %v7358 = vrot.slane %v6716, %v7357
        %7360 = vbcast.lane.b32.xlu0 %v7358, 256
        %v7361 = vpop.permute.xlu0 %7360
        %s7363 = sor.u32 256, 8
        %7364 = vbcast.lane.b32.xlu0 %v7358, %s7363
        %v7365 = vpop.permute.xlu0 %7364
        %s7367 = sor.u32 256, 16
        %7368 = vbcast.lane.b32.xlu0 %v7358, %s7367
        %v7369 = vpop.permute.xlu0 %7368
        %s7371 = sor.u32 256, 24
        %7372 = vbcast.lane.b32.xlu0 %v7358, %s7371
        %v7373 = vpop.permute.xlu0 %7372
        %v7374 = vlaneseq
        %v7375 = vshrl.u32 %v7374, 7
        %v7376 = vsub.s32 0, %v7375
        %v7377 = vrot.slane %v6717, %v7376
        %7379 = vbcast.lane.b32.xlu0 %v7377, 256
        %v7380 = vpop.permute.xlu0 %7379
        %s7382 = sor.u32 256, 8
        %7383 = vbcast.lane.b32.xlu0 %v7377, %s7382
        %v7384 = vpop.permute.xlu0 %7383
        %s7386 = sor.u32 256, 16
        %7387 = vbcast.lane.b32.xlu0 %v7377, %s7386
        %v7388 = vpop.permute.xlu0 %7387
        %s7390 = sor.u32 256, 24
        %7391 = vbcast.lane.b32.xlu0 %v7377, %s7390
        %v7392 = vpop.permute.xlu0 %7391
        %v7393 = vlaneseq
        %v7394 = vshrl.u32 %v7393, 7
        %v7395 = vsub.s32 1, %v7394
        %v7396 = vrot.slane %v6717, %v7395
        %7398 = vbcast.lane.b32.xlu0 %v7396, 256
        %v7399 = vpop.permute.xlu0 %7398
        %s7401 = sor.u32 256, 8
        %7402 = vbcast.lane.b32.xlu0 %v7396, %s7401
        %v7403 = vpop.permute.xlu0 %7402
        %s7405 = sor.u32 256, 16
        %7406 = vbcast.lane.b32.xlu0 %v7396, %s7405
        %v7407 = vpop.permute.xlu0 %7406
        %s7409 = sor.u32 256, 24
        %7410 = vbcast.lane.b32.xlu0 %v7396, %s7409
        %v7411 = vpop.permute.xlu0 %7410
        %v7412 = vlaneseq
        %v7413 = vshrl.u32 %v7412, 7
        %v7414 = vsub.s32 2, %v7413
        %v7415 = vrot.slane %v6717, %v7414
        %7417 = vbcast.lane.b32.xlu0 %v7415, 256
        %v7418 = vpop.permute.xlu0 %7417
        %s7420 = sor.u32 256, 8
        %7421 = vbcast.lane.b32.xlu0 %v7415, %s7420
        %v7422 = vpop.permute.xlu0 %7421
        %s7424 = sor.u32 256, 16
        %7425 = vbcast.lane.b32.xlu0 %v7415, %s7424
        %v7426 = vpop.permute.xlu0 %7425
        %s7428 = sor.u32 256, 24
        %7429 = vbcast.lane.b32.xlu0 %v7415, %s7428
        %v7430 = vpop.permute.xlu0 %7429
        %v7431 = vlaneseq
        %v7432 = vshrl.u32 %v7431, 7
        %v7433 = vsub.s32 3, %v7432
        %v7434 = vrot.slane %v6717, %v7433
        %7436 = vbcast.lane.b32.xlu0 %v7434, 256
        %v7437 = vpop.permute.xlu0 %7436
        %s7439 = sor.u32 256, 8
        %7440 = vbcast.lane.b32.xlu0 %v7434, %s7439
        %v7441 = vpop.permute.xlu0 %7440
        %s7443 = sor.u32 256, 16
        %7444 = vbcast.lane.b32.xlu0 %v7434, %s7443
        %v7445 = vpop.permute.xlu0 %7444
        %s7447 = sor.u32 256, 24
        %7448 = vbcast.lane.b32.xlu0 %v7434, %s7447
        %v7449 = vpop.permute.xlu0 %7448
        %v7450 = vlaneseq
        %v7451 = vshrl.u32 %v7450, 7
        %v7452 = vsub.s32 4, %v7451
        %v7453 = vrot.slane %v6717, %v7452
        %7455 = vbcast.lane.b32.xlu0 %v7453, 256
        %v7456 = vpop.permute.xlu0 %7455
        %s7458 = sor.u32 256, 8
        %7459 = vbcast.lane.b32.xlu0 %v7453, %s7458
        %v7460 = vpop.permute.xlu0 %7459
        %s7462 = sor.u32 256, 16
        %7463 = vbcast.lane.b32.xlu0 %v7453, %s7462
        %v7464 = vpop.permute.xlu0 %7463
        %s7466 = sor.u32 256, 24
        %7467 = vbcast.lane.b32.xlu0 %v7453, %s7466
        %v7468 = vpop.permute.xlu0 %7467
        %v7469 = vlaneseq
        %v7470 = vshrl.u32 %v7469, 7
        %v7471 = vsub.s32 5, %v7470
        %v7472 = vrot.slane %v6717, %v7471
        %7474 = vbcast.lane.b32.xlu0 %v7472, 256
        %v7475 = vpop.permute.xlu0 %7474
        %s7477 = sor.u32 256, 8
        %7478 = vbcast.lane.b32.xlu0 %v7472, %s7477
        %v7479 = vpop.permute.xlu0 %7478
        %s7481 = sor.u32 256, 16
        %7482 = vbcast.lane.b32.xlu0 %v7472, %s7481
        %v7483 = vpop.permute.xlu0 %7482
        %s7485 = sor.u32 256, 24
        %7486 = vbcast.lane.b32.xlu0 %v7472, %s7485
        %v7487 = vpop.permute.xlu0 %7486
        %v7488 = vlaneseq
        %v7489 = vshrl.u32 %v7488, 7
        %v7490 = vsub.s32 6, %v7489
        %v7491 = vrot.slane %v6717, %v7490
        %7493 = vbcast.lane.b32.xlu0 %v7491, 256
        %v7494 = vpop.permute.xlu0 %7493
        %s7496 = sor.u32 256, 8
        %7497 = vbcast.lane.b32.xlu0 %v7491, %s7496
        %v7498 = vpop.permute.xlu0 %7497
        %s7500 = sor.u32 256, 16
        %7501 = vbcast.lane.b32.xlu0 %v7491, %s7500
        %v7502 = vpop.permute.xlu0 %7501
        %s7504 = sor.u32 256, 24
        %7505 = vbcast.lane.b32.xlu0 %v7491, %s7504
        %v7506 = vpop.permute.xlu0 %7505
        %v7507 = vlaneseq
        %v7508 = vshrl.u32 %v7507, 7
        %v7509 = vsub.s32 7, %v7508
        %v7510 = vrot.slane %v6717, %v7509
        %7512 = vbcast.lane.b32.xlu0 %v7510, 256
        %v7513 = vpop.permute.xlu0 %7512
        %s7515 = sor.u32 256, 8
        %7516 = vbcast.lane.b32.xlu0 %v7510, %s7515
        %v7517 = vpop.permute.xlu0 %7516
        %s7519 = sor.u32 256, 16
        %7520 = vbcast.lane.b32.xlu0 %v7510, %s7519
        %v7521 = vpop.permute.xlu0 %7520
        %s7523 = sor.u32 256, 24
        %7524 = vbcast.lane.b32.xlu0 %v7510, %s7523
        %v7525 = vpop.permute.xlu0 %7524
        %v7526 = vlaneseq
        %v7527 = vshrl.u32 %v7526, 7
        %v7528 = vsub.s32 0, %v7527
        %v7529 = vrot.slane %v6745, %v7528
        %v7530 = vlaneseq
        %v7531 = vshrl.u32 %v7530, 7
        %v7532 = vsub.s32 0, %v7531
        %v7533 = vrot.slane %v6759, %v7532
        %v7534 = vlaneseq
        %v7535 = vshrl.u32 %v7534, 7
        %v7536 = vsub.s32 0, %v7535
        %v7537 = vrot.slane %v6767, %v7536
        %v7538 = vlaneseq
        %v7539 = vshrl.u32 %v7538, 7
        %v7540 = vsub.s32 0, %v7539
        %v7541 = vrot.slane %v6769, %v7540
        %v7542 = vlaneseq
        %v7543 = vshrl.u32 %v7542, 7
        %v7544 = vsub.s32 0, %v7543
        %v7545 = vrot.slane %v6752, %v7544
        %v7546 = vlaneseq
        %v7547 = vshrl.u32 %v7546, 7
        %v7548 = vsub.s32 0, %v7547
        %v7549 = vrot.slane %v6766, %v7548
        %v7550 = vlaneseq
        %v7551 = vshrl.u32 %v7550, 7
        %v7552 = vsub.s32 0, %v7551
        %v7553 = vrot.slane %v6768, %v7552
        %v7554 = vlaneseq
        %v7555 = vshrl.u32 %v7554, 7
        %v7556 = vsub.s32 0, %v7555
        %v7557 = vrot.slane %v6770, %v7556
        %v7558 = vlaneseq
        %v7559 = vshrl.u32 %v7558, 7
        %v7560 = vsub.s32 0, %v7559
        %v7561 = vrot.slane %v6794, %v7560
        %v7562 = vlaneseq
        %v7563 = vshrl.u32 %v7562, 7
        %v7564 = vsub.s32 0, %v7563
        %v7565 = vrot.slane %v6808, %v7564
        %v7566 = vlaneseq
        %v7567 = vshrl.u32 %v7566, 7
        %v7568 = vsub.s32 0, %v7567
        %v7569 = vrot.slane %v6816, %v7568
        %v7570 = vlaneseq
        %v7571 = vshrl.u32 %v7570, 7
        %v7572 = vsub.s32 0, %v7571
        %v7573 = vrot.slane %v6818, %v7572
        %v7574 = vlaneseq
        %v7575 = vshrl.u32 %v7574, 7
        %v7576 = vsub.s32 0, %v7575
        %v7577 = vrot.slane %v6801, %v7576
        %v7578 = vlaneseq
        %v7579 = vshrl.u32 %v7578, 7
        %v7580 = vsub.s32 0, %v7579
        %v7581 = vrot.slane %v6815, %v7580
        %v7582 = vlaneseq
        %v7583 = vshrl.u32 %v7582, 7
        %v7584 = vsub.s32 0, %v7583
        %v7585 = vrot.slane %v6817, %v7584
        %v7586 = vlaneseq
        %v7587 = vshrl.u32 %v7586, 7
        %v7588 = vsub.s32 0, %v7587
        %v7589 = vrot.slane %v6819, %v7588
        %v7590 = vlaneseq
        %v7591 = vshrl.u32 %v7590, 7
        %v7592 = vsub.s32 0, %v7591
        %v7593 = vrot.slane %v6843, %v7592
        %v7594 = vlaneseq
        %v7595 = vshrl.u32 %v7594, 7
        %v7596 = vsub.s32 0, %v7595
        %v7597 = vrot.slane %v6857, %v7596
        %v7598 = vlaneseq
        %v7599 = vshrl.u32 %v7598, 7
        %v7600 = vsub.s32 0, %v7599
        %v7601 = vrot.slane %v6865, %v7600
        %v7602 = vlaneseq
        %v7603 = vshrl.u32 %v7602, 7
        %v7604 = vsub.s32 0, %v7603
        %v7605 = vrot.slane %v6867, %v7604
        %v7606 = vlaneseq
        %v7607 = vshrl.u32 %v7606, 7
        %v7608 = vsub.s32 0, %v7607
        %v7609 = vrot.slane %v6850, %v7608
        %v7610 = vlaneseq
        %v7611 = vshrl.u32 %v7610, 7
        %v7612 = vsub.s32 0, %v7611
        %v7613 = vrot.slane %v6864, %v7612
        %v7614 = vlaneseq
        %v7615 = vshrl.u32 %v7614, 7
        %v7616 = vsub.s32 0, %v7615
        %v7617 = vrot.slane %v6866, %v7616
        %v7618 = vlaneseq
        %v7619 = vshrl.u32 %v7618, 7
        %v7620 = vsub.s32 0, %v7619
        %v7621 = vrot.slane %v6868, %v7620
        %v7622 = vlaneseq
        %v7623 = vshrl.u32 %v7622, 7
        %v7624 = vsub.s32 0, %v7623
        %v7625 = vrot.slane %v6892, %v7624
        %v7626 = vlaneseq
        %v7627 = vshrl.u32 %v7626, 7
        %v7628 = vsub.s32 0, %v7627
        %v7629 = vrot.slane %v6906, %v7628
        %v7630 = vlaneseq
        %v7631 = vshrl.u32 %v7630, 7
        %v7632 = vsub.s32 0, %v7631
        %v7633 = vrot.slane %v6914, %v7632
        %v7634 = vlaneseq
        %v7635 = vshrl.u32 %v7634, 7
        %v7636 = vsub.s32 0, %v7635
        %v7637 = vrot.slane %v6916, %v7636
        %v7638 = vlaneseq
        %v7639 = vshrl.u32 %v7638, 7
        %v7640 = vsub.s32 0, %v7639
        %v7641 = vrot.slane %v6899, %v7640
        %v7642 = vlaneseq
        %v7643 = vshrl.u32 %v7642, 7
        %v7644 = vsub.s32 0, %v7643
        %v7645 = vrot.slane %v6913, %v7644
        %v7646 = vlaneseq
        %v7647 = vshrl.u32 %v7646, 7
        %v7648 = vsub.s32 0, %v7647
        %v7649 = vrot.slane %v6915, %v7648
        %v7650 = vlaneseq
        %v7651 = vshrl.u32 %v7650, 7
        %v7652 = vsub.s32 0, %v7651
        %v7653 = vrot.slane %v6917, %v7652
        %v7686 = vsub.f32 %v7529, %v6924
        %v7687 = vsub.f32 %v7529, %v6928
        %v7688 = vsub.f32 %v7529, %v6932
        %v7689 = vsub.f32 %v7529, %v6936
        %v7690 = vsub.f32 %v7533, %v6943
        %v7691 = vsub.f32 %v7533, %v6947
        %v7692 = vsub.f32 %v7533, %v6951
        %v7693 = vsub.f32 %v7533, %v6955
        %v7694 = vsub.f32 %v7537, %v6962
        %v7695 = vsub.f32 %v7537, %v6966
        %v7696 = vsub.f32 %v7537, %v6970
        %v7697 = vsub.f32 %v7537, %v6974
        %v7698 = vsub.f32 %v7541, %v6981
        %v7699 = vsub.f32 %v7541, %v6985
        %v7700 = vsub.f32 %v7541, %v6989
        %v7701 = vsub.f32 %v7541, %v6993
        %v7702 = vsub.f32 %v7545, %v7000
        %v7703 = vsub.f32 %v7545, %v7004
        %v7704 = vsub.f32 %v7545, %v7008
        %v7705 = vsub.f32 %v7545, %v7012
        %v7706 = vsub.f32 %v7549, %v7019
        %v7707 = vsub.f32 %v7549, %v7023
        %v7708 = vsub.f32 %v7549, %v7027
        %v7709 = vsub.f32 %v7549, %v7031
        %v7710 = vsub.f32 %v7553, %v7038
        %v7711 = vsub.f32 %v7553, %v7042
        %v7712 = vsub.f32 %v7553, %v7046
        %v7713 = vsub.f32 %v7553, %v7050
        %v7714 = vsub.f32 %v7557, %v7057
        %v7715 = vsub.f32 %v7557, %v7061
        %v7716 = vsub.f32 %v7557, %v7065
        %v7717 = vsub.f32 %v7557, %v7069
        %v7718 = vsub.f32 %v7561, %v7076
        %v7719 = vsub.f32 %v7561, %v7080
        %v7720 = vsub.f32 %v7561, %v7084
        %v7721 = vsub.f32 %v7561, %v7088
        %v7722 = vsub.f32 %v7565, %v7095
        %v7723 = vsub.f32 %v7565, %v7099
        %v7724 = vsub.f32 %v7565, %v7103
        %v7725 = vsub.f32 %v7565, %v7107
        %v7726 = vsub.f32 %v7569, %v7114
        %v7727 = vsub.f32 %v7569, %v7118
        %v7728 = vsub.f32 %v7569, %v7122
        %v7729 = vsub.f32 %v7569, %v7126
        %v7730 = vsub.f32 %v7573, %v7133
        %v7731 = vsub.f32 %v7573, %v7137
        %v7732 = vsub.f32 %v7573, %v7141
        %v7733 = vsub.f32 %v7573, %v7145
        %v7734 = vsub.f32 %v7577, %v7152
        %v7735 = vsub.f32 %v7577, %v7156
        %v7736 = vsub.f32 %v7577, %v7160
        %v7737 = vsub.f32 %v7577, %v7164
        %v7738 = vsub.f32 %v7581, %v7171
        %v7739 = vsub.f32 %v7581, %v7175
        %v7740 = vsub.f32 %v7581, %v7179
        %v7741 = vsub.f32 %v7581, %v7183
        %v7742 = vsub.f32 %v7585, %v7190
        %v7743 = vsub.f32 %v7585, %v7194
        %v7744 = vsub.f32 %v7585, %v7198
        %v7745 = vsub.f32 %v7585, %v7202
        %v7746 = vsub.f32 %v7589, %v7209
        %v7747 = vsub.f32 %v7589, %v7213
        %v7748 = vsub.f32 %v7589, %v7217
        %v7749 = vsub.f32 %v7589, %v7221
        %v7750 = vsub.f32 %v7593, %v7228
        %v7751 = vsub.f32 %v7593, %v7232
        %v7752 = vsub.f32 %v7593, %v7236
        %v7753 = vsub.f32 %v7593, %v7240
        %v7754 = vsub.f32 %v7597, %v7247
        %v7755 = vsub.f32 %v7597, %v7251
        %v7756 = vsub.f32 %v7597, %v7255
        %v7757 = vsub.f32 %v7597, %v7259
        %v7758 = vsub.f32 %v7601, %v7266
        %v7759 = vsub.f32 %v7601, %v7270
        %v7760 = vsub.f32 %v7601, %v7274
        %v7761 = vsub.f32 %v7601, %v7278
        %v7762 = vsub.f32 %v7605, %v7285
        %v7763 = vsub.f32 %v7605, %v7289
        %v7764 = vsub.f32 %v7605, %v7293
        %v7765 = vsub.f32 %v7605, %v7297
        %v7766 = vsub.f32 %v7609, %v7304
        %v7767 = vsub.f32 %v7609, %v7308
        %v7768 = vsub.f32 %v7609, %v7312
        %v7769 = vsub.f32 %v7609, %v7316
        %v7770 = vsub.f32 %v7613, %v7323
        %v7771 = vsub.f32 %v7613, %v7327
        %v7772 = vsub.f32 %v7613, %v7331
        %v7773 = vsub.f32 %v7613, %v7335
        %v7774 = vsub.f32 %v7617, %v7342
        %v7775 = vsub.f32 %v7617, %v7346
        %v7776 = vsub.f32 %v7617, %v7350
        %v7777 = vsub.f32 %v7617, %v7354
        %v7778 = vsub.f32 %v7621, %v7361
        %v7779 = vsub.f32 %v7621, %v7365
        %v7780 = vsub.f32 %v7621, %v7369
        %v7781 = vsub.f32 %v7621, %v7373
        %v7782 = vsub.f32 %v7625, %v7380
        %v7783 = vsub.f32 %v7625, %v7384
        %v7784 = vsub.f32 %v7625, %v7388
        %v7785 = vsub.f32 %v7625, %v7392
        %v7786 = vsub.f32 %v7629, %v7399
        %v7787 = vsub.f32 %v7629, %v7403
        %v7788 = vsub.f32 %v7629, %v7407
        %v7789 = vsub.f32 %v7629, %v7411
        %v7790 = vsub.f32 %v7633, %v7418
        %v7791 = vsub.f32 %v7633, %v7422
        %v7792 = vsub.f32 %v7633, %v7426
        %v7793 = vsub.f32 %v7633, %v7430
        %v7794 = vsub.f32 %v7637, %v7437
        %v7795 = vsub.f32 %v7637, %v7441
        %v7796 = vsub.f32 %v7637, %v7445
        %v7797 = vsub.f32 %v7637, %v7449
        %v7798 = vsub.f32 %v7641, %v7456
        %v7799 = vsub.f32 %v7641, %v7460
        %v7800 = vsub.f32 %v7641, %v7464
        %v7801 = vsub.f32 %v7641, %v7468
        %v7802 = vsub.f32 %v7645, %v7475
        %v7803 = vsub.f32 %v7645, %v7479
        %v7804 = vsub.f32 %v7645, %v7483
        %v7805 = vsub.f32 %v7645, %v7487
        %v7806 = vsub.f32 %v7649, %v7494
        %v7807 = vsub.f32 %v7649, %v7498
        %v7808 = vsub.f32 %v7649, %v7502
        %v7809 = vsub.f32 %v7649, %v7506
        %v7810 = vsub.f32 %v7653, %v7513
        %v7811 = vsub.f32 %v7653, %v7517
        %v7812 = vsub.f32 %v7653, %v7521
        %v7813 = vsub.f32 %v7653, %v7525
        %v7814 = vmax.f32 %v7686, %v7690
        %v7815 = vmax.f32 %v7814, %v7694
        %v7816 = vmax.f32 %v7815, %v7698
        %v7817 = vmax.f32 %v7816, %v7702
        %v7818 = vmax.f32 %v7817, %v7706
        %v7819 = vmax.f32 %v7818, %v7710
        %v7820 = vmax.f32 %v7819, %v7714
        %v7821 = vmax.f32 %v7820, %v7718
        %v7822 = vmax.f32 %v7821, %v7722
        %v7823 = vmax.f32 %v7822, %v7726
        %v7824 = vmax.f32 %v7823, %v7730
        %v7825 = vmax.f32 %v7824, %v7734
        %v7826 = vmax.f32 %v7825, %v7738
        %v7827 = vmax.f32 %v7826, %v7742
        %v7828 = vmax.f32 %v7827, %v7746
        %v7829 = vmax.f32 %v7828, %v7750
        %v7830 = vmax.f32 %v7829, %v7754
        %v7831 = vmax.f32 %v7830, %v7758
        %v7832 = vmax.f32 %v7831, %v7762
        %v7833 = vmax.f32 %v7832, %v7766
        %v7834 = vmax.f32 %v7833, %v7770
        %v7835 = vmax.f32 %v7834, %v7774
        %v7836 = vmax.f32 %v7835, %v7778
        %v7837 = vmax.f32 %v7836, %v7782
        %v7838 = vmax.f32 %v7837, %v7786
        %v7839 = vmax.f32 %v7838, %v7790
        %v7840 = vmax.f32 %v7839, %v7794
        %v7841 = vmax.f32 %v7840, %v7798
        %v7842 = vmax.f32 %v7841, %v7802
        %v7843 = vmax.f32 %v7842, %v7806
        %v7844 = vmax.f32 %v7843, %v7810
        %v7845 = vmax.f32 %v7687, %v7691
        %v7846 = vmax.f32 %v7845, %v7695
        %v7847 = vmax.f32 %v7846, %v7699
        %v7848 = vmax.f32 %v7847, %v7703
        %v7849 = vmax.f32 %v7848, %v7707
        %v7850 = vmax.f32 %v7849, %v7711
        %v7851 = vmax.f32 %v7850, %v7715
        %v7852 = vmax.f32 %v7851, %v7719
        %v7853 = vmax.f32 %v7852, %v7723
        %v7854 = vmax.f32 %v7853, %v7727
        %v7855 = vmax.f32 %v7854, %v7731
        %v7856 = vmax.f32 %v7855, %v7735
        %v7857 = vmax.f32 %v7856, %v7739
        %v7858 = vmax.f32 %v7857, %v7743
        %v7859 = vmax.f32 %v7858, %v7747
        %v7860 = vmax.f32 %v7859, %v7751
        %v7861 = vmax.f32 %v7860, %v7755
        %v7862 = vmax.f32 %v7861, %v7759
        %v7863 = vmax.f32 %v7862, %v7763
        %v7864 = vmax.f32 %v7863, %v7767
        %v7865 = vmax.f32 %v7864, %v7771
        %v7866 = vmax.f32 %v7865, %v7775
        %v7867 = vmax.f32 %v7866, %v7779
        %v7868 = vmax.f32 %v7867, %v7783
        %v7869 = vmax.f32 %v7868, %v7787
        %v7870 = vmax.f32 %v7869, %v7791
        %v7871 = vmax.f32 %v7870, %v7795
        %v7872 = vmax.f32 %v7871, %v7799
        %v7873 = vmax.f32 %v7872, %v7803
        %v7874 = vmax.f32 %v7873, %v7807
        %v7875 = vmax.f32 %v7874, %v7811
        %v7876 = vmax.f32 %v7688, %v7692
        %v7877 = vmax.f32 %v7876, %v7696
        %v7878 = vmax.f32 %v7877, %v7700
        %v7879 = vmax.f32 %v7878, %v7704
        %v7880 = vmax.f32 %v7879, %v7708
        %v7881 = vmax.f32 %v7880, %v7712
        %v7882 = vmax.f32 %v7881, %v7716
        %v7883 = vmax.f32 %v7882, %v7720
        %v7884 = vmax.f32 %v7883, %v7724
        %v7885 = vmax.f32 %v7884, %v7728
        %v7886 = vmax.f32 %v7885, %v7732
        %v7887 = vmax.f32 %v7886, %v7736
        %v7888 = vmax.f32 %v7887, %v7740
        %v7889 = vmax.f32 %v7888, %v7744
        %v7890 = vmax.f32 %v7889, %v7748
        %v7891 = vmax.f32 %v7890, %v7752
        %v7892 = vmax.f32 %v7891, %v7756
        %v7893 = vmax.f32 %v7892, %v7760
        %v7894 = vmax.f32 %v7893, %v7764
        %v7895 = vmax.f32 %v7894, %v7768
        %v7896 = vmax.f32 %v7895, %v7772
        %v7897 = vmax.f32 %v7896, %v7776
        %v7898 = vmax.f32 %v7897, %v7780
        %v7899 = vmax.f32 %v7898, %v7784
        %v7900 = vmax.f32 %v7899, %v7788
        %v7901 = vmax.f32 %v7900, %v7792
        %v7902 = vmax.f32 %v7901, %v7796
        %v7903 = vmax.f32 %v7902, %v7800
        %v7904 = vmax.f32 %v7903, %v7804
        %v7905 = vmax.f32 %v7904, %v7808
        %v7906 = vmax.f32 %v7905, %v7812
        %v7907 = vmax.f32 %v7689, %v7693
        %v7908 = vmax.f32 %v7907, %v7697
        %v7909 = vmax.f32 %v7908, %v7701
        %v7910 = vmax.f32 %v7909, %v7705
        %v7911 = vmax.f32 %v7910, %v7709
        %v7912 = vmax.f32 %v7911, %v7713
        %v7913 = vmax.f32 %v7912, %v7717
        %v7914 = vmax.f32 %v7913, %v7721
        %v7915 = vmax.f32 %v7914, %v7725
        %v7916 = vmax.f32 %v7915, %v7729
        %v7917 = vmax.f32 %v7916, %v7733
        %v7918 = vmax.f32 %v7917, %v7737
        %v7919 = vmax.f32 %v7918, %v7741
        %v7920 = vmax.f32 %v7919, %v7745
        %v7921 = vmax.f32 %v7920, %v7749
        %v7922 = vmax.f32 %v7921, %v7753
        %v7923 = vmax.f32 %v7922, %v7757
        %v7924 = vmax.f32 %v7923, %v7761
        %v7925 = vmax.f32 %v7924, %v7765
        %v7926 = vmax.f32 %v7925, %v7769
        %v7927 = vmax.f32 %v7926, %v7773
        %v7928 = vmax.f32 %v7927, %v7777
        %v7929 = vmax.f32 %v7928, %v7781
        %v7930 = vmax.f32 %v7929, %v7785
        %v7931 = vmax.f32 %v7930, %v7789
        %v7932 = vmax.f32 %v7931, %v7793
        %v7933 = vmax.f32 %v7932, %v7797
        %v7934 = vmax.f32 %v7933, %v7801
        %v7935 = vmax.f32 %v7934, %v7805
        %v7936 = vmax.f32 %v7935, %v7809
        %v7937 = vmax.f32 %v7936, %v7813
        %v7938 = vmax.f32 %v6450, %v7844
        %v7939 = vmax.f32 %v6451, %v7875
        %v7940 = vmax.f32 %v6452, %v7906
        %v7941 = vmax.f32 %v6453, %v7937
        %v7942 = vadd.f32 %v7529, %v6924
        %v7943 = vadd.f32 %v7529, %v6928
        %v7944 = vadd.f32 %v7529, %v6932
        %v7945 = vadd.f32 %v7529, %v6936
        %v7946 = vadd.f32 %v7533, %v6943
        %v7947 = vadd.f32 %v7533, %v6947
        %v7948 = vadd.f32 %v7533, %v6951
        %v7949 = vadd.f32 %v7533, %v6955
        %v7950 = vadd.f32 %v7537, %v6962
        %v7951 = vadd.f32 %v7537, %v6966
        %v7952 = vadd.f32 %v7537, %v6970
        %v7953 = vadd.f32 %v7537, %v6974
        %v7954 = vadd.f32 %v7541, %v6981
        %v7955 = vadd.f32 %v7541, %v6985
        %v7956 = vadd.f32 %v7541, %v6989
        %v7957 = vadd.f32 %v7541, %v6993
        %v7958 = vadd.f32 %v7545, %v7000
        %v7959 = vadd.f32 %v7545, %v7004
        %v7960 = vadd.f32 %v7545, %v7008
        %v7961 = vadd.f32 %v7545, %v7012
        %v7962 = vadd.f32 %v7549, %v7019
        %v7963 = vadd.f32 %v7549, %v7023
        %v7964 = vadd.f32 %v7549, %v7027
        %v7965 = vadd.f32 %v7549, %v7031
        %v7966 = vadd.f32 %v7553, %v7038
        %v7967 = vadd.f32 %v7553, %v7042
        %v7968 = vadd.f32 %v7553, %v7046
        %v7969 = vadd.f32 %v7553, %v7050
        %v7970 = vadd.f32 %v7557, %v7057
        %v7971 = vadd.f32 %v7557, %v7061
        %v7972 = vadd.f32 %v7557, %v7065
        %v7973 = vadd.f32 %v7557, %v7069
        %v7974 = vadd.f32 %v7561, %v7076
        %v7975 = vadd.f32 %v7561, %v7080
        %v7976 = vadd.f32 %v7561, %v7084
        %v7977 = vadd.f32 %v7561, %v7088
        %v7978 = vadd.f32 %v7565, %v7095
        %v7979 = vadd.f32 %v7565, %v7099
        %v7980 = vadd.f32 %v7565, %v7103
        %v7981 = vadd.f32 %v7565, %v7107
        %v7982 = vadd.f32 %v7569, %v7114
        %v7983 = vadd.f32 %v7569, %v7118
        %v7984 = vadd.f32 %v7569, %v7122
        %v7985 = vadd.f32 %v7569, %v7126
        %v7986 = vadd.f32 %v7573, %v7133
        %v7987 = vadd.f32 %v7573, %v7137
        %v7988 = vadd.f32 %v7573, %v7141
        %v7989 = vadd.f32 %v7573, %v7145
        %v7990 = vadd.f32 %v7577, %v7152
        %v7991 = vadd.f32 %v7577, %v7156
        %v7992 = vadd.f32 %v7577, %v7160
        %v7993 = vadd.f32 %v7577, %v7164
        %v7994 = vadd.f32 %v7581, %v7171
        %v7995 = vadd.f32 %v7581, %v7175
        %v7996 = vadd.f32 %v7581, %v7179
        %v7997 = vadd.f32 %v7581, %v7183
        %v7998 = vadd.f32 %v7585, %v7190
        %v7999 = vadd.f32 %v7585, %v7194
        %v8000 = vadd.f32 %v7585, %v7198
        %v8001 = vadd.f32 %v7585, %v7202
        %v8002 = vadd.f32 %v7589, %v7209
        %v8003 = vadd.f32 %v7589, %v7213
        %v8004 = vadd.f32 %v7589, %v7217
        %v8005 = vadd.f32 %v7589, %v7221
        %v8006 = vadd.f32 %v7593, %v7228
        %v8007 = vadd.f32 %v7593, %v7232
        %v8008 = vadd.f32 %v7593, %v7236
        %v8009 = vadd.f32 %v7593, %v7240
        %v8010 = vadd.f32 %v7597, %v7247
        %v8011 = vadd.f32 %v7597, %v7251
        %v8012 = vadd.f32 %v7597, %v7255
        %v8013 = vadd.f32 %v7597, %v7259
        %v8014 = vadd.f32 %v7601, %v7266
        %v8015 = vadd.f32 %v7601, %v7270
        %v8016 = vadd.f32 %v7601, %v7274
        %v8017 = vadd.f32 %v7601, %v7278
        %v8018 = vadd.f32 %v7605, %v7285
        %v8019 = vadd.f32 %v7605, %v7289
        %v8020 = vadd.f32 %v7605, %v7293
        %v8021 = vadd.f32 %v7605, %v7297
        %v8022 = vadd.f32 %v7609, %v7304
        %v8023 = vadd.f32 %v7609, %v7308
        %v8024 = vadd.f32 %v7609, %v7312
        %v8025 = vadd.f32 %v7609, %v7316
        %v8026 = vadd.f32 %v7613, %v7323
        %v8027 = vadd.f32 %v7613, %v7327
        %v8028 = vadd.f32 %v7613, %v7331
        %v8029 = vadd.f32 %v7613, %v7335
        %v8030 = vadd.f32 %v7617, %v7342
        %v8031 = vadd.f32 %v7617, %v7346
        %v8032 = vadd.f32 %v7617, %v7350
        %v8033 = vadd.f32 %v7617, %v7354
        %v8034 = vadd.f32 %v7621, %v7361
        %v8035 = vadd.f32 %v7621, %v7365
        %v8036 = vadd.f32 %v7621, %v7369
        %v8037 = vadd.f32 %v7621, %v7373
        %v8038 = vadd.f32 %v7625, %v7380
        %v8039 = vadd.f32 %v7625, %v7384
        %v8040 = vadd.f32 %v7625, %v7388
        %v8041 = vadd.f32 %v7625, %v7392
        %v8042 = vadd.f32 %v7629, %v7399
        %v8043 = vadd.f32 %v7629, %v7403
        %v8044 = vadd.f32 %v7629, %v7407
        %v8045 = vadd.f32 %v7629, %v7411
        %v8046 = vadd.f32 %v7633, %v7418
        %v8047 = vadd.f32 %v7633, %v7422
        %v8048 = vadd.f32 %v7633, %v7426
        %v8049 = vadd.f32 %v7633, %v7430
        %v8050 = vadd.f32 %v7637, %v7437
        %v8051 = vadd.f32 %v7637, %v7441
        %v8052 = vadd.f32 %v7637, %v7445
        %v8053 = vadd.f32 %v7637, %v7449
        %v8054 = vadd.f32 %v7641, %v7456
        %v8055 = vadd.f32 %v7641, %v7460
        %v8056 = vadd.f32 %v7641, %v7464
        %v8057 = vadd.f32 %v7641, %v7468
        %v8058 = vadd.f32 %v7645, %v7475
        %v8059 = vadd.f32 %v7645, %v7479
        %v8060 = vadd.f32 %v7645, %v7483
        %v8061 = vadd.f32 %v7645, %v7487
        %v8062 = vadd.f32 %v7649, %v7494
        %v8063 = vadd.f32 %v7649, %v7498
        %v8064 = vadd.f32 %v7649, %v7502
        %v8065 = vadd.f32 %v7649, %v7506
        %v8066 = vadd.f32 %v7653, %v7513
        %v8067 = vadd.f32 %v7653, %v7517
        %v8068 = vadd.f32 %v7653, %v7521
        %v8069 = vadd.f32 %v7653, %v7525
        %v8070 = vmin.f32 %v7942, %v7946
        %v8071 = vmin.f32 %v8070, %v7950
        %v8072 = vmin.f32 %v8071, %v7954
        %v8073 = vmin.f32 %v8072, %v7958
        %v8074 = vmin.f32 %v8073, %v7962
        %v8075 = vmin.f32 %v8074, %v7966
        %v8076 = vmin.f32 %v8075, %v7970
        %v8077 = vmin.f32 %v8076, %v7974
        %v8078 = vmin.f32 %v8077, %v7978
        %v8079 = vmin.f32 %v8078, %v7982
        %v8080 = vmin.f32 %v8079, %v7986
        %v8081 = vmin.f32 %v8080, %v7990
        %v8082 = vmin.f32 %v8081, %v7994
        %v8083 = vmin.f32 %v8082, %v7998
        %v8084 = vmin.f32 %v8083, %v8002
        %v8085 = vmin.f32 %v8084, %v8006
        %v8086 = vmin.f32 %v8085, %v8010
        %v8087 = vmin.f32 %v8086, %v8014
        %v8088 = vmin.f32 %v8087, %v8018
        %v8089 = vmin.f32 %v8088, %v8022
        %v8090 = vmin.f32 %v8089, %v8026
        %v8091 = vmin.f32 %v8090, %v8030
        %v8092 = vmin.f32 %v8091, %v8034
        %v8093 = vmin.f32 %v8092, %v8038
        %v8094 = vmin.f32 %v8093, %v8042
        %v8095 = vmin.f32 %v8094, %v8046
        %v8096 = vmin.f32 %v8095, %v8050
        %v8097 = vmin.f32 %v8096, %v8054
        %v8098 = vmin.f32 %v8097, %v8058
        %v8099 = vmin.f32 %v8098, %v8062
        %v8100 = vmin.f32 %v8099, %v8066
        %v8101 = vmin.f32 %v7943, %v7947
        %v8102 = vmin.f32 %v8101, %v7951
        %v8103 = vmin.f32 %v8102, %v7955
        %v8104 = vmin.f32 %v8103, %v7959
        %v8105 = vmin.f32 %v8104, %v7963
        %v8106 = vmin.f32 %v8105, %v7967
        %v8107 = vmin.f32 %v8106, %v7971
        %v8108 = vmin.f32 %v8107, %v7975
        %v8109 = vmin.f32 %v8108, %v7979
        %v8110 = vmin.f32 %v8109, %v7983
        %v8111 = vmin.f32 %v8110, %v7987
        %v8112 = vmin.f32 %v8111, %v7991
        %v8113 = vmin.f32 %v8112, %v7995
        %v8114 = vmin.f32 %v8113, %v7999
        %v8115 = vmin.f32 %v8114, %v8003
        %v8116 = vmin.f32 %v8115, %v8007
        %v8117 = vmin.f32 %v8116, %v8011
        %v8118 = vmin.f32 %v8117, %v8015
        %v8119 = vmin.f32 %v8118, %v8019
        %v8120 = vmin.f32 %v8119, %v8023
        %v8121 = vmin.f32 %v8120, %v8027
        %v8122 = vmin.f32 %v8121, %v8031
        %v8123 = vmin.f32 %v8122, %v8035
        %v8124 = vmin.f32 %v8123, %v8039
        %v8125 = vmin.f32 %v8124, %v8043
        %v8126 = vmin.f32 %v8125, %v8047
        %v8127 = vmin.f32 %v8126, %v8051
        %v8128 = vmin.f32 %v8127, %v8055
        %v8129 = vmin.f32 %v8128, %v8059
        %v8130 = vmin.f32 %v8129, %v8063
        %v8131 = vmin.f32 %v8130, %v8067
        %v8132 = vmin.f32 %v7944, %v7948
        %v8133 = vmin.f32 %v8132, %v7952
        %v8134 = vmin.f32 %v8133, %v7956
        %v8135 = vmin.f32 %v8134, %v7960
        %v8136 = vmin.f32 %v8135, %v7964
        %v8137 = vmin.f32 %v8136, %v7968
        %v8138 = vmin.f32 %v8137, %v7972
        %v8139 = vmin.f32 %v8138, %v7976
        %v8140 = vmin.f32 %v8139, %v7980
        %v8141 = vmin.f32 %v8140, %v7984
        %v8142 = vmin.f32 %v8141, %v7988
        %v8143 = vmin.f32 %v8142, %v7992
        %v8144 = vmin.f32 %v8143, %v7996
        %v8145 = vmin.f32 %v8144, %v8000
        %v8146 = vmin.f32 %v8145, %v8004
        %v8147 = vmin.f32 %v8146, %v8008
        %v8148 = vmin.f32 %v8147, %v8012
        %v8149 = vmin.f32 %v8148, %v8016
        %v8150 = vmin.f32 %v8149, %v8020
        %v8151 = vmin.f32 %v8150, %v8024
        %v8152 = vmin.f32 %v8151, %v8028
        %v8153 = vmin.f32 %v8152, %v8032
        %v8154 = vmin.f32 %v8153, %v8036
        %v8155 = vmin.f32 %v8154, %v8040
        %v8156 = vmin.f32 %v8155, %v8044
        %v8157 = vmin.f32 %v8156, %v8048
        %v8158 = vmin.f32 %v8157, %v8052
        %v8159 = vmin.f32 %v8158, %v8056
        %v8160 = vmin.f32 %v8159, %v8060
        %v8161 = vmin.f32 %v8160, %v8064
        %v8162 = vmin.f32 %v8161, %v8068
        %v8163 = vmin.f32 %v7945, %v7949
        %v8164 = vmin.f32 %v8163, %v7953
        %v8165 = vmin.f32 %v8164, %v7957
        %v8166 = vmin.f32 %v8165, %v7961
        %v8167 = vmin.f32 %v8166, %v7965
        %v8168 = vmin.f32 %v8167, %v7969
        %v8169 = vmin.f32 %v8168, %v7973
        %v8170 = vmin.f32 %v8169, %v7977
        %v8171 = vmin.f32 %v8170, %v7981
        %v8172 = vmin.f32 %v8171, %v7985
        %v8173 = vmin.f32 %v8172, %v7989
        %v8174 = vmin.f32 %v8173, %v7993
        %v8175 = vmin.f32 %v8174, %v7997
        %v8176 = vmin.f32 %v8175, %v8001
        %v8177 = vmin.f32 %v8176, %v8005
        %v8178 = vmin.f32 %v8177, %v8009
        %v8179 = vmin.f32 %v8178, %v8013
        %v8180 = vmin.f32 %v8179, %v8017
        %v8181 = vmin.f32 %v8180, %v8021
        %v8182 = vmin.f32 %v8181, %v8025
        %v8183 = vmin.f32 %v8182, %v8029
        %v8184 = vmin.f32 %v8183, %v8033
        %v8185 = vmin.f32 %v8184, %v8037
        %v8186 = vmin.f32 %v8185, %v8041
        %v8187 = vmin.f32 %v8186, %v8045
        %v8188 = vmin.f32 %v8187, %v8049
        %v8189 = vmin.f32 %v8188, %v8053
        %v8190 = vmin.f32 %v8189, %v8057
        %v8191 = vmin.f32 %v8190, %v8061
        %v8192 = vmin.f32 %v8191, %v8065
        %v8193 = vmin.f32 %v8192, %v8069
        %v8194 = vmin.f32 %v6706, %v8100
        %v8195 = vmin.f32 %v6707, %v8131
        %v8196 = vmin.f32 %v6708, %v8162
        %v8197 = vmin.f32 %v6709, %v8193
        %vm8198 = vcmp.gt.f32.partialorder %v863, 0.5
        %vm8199 = vcmp.gt.f32.partialorder %v864, 0.5
        %vm8200 = vcmp.gt.f32.partialorder %v865, 0.5
        %vm8201 = vcmp.gt.f32.partialorder %v866, 0.5
        %v8202 = vsel %vm8198, 1, 0
        %v8203 = vsel %vm8199, 1, 0
        %v8204 = vsel %vm8200, 1, 0
        %v8205 = vsel %vm8201, 1, 0
        %8206 = vset.pattern.permute.xlu0 5
        %8207 = vperm.xlu0 %8206, %v8202
        %v8208 = vpop.permute.xlu0 %8207
        %8209 = vset.pattern.permute.xlu0 5
        %8210 = vperm.xlu0 %8209, %v8203
        %v8211 = vpop.permute.xlu0 %8210
        %8212 = vset.pattern.permute.xlu0 5
        %8213 = vperm.xlu0 %8212, %v8204
        %v8214 = vpop.permute.xlu0 %8213
        %8215 = vset.pattern.permute.xlu0 5
        %8216 = vperm.xlu0 %8215, %v8205
        %v8217 = vpop.permute.xlu0 %8216
        %vm8218 = vcmp.eq.s32.totalorder %v8208, 1
        %vm8219 = vcmp.eq.s32.totalorder %v8211, 1
        %vm8220 = vcmp.eq.s32.totalorder %v8214, 1
        %vm8221 = vcmp.eq.s32.totalorder %v8217, 1
        %v8222 = vsel %vm8218, %v7938, 0.0
        %v8223 = vsel %vm8219, %v7939, 0.0
        %v8224 = vsel %vm8220, %v7940, 0.0
        %v8225 = vsel %vm8221, %v7941, 0.0
        %v8226 = vsel %vm8218, %v8194, 0.0
        %v8227 = vsel %vm8219, %v8195, 0.0
        %v8228 = vsel %vm8220, %v8196, 0.0
        %v8229 = vsel %vm8221, %v8197, 0.0
        %v8230 = vld [vmem:[%s728 + $0x2] sm:$0x1]
        %v8231 = vld [vmem:[%s710] sm:$0xff]
        %v8232 = vld [vmem:[%s710 + $0x8] sm:$0xff]
        %v8233 = vld [vmem:[%s710 + $0x10] sm:$0xff]
        %v8234 = vld [vmem:[%s710 + $0x18] sm:$0xff]
        %v8235 = vld [vmem:[%s710 + $0x20] sm:$0xff]
        %v8236 = vld [vmem:[%s710 + $0x28] sm:$0xff]
        %v8237 = vld [vmem:[%s710 + $0x30] sm:$0xff]
        %v8238 = vld [vmem:[%s710 + $0x38] sm:$0xff]
        %v8239 = vld [vmem:[%s710 + $0x40] sm:$0xff]
        %v8240 = vld [vmem:[%s710 + $0x48] sm:$0xff]
        %v8241 = vld [vmem:[%s710 + $0x50] sm:$0xff]
        %v8242 = vld [vmem:[%s710 + $0x58] sm:$0xff]
        %v8243 = vld [vmem:[%s710 + $0x60] sm:$0xff]
        %v8244 = vld [vmem:[%s710 + $0x68] sm:$0xff]
        %v8245 = vld [vmem:[%s710 + $0x70] sm:$0xff]
        %v8246 = vld [vmem:[%s710 + $0x78] sm:$0xff]
        %v8247 = vld [vmem:[%s710 + $0x80] sm:$0xff]
        %v8248 = vld [vmem:[%s710 + $0x88] sm:$0xff]
        %v8249 = vld [vmem:[%s710 + $0x90] sm:$0xff]
        %v8250 = vld [vmem:[%s710 + $0x98] sm:$0xff]
        %v8251 = vld [vmem:[%s710 + $0xa0] sm:$0xff]
        %v8252 = vld [vmem:[%s710 + $0xa8] sm:$0xff]
        %v8253 = vld [vmem:[%s710 + $0xb0] sm:$0xff]
        %v8254 = vld [vmem:[%s710 + $0xb8] sm:$0xff]
        %v8255 = vld [vmem:[%s710 + $0xc0] sm:$0xff]
        %v8256 = vld [vmem:[%s710 + $0xc8] sm:$0xff]
        %v8257 = vld [vmem:[%s710 + $0xd0] sm:$0xff]
        %v8258 = vld [vmem:[%s710 + $0xd8] sm:$0xff]
        %v8259 = vld [vmem:[%s710 + $0xe0] sm:$0xff]
        %v8260 = vld [vmem:[%s710 + $0xe8] sm:$0xff]
        %v8261 = vld [vmem:[%s710 + $0xf0] sm:$0xff]
        %v8262 = vld [vmem:[%s710 + $0xf8] sm:$0xff]
        %v8263 = vld [vmem:[%s710 + $0x100] sm:$0xff]
        %v8264 = vld [vmem:[%s710 + $0x108] sm:$0xff]
        %v8265 = vld [vmem:[%s710 + $0x110] sm:$0xff]
        %v8266 = vld [vmem:[%s710 + $0x118] sm:$0xff]
        %v8267 = vld [vmem:[%s710 + $0x120] sm:$0xff]
        %v8268 = vld [vmem:[%s710 + $0x128] sm:$0xff]
        %v8269 = vld [vmem:[%s710 + $0x130] sm:$0xff]
        %v8270 = vld [vmem:[%s710 + $0x138] sm:$0xff]
        %v8271 = vld [vmem:[%s710 + $0x140] sm:$0xff]
        %v8272 = vld [vmem:[%s710 + $0x148] sm:$0xff]
        %v8273 = vld [vmem:[%s710 + $0x150] sm:$0xff]
        %v8274 = vld [vmem:[%s710 + $0x158] sm:$0xff]
        %v8275 = vld [vmem:[%s710 + $0x160] sm:$0xff]
        %v8276 = vld [vmem:[%s710 + $0x168] sm:$0xff]
        %v8277 = vld [vmem:[%s710 + $0x170] sm:$0xff]
        %v8278 = vld [vmem:[%s710 + $0x178] sm:$0xff]
        %v8279 = vld [vmem:[%s710 + $0x180] sm:$0xff]
        %v8280 = vld [vmem:[%s710 + $0x188] sm:$0xff]
        %v8281 = vld [vmem:[%s710 + $0x190] sm:$0xff]
        %v8282 = vld [vmem:[%s710 + $0x198] sm:$0xff]
        %v8283 = vld [vmem:[%s710 + $0x1a0] sm:$0xff]
        %v8284 = vld [vmem:[%s710 + $0x1a8] sm:$0xff]
        %v8285 = vld [vmem:[%s710 + $0x1b0] sm:$0xff]
        %v8286 = vld [vmem:[%s710 + $0x1b8] sm:$0xff]
        %v8287 = vld [vmem:[%s710 + $0x1c0] sm:$0xff]
        %v8288 = vld [vmem:[%s710 + $0x1c8] sm:$0xff]
        %v8289 = vld [vmem:[%s710 + $0x1d0] sm:$0xff]
        %v8290 = vld [vmem:[%s710 + $0x1d8] sm:$0xff]
        %v8291 = vld [vmem:[%s710 + $0x1e0] sm:$0xff]
        %v8292 = vld [vmem:[%s710 + $0x1e8] sm:$0xff]
        %v8293 = vld [vmem:[%s710 + $0x1f0] sm:$0xff]
        %v8294 = vld [vmem:[%s710 + $0x1f8] sm:$0xff]
        %v8295 = vld [vmem:[%s710 + $0x200] sm:$0xff]
        %v8296 = vld [vmem:[%s710 + $0x208] sm:$0xff]
        %v8297 = vld [vmem:[%s710 + $0x210] sm:$0xff]
        %v8298 = vld [vmem:[%s710 + $0x218] sm:$0xff]
        %v8299 = vld [vmem:[%s710 + $0x220] sm:$0xff]
        %v8300 = vld [vmem:[%s710 + $0x228] sm:$0xff]
        %v8301 = vld [vmem:[%s710 + $0x230] sm:$0xff]
        %v8302 = vld [vmem:[%s710 + $0x238] sm:$0xff]
        %v8303 = vld [vmem:[%s710 + $0x240] sm:$0xff]
        %v8304 = vld [vmem:[%s710 + $0x248] sm:$0xff]
        %v8305 = vld [vmem:[%s710 + $0x250] sm:$0xff]
        %v8306 = vld [vmem:[%s710 + $0x258] sm:$0xff]
        %v8307 = vld [vmem:[%s710 + $0x260] sm:$0xff]
        %v8308 = vld [vmem:[%s710 + $0x268] sm:$0xff]
        %v8309 = vld [vmem:[%s710 + $0x270] sm:$0xff]
        %v8310 = vld [vmem:[%s710 + $0x278] sm:$0xff]
        %v8311 = vld [vmem:[%s710 + $0x280] sm:$0xff]
        %v8312 = vld [vmem:[%s710 + $0x288] sm:$0xff]
        %v8313 = vld [vmem:[%s710 + $0x290] sm:$0xff]
        %v8314 = vld [vmem:[%s710 + $0x298] sm:$0xff]
        %v8315 = vld [vmem:[%s710 + $0x2a0] sm:$0xff]
        %v8316 = vld [vmem:[%s710 + $0x2a8] sm:$0xff]
        %v8317 = vld [vmem:[%s710 + $0x2b0] sm:$0xff]
        %v8318 = vld [vmem:[%s710 + $0x2b8] sm:$0xff]
        %v8319 = vld [vmem:[%s710 + $0x2c0] sm:$0xff]
        %v8320 = vld [vmem:[%s710 + $0x2c8] sm:$0xff]
        %v8321 = vld [vmem:[%s710 + $0x2d0] sm:$0xff]
        %v8322 = vld [vmem:[%s710 + $0x2d8] sm:$0xff]
        %v8323 = vld [vmem:[%s710 + $0x2e0] sm:$0xff]
        %v8324 = vld [vmem:[%s710 + $0x2e8] sm:$0xff]
        %v8325 = vld [vmem:[%s710 + $0x2f0] sm:$0xff]
        %v8326 = vld [vmem:[%s710 + $0x2f8] sm:$0xff]
        %v8327 = vld [vmem:[%s710 + $0x300] sm:$0xff]
        %v8328 = vld [vmem:[%s710 + $0x308] sm:$0xff]
        %v8329 = vld [vmem:[%s710 + $0x310] sm:$0xff]
        %v8330 = vld [vmem:[%s710 + $0x318] sm:$0xff]
        %v8331 = vld [vmem:[%s710 + $0x320] sm:$0xff]
        %v8332 = vld [vmem:[%s710 + $0x328] sm:$0xff]
        %v8333 = vld [vmem:[%s710 + $0x330] sm:$0xff]
        %v8334 = vld [vmem:[%s710 + $0x338] sm:$0xff]
        %v8335 = vld [vmem:[%s710 + $0x340] sm:$0xff]
        %v8336 = vld [vmem:[%s710 + $0x348] sm:$0xff]
        %v8337 = vld [vmem:[%s710 + $0x350] sm:$0xff]
        %v8338 = vld [vmem:[%s710 + $0x358] sm:$0xff]
        %v8339 = vld [vmem:[%s710 + $0x360] sm:$0xff]
        %v8340 = vld [vmem:[%s710 + $0x368] sm:$0xff]
        %v8341 = vld [vmem:[%s710 + $0x370] sm:$0xff]
        %v8342 = vld [vmem:[%s710 + $0x378] sm:$0xff]
        %v8343 = vld [vmem:[%s710 + $0x380] sm:$0xff]
        %v8344 = vld [vmem:[%s710 + $0x388] sm:$0xff]
        %v8345 = vld [vmem:[%s710 + $0x390] sm:$0xff]
        %v8346 = vld [vmem:[%s710 + $0x398] sm:$0xff]
        %v8347 = vld [vmem:[%s710 + $0x3a0] sm:$0xff]
        %v8348 = vld [vmem:[%s710 + $0x3a8] sm:$0xff]
        %v8349 = vld [vmem:[%s710 + $0x3b0] sm:$0xff]
        %v8350 = vld [vmem:[%s710 + $0x3b8] sm:$0xff]
        %v8351 = vld [vmem:[%s710 + $0x3c0] sm:$0xff]
        %v8352 = vld [vmem:[%s710 + $0x3c8] sm:$0xff]
        %v8353 = vld [vmem:[%s710 + $0x3d0] sm:$0xff]
        %v8354 = vld [vmem:[%s710 + $0x3d8] sm:$0xff]
        %v8355 = vld [vmem:[%s710 + $0x3e0] sm:$0xff]
        %v8356 = vld [vmem:[%s710 + $0x3e8] sm:$0xff]
        %v8357 = vld [vmem:[%s710 + $0x3f0] sm:$0xff]
        %v8358 = vld [vmem:[%s710 + $0x3f8] sm:$0xff]
        %v8359 = vld [vmem:[%s710 + $0x400] sm:$0xff]
        %v8360 = vld [vmem:[%s710 + $0x408] sm:$0xff]
        %v8361 = vld [vmem:[%s710 + $0x410] sm:$0xff]
        %v8362 = vld [vmem:[%s710 + $0x418] sm:$0xff]
        %v8363 = vld [vmem:[%s710 + $0x420] sm:$0xff]
        %v8364 = vld [vmem:[%s710 + $0x428] sm:$0xff]
        %v8365 = vld [vmem:[%s710 + $0x430] sm:$0xff]
        %v8366 = vld [vmem:[%s710 + $0x438] sm:$0xff]
        %v8367 = vld [vmem:[%s710 + $0x440] sm:$0xff]
        %v8368 = vld [vmem:[%s710 + $0x448] sm:$0xff]
        %v8369 = vld [vmem:[%s710 + $0x450] sm:$0xff]
        %v8370 = vld [vmem:[%s710 + $0x458] sm:$0xff]
        %v8371 = vld [vmem:[%s710 + $0x460] sm:$0xff]
        %v8372 = vld [vmem:[%s710 + $0x468] sm:$0xff]
        %v8373 = vld [vmem:[%s710 + $0x470] sm:$0xff]
        %v8374 = vld [vmem:[%s710 + $0x478] sm:$0xff]
        %v8375 = vld [vmem:[%s710 + $0x480] sm:$0xff]
        %v8376 = vld [vmem:[%s710 + $0x488] sm:$0xff]
        %v8377 = vld [vmem:[%s710 + $0x490] sm:$0xff]
        %v8378 = vld [vmem:[%s710 + $0x498] sm:$0xff]
        %v8379 = vld [vmem:[%s710 + $0x4a0] sm:$0xff]
        %v8380 = vld [vmem:[%s710 + $0x4a8] sm:$0xff]
        %v8381 = vld [vmem:[%s710 + $0x4b0] sm:$0xff]
        %v8382 = vld [vmem:[%s710 + $0x4b8] sm:$0xff]
        %v8383 = vld [vmem:[%s710 + $0x4c0] sm:$0xff]
        %v8384 = vld [vmem:[%s710 + $0x4c8] sm:$0xff]
        %v8385 = vld [vmem:[%s710 + $0x4d0] sm:$0xff]
        %v8386 = vld [vmem:[%s710 + $0x4d8] sm:$0xff]
        %v8387 = vld [vmem:[%s710 + $0x4e0] sm:$0xff]
        %v8388 = vld [vmem:[%s710 + $0x4e8] sm:$0xff]
        %v8389 = vld [vmem:[%s710 + $0x4f0] sm:$0xff]
        %v8390 = vld [vmem:[%s710 + $0x4f8] sm:$0xff]
        %v8391 = vld [vmem:[%s710 + $0x500] sm:$0xff]
        %v8392 = vld [vmem:[%s710 + $0x508] sm:$0xff]
        %v8393 = vld [vmem:[%s710 + $0x510] sm:$0xff]
        %v8394 = vld [vmem:[%s710 + $0x518] sm:$0xff]
        %v8395 = vld [vmem:[%s710 + $0x520] sm:$0xff]
        %v8396 = vld [vmem:[%s710 + $0x528] sm:$0xff]
        %v8397 = vld [vmem:[%s710 + $0x530] sm:$0xff]
        %v8398 = vld [vmem:[%s710 + $0x538] sm:$0xff]
        %v8399 = vld [vmem:[%s710 + $0x540] sm:$0xff]
        %v8400 = vld [vmem:[%s710 + $0x548] sm:$0xff]
        %v8401 = vld [vmem:[%s710 + $0x550] sm:$0xff]
        %v8402 = vld [vmem:[%s710 + $0x558] sm:$0xff]
        %v8403 = vld [vmem:[%s710 + $0x560] sm:$0xff]
        %v8404 = vld [vmem:[%s710 + $0x568] sm:$0xff]
        %v8405 = vld [vmem:[%s710 + $0x570] sm:$0xff]
        %v8406 = vld [vmem:[%s710 + $0x578] sm:$0xff]
        %v8407 = vld [vmem:[%s710 + $0x580] sm:$0xff]
        %v8408 = vld [vmem:[%s710 + $0x588] sm:$0xff]
        %v8409 = vld [vmem:[%s710 + $0x590] sm:$0xff]
        %v8410 = vld [vmem:[%s710 + $0x598] sm:$0xff]
        %v8411 = vld [vmem:[%s710 + $0x5a0] sm:$0xff]
        %v8412 = vld [vmem:[%s710 + $0x5a8] sm:$0xff]
        %v8413 = vld [vmem:[%s710 + $0x5b0] sm:$0xff]
        %v8414 = vld [vmem:[%s710 + $0x5b8] sm:$0xff]
        %v8415 = vld [vmem:[%s710 + $0x5c0] sm:$0xff]
        %v8416 = vld [vmem:[%s710 + $0x5c8] sm:$0xff]
        %v8417 = vld [vmem:[%s710 + $0x5d0] sm:$0xff]
        %v8418 = vld [vmem:[%s710 + $0x5d8] sm:$0xff]
        %v8419 = vld [vmem:[%s710 + $0x5e0] sm:$0xff]
        %v8420 = vld [vmem:[%s710 + $0x5e8] sm:$0xff]
        %v8421 = vld [vmem:[%s710 + $0x5f0] sm:$0xff]
        %v8422 = vld [vmem:[%s710 + $0x5f8] sm:$0xff]
        %v8423 = vld [vmem:[%s710 + $0x600] sm:$0xff]
        %v8424 = vld [vmem:[%s710 + $0x608] sm:$0xff]
        %v8425 = vld [vmem:[%s710 + $0x610] sm:$0xff]
        %v8426 = vld [vmem:[%s710 + $0x618] sm:$0xff]
        %v8427 = vld [vmem:[%s710 + $0x620] sm:$0xff]
        %v8428 = vld [vmem:[%s710 + $0x628] sm:$0xff]
        %v8429 = vld [vmem:[%s710 + $0x630] sm:$0xff]
        %v8430 = vld [vmem:[%s710 + $0x638] sm:$0xff]
        %v8431 = vld [vmem:[%s710 + $0x640] sm:$0xff]
        %v8432 = vld [vmem:[%s710 + $0x648] sm:$0xff]
        %v8433 = vld [vmem:[%s710 + $0x650] sm:$0xff]
        %v8434 = vld [vmem:[%s710 + $0x658] sm:$0xff]
        %v8435 = vld [vmem:[%s710 + $0x660] sm:$0xff]
        %v8436 = vld [vmem:[%s710 + $0x668] sm:$0xff]
        %v8437 = vld [vmem:[%s710 + $0x670] sm:$0xff]
        %v8438 = vld [vmem:[%s710 + $0x678] sm:$0xff]
        %v8439 = vld [vmem:[%s710 + $0x680] sm:$0xff]
        %v8440 = vld [vmem:[%s710 + $0x688] sm:$0xff]
        %v8441 = vld [vmem:[%s710 + $0x690] sm:$0xff]
        %v8442 = vld [vmem:[%s710 + $0x698] sm:$0xff]
        %v8443 = vld [vmem:[%s710 + $0x6a0] sm:$0xff]
        %v8444 = vld [vmem:[%s710 + $0x6a8] sm:$0xff]
        %v8445 = vld [vmem:[%s710 + $0x6b0] sm:$0xff]
        %v8446 = vld [vmem:[%s710 + $0x6b8] sm:$0xff]
        %v8447 = vld [vmem:[%s710 + $0x6c0] sm:$0xff]
        %v8448 = vld [vmem:[%s710 + $0x6c8] sm:$0xff]
        %v8449 = vld [vmem:[%s710 + $0x6d0] sm:$0xff]
        %v8450 = vld [vmem:[%s710 + $0x6d8] sm:$0xff]
        %v8451 = vld [vmem:[%s710 + $0x6e0] sm:$0xff]
        %v8452 = vld [vmem:[%s710 + $0x6e8] sm:$0xff]
        %v8453 = vld [vmem:[%s710 + $0x6f0] sm:$0xff]
        %v8454 = vld [vmem:[%s710 + $0x6f8] sm:$0xff]
        %v8455 = vld [vmem:[%s710 + $0x700] sm:$0xff]
        %v8456 = vld [vmem:[%s710 + $0x708] sm:$0xff]
        %v8457 = vld [vmem:[%s710 + $0x710] sm:$0xff]
        %v8458 = vld [vmem:[%s710 + $0x718] sm:$0xff]
        %v8459 = vld [vmem:[%s710 + $0x720] sm:$0xff]
        %v8460 = vld [vmem:[%s710 + $0x728] sm:$0xff]
        %v8461 = vld [vmem:[%s710 + $0x730] sm:$0xff]
        %v8462 = vld [vmem:[%s710 + $0x738] sm:$0xff]
        %v8463 = vld [vmem:[%s710 + $0x740] sm:$0xff]
        %v8464 = vld [vmem:[%s710 + $0x748] sm:$0xff]
        %v8465 = vld [vmem:[%s710 + $0x750] sm:$0xff]
        %v8466 = vld [vmem:[%s710 + $0x758] sm:$0xff]
        %v8467 = vld [vmem:[%s710 + $0x760] sm:$0xff]
        %v8468 = vld [vmem:[%s710 + $0x768] sm:$0xff]
        %v8469 = vld [vmem:[%s710 + $0x770] sm:$0xff]
        %v8470 = vld [vmem:[%s710 + $0x778] sm:$0xff]
        %v8471 = vld [vmem:[%s710 + $0x780] sm:$0xff]
        %v8472 = vld [vmem:[%s710 + $0x788] sm:$0xff]
        %v8473 = vld [vmem:[%s710 + $0x790] sm:$0xff]
        %v8474 = vld [vmem:[%s710 + $0x798] sm:$0xff]
        %v8475 = vld [vmem:[%s710 + $0x7a0] sm:$0xff]
        %v8476 = vld [vmem:[%s710 + $0x7a8] sm:$0xff]
        %v8477 = vld [vmem:[%s710 + $0x7b0] sm:$0xff]
        %v8478 = vld [vmem:[%s710 + $0x7b8] sm:$0xff]
        %v8479 = vld [vmem:[%s710 + $0x7c0] sm:$0xff]
        %v8480 = vld [vmem:[%s710 + $0x7c8] sm:$0xff]
        %v8481 = vld [vmem:[%s710 + $0x7d0] sm:$0xff]
        %v8482 = vld [vmem:[%s710 + $0x7d8] sm:$0xff]
        %v8483 = vld [vmem:[%s710 + $0x7e0] sm:$0xff]
        %v8484 = vld [vmem:[%s710 + $0x7e8] sm:$0xff]
        %v8485 = vld [vmem:[%s710 + $0x7f0] sm:$0xff]
        %v8486 = vld [vmem:[%s710 + $0x7f8] sm:$0xff]
        %8487 = vmatprep.subr.mxu0 %v8232
        %8488 = vmatpush1.msra.mxu0 %v8231
        %8489 = vmatprep.subr.mxu0 %v8236
        %8490 = vmatpush1.msra.mxu0 %v8235
        %8491 = vmatprep.subr.mxu0 %v8240
        %8492 = vmatpush1.msra.mxu0 %v8239
        %8493 = vmatprep.subr.mxu0 %v8244
        %8494 = vmatpush1.msra.mxu0 %v8243
        %8495 = vmatprep.subr.mxu0 %v8248
        %8496 = vmatpush1.msra.mxu0 %v8247
        %8497 = vmatprep.subr.mxu0 %v8252
        %8498 = vmatpush1.msra.mxu0 %v8251
        %8499 = vmatprep.subr.mxu0 %v8256
        %8500 = vmatpush1.msra.mxu0 %v8255
        %8501 = vmatprep.subr.mxu0 %v8260
        %8502 = vmatpush1.msra.mxu0 %v8259
        %8503 = vmatprep.subr.mxu0 %v8264
        %8504 = vmatpush1.msra.mxu0 %v8263
        %8505 = vmatprep.subr.mxu0 %v8268
        %8506 = vmatpush1.msra.mxu0 %v8267
        %8507 = vmatprep.subr.mxu0 %v8272
        %8508 = vmatpush1.msra.mxu0 %v8271
        %8509 = vmatprep.subr.mxu0 %v8276
        %8510 = vmatpush1.msra.mxu0 %v8275
        %8511 = vmatprep.subr.mxu0 %v8280
        %8512 = vmatpush1.msra.mxu0 %v8279
        %8513 = vmatprep.subr.mxu0 %v8284
        %8514 = vmatpush1.msra.mxu0 %v8283
        %8515 = vmatprep.subr.mxu0 %v8288
        %8516 = vmatpush1.msra.mxu0 %v8287
        %8517 = vmatprep.subr.mxu0 %v8292
        %8518 = vmatpush1.msra.mxu0 %v8291
        %8519 = vmatprep.subr.mxu0 %v8296
        %8520 = vmatpush1.msra.mxu0 %v8295
        %8521 = vmatprep.subr.mxu0 %v8300
        %8522 = vmatpush1.msra.mxu0 %v8299
        %8523 = vmatprep.subr.mxu0 %v8304
        %8524 = vmatpush1.msra.mxu0 %v8303
        %8525 = vmatprep.subr.mxu0 %v8308
        %8526 = vmatpush1.msra.mxu0 %v8307
        %8527 = vmatprep.subr.mxu0 %v8312
        %8528 = vmatpush1.msra.mxu0 %v8311
        %8529 = vmatprep.subr.mxu0 %v8316
        %8530 = vmatpush1.msra.mxu0 %v8315
        %8531 = vmatprep.subr.mxu0 %v8320
        %8532 = vmatpush1.msra.mxu0 %v8319
        %8533 = vmatprep.subr.mxu0 %v8324
        %8534 = vmatpush1.msra.mxu0 %v8323
        %8535 = vmatprep.subr.mxu0 %v8328
        %8536 = vmatpush1.msra.mxu0 %v8327
        %8537 = vmatprep.subr.mxu0 %v8332
        %8538 = vmatpush1.msra.mxu0 %v8331
        %8539 = vmatprep.subr.mxu0 %v8336
        %8540 = vmatpush1.msra.mxu0 %v8335
        %8541 = vmatprep.subr.mxu0 %v8340
        %8542 = vmatpush1.msra.mxu0 %v8339
        %8543 = vmatprep.subr.mxu0 %v8344
        %8544 = vmatpush1.msra.mxu0 %v8343
        %8545 = vmatprep.subr.mxu0 %v8348
        %8546 = vmatpush1.msra.mxu0 %v8347
        %8547 = vmatprep.subr.mxu0 %v8352
        %8548 = vmatpush1.msra.mxu0 %v8351
        %8549 = vmatprep.subr.mxu0 %v8356
        %8550 = vmatpush1.msra.mxu0 %v8355
        %8551 = vmatprep.mubr.f32.mxu0 %v8226
        %8552 = vmatmul.mubr.f32.gmra.mrb[0].mxu0 %v2194
        %v8553 = vpop.f32.mrb[0].mxu0
        %v8554 = vadd.f32 0.0, %v8553
        %v8555 = vpop.f32.mrb[0].mxu0
        %v8556 = vadd.f32 0.0, %v8555
        %8557 = vmatprep.mubr.f32.mxu0 %v8227
        %8558 = vmatmul.mubr.f32.gmra.mrb[0].mxu0 %v2195
        %v8559 = vpop.f32.mrb[0].mxu0
        %v8560 = vadd.f32 0.0, %v8559
        %v8561 = vpop.f32.mrb[0].mxu0
        %v8562 = vadd.f32 0.0, %v8561
        %8563 = vmatprep.mubr.f32.mxu0 %v8228
        %8564 = vmatmul.mubr.f32.gmra.mrb[0].mxu0 %v2196
        %v8565 = vpop.f32.mrb[0].mxu0
        %v8566 = vadd.f32 0.0, %v8565
        %v8567 = vpop.f32.mrb[0].mxu0
        %v8568 = vadd.f32 0.0, %v8567
        %8569 = vmatprep.mubr.f32.mxu0 %v8229
        %8570 = vmatmul.mubr.f32.gmra.mrb[0].mxu0 %v2197
        %v8571 = vpop.f32.mrb[0].mxu0
        %v8572 = vadd.f32 0.0, %v8571
        %v8573 = vpop.f32.mrb[0].mxu0
        %v8574 = vadd.f32 0.0, %v8573
        %8575 = vdwg.mxu0
        %8576 = vmatprep.subr.mxu0 %v8360
        %8577 = vmatpush1.msra.mxu0 %v8359
        %8578 = vmatprep.subr.mxu0 %v8364
        %8579 = vmatpush1.msra.mxu0 %v8363
        %8580 = vmatprep.subr.mxu0 %v8368
        %8581 = vmatpush1.msra.mxu0 %v8367
        %8582 = vmatprep.subr.mxu0 %v8372
        %8583 = vmatpush1.msra.mxu0 %v8371
        %8584 = vmatprep.subr.mxu0 %v8376
        %8585 = vmatpush1.msra.mxu0 %v8375
        %8586 = vmatprep.subr.mxu0 %v8380
        %8587 = vmatpush1.msra.mxu0 %v8379
        %8588 = vmatprep.subr.mxu0 %v8384
        %8589 = vmatpush1.msra.mxu0 %v8383
        %8590 = vmatprep.subr.mxu0 %v8388
        %8591 = vmatpush1.msra.mxu0 %v8387
        %8592 = vmatprep.subr.mxu0 %v8392
        %8593 = vmatpush1.msra.mxu0 %v8391
        %8594 = vmatprep.subr.mxu0 %v8396
        %8595 = vmatpush1.msra.mxu0 %v8395
        %8596 = vmatprep.subr.mxu0 %v8400
        %8597 = vmatpush1.msra.mxu0 %v8399
        %8598 = vmatprep.subr.mxu0 %v8404
        %8599 = vmatpush1.msra.mxu0 %v8403
        %8600 = vmatprep.subr.mxu0 %v8408
        %8601 = vmatpush1.msra.mxu0 %v8407
        %8602 = vmatprep.subr.mxu0 %v8412
        %8603 = vmatpush1.msra.mxu0 %v8411
        %8604 = vmatprep.subr.mxu0 %v8416
        %8605 = vmatpush1.msra.mxu0 %v8415
        %8606 = vmatprep.subr.mxu0 %v8420
        %8607 = vmatpush1.msra.mxu0 %v8419
        %8608 = vmatprep.subr.mxu0 %v8424
        %8609 = vmatpush1.msra.mxu0 %v8423
        %8610 = vmatprep.subr.mxu0 %v8428
        %8611 = vmatpush1.msra.mxu0 %v8427
        %8612 = vmatprep.subr.mxu0 %v8432
        %8613 = vmatpush1.msra.mxu0 %v8431
        %8614 = vmatprep.subr.mxu0 %v8436
        %8615 = vmatpush1.msra.mxu0 %v8435
        %8616 = vmatprep.subr.mxu0 %v8440
        %8617 = vmatpush1.msra.mxu0 %v8439
        %8618 = vmatprep.subr.mxu0 %v8444
        %8619 = vmatpush1.msra.mxu0 %v8443
        %8620 = vmatprep.subr.mxu0 %v8448
        %8621 = vmatpush1.msra.mxu0 %v8447
        %8622 = vmatprep.subr.mxu0 %v8452
        %8623 = vmatpush1.msra.mxu0 %v8451
        %8624 = vmatprep.subr.mxu0 %v8456
        %8625 = vmatpush1.msra.mxu0 %v8455
        %8626 = vmatprep.subr.mxu0 %v8460
        %8627 = vmatpush1.msra.mxu0 %v8459
        %8628 = vmatprep.subr.mxu0 %v8464
        %8629 = vmatpush1.msra.mxu0 %v8463
        %8630 = vmatprep.subr.mxu0 %v8468
        %8631 = vmatpush1.msra.mxu0 %v8467
        %8632 = vmatprep.subr.mxu0 %v8472
        %8633 = vmatpush1.msra.mxu0 %v8471
        %8634 = vmatprep.subr.mxu0 %v8476
        %8635 = vmatpush1.msra.mxu0 %v8475
        %8636 = vmatprep.subr.mxu0 %v8480
        %8637 = vmatpush1.msra.mxu0 %v8479
        %8638 = vmatprep.subr.mxu0 %v8484
        %8639 = vmatpush1.msra.mxu0 %v8483
        %8640 = vmatprep.mubr.f32.mxu0 %v2224
        %8641 = vmatmul.mubr.f32.gmra.mrb[0].mxu0 %v8222
        %v8642 = vpop.f32.mrb[0].mxu0
        %v8643 = vadd.f32 %v8554, %v8642
        %v8644 = vpop.f32.mrb[0].mxu0
        %v8645 = vadd.f32 %v8556, %v8644
        %8646 = vmatprep.mubr.f32.mxu0 %v2231
        %8647 = vmatmul.mubr.f32.gmra.mrb[0].mxu0 %v8223
        %v8648 = vpop.f32.mrb[0].mxu0
        %v8649 = vadd.f32 %v8560, %v8648
        %v8650 = vpop.f32.mrb[0].mxu0
        %v8651 = vadd.f32 %v8562, %v8650
        %8652 = vmatprep.mubr.f32.mxu0 %v2238
        %8653 = vmatmul.mubr.f32.gmra.mrb[0].mxu0 %v8224
        %v8654 = vpop.f32.mrb[0].mxu0
        %v8655 = vadd.f32 %v8566, %v8654
        %v8656 = vpop.f32.mrb[0].mxu0
        %v8657 = vadd.f32 %v8568, %v8656
        %8658 = vmatprep.mubr.f32.mxu0 %v2245
        %8659 = vmatmul.mubr.f32.gmra.mrb[0].mxu0 %v8225
        %v8660 = vpop.f32.mrb[0].mxu0
        %v8661 = vadd.f32 %v8572, %v8660
        %v8662 = vpop.f32.mrb[0].mxu0
        %v8663 = vadd.f32 %v8574, %v8662
        %8664 = vdwg.mxu0
        %8665 = vmatprep.subr.mxu0 %v8234
        %8666 = vmatpush1.msra.mxu0 %v8233
        %8667 = vmatprep.subr.mxu0 %v8238
        %8668 = vmatpush1.msra.mxu0 %v8237
        %8669 = vmatprep.subr.mxu0 %v8242
        %8670 = vmatpush1.msra.mxu0 %v8241
        %8671 = vmatprep.subr.mxu0 %v8246
        %8672 = vmatpush1.msra.mxu0 %v8245
        %8673 = vmatprep.subr.mxu0 %v8250
        %8674 = vmatpush1.msra.mxu0 %v8249
        %8675 = vmatprep.subr.mxu0 %v8254
        %8676 = vmatpush1.msra.mxu0 %v8253
        %8677 = vmatprep.subr.mxu0 %v8258
        %8678 = vmatpush1.msra.mxu0 %v8257
        %8679 = vmatprep.subr.mxu0 %v8262
        %8680 = vmatpush1.msra.mxu0 %v8261
        %8681 = vmatprep.subr.mxu0 %v8266
        %8682 = vmatpush1.msra.mxu0 %v8265
        %8683 = vmatprep.subr.mxu0 %v8270
        %8684 = vmatpush1.msra.mxu0 %v8269
        %8685 = vmatprep.subr.mxu0 %v8274
        %8686 = vmatpush1.msra.mxu0 %v8273
        %8687 = vmatprep.subr.mxu0 %v8278
        %8688 = vmatpush1.msra.mxu0 %v8277
        %8689 = vmatprep.subr.mxu0 %v8282
        %8690 = vmatpush1.msra.mxu0 %v8281
        %8691 = vmatprep.subr.mxu0 %v8286
        %8692 = vmatpush1.msra.mxu0 %v8285
        %8693 = vmatprep.subr.mxu0 %v8290
        %8694 = vmatpush1.msra.mxu0 %v8289
        %8695 = vmatprep.subr.mxu0 %v8294
        %8696 = vmatpush1.msra.mxu0 %v8293
        %8697 = vmatprep.subr.mxu0 %v8298
        %8698 = vmatpush1.msra.mxu0 %v8297
        %8699 = vmatprep.subr.mxu0 %v8302
        %8700 = vmatpush1.msra.mxu0 %v8301
        %8701 = vmatprep.subr.mxu0 %v8306
        %8702 = vmatpush1.msra.mxu0 %v8305
        %8703 = vmatprep.subr.mxu0 %v8310
        %8704 = vmatpush1.msra.mxu0 %v8309
        %8705 = vmatprep.subr.mxu0 %v8314
        %8706 = vmatpush1.msra.mxu0 %v8313
        %8707 = vmatprep.subr.mxu0 %v8318
        %8708 = vmatpush1.msra.mxu0 %v8317
        %8709 = vmatprep.subr.mxu0 %v8322
        %8710 = vmatpush1.msra.mxu0 %v8321
        %8711 = vmatprep.subr.mxu0 %v8326
        %8712 = vmatpush1.msra.mxu0 %v8325
        %8713 = vmatprep.subr.mxu0 %v8330
        %8714 = vmatpush1.msra.mxu0 %v8329
        %8715 = vmatprep.subr.mxu0 %v8334
        %8716 = vmatpush1.msra.mxu0 %v8333
        %8717 = vmatprep.subr.mxu0 %v8338
        %8718 = vmatpush1.msra.mxu0 %v8337
        %8719 = vmatprep.subr.mxu0 %v8342
        %8720 = vmatpush1.msra.mxu0 %v8341
        %8721 = vmatprep.subr.mxu0 %v8346
        %8722 = vmatpush1.msra.mxu0 %v8345
        %8723 = vmatprep.subr.mxu0 %v8350
        %8724 = vmatpush1.msra.mxu0 %v8349
        %8725 = vmatprep.subr.mxu0 %v8354
        %8726 = vmatpush1.msra.mxu0 %v8353
        %8727 = vmatprep.subr.mxu0 %v8358
        %8728 = vmatpush1.msra.mxu0 %v8357
        %8729 = vmatprep.mubr.f32.mxu0 %v8226
        %8730 = vmatmul.mubr.f32.gmra.mrb[0].mxu0 %v2194
        %v8731 = vpop.f32.mrb[0].mxu0
        %v8732 = vadd.f32 0.0, %v8731
        %v8733 = vpop.f32.mrb[0].mxu0
        %v8734 = vadd.f32 0.0, %v8733
        %8735 = vmatprep.mubr.f32.mxu0 %v8227
        %8736 = vmatmul.mubr.f32.gmra.mrb[0].mxu0 %v2195
        %v8737 = vpop.f32.mrb[0].mxu0
        %v8738 = vadd.f32 0.0, %v8737
        %v8739 = vpop.f32.mrb[0].mxu0
        %v8740 = vadd.f32 0.0, %v8739
        %8741 = vmatprep.mubr.f32.mxu0 %v8228
        %8742 = vmatmul.mubr.f32.gmra.mrb[0].mxu0 %v2196
        %v8743 = vpop.f32.mrb[0].mxu0
        %v8744 = vadd.f32 0.0, %v8743
        %v8745 = vpop.f32.mrb[0].mxu0
        %v8746 = vadd.f32 0.0, %v8745
        %8747 = vmatprep.mubr.f32.mxu0 %v8229
        %8748 = vmatmul.mubr.f32.gmra.mrb[0].mxu0 %v2197
        %v8749 = vpop.f32.mrb[0].mxu0
        %v8750 = vadd.f32 0.0, %v8749
        %v8751 = vpop.f32.mrb[0].mxu0
        %v8752 = vadd.f32 0.0, %v8751
        %8753 = vdwg.mxu0
        %8754 = vmatprep.subr.mxu0 %v8362
        %8755 = vmatpush1.msra.mxu0 %v8361
        %8756 = vmatprep.subr.mxu0 %v8366
        %8757 = vmatpush1.msra.mxu0 %v8365
        %8758 = vmatprep.subr.mxu0 %v8370
        %8759 = vmatpush1.msra.mxu0 %v8369
        %8760 = vmatprep.subr.mxu0 %v8374
        %8761 = vmatpush1.msra.mxu0 %v8373
        %8762 = vmatprep.subr.mxu0 %v8378
        %8763 = vmatpush1.msra.mxu0 %v8377
        %8764 = vmatprep.subr.mxu0 %v8382
        %8765 = vmatpush1.msra.mxu0 %v8381
        %8766 = vmatprep.subr.mxu0 %v8386
        %8767 = vmatpush1.msra.mxu0 %v8385
        %8768 = vmatprep.subr.mxu0 %v8390
        %8769 = vmatpush1.msra.mxu0 %v8389
        %8770 = vmatprep.subr.mxu0 %v8394
        %8771 = vmatpush1.msra.mxu0 %v8393
        %8772 = vmatprep.subr.mxu0 %v8398
        %8773 = vmatpush1.msra.mxu0 %v8397
        %8774 = vmatprep.subr.mxu0 %v8402
        %8775 = vmatpush1.msra.mxu0 %v8401
        %8776 = vmatprep.subr.mxu0 %v8406
        %8777 = vmatpush1.msra.mxu0 %v8405
        %8778 = vmatprep.subr.mxu0 %v8410
        %8779 = vmatpush1.msra.mxu0 %v8409
        %8780 = vmatprep.subr.mxu0 %v8414
        %8781 = vmatpush1.msra.mxu0 %v8413
        %8782 = vmatprep.subr.mxu0 %v8418
        %8783 = vmatpush1.msra.mxu0 %v8417
        %8784 = vmatprep.subr.mxu0 %v8422
        %8785 = vmatpush1.msra.mxu0 %v8421
        %8786 = vmatprep.subr.mxu0 %v8426
        %8787 = vmatpush1.msra.mxu0 %v8425
        %8788 = vmatprep.subr.mxu0 %v8430
        %8789 = vmatpush1.msra.mxu0 %v8429
        %8790 = vmatprep.subr.mxu0 %v8434
        %8791 = vmatpush1.msra.mxu0 %v8433
        %8792 = vmatprep.subr.mxu0 %v8438
        %8793 = vmatpush1.msra.mxu0 %v8437
        %8794 = vmatprep.subr.mxu0 %v8442
        %8795 = vmatpush1.msra.mxu0 %v8441
        %8796 = vmatprep.subr.mxu0 %v8446
        %8797 = vmatpush1.msra.mxu0 %v8445
        %8798 = vmatprep.subr.mxu0 %v8450
        %8799 = vmatpush1.msra.mxu0 %v8449
        %8800 = vmatprep.subr.mxu0 %v8454
        %8801 = vmatpush1.msra.mxu0 %v8453
        %8802 = vmatprep.subr.mxu0 %v8458
        %8803 = vmatpush1.msra.mxu0 %v8457
        %8804 = vmatprep.subr.mxu0 %v8462
        %8805 = vmatpush1.msra.mxu0 %v8461
        %8806 = vmatprep.subr.mxu0 %v8466
        %8807 = vmatpush1.msra.mxu0 %v8465
        %8808 = vmatprep.subr.mxu0 %v8470
        %8809 = vmatpush1.msra.mxu0 %v8469
        %8810 = vmatprep.subr.mxu0 %v8474
        %8811 = vmatpush1.msra.mxu0 %v8473
        %8812 = vmatprep.subr.mxu0 %v8478
        %8813 = vmatpush1.msra.mxu0 %v8477
        %8814 = vmatprep.subr.mxu0 %v8482
        %8815 = vmatpush1.msra.mxu0 %v8481
        %8816 = vmatprep.subr.mxu0 %v8486
        %8817 = vmatpush1.msra.mxu0 %v8485
        %8818 = vmatprep.mubr.f32.mxu0 %v2224
        %8819 = vmatmul.mubr.f32.gmra.mrb[0].mxu0 %v8222
        %v8820 = vpop.f32.mrb[0].mxu0
        %v8821 = vadd.f32 %v8732, %v8820
        %v8822 = vpop.f32.mrb[0].mxu0
        %v8823 = vadd.f32 %v8734, %v8822
        %8824 = vmatprep.mubr.f32.mxu0 %v2231
        %8825 = vmatmul.mubr.f32.gmra.mrb[0].mxu0 %v8223
        %v8826 = vpop.f32.mrb[0].mxu0
        %v8827 = vadd.f32 %v8738, %v8826
        %v8828 = vpop.f32.mrb[0].mxu0
        %v8829 = vadd.f32 %v8740, %v8828
        %8830 = vmatprep.mubr.f32.mxu0 %v2238
        %8831 = vmatmul.mubr.f32.gmra.mrb[0].mxu0 %v8224
        %v8832 = vpop.f32.mrb[0].mxu0
        %v8833 = vadd.f32 %v8744, %v8832
        %v8834 = vpop.f32.mrb[0].mxu0
        %v8835 = vadd.f32 %v8746, %v8834
        %8836 = vmatprep.mubr.f32.mxu0 %v2245
        %8837 = vmatmul.mubr.f32.gmra.mrb[0].mxu0 %v8225
        %v8838 = vpop.f32.mrb[0].mxu0
        %v8839 = vadd.f32 %v8750, %v8838
        %v8840 = vpop.f32.mrb[0].mxu0
        %v8841 = vadd.f32 %v8752, %v8840
        %8842 = vdwg.mxu0
        %v8843 = vld [vmem:[%s701] sm:$0xff]
        %v8844 = vld [vmem:[%s701 + $0x8] sm:$0xff]
        %v8845 = vld [vmem:[%s701 + $0x10] sm:$0xff]
        %v8846 = vld [vmem:[%s701 + $0x18] sm:$0xff]
        %v8847 = vld [vmem:[%s701 + $0x20] sm:$0xff]
        %v8848 = vld [vmem:[%s701 + $0x28] sm:$0xff]
        %v8849 = vld [vmem:[%s701 + $0x30] sm:$0xff]
        %v8850 = vld [vmem:[%s701 + $0x38] sm:$0xff]
        %v8851 = vld [vmem:[%s701 + $0x40] sm:$0xff]
        %v8852 = vld [vmem:[%s701 + $0x48] sm:$0xff]
        %v8853 = vld [vmem:[%s701 + $0x50] sm:$0xff]
        %v8854 = vld [vmem:[%s701 + $0x58] sm:$0xff]
        %v8855 = vld [vmem:[%s701 + $0x60] sm:$0xff]
        %v8856 = vld [vmem:[%s701 + $0x68] sm:$0xff]
        %v8857 = vld [vmem:[%s701 + $0x70] sm:$0xff]
        %v8858 = vld [vmem:[%s701 + $0x78] sm:$0xff]
        %v8859 = vlaneseq
        %v8860 = vshrl.u32 %v8859, 7
        %v8861 = vsub.s32 0, %v8860
        %v8862 = vrot.slane %v8230, %v8861
        %8863 = vmatprep.subr.mxu0 0.0
        %8864 = vmatpush1.msra.mxu0 %v8843
        %8865 = vmatprep.subr.mxu0 0.0
        %8866 = vmatpush1.msra.mxu0 %v8844
        %8867 = vmatprep.subr.mxu0 0.0
        %8868 = vmatpush1.msra.mxu0 %v8845
        %8869 = vmatprep.subr.mxu0 0.0
        %8870 = vmatpush1.msra.mxu0 %v8846
        %8871 = vmatprep.subr.mxu0 0.0
        %8872 = vmatpush1.msra.mxu0 %v8847
        %8873 = vmatprep.subr.mxu0 0.0
        %8874 = vmatpush1.msra.mxu0 %v8848
        %8875 = vmatprep.subr.mxu0 0.0
        %8876 = vmatpush1.msra.mxu0 %v8849
        %8877 = vmatprep.subr.mxu0 0.0
        %8878 = vmatpush1.msra.mxu0 %v8850
        %8879 = vmatprep.subr.mxu0 0.0
        %8880 = vmatpush1.msra.mxu0 %v8851
        %8881 = vmatprep.subr.mxu0 0.0
        %8882 = vmatpush1.msra.mxu0 %v8852
        %8883 = vmatprep.subr.mxu0 0.0
        %8884 = vmatpush1.msra.mxu0 %v8853
        %8885 = vmatprep.subr.mxu0 0.0
        %8886 = vmatpush1.msra.mxu0 %v8854
        %8887 = vmatprep.subr.mxu0 0.0
        %8888 = vmatpush1.msra.mxu0 %v8855
        %8889 = vmatprep.subr.mxu0 0.0
        %8890 = vmatpush1.msra.mxu0 %v8856
        %8891 = vmatprep.subr.mxu0 0.0
        %8892 = vmatpush1.msra.mxu0 %v8857
        %8893 = vmatprep.subr.mxu0 0.0
        %8894 = vmatpush1.msra.mxu0 %v8858
        %8895 = vmatprep.subr.mxu0 0.0
        %8896 = vmatpush1.msra.mxu0 0.0
        %8897 = vmatprep.subr.mxu0 0.0
        %8898 = vmatpush1.msra.mxu0 0.0
        %8899 = vmatprep.subr.mxu0 0.0
        %8900 = vmatpush1.msra.mxu0 0.0
        %8901 = vmatprep.subr.mxu0 0.0
        %8902 = vmatpush1.msra.mxu0 0.0
        %8903 = vmatprep.subr.mxu0 0.0
        %8904 = vmatpush1.msra.mxu0 0.0
        %8905 = vmatprep.subr.mxu0 0.0
        %8906 = vmatpush1.msra.mxu0 0.0
        %8907 = vmatprep.subr.mxu0 0.0
        %8908 = vmatpush1.msra.mxu0 0.0
        %8909 = vmatprep.subr.mxu0 0.0
        %8910 = vmatpush1.msra.mxu0 0.0
        %8911 = vmatprep.subr.mxu0 0.0
        %8912 = vmatpush1.msra.mxu0 0.0
        %8913 = vmatprep.subr.mxu0 0.0
        %8914 = vmatpush1.msra.mxu0 0.0
        %8915 = vmatprep.subr.mxu0 0.0
        %8916 = vmatpush1.msra.mxu0 0.0
        %8917 = vmatprep.subr.mxu0 0.0
        %8918 = vmatpush1.msra.mxu0 0.0
        %8919 = vmatprep.subr.mxu0 0.0
        %8920 = vmatpush1.msra.mxu0 0.0
        %8921 = vmatprep.subr.mxu0 0.0
        %8922 = vmatpush1.msra.mxu0 0.0
        %8923 = vmatprep.subr.mxu0 0.0
        %8924 = vmatpush1.msra.mxu0 0.0
        %8925 = vmatprep.subr.mxu0 0.0
        %8926 = vmatpush1.msra.mxu0 0.0
        %8927 = vmatprep.mubr.f32.mxu0 0.0
        %8928 = vmatmul.mubr.f32.gmra.mrb[0].mxu0 %v827
        %v8929 = vpop.f32.mrb[0].mxu0
        %v8930 = vadd.f32 %v8862, %v8929
        %v8931 = vpop.f32.mrb[0].mxu0
        %8932 = vmatprep.mubr.f32.mxu0 0.0
        %8933 = vmatmul.mubr.f32.gmra.mrb[0].mxu0 %v828
        %v8934 = vpop.f32.mrb[0].mxu0
        %v8935 = vadd.f32 %v8862, %v8934
        %v8936 = vpop.f32.mrb[0].mxu0
        %8937 = vmatprep.mubr.f32.mxu0 0.0
        %8938 = vmatmul.mubr.f32.gmra.mrb[0].mxu0 %v829
        %v8939 = vpop.f32.mrb[0].mxu0
        %v8940 = vadd.f32 %v8862, %v8939
        %v8941 = vpop.f32.mrb[0].mxu0
        %8942 = vmatprep.mubr.f32.mxu0 0.0
        %8943 = vmatmul.mubr.f32.gmra.mrb[0].mxu0 %v830
        %v8944 = vpop.f32.mrb[0].mxu0
        %v8945 = vadd.f32 %v8862, %v8944
        %v8946 = vpop.f32.mrb[0].mxu0
        %8947 = vdwg.mxu0
        %8948 = vset.pattern.permute.xlu0 1
        %8949 = vperm.xlu0 %8948, %v863
        %v8950 = vpop.permute.xlu0 %8949
        %8952 = vset.pattern.permute.xlu0 1
        %8953 = vperm.xlu0 %8952, %v864
        %v8954 = vpop.permute.xlu0 %8953
        %8956 = vset.pattern.permute.xlu0 1
        %8957 = vperm.xlu0 %8956, %v865
        %v8958 = vpop.permute.xlu0 %8957
        %8960 = vset.pattern.permute.xlu0 1
        %8961 = vperm.xlu0 %8960, %v866
        %v8962 = vpop.permute.xlu0 %8961
        %v8964 = vmul.f32 %v8950, %v8643
        %v8965 = vmul.f32 %v8954, %v8649
        %v8966 = vmul.f32 %v8958, %v8655
        %v8967 = vmul.f32 %v8962, %v8661
        %v8968 = vadd.f32 %v8930, %v8964
        %v8969 = vadd.f32 %v8935, %v8965
        %v8970 = vadd.f32 %v8940, %v8966
        %v8971 = vadd.f32 %v8945, %v8967
        %8972 = vset.pattern.permute.xlu0 2
        %8973 = vperm.xlu0 %8972, %v863
        %v8974 = vpop.permute.xlu0 %8973
        %8976 = vset.pattern.permute.xlu0 2
        %8977 = vperm.xlu0 %8976, %v864
        %v8978 = vpop.permute.xlu0 %8977
        %8980 = vset.pattern.permute.xlu0 2
        %8981 = vperm.xlu0 %8980, %v865
        %v8982 = vpop.permute.xlu0 %8981
        %8984 = vset.pattern.permute.xlu0 2
        %8985 = vperm.xlu0 %8984, %v866
        %v8986 = vpop.permute.xlu0 %8985
        %v8988 = vmul.f32 %v8974, %v8645
        %v8989 = vmul.f32 %v8978, %v8651
        %v8990 = vmul.f32 %v8982, %v8657
        %v8991 = vmul.f32 %v8986, %v8663
        %v8992 = vadd.f32 %v8968, %v8988
        %v8993 = vadd.f32 %v8969, %v8989
        %v8994 = vadd.f32 %v8970, %v8990
        %v8995 = vadd.f32 %v8971, %v8991
        %8996 = vset.pattern.permute.xlu0 3
        %8997 = vperm.xlu0 %8996, %v863
        %v8998 = vpop.permute.xlu0 %8997
        %9000 = vset.pattern.permute.xlu0 3
        %9001 = vperm.xlu0 %9000, %v864
        %v9002 = vpop.permute.xlu0 %9001
        %9004 = vset.pattern.permute.xlu0 3
        %9005 = vperm.xlu0 %9004, %v865
        %v9006 = vpop.permute.xlu0 %9005
        %9008 = vset.pattern.permute.xlu0 3
        %9009 = vperm.xlu0 %9008, %v866
        %v9010 = vpop.permute.xlu0 %9009
        %v9012 = vmul.f32 %v8998, %v8821
        %v9013 = vmul.f32 %v9002, %v8827
        %v9014 = vmul.f32 %v9006, %v8833
        %v9015 = vmul.f32 %v9010, %v8839
        %v9016 = vadd.f32 %v8992, %v9012
        %v9017 = vadd.f32 %v8993, %v9013
        %v9018 = vadd.f32 %v8994, %v9014
        %v9019 = vadd.f32 %v8995, %v9015
        %9020 = vset.pattern.permute.xlu0 4
        %9021 = vperm.xlu0 %9020, %v863
        %v9022 = vpop.permute.xlu0 %9021
        %9024 = vset.pattern.permute.xlu0 4
        %9025 = vperm.xlu0 %9024, %v864
        %v9026 = vpop.permute.xlu0 %9025
        %9028 = vset.pattern.permute.xlu0 4
        %9029 = vperm.xlu0 %9028, %v865
        %v9030 = vpop.permute.xlu0 %9029
        %9032 = vset.pattern.permute.xlu0 4
        %9033 = vperm.xlu0 %9032, %v866
        %v9034 = vpop.permute.xlu0 %9033
        %v9036 = vmul.f32 %v9022, %v8823
        %v9037 = vmul.f32 %v9026, %v8829
        %v9038 = vmul.f32 %v9030, %v8835
        %v9039 = vmul.f32 %v9034, %v8841
        %v9040 = vadd.f32 %v9016, %v9036
        %v9041 = vadd.f32 %v9017, %v9037
        %v9042 = vadd.f32 %v9018, %v9038
        %v9043 = vadd.f32 %v9019, %v9039
        %v9044 = vld [vmem:[%s728 + $0x3] sm:$0x1]
        %v9045 = vld [vmem:[%s719] sm:$0xff]
        %v9046 = vld [vmem:[%s719 + $0x8] sm:$0xff]
        %v9047 = vld [vmem:[%s719 + $0x10] sm:$0xff]
        %v9048 = vld [vmem:[%s719 + $0x18] sm:$0xff]
        %v9049 = vld [vmem:[%s719 + $0x20] sm:$0xff]
        %v9050 = vld [vmem:[%s719 + $0x28] sm:$0xff]
        %v9051 = vld [vmem:[%s719 + $0x30] sm:$0xff]
        %v9052 = vld [vmem:[%s719 + $0x38] sm:$0xff]
        %v9053 = vld [vmem:[%s719 + $0x40] sm:$0xff]
        %v9054 = vld [vmem:[%s719 + $0x48] sm:$0xff]
        %v9055 = vld [vmem:[%s719 + $0x50] sm:$0xff]
        %v9056 = vld [vmem:[%s719 + $0x58] sm:$0xff]
        %v9057 = vld [vmem:[%s719 + $0x60] sm:$0xff]
        %v9058 = vld [vmem:[%s719 + $0x68] sm:$0xff]
        %v9059 = vld [vmem:[%s719 + $0x70] sm:$0xff]
        %v9060 = vld [vmem:[%s719 + $0x78] sm:$0xff]
        %v9061 = vlaneseq
        %v9062 = vshrl.u32 %v9061, 7
        %v9063 = vsub.s32 0, %v9062
        %v9064 = vrot.slane %v9044, %v9063
        %9065 = vmatprep.subr.mxu0 0.0
        %9066 = vmatpush1.msra.mxu0 %v9045
        %9067 = vmatprep.subr.mxu0 0.0
        %9068 = vmatpush1.msra.mxu0 %v9046
        %9069 = vmatprep.subr.mxu0 0.0
        %9070 = vmatpush1.msra.mxu0 %v9047
        %9071 = vmatprep.subr.mxu0 0.0
        %9072 = vmatpush1.msra.mxu0 %v9048
        %9073 = vmatprep.subr.mxu0 0.0
        %9074 = vmatpush1.msra.mxu0 %v9049
        %9075 = vmatprep.subr.mxu0 0.0
        %9076 = vmatpush1.msra.mxu0 %v9050
        %9077 = vmatprep.subr.mxu0 0.0
        %9078 = vmatpush1.msra.mxu0 %v9051
        %9079 = vmatprep.subr.mxu0 0.0
        %9080 = vmatpush1.msra.mxu0 %v9052
        %9081 = vmatprep.subr.mxu0 0.0
        %9082 = vmatpush1.msra.mxu0 %v9053
        %9083 = vmatprep.subr.mxu0 0.0
        %9084 = vmatpush1.msra.mxu0 %v9054
        %9085 = vmatprep.subr.mxu0 0.0
        %9086 = vmatpush1.msra.mxu0 %v9055
        %9087 = vmatprep.subr.mxu0 0.0
        %9088 = vmatpush1.msra.mxu0 %v9056
        %9089 = vmatprep.subr.mxu0 0.0
        %9090 = vmatpush1.msra.mxu0 %v9057
        %9091 = vmatprep.subr.mxu0 0.0
        %9092 = vmatpush1.msra.mxu0 %v9058
        %9093 = vmatprep.subr.mxu0 0.0
        %9094 = vmatpush1.msra.mxu0 %v9059
        %9095 = vmatprep.subr.mxu0 0.0
        %9096 = vmatpush1.msra.mxu0 %v9060
        %9097 = vmatprep.subr.mxu0 0.0
        %9098 = vmatpush1.msra.mxu0 0.0
        %9099 = vmatprep.subr.mxu0 0.0
        %9100 = vmatpush1.msra.mxu0 0.0
        %9101 = vmatprep.subr.mxu0 0.0
        %9102 = vmatpush1.msra.mxu0 0.0
        %9103 = vmatprep.subr.mxu0 0.0
        %9104 = vmatpush1.msra.mxu0 0.0
        %9105 = vmatprep.subr.mxu0 0.0
        %9106 = vmatpush1.msra.mxu0 0.0
        %9107 = vmatprep.subr.mxu0 0.0
        %9108 = vmatpush1.msra.mxu0 0.0
        %9109 = vmatprep.subr.mxu0 0.0
        %9110 = vmatpush1.msra.mxu0 0.0
        %9111 = vmatprep.subr.mxu0 0.0
        %9112 = vmatpush1.msra.mxu0 0.0
        %9113 = vmatprep.subr.mxu0 0.0
        %9114 = vmatpush1.msra.mxu0 0.0
        %9115 = vmatprep.subr.mxu0 0.0
        %9116 = vmatpush1.msra.mxu0 0.0
        %9117 = vmatprep.subr.mxu0 0.0
        %9118 = vmatpush1.msra.mxu0 0.0
        %9119 = vmatprep.subr.mxu0 0.0
        %9120 = vmatpush1.msra.mxu0 0.0
        %9121 = vmatprep.subr.mxu0 0.0
        %9122 = vmatpush1.msra.mxu0 0.0
        %9123 = vmatprep.subr.mxu0 0.0
        %9124 = vmatpush1.msra.mxu0 0.0
        %9125 = vmatprep.subr.mxu0 0.0
        %9126 = vmatpush1.msra.mxu0 0.0
        %9127 = vmatprep.subr.mxu0 0.0
        %9128 = vmatpush1.msra.mxu0 0.0
        %9129 = vmatprep.mubr.f32.mxu0 0.0
        %9130 = vmatmul.mubr.f32.gmra.mrb[0].mxu0 %v9040
        %v9131 = vpop.f32.mrb[0].mxu0
        %v9132 = vadd.f32 %v9064, %v9131
        %v9133 = vpop.f32.mrb[0].mxu0
        %9134 = vmatprep.mubr.f32.mxu0 0.0
        %9135 = vmatmul.mubr.f32.gmra.mrb[0].mxu0 %v9041
        %v9136 = vpop.f32.mrb[0].mxu0
        %v9137 = vadd.f32 %v9064, %v9136
        %v9138 = vpop.f32.mrb[0].mxu0
        %9139 = vmatprep.mubr.f32.mxu0 0.0
        %9140 = vmatmul.mubr.f32.gmra.mrb[0].mxu0 %v9042
        %v9141 = vpop.f32.mrb[0].mxu0
        %v9142 = vadd.f32 %v9064, %v9141
        %v9143 = vpop.f32.mrb[0].mxu0
        %9144 = vmatprep.mubr.f32.mxu0 0.0
        %9145 = vmatmul.mubr.f32.gmra.mrb[0].mxu0 %v9043
        %v9146 = vpop.f32.mrb[0].mxu0
        %v9147 = vadd.f32 %v9064, %v9146
        %v9148 = vpop.f32.mrb[0].mxu0
        %9149 = vdwg.mxu0
        %v9150 = vld [vmem:[%s728 + $0x4] sm:$0x1]
        %v9151 = vld [vmem:[%s728 + $0x5] sm:$0x1]
        %v9152 = vadd.f32 %v9132, %v9137
        %v9153 = vadd.f32 %v9152, %v9142
        %v9154 = vadd.f32 %v9153, %v9147
        %v9155 = vrot.slane %v9154, 4
        %v9156 = vadd.f32 %v9154, %v9155
        %v9157 = vrot.slane %v9156, 2
        %v9158 = vadd.f32 %v9156, %v9157
        %v9159 = vrot.slane %v9158, 1
        %v9160 = vadd.f32 %v9158, %v9159
        %v9161 = vrcp.pop 32.0
        %v9162 = vmul.f32 %v9160, %v9161
        %v9163 = vsub.f32 %v9132, %v9162
        %v9164 = vsub.f32 %v9137, %v9162
        %v9165 = vsub.f32 %v9142, %v9162
        %v9166 = vsub.f32 %v9147, %v9162
        %v9167 = vmul.f32 %v9163, %v9163
        %v9168 = vmul.f32 %v9164, %v9164
        %v9169 = vmul.f32 %v9165, %v9165
        %v9170 = vmul.f32 %v9166, %v9166
        %v9171 = vadd.f32 %v9167, %v9168
        %v9172 = vadd.f32 %v9171, %v9169
        %v9173 = vadd.f32 %v9172, %v9170
        %v9174 = vrot.slane %v9173, 4
        %v9175 = vadd.f32 %v9173, %v9174
        %v9176 = vrot.slane %v9175, 2
        %v9177 = vadd.f32 %v9175, %v9176
        %v9178 = vrot.slane %v9177, 1
        %v9179 = vadd.f32 %v9177, %v9178
        %v9180 = vmul.f32 %v9179, %v9161
        %v9181 = vadd.f32 %v9180, 1e-05
        %v9182 = vrsqrt.pop %v9181
        %v9183 = vmul.f32 %v9163, %v9182
        %v9184 = vmul.f32 %v9164, %v9182
        %v9185 = vmul.f32 %v9165, %v9182
        %v9186 = vmul.f32 %v9166, %v9182
        %v9187 = vlaneseq
        %v9188 = vshrl.u32 %v9187, 7
        %v9189 = vsub.s32 0, %v9188
        %v9190 = vrot.slane %v9150, %v9189
        %v9191 = vmul.f32 %v9183, %v9190
        %v9192 = vmul.f32 %v9184, %v9190
        %v9193 = vmul.f32 %v9185, %v9190
        %v9194 = vmul.f32 %v9186, %v9190
        %v9195 = vlaneseq
        %v9196 = vshrl.u32 %v9195, 7
        %v9197 = vsub.s32 0, %v9196
        %v9198 = vrot.slane %v9151, %v9197
        %v9199 = vadd.f32 %v9191, %v9198
        %v9200 = vadd.f32 %v9192, %v9198
        %v9201 = vadd.f32 %v9193, %v9198
        %v9202 = vadd.f32 %v9194, %v9198
        %vm9203 = vcmp.gt.f32.partialorder %v9199, 0.0
        %vm9204 = vcmp.gt.f32.partialorder %v9200, 0.0
        %vm9205 = vcmp.gt.f32.partialorder %v9201, 0.0
        %vm9206 = vcmp.gt.f32.partialorder %v9202, 0.0
        %v9207 = vmul.f32 %v9199, 0.01
        %v9208 = vmul.f32 %v9200, 0.01
        %v9209 = vmul.f32 %v9201, 0.01
        %v9210 = vmul.f32 %v9202, 0.01
        %v9211 = vsel %vm9203, %v9199, %v9207
        %v9212 = vsel %vm9204, %v9200, %v9208
        %v9213 = vsel %vm9205, %v9201, %v9209
        %v9214 = vsel %vm9206, %v9202, %v9210
        %9215 = vst [vmem:[#allocation2] sm:$0xff] %v9211
        %9216 = vst [vmem:[#allocation2 + $0x8] sm:$0xff] %v9212
        %9217 = vst [vmem:[#allocation2 + $0x10] sm:$0xff] %v9213
        %9218 = vst [vmem:[#allocation2 + $0x18] sm:$0xff] %v9214
        %p9219 = scmp.eq.s32.totalorder %s44, 5
        // Predicated region
        $region133: #{modified_pna_net.1} parent=91 // pred_check
          %p9220 = pneg %p9219
        $region134: #{modified_pna_net.1} parent=91 // pred_check_branch
          %9222 = sbr.rel (%p9220) target = $region136
        $region135: #{modified_pna_net.1} parent=91 // pred_region
          %v9223 = vld [vmem:[%s5] sm:$0xff]
          %v9224 = vld [vmem:[%s5 + $0x8] sm:$0xff]
          %v9225 = vld [vmem:[%s5 + $0x10] sm:$0xff]
          %v9226 = vld [vmem:[%s5 + $0x18] sm:$0xff]
          %9227 = vxpose.xlu0.b32.start [1/16] %v9223, 128
          %9228 = vxpose.xlu0.b32.cont [2/16] %v9224, 128
          %9229 = vxpose.xlu0.b32.cont [3/16] %v9225, 128
          %9230 = vxpose.xlu0.b32.cont [4/16] %v9226, 128
          %9231 = vxpose.xlu0.b32.cont [5/16] 0.0, 128
          %9232 = vxpose.xlu0.b32.cont [6/16] 0.0, 128
          %9233 = vxpose.xlu0.b32.cont [7/16] 0.0, 128
          %9234 = vxpose.xlu0.b32.cont [8/16] 0.0, 128
          %9235 = vxpose.xlu0.b32.cont [9/16] 0.0, 128
          %9236 = vxpose.xlu0.b32.cont [10/16] 0.0, 128
          %9237 = vxpose.xlu0.b32.cont [11/16] 0.0, 128
          %9238 = vxpose.xlu0.b32.cont [12/16] 0.0, 128
          %9239 = vxpose.xlu0.b32.cont [13/16] 0.0, 128
          %9240 = vxpose.xlu0.b32.cont [14/16] 0.0, 128
          %9241 = vxpose.xlu0.b32.cont [15/16] 0.0, 128
          %9242 = vxpose.xlu0.b32.end [16/16] 0.0, 128
          %v9243 = vpop.trf.xlu0
          %v9244 = vpop.trf.xlu0
          %v9245 = vpop.trf.xlu0
          %v9246 = vpop.trf.xlu0
          %v9247 = vpop.trf.xlu0
          %v9248 = vpop.trf.xlu0
          %v9249 = vpop.trf.xlu0
          %v9250 = vpop.trf.xlu0
          %v9251 = vpop.trf.xlu0
          %v9252 = vpop.trf.xlu0
          %v9253 = vpop.trf.xlu0
          %v9254 = vpop.trf.xlu0
          %v9255 = vpop.trf.xlu0
          %v9256 = vpop.trf.xlu0
          %v9257 = vpop.trf.xlu0
          %v9258 = vpop.trf.xlu0
          %v9260 = vsel %vm867, %v9243, 0
          %9262 = vmatprep.subr.mxu0 0.0
          %9263 = vmatpush1.msra.mxu0 %v9211
          %9264 = vmatprep.subr.mxu0 0.0
          %9265 = vmatpush1.msra.mxu0 %v9212
          %9266 = vmatprep.subr.mxu0 0.0
          %9267 = vmatpush1.msra.mxu0 %v9213
          %9268 = vmatprep.subr.mxu0 0.0
          %9269 = vmatpush1.msra.mxu0 %v9214
          %9270 = vmatprep.subr.mxu0 0.0
          %9271 = vmatpush1.msra.mxu0 0.0
          %9272 = vmatprep.subr.mxu0 0.0
          %9273 = vmatpush1.msra.mxu0 0.0
          %9274 = vmatprep.subr.mxu0 0.0
          %9275 = vmatpush1.msra.mxu0 0.0
          %9276 = vmatprep.subr.mxu0 0.0
          %9277 = vmatpush1.msra.mxu0 0.0
          %9278 = vmatprep.subr.mxu0 0.0
          %9279 = vmatpush1.msra.mxu0 0.0
          %9280 = vmatprep.subr.mxu0 0.0
          %9281 = vmatpush1.msra.mxu0 0.0
          %9282 = vmatprep.subr.mxu0 0.0
          %9283 = vmatpush1.msra.mxu0 0.0
          %9284 = vmatprep.subr.mxu0 0.0
          %9285 = vmatpush1.msra.mxu0 0.0
          %9286 = vmatprep.subr.mxu0 0.0
          %9287 = vmatpush1.msra.mxu0 0.0
          %9288 = vmatprep.subr.mxu0 0.0
          %9289 = vmatpush1.msra.mxu0 0.0
          %9290 = vmatprep.subr.mxu0 0.0
          %9291 = vmatpush1.msra.mxu0 0.0
          %9292 = vmatprep.subr.mxu0 0.0
          %9293 = vmatpush1.msra.mxu0 0.0
          %9294 = vmatprep.subr.mxu0 0.0
          %9295 = vmatpush1.msra.mxu0 0.0
          %9296 = vmatprep.subr.mxu0 0.0
          %9297 = vmatpush1.msra.mxu0 0.0
          %9298 = vmatprep.subr.mxu0 0.0
          %9299 = vmatpush1.msra.mxu0 0.0
          %9300 = vmatprep.subr.mxu0 0.0
          %9301 = vmatpush1.msra.mxu0 0.0
          %9302 = vmatprep.subr.mxu0 0.0
          %9303 = vmatpush1.msra.mxu0 0.0
          %9304 = vmatprep.subr.mxu0 0.0
          %9305 = vmatpush1.msra.mxu0 0.0
          %9306 = vmatprep.subr.mxu0 0.0
          %9307 = vmatpush1.msra.mxu0 0.0
          %9308 = vmatprep.subr.mxu0 0.0
          %9309 = vmatpush1.msra.mxu0 0.0
          %9310 = vmatprep.subr.mxu0 0.0
          %9311 = vmatpush1.msra.mxu0 0.0
          %9312 = vmatprep.subr.mxu0 0.0
          %9313 = vmatpush1.msra.mxu0 0.0
          %9314 = vmatprep.subr.mxu0 0.0
          %9315 = vmatpush1.msra.mxu0 0.0
          %9316 = vmatprep.subr.mxu0 0.0
          %9317 = vmatpush1.msra.mxu0 0.0
          %9318 = vmatprep.subr.mxu0 0.0
          %9319 = vmatpush1.msra.mxu0 0.0
          %9320 = vmatprep.subr.mxu0 0.0
          %9321 = vmatpush1.msra.mxu0 0.0
          %9322 = vmatprep.subr.mxu0 0.0
          %9323 = vmatpush1.msra.mxu0 0.0
          %9324 = vmatprep.subr.mxu0 0.0
          %9325 = vmatpush1.msra.mxu0 0.0
          %9326 = vmatprep.mubr.f32.mxu0 0.0
          %9327 = vmatmul.mubr.f32.gmra.mrb[0].mxu0 %v9260
          %v9328 = vpop.f32.mrb[0].mxu0
          %v9329 = vadd.f32 0.0, %v9328
          %v9330 = vpop.f32.mrb[0].mxu0
          %9331 = vdwg.mxu0
          %v9332 = vlaneseq
          %v9333 = vshrl.u32 %v9332, 7
          %v9334 = vsub.s32 0, %v9333
          %v9335 = vrot.slane %v9223, %v9334
          %9337 = vbcast.lane.b32.xlu0 %v9335, 256
          %v9338 = vpop.permute.xlu0 %9337
          %v9339 = vlaneseq
          %v9340 = vshrl.u32 %v9339, 7
          %v9341 = vsub.s32 1, %v9340
          %v9342 = vrot.slane %v9223, %v9341
          %9344 = vbcast.lane.b32.xlu0 %v9342, 256
          %v9345 = vpop.permute.xlu0 %9344
          %v9346 = vlaneseq
          %v9347 = vshrl.u32 %v9346, 7
          %v9348 = vsub.s32 2, %v9347
          %v9349 = vrot.slane %v9223, %v9348
          %9351 = vbcast.lane.b32.xlu0 %v9349, 256
          %v9352 = vpop.permute.xlu0 %9351
          %v9353 = vlaneseq
          %v9354 = vshrl.u32 %v9353, 7
          %v9355 = vsub.s32 3, %v9354
          %v9356 = vrot.slane %v9223, %v9355
          %9358 = vbcast.lane.b32.xlu0 %v9356, 256
          %v9359 = vpop.permute.xlu0 %9358
          %v9360 = vlaneseq
          %v9361 = vshrl.u32 %v9360, 7
          %v9362 = vsub.s32 4, %v9361
          %v9363 = vrot.slane %v9223, %v9362
          %9365 = vbcast.lane.b32.xlu0 %v9363, 256
          %v9366 = vpop.permute.xlu0 %9365
          %v9367 = vlaneseq
          %v9368 = vshrl.u32 %v9367, 7
          %v9369 = vsub.s32 5, %v9368
          %v9370 = vrot.slane %v9223, %v9369
          %9372 = vbcast.lane.b32.xlu0 %v9370, 256
          %v9373 = vpop.permute.xlu0 %9372
          %v9374 = vlaneseq
          %v9375 = vshrl.u32 %v9374, 7
          %v9376 = vsub.s32 6, %v9375
          %v9377 = vrot.slane %v9223, %v9376
          %9379 = vbcast.lane.b32.xlu0 %v9377, 256
          %v9380 = vpop.permute.xlu0 %9379
          %v9381 = vlaneseq
          %v9382 = vshrl.u32 %v9381, 7
          %v9383 = vsub.s32 7, %v9382
          %v9384 = vrot.slane %v9223, %v9383
          %9386 = vbcast.lane.b32.xlu0 %v9384, 256
          %v9387 = vpop.permute.xlu0 %9386
          %v9388 = vlaneseq
          %v9389 = vshrl.u32 %v9388, 7
          %v9390 = vsub.s32 0, %v9389
          %v9391 = vrot.slane %v9224, %v9390
          %9393 = vbcast.lane.b32.xlu0 %v9391, 256
          %v9394 = vpop.permute.xlu0 %9393
          %v9395 = vlaneseq
          %v9396 = vshrl.u32 %v9395, 7
          %v9397 = vsub.s32 1, %v9396
          %v9398 = vrot.slane %v9224, %v9397
          %9400 = vbcast.lane.b32.xlu0 %v9398, 256
          %v9401 = vpop.permute.xlu0 %9400
          %v9402 = vlaneseq
          %v9403 = vshrl.u32 %v9402, 7
          %v9404 = vsub.s32 2, %v9403
          %v9405 = vrot.slane %v9224, %v9404
          %9407 = vbcast.lane.b32.xlu0 %v9405, 256
          %v9408 = vpop.permute.xlu0 %9407
          %v9409 = vlaneseq
          %v9410 = vshrl.u32 %v9409, 7
          %v9411 = vsub.s32 3, %v9410
          %v9412 = vrot.slane %v9224, %v9411
          %9414 = vbcast.lane.b32.xlu0 %v9412, 256
          %v9415 = vpop.permute.xlu0 %9414
          %v9416 = vlaneseq
          %v9417 = vshrl.u32 %v9416, 7
          %v9418 = vsub.s32 4, %v9417
          %v9419 = vrot.slane %v9224, %v9418
          %9421 = vbcast.lane.b32.xlu0 %v9419, 256
          %v9422 = vpop.permute.xlu0 %9421
          %v9423 = vlaneseq
          %v9424 = vshrl.u32 %v9423, 7
          %v9425 = vsub.s32 5, %v9424
          %v9426 = vrot.slane %v9224, %v9425
          %9428 = vbcast.lane.b32.xlu0 %v9426, 256
          %v9429 = vpop.permute.xlu0 %9428
          %v9430 = vlaneseq
          %v9431 = vshrl.u32 %v9430, 7
          %v9432 = vsub.s32 6, %v9431
          %v9433 = vrot.slane %v9224, %v9432
          %9435 = vbcast.lane.b32.xlu0 %v9433, 256
          %v9436 = vpop.permute.xlu0 %9435
          %v9437 = vlaneseq
          %v9438 = vshrl.u32 %v9437, 7
          %v9439 = vsub.s32 7, %v9438
          %v9440 = vrot.slane %v9224, %v9439
          %9442 = vbcast.lane.b32.xlu0 %v9440, 256
          %v9443 = vpop.permute.xlu0 %9442
          %v9444 = vlaneseq
          %v9445 = vshrl.u32 %v9444, 7
          %v9446 = vsub.s32 0, %v9445
          %v9447 = vrot.slane %v9225, %v9446
          %9449 = vbcast.lane.b32.xlu0 %v9447, 256
          %v9450 = vpop.permute.xlu0 %9449
          %v9451 = vlaneseq
          %v9452 = vshrl.u32 %v9451, 7
          %v9453 = vsub.s32 1, %v9452
          %v9454 = vrot.slane %v9225, %v9453
          %9456 = vbcast.lane.b32.xlu0 %v9454, 256
          %v9457 = vpop.permute.xlu0 %9456
          %v9458 = vlaneseq
          %v9459 = vshrl.u32 %v9458, 7
          %v9460 = vsub.s32 2, %v9459
          %v9461 = vrot.slane %v9225, %v9460
          %9463 = vbcast.lane.b32.xlu0 %v9461, 256
          %v9464 = vpop.permute.xlu0 %9463
          %v9465 = vlaneseq
          %v9466 = vshrl.u32 %v9465, 7
          %v9467 = vsub.s32 3, %v9466
          %v9468 = vrot.slane %v9225, %v9467
          %9470 = vbcast.lane.b32.xlu0 %v9468, 256
          %v9471 = vpop.permute.xlu0 %9470
          %v9472 = vlaneseq
          %v9473 = vshrl.u32 %v9472, 7
          %v9474 = vsub.s32 4, %v9473
          %v9475 = vrot.slane %v9225, %v9474
          %9477 = vbcast.lane.b32.xlu0 %v9475, 256
          %v9478 = vpop.permute.xlu0 %9477
          %v9479 = vlaneseq
          %v9480 = vshrl.u32 %v9479, 7
          %v9481 = vsub.s32 5, %v9480
          %v9482 = vrot.slane %v9225, %v9481
          %9484 = vbcast.lane.b32.xlu0 %v9482, 256
          %v9485 = vpop.permute.xlu0 %9484
          %v9486 = vlaneseq
          %v9487 = vshrl.u32 %v9486, 7
          %v9488 = vsub.s32 6, %v9487
          %v9489 = vrot.slane %v9225, %v9488
          %9491 = vbcast.lane.b32.xlu0 %v9489, 256
          %v9492 = vpop.permute.xlu0 %9491
          %v9493 = vlaneseq
          %v9494 = vshrl.u32 %v9493, 7
          %v9495 = vsub.s32 7, %v9494
          %v9496 = vrot.slane %v9225, %v9495
          %9498 = vbcast.lane.b32.xlu0 %v9496, 256
          %v9499 = vpop.permute.xlu0 %9498
          %v9500 = vlaneseq
          %v9501 = vshrl.u32 %v9500, 7
          %v9502 = vsub.s32 0, %v9501
          %v9503 = vrot.slane %v9226, %v9502
          %9505 = vbcast.lane.b32.xlu0 %v9503, 256
          %v9506 = vpop.permute.xlu0 %9505
          %v9507 = vlaneseq
          %v9508 = vshrl.u32 %v9507, 7
          %v9509 = vsub.s32 1, %v9508
          %v9510 = vrot.slane %v9226, %v9509
          %9512 = vbcast.lane.b32.xlu0 %v9510, 256
          %v9513 = vpop.permute.xlu0 %9512
          %v9514 = vlaneseq
          %v9515 = vshrl.u32 %v9514, 7
          %v9516 = vsub.s32 2, %v9515
          %v9517 = vrot.slane %v9226, %v9516
          %9519 = vbcast.lane.b32.xlu0 %v9517, 256
          %v9520 = vpop.permute.xlu0 %9519
          %v9521 = vlaneseq
          %v9522 = vshrl.u32 %v9521, 7
          %v9523 = vsub.s32 3, %v9522
          %v9524 = vrot.slane %v9226, %v9523
          %9526 = vbcast.lane.b32.xlu0 %v9524, 256
          %v9527 = vpop.permute.xlu0 %9526
          %v9528 = vlaneseq
          %v9529 = vshrl.u32 %v9528, 7
          %v9530 = vsub.s32 4, %v9529
          %v9531 = vrot.slane %v9226, %v9530
          %9533 = vbcast.lane.b32.xlu0 %v9531, 256
          %v9534 = vpop.permute.xlu0 %9533
          %v9535 = vlaneseq
          %v9536 = vshrl.u32 %v9535, 7
          %v9537 = vsub.s32 5, %v9536
          %v9538 = vrot.slane %v9226, %v9537
          %9540 = vbcast.lane.b32.xlu0 %v9538, 256
          %v9541 = vpop.permute.xlu0 %9540
          %v9542 = vlaneseq
          %v9543 = vshrl.u32 %v9542, 7
          %v9544 = vsub.s32 6, %v9543
          %v9545 = vrot.slane %v9226, %v9544
          %9547 = vbcast.lane.b32.xlu0 %v9545, 256
          %v9548 = vpop.permute.xlu0 %9547
          %v9549 = vlaneseq
          %v9550 = vshrl.u32 %v9549, 7
          %v9551 = vsub.s32 7, %v9550
          %v9552 = vrot.slane %v9226, %v9551
          %9554 = vbcast.lane.b32.xlu0 %v9552, 256
          %v9555 = vpop.permute.xlu0 %9554
          %vm9556 = vcmp.gt.f32.partialorder %v9338, 0.0
          %vm9557 = vcmp.gt.f32.partialorder %v9345, 0.0
          %vm9558 = vcmp.gt.f32.partialorder %v9352, 0.0
          %vm9559 = vcmp.gt.f32.partialorder %v9359, 0.0
          %vm9560 = vcmp.gt.f32.partialorder %v9366, 0.0
          %vm9561 = vcmp.gt.f32.partialorder %v9373, 0.0
          %vm9562 = vcmp.gt.f32.partialorder %v9380, 0.0
          %vm9563 = vcmp.gt.f32.partialorder %v9387, 0.0
          %vm9564 = vcmp.gt.f32.partialorder %v9394, 0.0
          %vm9565 = vcmp.gt.f32.partialorder %v9401, 0.0
          %vm9566 = vcmp.gt.f32.partialorder %v9408, 0.0
          %vm9567 = vcmp.gt.f32.partialorder %v9415, 0.0
          %vm9568 = vcmp.gt.f32.partialorder %v9422, 0.0
          %vm9569 = vcmp.gt.f32.partialorder %v9429, 0.0
          %vm9570 = vcmp.gt.f32.partialorder %v9436, 0.0
          %vm9571 = vcmp.gt.f32.partialorder %v9443, 0.0
          %vm9572 = vcmp.gt.f32.partialorder %v9450, 0.0
          %vm9573 = vcmp.gt.f32.partialorder %v9457, 0.0
          %vm9574 = vcmp.gt.f32.partialorder %v9464, 0.0
          %vm9575 = vcmp.gt.f32.partialorder %v9471, 0.0
          %vm9576 = vcmp.gt.f32.partialorder %v9478, 0.0
          %vm9577 = vcmp.gt.f32.partialorder %v9485, 0.0
          %vm9578 = vcmp.gt.f32.partialorder %v9492, 0.0
          %vm9579 = vcmp.gt.f32.partialorder %v9499, 0.0
          %vm9580 = vcmp.gt.f32.partialorder %v9506, 0.0
          %vm9581 = vcmp.gt.f32.partialorder %v9513, 0.0
          %vm9582 = vcmp.gt.f32.partialorder %v9520, 0.0
          %vm9583 = vcmp.gt.f32.partialorder %v9527, 0.0
          %vm9584 = vcmp.gt.f32.partialorder %v9534, 0.0
          %vm9585 = vcmp.gt.f32.partialorder %v9541, 0.0
          %vm9586 = vcmp.gt.f32.partialorder %v9548, 0.0
          %vm9587 = vcmp.gt.f32.partialorder %v9555, 0.0
          %v9592 = vcombine.high %v9211, %v9211
          %v9594 = vunpack.c.l.s4 1966171168
          %v9595 = vunpack.c.0.s8 %v9594
          %v9596 = vlaneseq
          %v9597 = vshrl.u32 %v9596, 7
          %v9598 = vsub.s32 %v9595, %v9597
          %v9599 = vrot.slane %v9211, %v9598
          %v9601 = vunpack.c.l.s4 1966171168
          %v9602 = vunpack.c.0.s8 %v9601
          %v9603 = vlaneseq
          %v9604 = vshrl.u32 %v9603, 7
          %v9605 = vsub.s32 %v9602, %v9604
          %v9606 = vrot.slane %v9592, %v9605
          %v9607 = vcombine.high %v9599, %v9599
          %v9608 = vcombine.high %v9606, %v9606
          %v9610 = vunpack.c.l.s4 1966171168
          %v9611 = vunpack.c.0.s8 %v9610
          %v9612 = vlaneseq
          %v9613 = vshrl.u32 %v9612, 7
          %v9614 = vsub.s32 %v9611, %v9613
          %v9615 = vrot.slane %v9599, %v9614
          %v9617 = vunpack.c.l.s4 1966171168
          %v9618 = vunpack.c.0.s8 %v9617
          %v9619 = vlaneseq
          %v9620 = vshrl.u32 %v9619, 7
          %v9621 = vsub.s32 %v9618, %v9620
          %v9622 = vrot.slane %v9606, %v9621
          %v9624 = vunpack.c.l.s4 1966171168
          %v9625 = vunpack.c.0.s8 %v9624
          %v9626 = vlaneseq
          %v9627 = vshrl.u32 %v9626, 7
          %v9628 = vsub.s32 %v9625, %v9627
          %v9629 = vrot.slane %v9607, %v9628
          %v9631 = vunpack.c.l.s4 1966171168
          %v9632 = vunpack.c.0.s8 %v9631
          %v9633 = vlaneseq
          %v9634 = vshrl.u32 %v9633, 7
          %v9635 = vsub.s32 %v9632, %v9634
          %v9636 = vrot.slane %v9608, %v9635
          %v9637 = vcombine.high %v9615, %v9615
          %v9638 = vcombine.high %v9622, %v9622
          %v9639 = vcombine.high %v9629, %v9629
          %v9640 = vcombine.high %v9636, %v9636
          %v9641 = vcombine.high %v9212, %v9212
          %v9643 = vunpack.c.l.s4 1966171168
          %v9644 = vunpack.c.0.s8 %v9643
          %v9645 = vlaneseq
          %v9646 = vshrl.u32 %v9645, 7
          %v9647 = vsub.s32 %v9644, %v9646
          %v9648 = vrot.slane %v9212, %v9647
          %v9650 = vunpack.c.l.s4 1966171168
          %v9651 = vunpack.c.0.s8 %v9650
          %v9652 = vlaneseq
          %v9653 = vshrl.u32 %v9652, 7
          %v9654 = vsub.s32 %v9651, %v9653
          %v9655 = vrot.slane %v9641, %v9654
          %v9656 = vcombine.high %v9648, %v9648
          %v9657 = vcombine.high %v9655, %v9655
          %v9659 = vunpack.c.l.s4 1966171168
          %v9660 = vunpack.c.0.s8 %v9659
          %v9661 = vlaneseq
          %v9662 = vshrl.u32 %v9661, 7
          %v9663 = vsub.s32 %v9660, %v9662
          %v9664 = vrot.slane %v9648, %v9663
          %v9666 = vunpack.c.l.s4 1966171168
          %v9667 = vunpack.c.0.s8 %v9666
          %v9668 = vlaneseq
          %v9669 = vshrl.u32 %v9668, 7
          %v9670 = vsub.s32 %v9667, %v9669
          %v9671 = vrot.slane %v9655, %v9670
          %v9673 = vunpack.c.l.s4 1966171168
          %v9674 = vunpack.c.0.s8 %v9673
          %v9675 = vlaneseq
          %v9676 = vshrl.u32 %v9675, 7
          %v9677 = vsub.s32 %v9674, %v9676
          %v9678 = vrot.slane %v9656, %v9677
          %v9680 = vunpack.c.l.s4 1966171168
          %v9681 = vunpack.c.0.s8 %v9680
          %v9682 = vlaneseq
          %v9683 = vshrl.u32 %v9682, 7
          %v9684 = vsub.s32 %v9681, %v9683
          %v9685 = vrot.slane %v9657, %v9684
          %v9686 = vcombine.high %v9664, %v9664
          %v9687 = vcombine.high %v9671, %v9671
          %v9688 = vcombine.high %v9678, %v9678
          %v9689 = vcombine.high %v9685, %v9685
          %v9690 = vcombine.high %v9213, %v9213
          %v9692 = vunpack.c.l.s4 1966171168
          %v9693 = vunpack.c.0.s8 %v9692
          %v9694 = vlaneseq
          %v9695 = vshrl.u32 %v9694, 7
          %v9696 = vsub.s32 %v9693, %v9695
          %v9697 = vrot.slane %v9213, %v9696
          %v9699 = vunpack.c.l.s4 1966171168
          %v9700 = vunpack.c.0.s8 %v9699
          %v9701 = vlaneseq
          %v9702 = vshrl.u32 %v9701, 7
          %v9703 = vsub.s32 %v9700, %v9702
          %v9704 = vrot.slane %v9690, %v9703
          %v9705 = vcombine.high %v9697, %v9697
          %v9706 = vcombine.high %v9704, %v9704
          %v9708 = vunpack.c.l.s4 1966171168
          %v9709 = vunpack.c.0.s8 %v9708
          %v9710 = vlaneseq
          %v9711 = vshrl.u32 %v9710, 7
          %v9712 = vsub.s32 %v9709, %v9711
          %v9713 = vrot.slane %v9697, %v9712
          %v9715 = vunpack.c.l.s4 1966171168
          %v9716 = vunpack.c.0.s8 %v9715
          %v9717 = vlaneseq
          %v9718 = vshrl.u32 %v9717, 7
          %v9719 = vsub.s32 %v9716, %v9718
          %v9720 = vrot.slane %v9704, %v9719
          %v9722 = vunpack.c.l.s4 1966171168
          %v9723 = vunpack.c.0.s8 %v9722
          %v9724 = vlaneseq
          %v9725 = vshrl.u32 %v9724, 7
          %v9726 = vsub.s32 %v9723, %v9725
          %v9727 = vrot.slane %v9705, %v9726
          %v9729 = vunpack.c.l.s4 1966171168
          %v9730 = vunpack.c.0.s8 %v9729
          %v9731 = vlaneseq
          %v9732 = vshrl.u32 %v9731, 7
          %v9733 = vsub.s32 %v9730, %v9732
          %v9734 = vrot.slane %v9706, %v9733
          %v9735 = vcombine.high %v9713, %v9713
          %v9736 = vcombine.high %v9720, %v9720
          %v9737 = vcombine.high %v9727, %v9727
          %v9738 = vcombine.high %v9734, %v9734
          %v9739 = vcombine.high %v9214, %v9214
          %v9741 = vunpack.c.l.s4 1966171168
          %v9742 = vunpack.c.0.s8 %v9741
          %v9743 = vlaneseq
          %v9744 = vshrl.u32 %v9743, 7
          %v9745 = vsub.s32 %v9742, %v9744
          %v9746 = vrot.slane %v9214, %v9745
          %v9748 = vunpack.c.l.s4 1966171168
          %v9749 = vunpack.c.0.s8 %v9748
          %v9750 = vlaneseq
          %v9751 = vshrl.u32 %v9750, 7
          %v9752 = vsub.s32 %v9749, %v9751
          %v9753 = vrot.slane %v9739, %v9752
          %v9754 = vcombine.high %v9746, %v9746
          %v9755 = vcombine.high %v9753, %v9753
          %v9757 = vunpack.c.l.s4 1966171168
          %v9758 = vunpack.c.0.s8 %v9757
          %v9759 = vlaneseq
          %v9760 = vshrl.u32 %v9759, 7
          %v9761 = vsub.s32 %v9758, %v9760
          %v9762 = vrot.slane %v9746, %v9761
          %v9764 = vunpack.c.l.s4 1966171168
          %v9765 = vunpack.c.0.s8 %v9764
          %v9766 = vlaneseq
          %v9767 = vshrl.u32 %v9766, 7
          %v9768 = vsub.s32 %v9765, %v9767
          %v9769 = vrot.slane %v9753, %v9768
          %v9771 = vunpack.c.l.s4 1966171168
          %v9772 = vunpack.c.0.s8 %v9771
          %v9773 = vlaneseq
          %v9774 = vshrl.u32 %v9773, 7
          %v9775 = vsub.s32 %v9772, %v9774
          %v9776 = vrot.slane %v9754, %v9775
          %v9778 = vunpack.c.l.s4 1966171168
          %v9779 = vunpack.c.0.s8 %v9778
          %v9780 = vlaneseq
          %v9781 = vshrl.u32 %v9780, 7
          %v9782 = vsub.s32 %v9779, %v9781
          %v9783 = vrot.slane %v9755, %v9782
          %v9784 = vcombine.high %v9762, %v9762
          %v9785 = vcombine.high %v9769, %v9769
          %v9786 = vcombine.high %v9776, %v9776
          %v9787 = vcombine.high %v9783, %v9783
          %v9788 = vsel %vm9556, 1, 0
          %v9789 = vsel %vm9557, 1, 0
          %v9790 = vsel %vm9558, 1, 0
          %v9791 = vsel %vm9559, 1, 0
          %v9792 = vsel %vm9560, 1, 0
          %v9793 = vsel %vm9561, 1, 0
          %v9794 = vsel %vm9562, 1, 0
          %v9795 = vsel %vm9563, 1, 0
          %v9796 = vsel %vm9564, 1, 0
          %v9797 = vsel %vm9565, 1, 0
          %v9798 = vsel %vm9566, 1, 0
          %v9799 = vsel %vm9567, 1, 0
          %v9800 = vsel %vm9568, 1, 0
          %v9801 = vsel %vm9569, 1, 0
          %v9802 = vsel %vm9570, 1, 0
          %v9803 = vsel %vm9571, 1, 0
          %v9804 = vsel %vm9572, 1, 0
          %v9805 = vsel %vm9573, 1, 0
          %v9806 = vsel %vm9574, 1, 0
          %v9807 = vsel %vm9575, 1, 0
          %v9808 = vsel %vm9576, 1, 0
          %v9809 = vsel %vm9577, 1, 0
          %v9810 = vsel %vm9578, 1, 0
          %v9811 = vsel %vm9579, 1, 0
          %v9812 = vsel %vm9580, 1, 0
          %v9813 = vsel %vm9581, 1, 0
          %v9814 = vsel %vm9582, 1, 0
          %v9815 = vsel %vm9583, 1, 0
          %v9816 = vsel %vm9584, 1, 0
          %v9817 = vsel %vm9585, 1, 0
          %v9818 = vsel %vm9586, 1, 0
          %v9819 = vsel %vm9587, 1, 0
          %vm9820 = vcmp.eq.s32.totalorder %v9788, 1
          %vm9821 = vcmp.eq.s32.totalorder %v9789, 1
          %vm9822 = vcmp.eq.s32.totalorder %v9790, 1
          %vm9823 = vcmp.eq.s32.totalorder %v9791, 1
          %vm9824 = vcmp.eq.s32.totalorder %v9792, 1
          %vm9825 = vcmp.eq.s32.totalorder %v9793, 1
          %vm9826 = vcmp.eq.s32.totalorder %v9794, 1
          %vm9827 = vcmp.eq.s32.totalorder %v9795, 1
          %vm9828 = vcmp.eq.s32.totalorder %v9796, 1
          %vm9829 = vcmp.eq.s32.totalorder %v9797, 1
          %vm9830 = vcmp.eq.s32.totalorder %v9798, 1
          %vm9831 = vcmp.eq.s32.totalorder %v9799, 1
          %vm9832 = vcmp.eq.s32.totalorder %v9800, 1
          %vm9833 = vcmp.eq.s32.totalorder %v9801, 1
          %vm9834 = vcmp.eq.s32.totalorder %v9802, 1
          %vm9835 = vcmp.eq.s32.totalorder %v9803, 1
          %vm9836 = vcmp.eq.s32.totalorder %v9804, 1
          %vm9837 = vcmp.eq.s32.totalorder %v9805, 1
          %vm9838 = vcmp.eq.s32.totalorder %v9806, 1
          %vm9839 = vcmp.eq.s32.totalorder %v9807, 1
          %vm9840 = vcmp.eq.s32.totalorder %v9808, 1
          %vm9841 = vcmp.eq.s32.totalorder %v9809, 1
          %vm9842 = vcmp.eq.s32.totalorder %v9810, 1
          %vm9843 = vcmp.eq.s32.totalorder %v9811, 1
          %vm9844 = vcmp.eq.s32.totalorder %v9812, 1
          %vm9845 = vcmp.eq.s32.totalorder %v9813, 1
          %vm9846 = vcmp.eq.s32.totalorder %v9814, 1
          %vm9847 = vcmp.eq.s32.totalorder %v9815, 1
          %vm9848 = vcmp.eq.s32.totalorder %v9816, 1
          %vm9849 = vcmp.eq.s32.totalorder %v9817, 1
          %vm9850 = vcmp.eq.s32.totalorder %v9818, 1
          %vm9851 = vcmp.eq.s32.totalorder %v9819, 1
          %v9852 = vlaneseq
          %v9853 = vshrl.u32 %v9852, 7
          %v9854 = vsub.s32 0, %v9853
          %v9855 = vrot.slane %v9615, %v9854
          %v9856 = vlaneseq
          %v9857 = vshrl.u32 %v9856, 7
          %v9858 = vsub.s32 0, %v9857
          %v9859 = vrot.slane %v9629, %v9858
          %v9860 = vlaneseq
          %v9861 = vshrl.u32 %v9860, 7
          %v9862 = vsub.s32 0, %v9861
          %v9863 = vrot.slane %v9637, %v9862
          %v9864 = vlaneseq
          %v9865 = vshrl.u32 %v9864, 7
          %v9866 = vsub.s32 0, %v9865
          %v9867 = vrot.slane %v9639, %v9866
          %v9868 = vlaneseq
          %v9869 = vshrl.u32 %v9868, 7
          %v9870 = vsub.s32 0, %v9869
          %v9871 = vrot.slane %v9622, %v9870
          %v9872 = vlaneseq
          %v9873 = vshrl.u32 %v9872, 7
          %v9874 = vsub.s32 0, %v9873
          %v9875 = vrot.slane %v9636, %v9874
          %v9876 = vlaneseq
          %v9877 = vshrl.u32 %v9876, 7
          %v9878 = vsub.s32 0, %v9877
          %v9879 = vrot.slane %v9638, %v9878
          %v9880 = vlaneseq
          %v9881 = vshrl.u32 %v9880, 7
          %v9882 = vsub.s32 0, %v9881
          %v9883 = vrot.slane %v9640, %v9882
          %v9884 = vlaneseq
          %v9885 = vshrl.u32 %v9884, 7
          %v9886 = vsub.s32 0, %v9885
          %v9887 = vrot.slane %v9664, %v9886
          %v9888 = vlaneseq
          %v9889 = vshrl.u32 %v9888, 7
          %v9890 = vsub.s32 0, %v9889
          %v9891 = vrot.slane %v9678, %v9890
          %v9892 = vlaneseq
          %v9893 = vshrl.u32 %v9892, 7
          %v9894 = vsub.s32 0, %v9893
          %v9895 = vrot.slane %v9686, %v9894
          %v9896 = vlaneseq
          %v9897 = vshrl.u32 %v9896, 7
          %v9898 = vsub.s32 0, %v9897
          %v9899 = vrot.slane %v9688, %v9898
          %v9900 = vlaneseq
          %v9901 = vshrl.u32 %v9900, 7
          %v9902 = vsub.s32 0, %v9901
          %v9903 = vrot.slane %v9671, %v9902
          %v9904 = vlaneseq
          %v9905 = vshrl.u32 %v9904, 7
          %v9906 = vsub.s32 0, %v9905
          %v9907 = vrot.slane %v9685, %v9906
          %v9908 = vlaneseq
          %v9909 = vshrl.u32 %v9908, 7
          %v9910 = vsub.s32 0, %v9909
          %v9911 = vrot.slane %v9687, %v9910
          %v9912 = vlaneseq
          %v9913 = vshrl.u32 %v9912, 7
          %v9914 = vsub.s32 0, %v9913
          %v9915 = vrot.slane %v9689, %v9914
          %v9916 = vlaneseq
          %v9917 = vshrl.u32 %v9916, 7
          %v9918 = vsub.s32 0, %v9917
          %v9919 = vrot.slane %v9713, %v9918
          %v9920 = vlaneseq
          %v9921 = vshrl.u32 %v9920, 7
          %v9922 = vsub.s32 0, %v9921
          %v9923 = vrot.slane %v9727, %v9922
          %v9924 = vlaneseq
          %v9925 = vshrl.u32 %v9924, 7
          %v9926 = vsub.s32 0, %v9925
          %v9927 = vrot.slane %v9735, %v9926
          %v9928 = vlaneseq
          %v9929 = vshrl.u32 %v9928, 7
          %v9930 = vsub.s32 0, %v9929
          %v9931 = vrot.slane %v9737, %v9930
          %v9932 = vlaneseq
          %v9933 = vshrl.u32 %v9932, 7
          %v9934 = vsub.s32 0, %v9933
          %v9935 = vrot.slane %v9720, %v9934
          %v9936 = vlaneseq
          %v9937 = vshrl.u32 %v9936, 7
          %v9938 = vsub.s32 0, %v9937
          %v9939 = vrot.slane %v9734, %v9938
          %v9940 = vlaneseq
          %v9941 = vshrl.u32 %v9940, 7
          %v9942 = vsub.s32 0, %v9941
          %v9943 = vrot.slane %v9736, %v9942
          %v9944 = vlaneseq
          %v9945 = vshrl.u32 %v9944, 7
          %v9946 = vsub.s32 0, %v9945
          %v9947 = vrot.slane %v9738, %v9946
          %v9948 = vlaneseq
          %v9949 = vshrl.u32 %v9948, 7
          %v9950 = vsub.s32 0, %v9949
          %v9951 = vrot.slane %v9762, %v9950
          %v9952 = vlaneseq
          %v9953 = vshrl.u32 %v9952, 7
          %v9954 = vsub.s32 0, %v9953
          %v9955 = vrot.slane %v9776, %v9954
          %v9956 = vlaneseq
          %v9957 = vshrl.u32 %v9956, 7
          %v9958 = vsub.s32 0, %v9957
          %v9959 = vrot.slane %v9784, %v9958
          %v9960 = vlaneseq
          %v9961 = vshrl.u32 %v9960, 7
          %v9962 = vsub.s32 0, %v9961
          %v9963 = vrot.slane %v9786, %v9962
          %v9964 = vlaneseq
          %v9965 = vshrl.u32 %v9964, 7
          %v9966 = vsub.s32 0, %v9965
          %v9967 = vrot.slane %v9769, %v9966
          %v9968 = vlaneseq
          %v9969 = vshrl.u32 %v9968, 7
          %v9970 = vsub.s32 0, %v9969
          %v9971 = vrot.slane %v9783, %v9970
          %v9972 = vlaneseq
          %v9973 = vshrl.u32 %v9972, 7
          %v9974 = vsub.s32 0, %v9973
          %v9975 = vrot.slane %v9785, %v9974
          %v9976 = vlaneseq
          %v9977 = vshrl.u32 %v9976, 7
          %v9978 = vsub.s32 0, %v9977
          %v9979 = vrot.slane %v9787, %v9978
          %v10012 = vsel %vm9820, %v9855, -1e+30
          %v10013 = vsel %vm9821, %v9859, -1e+30
          %v10014 = vsel %vm9822, %v9863, -1e+30
          %v10015 = vsel %vm9823, %v9867, -1e+30
          %v10016 = vsel %vm9824, %v9871, -1e+30
          %v10017 = vsel %vm9825, %v9875, -1e+30
          %v10018 = vsel %vm9826, %v9879, -1e+30
          %v10019 = vsel %vm9827, %v9883, -1e+30
          %v10020 = vsel %vm9828, %v9887, -1e+30
          %v10021 = vsel %vm9829, %v9891, -1e+30
          %v10022 = vsel %vm9830, %v9895, -1e+30
          %v10023 = vsel %vm9831, %v9899, -1e+30
          %v10024 = vsel %vm9832, %v9903, -1e+30
          %v10025 = vsel %vm9833, %v9907, -1e+30
          %v10026 = vsel %vm9834, %v9911, -1e+30
          %v10027 = vsel %vm9835, %v9915, -1e+30
          %v10028 = vsel %vm9836, %v9919, -1e+30
          %v10029 = vsel %vm9837, %v9923, -1e+30
          %v10030 = vsel %vm9838, %v9927, -1e+30
          %v10031 = vsel %vm9839, %v9931, -1e+30
          %v10032 = vsel %vm9840, %v9935, -1e+30
          %v10033 = vsel %vm9841, %v9939, -1e+30
          %v10034 = vsel %vm9842, %v9943, -1e+30
          %v10035 = vsel %vm9843, %v9947, -1e+30
          %v10036 = vsel %vm9844, %v9951, -1e+30
          %v10037 = vsel %vm9845, %v9955, -1e+30
          %v10038 = vsel %vm9846, %v9959, -1e+30
          %v10039 = vsel %vm9847, %v9963, -1e+30
          %v10040 = vsel %vm9848, %v9967, -1e+30
          %v10041 = vsel %vm9849, %v9971, -1e+30
          %v10042 = vsel %vm9850, %v9975, -1e+30
          %v10043 = vsel %vm9851, %v9979, -1e+30
          %vm10044 = vcmask 1041408
          %v10045 = vsel %vm10044, %v10012, -inf
          %v10046 = vsel %vm10044, %v10013, -inf
          %v10047 = vsel %vm10044, %v10014, -inf
          %v10048 = vsel %vm10044, %v10015, -inf
          %v10049 = vsel %vm10044, %v10016, -inf
          %v10050 = vmax.f32 %v10045, %v10049
          %v10051 = vsel %vm10044, %v10017, -inf
          %v10052 = vmax.f32 %v10046, %v10051
          %v10053 = vsel %vm10044, %v10018, -inf
          %v10054 = vmax.f32 %v10047, %v10053
          %v10055 = vsel %vm10044, %v10019, -inf
          %v10056 = vmax.f32 %v10048, %v10055
          %v10057 = vsel %vm10044, %v10020, -inf
          %v10058 = vmax.f32 %v10050, %v10057
          %v10059 = vsel %vm10044, %v10021, -inf
          %v10060 = vmax.f32 %v10052, %v10059
          %v10061 = vsel %vm10044, %v10022, -inf
          %v10062 = vmax.f32 %v10054, %v10061
          %v10063 = vsel %vm10044, %v10023, -inf
          %v10064 = vmax.f32 %v10056, %v10063
          %v10065 = vsel %vm10044, %v10024, -inf
          %v10066 = vmax.f32 %v10058, %v10065
          %v10067 = vsel %vm10044, %v10025, -inf
          %v10068 = vmax.f32 %v10060, %v10067
          %v10069 = vsel %vm10044, %v10026, -inf
          %v10070 = vmax.f32 %v10062, %v10069
          %v10071 = vsel %vm10044, %v10027, -inf
          %v10072 = vmax.f32 %v10064, %v10071
          %v10073 = vsel %vm10044, %v10028, -inf
          %v10074 = vmax.f32 %v10066, %v10073
          %v10075 = vsel %vm10044, %v10029, -inf
          %v10076 = vmax.f32 %v10068, %v10075
          %v10077 = vsel %vm10044, %v10030, -inf
          %v10078 = vmax.f32 %v10070, %v10077
          %v10079 = vsel %vm10044, %v10031, -inf
          %v10080 = vmax.f32 %v10072, %v10079
          %v10081 = vsel %vm10044, %v10032, -inf
          %v10082 = vmax.f32 %v10074, %v10081
          %v10083 = vsel %vm10044, %v10033, -inf
          %v10084 = vmax.f32 %v10076, %v10083
          %v10085 = vsel %vm10044, %v10034, -inf
          %v10086 = vmax.f32 %v10078, %v10085
          %v10087 = vsel %vm10044, %v10035, -inf
          %v10088 = vmax.f32 %v10080, %v10087
          %v10089 = vsel %vm10044, %v10036, -inf
          %v10090 = vmax.f32 %v10082, %v10089
          %v10091 = vsel %vm10044, %v10037, -inf
          %v10092 = vmax.f32 %v10084, %v10091
          %v10093 = vsel %vm10044, %v10038, -inf
          %v10094 = vmax.f32 %v10086, %v10093
          %v10095 = vsel %vm10044, %v10039, -inf
          %v10096 = vmax.f32 %v10088, %v10095
          %v10097 = vsel %vm10044, %v10040, -inf
          %v10098 = vmax.f32 %v10090, %v10097
          %v10099 = vsel %vm10044, %v10041, -inf
          %v10100 = vmax.f32 %v10092, %v10099
          %v10101 = vsel %vm10044, %v10042, -inf
          %v10102 = vmax.f32 %v10094, %v10101
          %v10103 = vsel %vm10044, %v10043, -inf
          %v10104 = vmax.f32 %v10096, %v10103
          %v10105 = vmax.f32 %v10098, %v10100
          %v10106 = vmax.f32 %v10102, %v10104
          %v10107 = vmax.f32 %v10105, %v10106
          %v10108 = vld [vmem:[#allocation14] sm:$0xff]
          %v10109 = vld [vmem:[#allocation14 + $0x8] sm:$0xff]
          %v10110 = vld [vmem:[#allocation14 + $0x10] sm:$0xff]
          %v10111 = vld [vmem:[#allocation14 + $0x18] sm:$0xff]
          %v10112 = vld [vmem:[#allocation14 + $0x20] sm:$0xff]
          %v10113 = vld [vmem:[#allocation14 + $0x28] sm:$0xff]
          %v10114 = vld [vmem:[#allocation14 + $0x30] sm:$0xff]
          %v10115 = vld [vmem:[#allocation14 + $0x38] sm:$0xff]
          %v10116 = vld [vmem:[#allocation14 + $0x40] sm:$0xff]
          %v10117 = vld [vmem:[#allocation14 + $0x48] sm:$0xff]
          %v10118 = vld [vmem:[#allocation14 + $0x50] sm:$0xff]
          %v10119 = vld [vmem:[#allocation14 + $0x58] sm:$0xff]
          %v10120 = vld [vmem:[#allocation14 + $0x60] sm:$0xff]
          %v10121 = vld [vmem:[#allocation14 + $0x68] sm:$0xff]
          %v10122 = vld [vmem:[#allocation14 + $0x70] sm:$0xff]
          %v10123 = vld [vmem:[#allocation14 + $0x78] sm:$0xff]
          %v10124 = vld [vmem:[#allocation14 + $0x80] sm:$0xff]
          %v10125 = vld [vmem:[#allocation14 + $0x88] sm:$0xff]
          %v10126 = vld [vmem:[#allocation14 + $0x90] sm:$0xff]
          %v10127 = vld [vmem:[#allocation14 + $0x98] sm:$0xff]
          %v10128 = vld [vmem:[#allocation14 + $0xa0] sm:$0xff]
          %v10129 = vld [vmem:[#allocation14 + $0xa8] sm:$0xff]
          %v10130 = vld [vmem:[#allocation14 + $0xb0] sm:$0xff]
          %v10131 = vld [vmem:[#allocation14 + $0xb8] sm:$0xff]
          %v10132 = vld [vmem:[#allocation14 + $0xc0] sm:$0xff]
          %v10133 = vld [vmem:[#allocation14 + $0xc8] sm:$0xff]
          %v10134 = vld [vmem:[#allocation14 + $0xd0] sm:$0xff]
          %v10135 = vld [vmem:[#allocation14 + $0xd8] sm:$0xff]
          %v10136 = vld [vmem:[#allocation14 + $0xe0] sm:$0xff]
          %v10137 = vld [vmem:[#allocation14 + $0xe8] sm:$0xff]
          %v10138 = vld [vmem:[#allocation14 + $0xf0] sm:$0xff]
          %v10139 = vld [vmem:[#allocation14 + $0xf8] sm:$0xff]
          %10140 = vmatprep.subr.mxu0 0.0
          %10141 = vmatpush1.msra.mxu0 %v10124
          %10142 = vmatprep.subr.mxu0 0.0
          %10143 = vmatpush1.msra.mxu0 %v10125
          %10144 = vmatprep.subr.mxu0 0.0
          %10145 = vmatpush1.msra.mxu0 %v10126
          %10146 = vmatprep.subr.mxu0 0.0
          %10147 = vmatpush1.msra.mxu0 %v10127
          %10148 = vmatprep.subr.mxu0 0.0
          %10149 = vmatpush1.msra.mxu0 %v10128
          %10150 = vmatprep.subr.mxu0 0.0
          %10151 = vmatpush1.msra.mxu0 %v10129
          %10152 = vmatprep.subr.mxu0 0.0
          %10153 = vmatpush1.msra.mxu0 %v10130
          %10154 = vmatprep.subr.mxu0 0.0
          %10155 = vmatpush1.msra.mxu0 %v10131
          %10156 = vmatprep.subr.mxu0 0.0
          %10157 = vmatpush1.msra.mxu0 %v10132
          %10158 = vmatprep.subr.mxu0 0.0
          %10159 = vmatpush1.msra.mxu0 %v10133
          %10160 = vmatprep.subr.mxu0 0.0
          %10161 = vmatpush1.msra.mxu0 %v10134
          %10162 = vmatprep.subr.mxu0 0.0
          %10163 = vmatpush1.msra.mxu0 %v10135
          %10164 = vmatprep.subr.mxu0 0.0
          %10165 = vmatpush1.msra.mxu0 %v10136
          %10166 = vmatprep.subr.mxu0 0.0
          %10167 = vmatpush1.msra.mxu0 %v10137
          %10168 = vmatprep.subr.mxu0 0.0
          %10169 = vmatpush1.msra.mxu0 %v10138
          %10170 = vmatprep.subr.mxu0 0.0
          %10171 = vmatpush1.msra.mxu0 %v10139
          %10172 = vmatprep.subr.mxu0 0.0
          %10173 = vmatpush1.msra.mxu0 0.0
          %10174 = vmatprep.subr.mxu0 0.0
          %10175 = vmatpush1.msra.mxu0 0.0
          %10176 = vmatprep.subr.mxu0 0.0
          %10177 = vmatpush1.msra.mxu0 0.0
          %10178 = vmatprep.subr.mxu0 0.0
          %10179 = vmatpush1.msra.mxu0 0.0
          %10180 = vmatprep.subr.mxu0 0.0
          %10181 = vmatpush1.msra.mxu0 0.0
          %10182 = vmatprep.subr.mxu0 0.0
          %10183 = vmatpush1.msra.mxu0 0.0
          %10184 = vmatprep.subr.mxu0 0.0
          %10185 = vmatpush1.msra.mxu0 0.0
          %10186 = vmatprep.subr.mxu0 0.0
          %10187 = vmatpush1.msra.mxu0 0.0
          %10188 = vmatprep.subr.mxu0 0.0
          %10189 = vmatpush1.msra.mxu0 0.0
          %10190 = vmatprep.subr.mxu0 0.0
          %10191 = vmatpush1.msra.mxu0 0.0
          %10192 = vmatprep.subr.mxu0 0.0
          %10193 = vmatpush1.msra.mxu0 0.0
          %10194 = vmatprep.subr.mxu0 0.0
          %10195 = vmatpush1.msra.mxu0 0.0
          %10196 = vmatprep.subr.mxu0 0.0
          %10197 = vmatpush1.msra.mxu0 0.0
          %10198 = vmatprep.subr.mxu0 0.0
          %10199 = vmatpush1.msra.mxu0 0.0
          %10200 = vmatprep.subr.mxu0 0.0
          %10201 = vmatpush1.msra.mxu0 0.0
          %10202 = vmatprep.subr.mxu0 0.0
          %10203 = vmatpush1.msra.mxu0 0.0
          %10204 = vmatprep.mubr.f32.mxu0 0.0
          %10205 = vmatmul.mubr.f32.gmra.mrb[0].mxu0 %v10107
          %v10206 = vpop.f32.mrb[0].mxu0
          %v10207 = vadd.f32 0.0, %v10206
          %v10208 = vpop.f32.mrb[0].mxu0
          %10209 = vdwg.mxu0
          %10210 = vmatprep.subr.mxu0 0.0
          %10211 = vmatpush1.msra.mxu0 %v10108
          %10212 = vmatprep.subr.mxu0 0.0
          %10213 = vmatpush1.msra.mxu0 %v10109
          %10214 = vmatprep.subr.mxu0 0.0
          %10215 = vmatpush1.msra.mxu0 %v10110
          %10216 = vmatprep.subr.mxu0 0.0
          %10217 = vmatpush1.msra.mxu0 %v10111
          %10218 = vmatprep.subr.mxu0 0.0
          %10219 = vmatpush1.msra.mxu0 %v10112
          %10220 = vmatprep.subr.mxu0 0.0
          %10221 = vmatpush1.msra.mxu0 %v10113
          %10222 = vmatprep.subr.mxu0 0.0
          %10223 = vmatpush1.msra.mxu0 %v10114
          %10224 = vmatprep.subr.mxu0 0.0
          %10225 = vmatpush1.msra.mxu0 %v10115
          %10226 = vmatprep.subr.mxu0 0.0
          %10227 = vmatpush1.msra.mxu0 %v10116
          %10228 = vmatprep.subr.mxu0 0.0
          %10229 = vmatpush1.msra.mxu0 %v10117
          %10230 = vmatprep.subr.mxu0 0.0
          %10231 = vmatpush1.msra.mxu0 %v10118
          %10232 = vmatprep.subr.mxu0 0.0
          %10233 = vmatpush1.msra.mxu0 %v10119
          %10234 = vmatprep.subr.mxu0 0.0
          %10235 = vmatpush1.msra.mxu0 %v10120
          %10236 = vmatprep.subr.mxu0 0.0
          %10237 = vmatpush1.msra.mxu0 %v10121
          %10238 = vmatprep.subr.mxu0 0.0
          %10239 = vmatpush1.msra.mxu0 %v10122
          %10240 = vmatprep.subr.mxu0 0.0
          %10241 = vmatpush1.msra.mxu0 %v10123
          %10242 = vmatprep.subr.mxu0 0.0
          %10243 = vmatpush1.msra.mxu0 0.0
          %10244 = vmatprep.subr.mxu0 0.0
          %10245 = vmatpush1.msra.mxu0 0.0
          %10246 = vmatprep.subr.mxu0 0.0
          %10247 = vmatpush1.msra.mxu0 0.0
          %10248 = vmatprep.subr.mxu0 0.0
          %10249 = vmatpush1.msra.mxu0 0.0
          %10250 = vmatprep.subr.mxu0 0.0
          %10251 = vmatpush1.msra.mxu0 0.0
          %10252 = vmatprep.subr.mxu0 0.0
          %10253 = vmatpush1.msra.mxu0 0.0
          %10254 = vmatprep.subr.mxu0 0.0
          %10255 = vmatpush1.msra.mxu0 0.0
          %10256 = vmatprep.subr.mxu0 0.0
          %10257 = vmatpush1.msra.mxu0 0.0
          %10258 = vmatprep.subr.mxu0 0.0
          %10259 = vmatpush1.msra.mxu0 0.0
          %10260 = vmatprep.subr.mxu0 0.0
          %10261 = vmatpush1.msra.mxu0 0.0
          %10262 = vmatprep.subr.mxu0 0.0
          %10263 = vmatpush1.msra.mxu0 0.0
          %10264 = vmatprep.subr.mxu0 0.0
          %10265 = vmatpush1.msra.mxu0 0.0
          %10266 = vmatprep.subr.mxu0 0.0
          %10267 = vmatpush1.msra.mxu0 0.0
          %10268 = vmatprep.subr.mxu0 0.0
          %10269 = vmatpush1.msra.mxu0 0.0
          %10270 = vmatprep.subr.mxu0 0.0
          %10271 = vmatpush1.msra.mxu0 0.0
          %10272 = vmatprep.subr.mxu0 0.0
          %10273 = vmatpush1.msra.mxu0 0.0
          %10274 = vmatprep.mubr.f32.mxu0 0.0
          %10275 = vmatmul.mubr.f32.gmra.mrb[0].mxu0 %v9329
          %v10276 = vpop.f32.mrb[0].mxu0
          %v10277 = vadd.f32 %v10207, %v10276
          %v10278 = vpop.f32.mrb[0].mxu0
          %10279 = vdwg.mxu0
          %v10280 = vld [vmem:[#allocation15] sm:$0x1]
          %v10282 = vlaneseq
          %v10283 = vshrl.u32 %v10282, 7
          %v10284 = vsub.s32 0, %v10283
          %v10285 = vrot.slane %v10280, %v10284
          %v10287 = vadd.f32 %v10277, %v10285
          %vm10288 = vcmp.gt.f32.partialorder %v10287, 0.0
          %v10289 = vmul.f32 %v10287, 0.01
          %v10290 = vsel %vm10288, %v10287, %v10289
          %v10291 = vld [vmem:[%s14] sm:$0xff]
          %v10292 = vld [vmem:[%s14 + $0x8] sm:$0xff]
          %v10293 = vld [vmem:[%s14 + $0x10] sm:$0xff]
          %v10294 = vld [vmem:[%s14 + $0x18] sm:$0xff]
          %v10295 = vld [vmem:[%s14 + $0x20] sm:$0xff]
          %v10296 = vld [vmem:[%s14 + $0x28] sm:$0xff]
          %v10297 = vld [vmem:[%s14 + $0x30] sm:$0xff]
          %v10298 = vld [vmem:[%s14 + $0x38] sm:$0xff]
          %v10299 = vld [vmem:[%s14 + $0x40] sm:$0xff]
          %v10300 = vld [vmem:[%s14 + $0x48] sm:$0xff]
          %v10301 = vld [vmem:[%s14 + $0x50] sm:$0xff]
          %v10302 = vld [vmem:[%s14 + $0x58] sm:$0xff]
          %v10303 = vld [vmem:[%s14 + $0x60] sm:$0xff]
          %v10304 = vld [vmem:[%s14 + $0x68] sm:$0xff]
          %v10305 = vld [vmem:[%s14 + $0x70] sm:$0xff]
          %v10306 = vld [vmem:[%s14 + $0x78] sm:$0xff]
          %v10307 = vld [vmem:[#allocation17] sm:$0x1]
          %v10309 = vlaneseq
          %v10310 = vshrl.u32 %v10309, 7
          %v10311 = vsub.s32 0, %v10310
          %v10312 = vrot.slane %v10307, %v10311
          %10314 = vmatprep.subr.mxu0 0.0
          %10315 = vmatpush1.msra.mxu0 %v10291
          %10316 = vmatprep.subr.mxu0 0.0
          %10317 = vmatpush1.msra.mxu0 %v10292
          %10318 = vmatprep.subr.mxu0 0.0
          %10319 = vmatpush1.msra.mxu0 %v10293
          %10320 = vmatprep.subr.mxu0 0.0
          %10321 = vmatpush1.msra.mxu0 %v10294
          %10322 = vmatprep.subr.mxu0 0.0
          %10323 = vmatpush1.msra.mxu0 %v10295
          %10324 = vmatprep.subr.mxu0 0.0
          %10325 = vmatpush1.msra.mxu0 %v10296
          %10326 = vmatprep.subr.mxu0 0.0
          %10327 = vmatpush1.msra.mxu0 %v10297
          %10328 = vmatprep.subr.mxu0 0.0
          %10329 = vmatpush1.msra.mxu0 %v10298
          %10330 = vmatprep.subr.mxu0 0.0
          %10331 = vmatpush1.msra.mxu0 %v10299
          %10332 = vmatprep.subr.mxu0 0.0
          %10333 = vmatpush1.msra.mxu0 %v10300
          %10334 = vmatprep.subr.mxu0 0.0
          %10335 = vmatpush1.msra.mxu0 %v10301
          %10336 = vmatprep.subr.mxu0 0.0
          %10337 = vmatpush1.msra.mxu0 %v10302
          %10338 = vmatprep.subr.mxu0 0.0
          %10339 = vmatpush1.msra.mxu0 %v10303
          %10340 = vmatprep.subr.mxu0 0.0
          %10341 = vmatpush1.msra.mxu0 %v10304
          %10342 = vmatprep.subr.mxu0 0.0
          %10343 = vmatpush1.msra.mxu0 %v10305
          %10344 = vmatprep.subr.mxu0 0.0
          %10345 = vmatpush1.msra.mxu0 %v10306
          %10346 = vmatprep.subr.mxu0 0.0
          %10347 = vmatpush1.msra.mxu0 0.0
          %10348 = vmatprep.subr.mxu0 0.0
          %10349 = vmatpush1.msra.mxu0 0.0
          %10350 = vmatprep.subr.mxu0 0.0
          %10351 = vmatpush1.msra.mxu0 0.0
          %10352 = vmatprep.subr.mxu0 0.0
          %10353 = vmatpush1.msra.mxu0 0.0
          %10354 = vmatprep.subr.mxu0 0.0
          %10355 = vmatpush1.msra.mxu0 0.0
          %10356 = vmatprep.subr.mxu0 0.0
          %10357 = vmatpush1.msra.mxu0 0.0
          %10358 = vmatprep.subr.mxu0 0.0
          %10359 = vmatpush1.msra.mxu0 0.0
          %10360 = vmatprep.subr.mxu0 0.0
          %10361 = vmatpush1.msra.mxu0 0.0
          %10362 = vmatprep.subr.mxu0 0.0
          %10363 = vmatpush1.msra.mxu0 0.0
          %10364 = vmatprep.subr.mxu0 0.0
          %10365 = vmatpush1.msra.mxu0 0.0
          %10366 = vmatprep.subr.mxu0 0.0
          %10367 = vmatpush1.msra.mxu0 0.0
          %10368 = vmatprep.subr.mxu0 0.0
          %10369 = vmatpush1.msra.mxu0 0.0
          %10370 = vmatprep.subr.mxu0 0.0
          %10371 = vmatpush1.msra.mxu0 0.0
          %10372 = vmatprep.subr.mxu0 0.0
          %10373 = vmatpush1.msra.mxu0 0.0
          %10374 = vmatprep.subr.mxu0 0.0
          %10375 = vmatpush1.msra.mxu0 0.0
          %10376 = vmatprep.subr.mxu0 0.0
          %10377 = vmatpush1.msra.mxu0 0.0
          %10378 = vmatprep.mubr.f32.mxu0 0.0
          %10379 = vmatmul.mubr.f32.gmra.mrb[0].mxu0 %v10290
          %v10380 = vpop.f32.mrb[0].mxu0
          %v10381 = vadd.f32 %v10312, %v10380
          %v10382 = vpop.f32.mrb[0].mxu0
          %10383 = vdwg.mxu0
          %vm10384 = vcmp.gt.f32.partialorder %v10381, 0.0
          %v10385 = vmul.f32 %v10381, 0.01
          %v10386 = vsel %vm10384, %v10381, %v10385
          %v10387 = vld [vmem:[%s16] sm:$0xff]
          %v10388 = vld [vmem:[%s16 + $0x8] sm:$0xff]
          %v10389 = vld [vmem:[%s16 + $0x10] sm:$0xff]
          %v10390 = vld [vmem:[%s16 + $0x18] sm:$0xff]
          %v10391 = vld [vmem:[%s16 + $0x20] sm:$0xff]
          %v10392 = vld [vmem:[%s16 + $0x28] sm:$0xff]
          %v10393 = vld [vmem:[%s16 + $0x30] sm:$0xff]
          %v10394 = vld [vmem:[%s16 + $0x38] sm:$0xff]
          %v10395 = vld [vmem:[#allocation3] sm:$0x1]
          %v10397 = vlaneseq
          %v10398 = vshrl.u32 %v10397, 7
          %v10399 = vsub.s32 0, %v10398
          %v10400 = vrot.slane %v10395, %v10399
          %vm10402 = vcmask 523264
          %v10404 = vsel %vm10402, %v10386, 0
          %10406 = vmatprep.subr.mxu0 0.0
          %10407 = vmatpush1.msra.mxu0 %v10387
          %10408 = vmatprep.subr.mxu0 0.0
          %10409 = vmatpush1.msra.mxu0 %v10388
          %10410 = vmatprep.subr.mxu0 0.0
          %10411 = vmatpush1.msra.mxu0 %v10389
          %10412 = vmatprep.subr.mxu0 0.0
          %10413 = vmatpush1.msra.mxu0 %v10390
          %10414 = vmatprep.subr.mxu0 0.0
          %10415 = vmatpush1.msra.mxu0 %v10391
          %10416 = vmatprep.subr.mxu0 0.0
          %10417 = vmatpush1.msra.mxu0 %v10392
          %10418 = vmatprep.subr.mxu0 0.0
          %10419 = vmatpush1.msra.mxu0 %v10393
          %10420 = vmatprep.subr.mxu0 0.0
          %10421 = vmatpush1.msra.mxu0 %v10394
          %10422 = vmatprep.subr.mxu0 0.0
          %10423 = vmatpush1.msra.mxu0 0.0
          %10424 = vmatprep.subr.mxu0 0.0
          %10425 = vmatpush1.msra.mxu0 0.0
          %10426 = vmatprep.subr.mxu0 0.0
          %10427 = vmatpush1.msra.mxu0 0.0
          %10428 = vmatprep.subr.mxu0 0.0
          %10429 = vmatpush1.msra.mxu0 0.0
          %10430 = vmatprep.subr.mxu0 0.0
          %10431 = vmatpush1.msra.mxu0 0.0
          %10432 = vmatprep.subr.mxu0 0.0
          %10433 = vmatpush1.msra.mxu0 0.0
          %10434 = vmatprep.subr.mxu0 0.0
          %10435 = vmatpush1.msra.mxu0 0.0
          %10436 = vmatprep.subr.mxu0 0.0
          %10437 = vmatpush1.msra.mxu0 0.0
          %10438 = vmatprep.subr.mxu0 0.0
          %10439 = vmatpush1.msra.mxu0 0.0
          %10440 = vmatprep.subr.mxu0 0.0
          %10441 = vmatpush1.msra.mxu0 0.0
          %10442 = vmatprep.subr.mxu0 0.0
          %10443 = vmatpush1.msra.mxu0 0.0
          %10444 = vmatprep.subr.mxu0 0.0
          %10445 = vmatpush1.msra.mxu0 0.0
          %10446 = vmatprep.subr.mxu0 0.0
          %10447 = vmatpush1.msra.mxu0 0.0
          %10448 = vmatprep.subr.mxu0 0.0
          %10449 = vmatpush1.msra.mxu0 0.0
          %10450 = vmatprep.subr.mxu0 0.0
          %10451 = vmatpush1.msra.mxu0 0.0
          %10452 = vmatprep.subr.mxu0 0.0
          %10453 = vmatpush1.msra.mxu0 0.0
          %10454 = vmatprep.subr.mxu0 0.0
          %10455 = vmatpush1.msra.mxu0 0.0
          %10456 = vmatprep.subr.mxu0 0.0
          %10457 = vmatpush1.msra.mxu0 0.0
          %10458 = vmatprep.subr.mxu0 0.0
          %10459 = vmatpush1.msra.mxu0 0.0
          %10460 = vmatprep.subr.mxu0 0.0
          %10461 = vmatpush1.msra.mxu0 0.0
          %10462 = vmatprep.subr.mxu0 0.0
          %10463 = vmatpush1.msra.mxu0 0.0
          %10464 = vmatprep.subr.mxu0 0.0
          %10465 = vmatpush1.msra.mxu0 0.0
          %10466 = vmatprep.subr.mxu0 0.0
          %10467 = vmatpush1.msra.mxu0 0.0
          %10468 = vmatprep.subr.mxu0 0.0
          %10469 = vmatpush1.msra.mxu0 0.0
          %10470 = vmatprep.mubr.f32.mxu0 0.0
          %10471 = vmatmul.mubr.f32.gmra.mrb[0].mxu0 %v10404
          %v10472 = vpop.f32.mrb[0].mxu0
          %v10473 = vadd.f32 %v10400, %v10472
          %v10474 = vpop.f32.mrb[0].mxu0
          %10475 = vdwg.mxu0
          %vm10476 = vcmask 1024
          %10477 = vst.msk [vmem:[%s18] sm:$0x3] %vm10476, %v10473
        $region136: #{modified_pna_net.1} parent=91 // pred_fallthru
          _
        // Predicated region
        $region137: #{modified_pna_net.1} parent=91 // pred_check
          %p10478 = pneg %p465
        $region138: #{modified_pna_net.1} parent=91 // pred_check_branch
          %10480 = sbr.rel (%p10478) target = $region140
        $region139: #{modified_pna_net.1} parent=91 // pred_region
          _
        $region140: #{modified_pna_net.1} parent=91 // pred_fallthru
          _
        // Predicated region
        $region141: #{modified_pna_net.1} parent=91 // pred_check
          %p10481 = pneg %p465
        $region142: #{modified_pna_net.1} parent=91 // pred_check_branch
          %10483 = sbr.rel (%p10481) target = $region144
        $region143: #{modified_pna_net.1} parent=91 // pred_region
          _
        $region144: #{modified_pna_net.1} parent=91 // pred_fallthru
          _
      $region92: #{modified_pna_net.1} parent=5 // pred_fallthru
        _
      %p10484 = scmp.le.s32.totalorder 2, %s39
      // Predicated region
      $region145: #{modified_pna_net.1} parent=5 // pred_check
        %p10485 = pneg %p10484
      $region146: #{modified_pna_net.1} parent=5 // pred_check_branch
        %10487 = sbr.rel (%p10485) target = $region148
      $region147: #{modified_pna_net.1} parent=5 // pred_region
        %s10488 = ssub.s32 %s39, 2
      $region148: #{modified_pna_net.1} parent=5 // pred_fallthru
        _
    $region6: #{modified_pna_net.1} parent=1 // loop_footer
      %s43 = sadd.s32 1, %s39
    $region7: #{modified_pna_net.1} parent=1 // loop_footer_branch
      %38 = sbr.rel target = $region3
    $region8: #{modified_pna_net.1} parent=1 // loop_exit
      _
    %10489 = vsyncpa [#allocation5], 1
    %s10490 = scalar_lea.sflag [#allocation5], 1
    %10491 = vsyncpa %s10490, 1
    %10492 = vsyncpa [#allocation7], 1
    %s10493 = scalar_lea.sflag [#allocation7], 1
    %10494 = vsyncpa %s10493, 1
    %10495 = vsyncpa [#allocation10], 1
    %s10496 = scalar_lea.sflag [#allocation10], 1
    %10497 = vsyncpa %s10496, 1
    %10498 = vsyncpa [#allocation13], 1
    %s10499 = scalar_lea.sflag [#allocation13], 1
    %10500 = vsyncpa %s10499, 1
    %10501 = vsyncpa [#allocation16], 1

</llo_original>
